<compile_context>
chip_gen: v5e
topology: v5e:2x2
jax: 0.10.0
libtpu: 0.0.40
codegen_flags: <defaults>
</compile_context>

<pallas_src>
import math
import jax
import jax.numpy as jnp
from jax.experimental import pallas as pl
from jax.experimental.pallas import tpu as pltpu

# ----------------------------- hyper-parameters ------------------------------
HID_DIM = 128
N_HEADS = 4
HEAD_DIM = HID_DIM // N_HEADS
PF_DIM = 256
INPUT_DIM = 64      # src vocab
OUTPUT_DIM = 64     # trg vocab
OUT_PAD = 128       # lane-dense padded width for fc_out / style_labeler outputs
MAX_LEN = 16
N_ENC_LAYERS = 1
N_DEC_LAYERS = 1
SRC_PAD_IDX = 0
TRG_PAD_IDX = 0
LN_EPS = 1e-5       # PyTorch nn.LayerNorm default
INV_SCALE = 1.0 / math.sqrt(HEAD_DIM)
NEG_INF = -1e10


# --------------------------- in-kernel helper math ----------------------------
def _bf(x):
    return x.astype(jnp.bfloat16)


def _ln(x, g, b):
    """LayerNorm over the last (lane) axis; residual add done by the caller."""
    mu = jnp.mean(x, axis=-1, keepdims=True)
    var = jnp.mean(jnp.square(x - mu), axis=-1, keepdims=True)
    return (x - mu) * jax.lax.rsqrt(var + LN_EPS) * g + b


def _mha_heads(q, k, v, bias, exact_softmax, collect_attn):
    """Per-sample multi-head attention core (Q already scaled by 1/sqrt(d)).

    q: [Lq, HID], k/v: [Lk, HID], bias: additive mask [1 or Lq, Lk].
    Returns (ctx_full [Lq, HID] — heads concatenated along lanes,
             attn_lane [Lq, N_HEADS*Lk] or None).
    The O-projection is done by the caller as ONE K=128 matmul on ctx_full.
    """
    ctxs, attns = [], []
    for h in range(N_HEADS):
        lo = h * HEAD_DIM
        qh = q[:, lo:lo + HEAD_DIM]
        kh = k[:, lo:lo + HEAD_DIM]
        vh = v[:, lo:lo + HEAD_DIM]
        energy = jnp.dot(qh, kh.T, preferred_element_type=jnp.float32) + bias
        emax = jnp.max(energy, axis=-1, keepdims=True)
        p = jnp.exp(energy - emax)
        denom = jnp.sum(p, axis=-1, keepdims=True)
        if exact_softmax:
            attn = p / denom                     # exact: these weights are returned
        else:
            attn = p * pl.reciprocal(denom, approx=True)
        ctxs.append(jnp.dot(attn, vh, preferred_element_type=jnp.float32))
        if collect_attn:
            attns.append(attn)
    ctx_full = jnp.concatenate(ctxs, axis=-1)                    # [Lq, HID]
    attn_lane = jnp.concatenate(attns, axis=-1) if collect_attn else None
    return ctx_full, attn_lane


def _enc_layer_body(B, Ls, x, spad,
                    wqkv, bqkv, wo, bo, g1, b1, w1, c1, w2, c2, g2, b2):
    """One encoder layer on a [B*Ls, HID] slab; spad: [B, Ls] pad flags (1 keep)."""
    qkv = jnp.dot(_bf(x), wqkv, preferred_element_type=jnp.float32) + bqkv
    ctxs = []
    for b in range(B):
        rows = slice(b * Ls, (b + 1) * Ls)
        bias = jnp.where(spad[b:b + 1, :] > 0.5, 0.0, NEG_INF)      # [1, Ls]
        ctx_b, _ = _mha_heads(qkv[rows, :HID_DIM],
                              qkv[rows, HID_DIM:2 * HID_DIM],
                              qkv[rows, 2 * HID_DIM:],
                              bias, exact_softmax=False, collect_attn=False)
        ctxs.append(ctx_b)
    ctx = jnp.concatenate(ctxs, axis=0)                             # [B*Ls, HID]
    sa = jnp.dot(_bf(ctx), wo, preferred_element_type=jnp.float32)  # one K=128 matmul
    y = _ln(x + sa + bo, g1, b1)
    ff = jnp.maximum(jnp.dot(_bf(y), w1,
                             preferred_element_type=jnp.float32) + c1, 0.0)
    ff = jnp.dot(_bf(ff), w2, preferred_element_type=jnp.float32) + c2
    return _ln(y + ff, g2, b2)


_ENC_W_KEYS = ["wqkv", "bqkv", "wo", "bo", "g1", "b1",
               "w1", "c1", "w2", "c2", "g2", "b2"]


# ------------------- encoder layer kernels (single grid step) ------------------
def encoder_plain_layer(x, spad, lp):
    """Non-final encoder layer (used only when N_ENC_LAYERS > 1)."""
    B, Ls = spad.shape

    def kern(x_ref, spad_ref, *refs):
        o_ref = refs[-1]
        w = [r[...] for r in refs[:-1]]
        o_ref[...] = _enc_layer_body(B, Ls, x_ref[...], spad_ref[...], *w)

    return pl.pallas_call(
        kern,
        out_shape=jax.ShapeDtypeStruct((B * Ls, HID_DIM), jnp.float32),
    )(x, spad, *[lp[k] for k in _ENC_W_KEYS])


def encoder_final_layer(x, spad, lp, pp):
    """Final encoder layer fused with style/content projections, style labeler,
    and the enc_out_h / enc_out_nh residual adds (returns the stacked pair)."""
    B, Ls = spad.shape

    def kern(x_ref, spad_ref, *refs):
        wrefs = refs[:12]
        wp_ref, bp_ref, wl_ref, bl_ref = refs[12:16]
        encpair_ref, proj_ref, pred_ref = refs[16], refs[17], refs[18]

        enc = _enc_layer_body(B, Ls, x_ref[...], spad_ref[...],
                              *[r[...] for r in wrefs])             # [B*Ls, HID]
        # fused style_proj_h | style_proj_nh | content_proj  (one 128x384 matmul)
        proj = jnp.dot(_bf(enc), wp_ref[...],
                       preferred_element_type=jnp.float32) + bp_ref[...]
        proj_ref[...] = proj
        style_h = proj[:, :HID_DIM]
        style_nh = proj[:, HID_DIM:2 * HID_DIM]
        content = proj[:, 2 * HID_DIM:]
        encpair_ref[0] = style_h + content                          # enc_out_h
        encpair_ref[1] = style_nh + content                         # enc_out_nh
        # style labeler on the sequence-mean of style_h (tile-friendly reshape)
        mean_sty = jnp.mean(style_h.reshape(B, Ls, HID_DIM), axis=1)   # [B, HID]
        pred_ref[...] = jnp.dot(_bf(mean_sty), wl_ref[...],
                                preferred_element_type=jnp.float32) + bl_ref[...]

    return pl.pallas_call(
        kern,
        out_shape=(jax.ShapeDtypeStruct((2, B * Ls, HID_DIM), jnp.float32),
                   jax.ShapeDtypeStruct((B * Ls, 3 * HID_DIM), jnp.float32),
                   jax.ShapeDtypeStruct((B, OUT_PAD), jnp.float32)),
    )(x, spad, *[lp[k] for k in _ENC_W_KEYS],
      pp["w_proj"], pp["b_proj"], pp["w_lab"], pp["b_lab"])


# ----------------- fused decoder layer (both decoders, grid=(ND,)) -------------
_DEC_W_KEYS = ["wqkv", "bqkv", "wos", "bos", "g1", "b1",
               "wqc", "bqc", "wkv", "bkv", "woc", "boc", "g2", "b2",
               "w1", "c1", "w2", "c2", "g3", "b3"]


def decoder_layer_pair(x, enc_pair, spad, tpad, lp, wout, bout):
    """One decoder layer for BOTH decoders (humor / non-humor) in one call.

    x: [2, B*Lt, HID], enc_pair: [2, B*Ls, HID], spad: [B, Ls], tpad: [B, Lt].
    Returns (x_out [2,B*Lt,HID], logits_pad [2,B*Lt,OUT_PAD],
             attn_lane [2,B*Lt,N_HEADS*Ls]).
    """
    ND = x.shape[0]
    B, Lt = tpad.shape
    Ls = spad.shape[1]
    nW = len(_DEC_W_KEYS)

    def kern(x_ref, enc_ref, spad_ref, tpad_ref, *refs):
        wrefs = refs[:nW]
        wout_ref, bout_ref = refs[nW], refs[nW + 1]
        xo_ref, logits_ref, attn_ref = refs[nW + 2], refs[nW + 3], refs[nW + 4]
        (wqkv, bqkv, wos, bos, g1, b1,
         wqc, bqc, wkv, bkv, woc, boc, g2, b2,
         w1, c1, w2, c2, g3, b3) = [r[0] for r in wrefs]

        xv = x_ref[0]                                    # [B*Lt, HID]
        enc = enc_ref[0]                                 # [B*Ls, HID]
        spad = spad_ref[...]                             # [B, Ls]
        tpad = tpad_ref[...]                             # [B, Lt]

        # --- masked self-attention (fused QKV; causal mask built in-kernel) ---
        qkv = jnp.dot(_bf(xv), wqkv, preferred_element_type=jnp.float32) + bqkv
        row = jax.lax.broadcasted_iota(jnp.int32, (Lt, Lt), 0)
        col = jax.lax.broadcasted_iota(jnp.int32, (Lt, Lt), 1)
        causal = row >= col
        ctxs = []
        for b in range(B):
            rows = slice(b * Lt, (b + 1) * Lt)
            keep = jnp.logical_and(causal, tpad[b:b + 1, :] > 0.5)  # [Lt, Lt]
            bias = jnp.where(keep, 0.0, NEG_INF)
            ctx_b, _ = _mha_heads(qkv[rows, :HID_DIM],
                                  qkv[rows, HID_DIM:2 * HID_DIM],
                                  qkv[rows, 2 * HID_DIM:],
                                  bias, exact_softmax=False, collect_attn=False)
            ctxs.append(ctx_b)
        ctx = jnp.concatenate(ctxs, axis=0)
        sa = jnp.dot(_bf(ctx), wos, preferred_element_type=jnp.float32)
        y = _ln(xv + sa + bos, g1, b1)

        # --- cross-attention (fused K/V; exact softmax — weights are returned) ---
        qc = jnp.dot(_bf(y), wqc, preferred_element_type=jnp.float32) + bqc
        kv = jnp.dot(_bf(enc), wkv, preferred_element_type=jnp.float32) + bkv
        ctxs, attns = [], []
        for b in range(B):
            qrows = slice(b * Lt, (b + 1) * Lt)
            krows = slice(b * Ls, (b + 1) * Ls)
            bias = jnp.where(spad[b:b + 1, :] > 0.5, 0.0, NEG_INF)  # [1, Ls]
            ctx_b, attn_b = _mha_heads(qc[qrows], kv[krows, :HID_DIM],
                                       kv[krows, HID_DIM:],
                                       bias, exact_softmax=True, collect_attn=True)
            ctxs.append(ctx_b)
            attns.append(attn_b)
        ctx = jnp.concatenate(ctxs, axis=0)
        ca = jnp.dot(_bf(ctx), woc, preferred_element_type=jnp.float32)
        z = _ln(y + ca + boc, g2, b2)

        # --- position-wise feed-forward + residual + LN ---
        ff = jnp.maximum(jnp.dot(_bf(z), w1,
                                 preferred_element_type=jnp.float32) + c1, 0.0)
        ff = jnp.dot(_bf(ff), w2, preferred_element_type=jnp.float32) + c2
        xo = _ln(z + ff, g3, b3)
        xo_ref[0] = xo

        # --- lane-dense fc_out (vocab padded to OUT_PAD) + cross-attn weights ---
        logits_ref[0] = jnp.dot(_bf(xo), wout_ref[0],
                                preferred_element_type=jnp.float32) + bout_ref[0]
        attn_ref[0] = jnp.concatenate(attns, axis=0)     # [B*Lt, N_HEADS*Ls]

    w_args = [lp[k] for k in _DEC_W_KEYS] + [wout, bout]
    w_specs = [pl.BlockSpec((1,) + w.shape[1:], lambda d: (d, 0, 0))
               for w in w_args]
    return pl.pallas_call(
        kern,
        out_shape=(
            jax.ShapeDtypeStruct((ND, B * Lt, HID_DIM), jnp.float32),
            jax.ShapeDtypeStruct((ND, B * Lt, OUT_PAD), jnp.float32),
            jax.ShapeDtypeStruct((ND, B * Lt, N_HEADS * Ls), jnp.float32),
        ),
        grid=(ND,),
        in_specs=[
            pl.BlockSpec((1, B * Lt, HID_DIM), lambda d: (d, 0, 0)),
            pl.BlockSpec((1, B * Ls, HID_DIM), lambda d: (d, 0, 0)),
            pl.BlockSpec((B, Ls), lambda d: (0, 0)),
            pl.BlockSpec((B, Lt), lambda d: (0, 0)),
        ] + w_specs,
        out_specs=(
            pl.BlockSpec((1, B * Lt, HID_DIM), lambda d: (d, 0, 0)),
            pl.BlockSpec((1, B * Lt, OUT_PAD), lambda d: (d, 0, 0)),
            pl.BlockSpec((1, B * Lt, N_HEADS * Ls), lambda d: (d, 0, 0)),
        ),
        compiler_params=pltpu.CompilerParams(dimension_semantics=("parallel",)),
    )(x, enc_pair, spad, tpad, *w_args)


# --------------------------- encoder / decoder stacks --------------------------
def encoder_forward(eparams, pparams, src, src_pad):
    B, Ls = src.shape
    tok = eparams["tok_emb"][src]                        # [B, Ls, HID] (glue gather)
    pos = eparams["pos_emb"][:Ls]                        # [Ls, HID]
    x = (tok * math.sqrt(HID_DIM) + pos[None]).reshape(B * Ls, HID_DIM)
    for lp in eparams["layers"][:-1]:
        x = encoder_plain_layer(x, src_pad, lp)
    return encoder_final_layer(x, src_pad, eparams["layers"][-1], pparams)


def decoder_pair_forward(dparams, trg, enc_pair, src_pad, trg_pad):
    B, Lt = trg.shape
    Ls = src_pad.shape[1]
    tok = dparams["tok_emb"][:, trg]                     # [2, B, Lt, HID]
    pos = dparams["pos_emb"][:, :Lt]                     # [2, Lt, HID]
    x = (tok * math.sqrt(HID_DIM) + pos[:, None, :, :]).reshape(2, B * Lt, HID_DIM)
    logits_pad = attn_lane = None
    for lp in dparams["layers"]:
        x, logits_pad, attn_lane = decoder_layer_pair(
            x, enc_pair, src_pad, trg_pad, lp, dparams["wout"], dparams["bout"])
    attn = attn_lane.reshape(2, B, Lt, N_HEADS, Ls).transpose(0, 1, 3, 2, 4)
    logits = logits_pad.reshape(2, B, Lt, OUT_PAD)[..., :OUTPUT_DIM]
    return logits, attn


# ------------------------------- Seq2Seq.forward ------------------------------
def seq2seq_forward(params, src, trg):
    B, Ls = src.shape
    # make_src_mask / make_trg_mask reduced to pad flags; masks are built in-kernel
    src_pad = (src != SRC_PAD_IDX).astype(jnp.float32)   # [B, Ls]
    trg_pad = (trg != TRG_PAD_IDX).astype(jnp.float32)   # [B, Lt]

    enc_pair, proj, pred = encoder_forward(params["encoder"], params["proj"],
                                           src, src_pad)
    style_h = proj[:, :HID_DIM].reshape(B, Ls, HID_DIM)
    style_nh = proj[:, HID_DIM:2 * HID_DIM].reshape(B, Ls, HID_DIM)
    content = proj[:, 2 * HID_DIM:].reshape(B, Ls, HID_DIM)
    pred_style = pred[:, :2]

    logits, attn = decoder_pair_forward(params["decoders"], trg, enc_pair,
                                        src_pad, trg_pad)
    output_h, output_n = logits[0], logits[1]
    attention_h, attention_n = attn[0], attn[1]
    mi_alpha = 0.0
    return (output_h, attention_h, output_n, attention_n,
            style_h, style_nh, content, pred_style, mi_alpha)


# --------------------------- deterministic parameters -------------------------
def init_params(key):
    keys = iter(jax.random.split(key, 128))

    def w(i, o):
        return jax.random.normal(next(keys), (i, o), jnp.float32) * 0.02

    def bfw(x):
        return x.astype(jnp.bfloat16)        # matmul weights stored as bf16

    def b(o):
        return jnp.zeros((1, o), jnp.float32)

    def ones(o):
        return jnp.ones((1, o), jnp.float32)

    def emb(n, d):
        return jax.random.normal(next(keys), (n, d), jnp.float32) * 0.02

    def enc_layer():
        # 1/sqrt(head_dim) folded into the Q columns
        wqkv = jnp.concatenate([w(HID_DIM, HID_DIM) * INV_SCALE,
                                w(HID_DIM, HID_DIM), w(HID_DIM, HID_DIM)], axis=1)
        bqkv = jnp.zeros((1, 3 * HID_DIM), jnp.float32)
        bqkv = bqkv.at[:, :HID_DIM].multiply(INV_SCALE)
        return {"wqkv": bfw(wqkv), "bqkv": bqkv,
                "wo": bfw(w(HID_DIM, HID_DIM)), "bo": b(HID_DIM),
                "g1": ones(HID_DIM), "b1": b(HID_DIM),
                "w1": bfw(w(HID_DIM, PF_DIM)), "c1": b(PF_DIM),
                "w2": bfw(w(PF_DIM, HID_DIM)), "c2": b(HID_DIM),
                "g2": ones(HID_DIM), "b2": b(HID_DIM)}

    def dec_layer():
        wqkv = jnp.concatenate([w(HID_DIM, HID_DIM) * INV_SCALE,
                                w(HID_DIM, HID_DIM), w(HID_DIM, HID_DIM)], axis=1)
        bqkv = jnp.zeros((1, 3 * HID_DIM), jnp.float32)
        bqkv = bqkv.at[:, :HID_DIM].multiply(INV_SCALE)
        wkv = jnp.concatenate([w(HID_DIM, HID_DIM), w(HID_DIM, HID_DIM)], axis=1)
        return {"wqkv": bfw(wqkv), "bqkv": bqkv,
                "wos": bfw(w(HID_DIM, HID_DIM)), "bos": b(HID_DIM),
                "g1": ones(HID_DIM), "b1": b(HID_DIM),
                "wqc": bfw(w(HID_DIM, HID_DIM) * INV_SCALE),
                "bqc": b(HID_DIM) * INV_SCALE,
                "wkv": bfw(wkv), "bkv": b(2 * HID_DIM),
                "woc": bfw(w(HID_DIM, HID_DIM)), "boc": b(HID_DIM),
                "g2": ones(HID_DIM), "b2": b(HID_DIM),
                "w1": bfw(w(HID_DIM, PF_DIM)), "c1": b(PF_DIM),
                "w2": bfw(w(PF_DIM, HID_DIM)), "c2": b(HID_DIM),
                "g3": ones(HID_DIM), "b3": b(HID_DIM)}

    def single_decoder():
        # fc_out padded to OUT_PAD lanes (real vocab columns 0:OUTPUT_DIM, rest 0)
        wout = jnp.zeros((HID_DIM, OUT_PAD), jnp.float32)
        wout = wout.at[:, :OUTPUT_DIM].set(w(HID_DIM, OUTPUT_DIM))
        return {"tok_emb": emb(OUTPUT_DIM, HID_DIM),
                "pos_emb": emb(MAX_LEN, HID_DIM),
                "layers": [dec_layer() for _ in range(N_DEC_LAYERS)],
                "wout": bfw(wout), "bout": jnp.zeros((1, OUT_PAD), jnp.float32)}

    encoder = {"tok_emb": emb(INPUT_DIM, HID_DIM),
               "pos_emb": emb(MAX_LEN, HID_DIM),
               "layers": [enc_layer() for _ in range(N_ENC_LAYERS)]}

    d_h, d_n = single_decoder(), single_decoder()
    stacked_layers = [{k: jnp.stack([lh[k], lnh[k]], axis=0) for k in lh}
                      for lh, lnh in zip(d_h["layers"], d_n["layers"])]
    decoders = {"tok_emb": jnp.stack([d_h["tok_emb"], d_n["tok_emb"]], axis=0),
                "pos_emb": jnp.stack([d_h["pos_emb"], d_n["pos_emb"]], axis=0),
                "layers": stacked_layers,
                "wout": jnp.stack([d_h["wout"], d_n["wout"]], axis=0),
                "bout": jnp.stack([d_h["bout"], d_n["bout"]], axis=0)}

    # fused style_proj_h | style_proj_nh | content_proj, plus padded style labeler
    w_proj = jnp.concatenate([w(HID_DIM, HID_DIM),
                              w(HID_DIM, HID_DIM),
                              w(HID_DIM, HID_DIM)], axis=1)     # [HID, 3*HID]
    b_proj = jnp.zeros((1, 3 * HID_DIM), jnp.float32)
    w_lab = jnp.zeros((HID_DIM, OUT_PAD), jnp.float32)
    w_lab = w_lab.at[:, :2].set(w(HID_DIM, 2))
    b_lab = jnp.zeros((1, OUT_PAD), jnp.float32)
    proj = {"w_proj": bfw(w_proj), "b_proj": b_proj,
            "w_lab": bfw(w_lab), "b_lab": b_lab}

    return {"encoder": encoder, "decoders": decoders, "proj": proj}


# ------------------------------------ main ------------------------------------
if __name__ == "__main__":
    key = jax.random.PRNGKey(0)
    pk, sk, tk = jax.random.split(key, 3)
    params = init_params(pk)

    B, Ls, Lt = 2, 8, 8
    src = jax.random.randint(sk, (B, Ls), 1, INPUT_DIM, dtype=jnp.int32)
    trg = jax.random.randint(tk, (B, Lt), 1, OUTPUT_DIM, dtype=jnp.int32)
    # introduce some padding so the masks are exercised
    src = src.at[:, -2:].set(SRC_PAD_IDX)
    trg = trg.at[:, -1:].set(TRG_PAD_IDX)

    fwd = jax.jit(seq2seq_forward)
    outs = fwd(params, src, trg)
    jax.block_until_ready(outs)

    (output_h, attention_h, output_n, attention_n,
     style_h, style_nh, content, pred_style, mi_alpha) = outs
    assert output_h.shape == (B, Lt, OUTPUT_DIM)
    assert attention_h.shape == (B, N_HEADS, Lt, Ls)
    assert output_n.shape == (B, Lt, OUTPUT_DIM)
    assert attention_n.shape == (B, N_HEADS, Lt, Ls)
    assert style_h.shape == (B, Ls, HID_DIM)
    assert style_nh.shape == (B, Ls, HID_DIM)
    assert content.shape == (B, Ls, HID_DIM)
    assert pred_style.shape == (B, 2)
    print("KERNEL_OK")
</pallas_src>

<mosaic_0001>
module attributes {stable_mosaic.version = 11 : i64} {
  func.func @kern(%arg0: memref<16x128xf32, #tpu.memory_space<vmem>>, %arg1: memref<2x8xf32, #tpu.memory_space<vmem>>, %arg2: memref<128x384xbf16, #tpu.memory_space<vmem>>, %arg3: memref<1x384xf32, #tpu.memory_space<vmem>>, %arg4: memref<128x128xbf16, #tpu.memory_space<vmem>>, %arg5: memref<1x128xf32, #tpu.memory_space<vmem>>, %arg6: memref<1x128xf32, #tpu.memory_space<vmem>>, %arg7: memref<1x128xf32, #tpu.memory_space<vmem>>, %arg8: memref<128x256xbf16, #tpu.memory_space<vmem>>, %arg9: memref<1x256xf32, #tpu.memory_space<vmem>>, %arg10: memref<256x128xbf16, #tpu.memory_space<vmem>>, %arg11: memref<1x128xf32, #tpu.memory_space<vmem>>, %arg12: memref<1x128xf32, #tpu.memory_space<vmem>>, %arg13: memref<1x128xf32, #tpu.memory_space<vmem>>, %arg14: memref<128x384xbf16, #tpu.memory_space<vmem>>, %arg15: memref<1x384xf32, #tpu.memory_space<vmem>>, %arg16: memref<128x128xbf16, #tpu.memory_space<vmem>>, %arg17: memref<1x128xf32, #tpu.memory_space<vmem>>, %arg18: memref<2x16x128xf32, #tpu.memory_space<vmem>>, %arg19: memref<16x384xf32, #tpu.memory_space<vmem>>, %arg20: memref<2x128xf32, #tpu.memory_space<vmem>>) attributes {dimension_semantics = [], scalar_prefetch = 0 : i64, scratch_operands = 0 : i64, tpu.core_type = #tpu.core_type<tc>} {
    %c0 = arith.constant 0 : index
    %c0_0 = arith.constant 0 : index
    %0 = vector.load %arg0[%c0, %c0_0] : memref<16x128xf32, #tpu.memory_space<vmem>>, vector<16x128xf32>
    %c0_1 = arith.constant 0 : index
    %c0_2 = arith.constant 0 : index
    %1 = vector.load %arg1[%c0_1, %c0_2] : memref<2x8xf32, #tpu.memory_space<vmem>>, vector<2x8xf32>
    %c0_3 = arith.constant 0 : index
    %c0_4 = arith.constant 0 : index
    %2 = vector.load %arg2[%c0_3, %c0_4] : memref<128x384xbf16, #tpu.memory_space<vmem>>, vector<128x384xbf16>
    %c0_5 = arith.constant 0 : index
    %c0_6 = arith.constant 0 : index
    %3 = vector.load %arg3[%c0_5, %c0_6] : memref<1x384xf32, #tpu.memory_space<vmem>>, vector<1x384xf32>
    %c0_7 = arith.constant 0 : index
    %c0_8 = arith.constant 0 : index
    %4 = vector.load %arg4[%c0_7, %c0_8] : memref<128x128xbf16, #tpu.memory_space<vmem>>, vector<128x128xbf16>
    %c0_9 = arith.constant 0 : index
    %c0_10 = arith.constant 0 : index
    %5 = vector.load %arg5[%c0_9, %c0_10] : memref<1x128xf32, #tpu.memory_space<vmem>>, vector<1x128xf32>
    %c0_11 = arith.constant 0 : index
    %c0_12 = arith.constant 0 : index
    %6 = vector.load %arg6[%c0_11, %c0_12] : memref<1x128xf32, #tpu.memory_space<vmem>>, vector<1x128xf32>
    %c0_13 = arith.constant 0 : index
    %c0_14 = arith.constant 0 : index
    %7 = vector.load %arg7[%c0_13, %c0_14] : memref<1x128xf32, #tpu.memory_space<vmem>>, vector<1x128xf32>
    %c0_15 = arith.constant 0 : index
    %c0_16 = arith.constant 0 : index
    %8 = vector.load %arg8[%c0_15, %c0_16] : memref<128x256xbf16, #tpu.memory_space<vmem>>, vector<128x256xbf16>
    %c0_17 = arith.constant 0 : index
    %c0_18 = arith.constant 0 : index
    %9 = vector.load %arg9[%c0_17, %c0_18] : memref<1x256xf32, #tpu.memory_space<vmem>>, vector<1x256xf32>
    %c0_19 = arith.constant 0 : index
    %c0_20 = arith.constant 0 : index
    %10 = vector.load %arg10[%c0_19, %c0_20] : memref<256x128xbf16, #tpu.memory_space<vmem>>, vector<256x128xbf16>
    %c0_21 = arith.constant 0 : index
    %c0_22 = arith.constant 0 : index
    %11 = vector.load %arg11[%c0_21, %c0_22] : memref<1x128xf32, #tpu.memory_space<vmem>>, vector<1x128xf32>
    %c0_23 = arith.constant 0 : index
    %c0_24 = arith.constant 0 : index
    %12 = vector.load %arg12[%c0_23, %c0_24] : memref<1x128xf32, #tpu.memory_space<vmem>>, vector<1x128xf32>
    %c0_25 = arith.constant 0 : index
    %c0_26 = arith.constant 0 : index
    %13 = vector.load %arg13[%c0_25, %c0_26] : memref<1x128xf32, #tpu.memory_space<vmem>>, vector<1x128xf32>
    %14 = arith.truncf %0 : vector<16x128xf32> to vector<16x128xbf16>
    %cst = arith.constant dense<0.000000e+00> : vector<16x384xf32>
    %15 = tpu.matmul %14, %2, %cst {dimension_numbers = #tpu.dot_dimension_numbers<[1], [0], [0], [1], [0, 0, 1, 1], [], []>} : vector<16x128xbf16>, vector<128x384xbf16>, vector<16x384xf32> -> vector<16x384xf32>
    %16 = vector.broadcast %3 : vector<1x384xf32> to vector<16x384xf32>
    %17 = arith.addf %15, %16 : vector<16x384xf32>
    %18 = vector.extract_strided_slice %1 {offsets = [0, 0], sizes = [1, 8], strides = [1, 1]} : vector<2x8xf32> to vector<1x8xf32>
    %cst_27 = arith.constant 5.000000e-01 : f32
    %19 = vector.broadcast %cst_27 : f32 to vector<1x8xf32>
    %20 = arith.cmpf ogt, %18, %19 : vector<1x8xf32>
    %cst_28 = arith.constant 0.000000e+00 : f32
    %cst_29 = arith.constant -1.000000e+10 : f32
    %21 = vector.broadcast %cst_28 : f32 to vector<1x8xf32>
    %22 = vector.broadcast %cst_29 : f32 to vector<1x8xf32>
    %23 = arith.select %20, %21, %22 : vector<1x8xi1>, vector<1x8xf32>
    %24 = vector.extract_strided_slice %17 {offsets = [0, 0], sizes = [8, 128], strides = [1, 1]} : vector<16x384xf32> to vector<8x128xf32>
    %25 = vector.extract_strided_slice %17 {offsets = [0, 128], sizes = [8, 128], strides = [1, 1]} : vector<16x384xf32> to vector<8x128xf32>
    %26 = vector.extract_strided_slice %17 {offsets = [0, 256], sizes = [8, 128], strides = [1, 1]} : vector<16x384xf32> to vector<8x128xf32>
    %27 = vector.extract_strided_slice %24 {offsets = [0, 0], sizes = [8, 32], strides = [1, 1]} : vector<8x128xf32> to vector<8x32xf32>
    %28 = vector.extract_strided_slice %25 {offsets = [0, 0], sizes = [8, 32], strides = [1, 1]} : vector<8x128xf32> to vector<8x32xf32>
    %29 = vector.extract_strided_slice %26 {offsets = [0, 0], sizes = [8, 32], strides = [1, 1]} : vector<8x128xf32> to vector<8x32xf32>
    %30 = tpu.transpose %28, [1, 0] : vector<8x32xf32> -> vector<32x8xf32>
    %cst_30 = arith.constant dense<0.000000e+00> : vector<8x8xf32>
    %31 = tpu.matmul %27, %30, %cst_30 {dimension_numbers = #tpu.dot_dimension_numbers<[1], [0], [0], [1], [0, 0, 1, 1], [], []>} : vector<8x32xf32>, vector<32x8xf32>, vector<8x8xf32> -> vector<8x8xf32>
    %32 = vector.broadcast %23 : vector<1x8xf32> to vector<8x8xf32>
    %33 = arith.addf %31, %32 : vector<8x8xf32>
    %cst_31 = arith.constant dense<0xFF800000> : vector<8xf32>
    %34 = vector.multi_reduction <maximumf>, %33, %cst_31 [1] : vector<8x8xf32> to vector<8xf32>
    %35 = vector.shape_cast %34 : vector<8xf32> to vector<8x1xf32>
    %36 = vector.broadcast %35 : vector<8x1xf32> to vector<8x8xf32>
    %37 = arith.subf %33, %36 : vector<8x8xf32>
    %38 = math.exp %37 : vector<8x8xf32>
    %cst_32 = arith.constant dense<0.000000e+00> : vector<8xf32>
    %39 = vector.multi_reduction <add>, %38, %cst_32 [1] : vector<8x8xf32> to vector<8xf32>
    %40 = vector.shape_cast %39 : vector<8xf32> to vector<8x1xf32>
    %41 = tpu.reciprocal %40 {approx = true} : vector<8x1xf32> -> vector<8x1xf32>
    %42 = vector.broadcast %41 : vector<8x1xf32> to vector<8x8xf32>
    %43 = arith.mulf %38, %42 : vector<8x8xf32>
    %cst_33 = arith.constant dense<0.000000e+00> : vector<8x32xf32>
    %44 = tpu.matmul %43, %29, %cst_33 {dimension_numbers = #tpu.dot_dimension_numbers<[1], [0], [0], [1], [0, 0, 1, 1], [], []>} : vector<8x8xf32>, vector<8x32xf32>, vector<8x32xf32> -> vector<8x32xf32>
    %45 = vector.extract_strided_slice %24 {offsets = [0, 32], sizes = [8, 32], strides = [1, 1]} : vector<8x128xf32> to vector<8x32xf32>
    %46 = vector.extract_strided_slice %25 {offsets = [0, 32], sizes = [8, 32], strides = [1, 1]} : vector<8x128xf32> to vector<8x32xf32>
    %47 = vector.extract_strided_slice %26 {offsets = [0, 32], sizes = [8, 32], strides = [1, 1]} : vector<8x128xf32> to vector<8x32xf32>
    %48 = tpu.transpose %46, [1, 0] : vector<8x32xf32> -> vector<32x8xf32>
    %cst_34 = arith.constant dense<0.000000e+00> : vector<8x8xf32>
    %49 = tpu.matmul %45, %48, %cst_34 {dimension_numbers = #tpu.dot_dimension_numbers<[1], [0], [0], [1], [0, 0, 1, 1], [], []>} : vector<8x32xf32>, vector<32x8xf32>, vector<8x8xf32> -> vector<8x8xf32>
    %50 = vector.broadcast %23 : vector<1x8xf32> to vector<8x8xf32>
    %51 = arith.addf %49, %50 : vector<8x8xf32>
    %cst_35 = arith.constant dense<0xFF800000> : vector<8xf32>
    %52 = vector.multi_reduction <maximumf>, %51, %cst_35 [1] : vector<8x8xf32> to vector<8xf32>
    %53 = vector.shape_cast %52 : vector<8xf32> to vector<8x1xf32>
    %54 = vector.broadcast %53 : vector<8x1xf32> to vector<8x8xf32>
    %55 = arith.subf %51, %54 : vector<8x8xf32>
    %56 = math.exp %55 : vector<8x8xf32>
    %cst_36 = arith.constant dense<0.000000e+00> : vector<8xf32>
    %57 = vector.multi_reduction <add>, %56, %cst_36 [1] : vector<8x8xf32> to vector<8xf32>
    %58 = vector.shape_cast %57 : vector<8xf32> to vector<8x1xf32>
    %59 = tpu.reciprocal %58 {approx = true} : vector<8x1xf32> -> vector<8x1xf32>
    %60 = vector.broadcast %59 : vector<8x1xf32> to vector<8x8xf32>
    %61 = arith.mulf %56, %60 : vector<8x8xf32>
    %cst_37 = arith.constant dense<0.000000e+00> : vector<8x32xf32>
    %62 = tpu.matmul %61, %47, %cst_37 {dimension_numbers = #tpu.dot_dimension_numbers<[1], [0], [0], [1], [0, 0, 1, 1], [], []>} : vector<8x8xf32>, vector<8x32xf32>, vector<8x32xf32> -> vector<8x32xf32>
    %63 = vector.extract_strided_slice %24 {offsets = [0, 64], sizes = [8, 32], strides = [1, 1]} : vector<8x128xf32> to vector<8x32xf32>
    %64 = vector.extract_strided_slice %25 {offsets = [0, 64], sizes = [8, 32], strides = [1, 1]} : vector<8x128xf32> to vector<8x32xf32>
    %65 = vector.extract_strided_slice %26 {offsets = [0, 64], sizes = [8, 32], strides = [1, 1]} : vector<8x128xf32> to vector<8x32xf32>
    %66 = tpu.transpose %64, [1, 0] : vector<8x32xf32> -> vector<32x8xf32>
    %cst_38 = arith.constant dense<0.000000e+00> : vector<8x8xf32>
    %67 = tpu.matmul %63, %66, %cst_38 {dimension_numbers = #tpu.dot_dimension_numbers<[1], [0], [0], [1], [0, 0, 1, 1], [], []>} : vector<8x32xf32>, vector<32x8xf32>, vector<8x8xf32> -> vector<8x8xf32>
    %68 = vector.broadcast %23 : vector<1x8xf32> to vector<8x8xf32>
    %69 = arith.addf %67, %68 : vector<8x8xf32>
    %cst_39 = arith.constant dense<0xFF800000> : vector<8xf32>
    %70 = vector.multi_reduction <maximumf>, %69, %cst_39 [1] : vector<8x8xf32> to vector<8xf32>
    %71 = vector.shape_cast %70 : vector<8xf32> to vector<8x1xf32>
    %72 = vector.broadcast %71 : vector<8x1xf32> to vector<8x8xf32>
    %73 = arith.subf %69, %72 : vector<8x8xf32>
    %74 = math.exp %73 : vector<8x8xf32>
    %cst_40 = arith.constant dense<0.000000e+00> : vector<8xf32>
    %75 = vector.multi_reduction <add>, %74, %cst_40 [1] : vector<8x8xf32> to vector<8xf32>
    %76 = vector.shape_cast %75 : vector<8xf32> to vector<8x1xf32>
    %77 = tpu.reciprocal %76 {approx = true} : vector<8x1xf32> -> vector<8x1xf32>
    %78 = vector.broadcast %77 : vector<8x1xf32> to vector<8x8xf32>
    %79 = arith.mulf %74, %78 : vector<8x8xf32>
    %cst_41 = arith.constant dense<0.000000e+00> : vector<8x32xf32>
    %80 = tpu.matmul %79, %65, %cst_41 {dimension_numbers = #tpu.dot_dimension_numbers<[1], [0], [0], [1], [0, 0, 1, 1], [], []>} : vector<8x8xf32>, vector<8x32xf32>, vector<8x32xf32> -> vector<8x32xf32>
    %81 = vector.extract_strided_slice %24 {offsets = [0, 96], sizes = [8, 32], strides = [1, 1]} : vector<8x128xf32> to vector<8x32xf32>
    %82 = vector.extract_strided_slice %25 {offsets = [0, 96], sizes = [8, 32], strides = [1, 1]} : vector<8x128xf32> to vector<8x32xf32>
    %83 = vector.extract_strided_slice %26 {offsets = [0, 96], sizes = [8, 32], strides = [1, 1]} : vector<8x128xf32> to vector<8x32xf32>
    %84 = tpu.transpose %82, [1, 0] : vector<8x32xf32> -> vector<32x8xf32>
    %cst_42 = arith.constant dense<0.000000e+00> : vector<8x8xf32>
    %85 = tpu.matmul %81, %84, %cst_42 {dimension_numbers = #tpu.dot_dimension_numbers<[1], [0], [0], [1], [0, 0, 1, 1], [], []>} : vector<8x32xf32>, vector<32x8xf32>, vector<8x8xf32> -> vector<8x8xf32>
    %86 = vector.broadcast %23 : vector<1x8xf32> to vector<8x8xf32>
    %87 = arith.addf %85, %86 : vector<8x8xf32>
    %cst_43 = arith.constant dense<0xFF800000> : vector<8xf32>
    %88 = vector.multi_reduction <maximumf>, %87, %cst_43 [1] : vector<8x8xf32> to vector<8xf32>
    %89 = vector.shape_cast %88 : vector<8xf32> to vector<8x1xf32>
    %90 = vector.broadcast %89 : vector<8x1xf32> to vector<8x8xf32>
    %91 = arith.subf %87, %90 : vector<8x8xf32>
    %92 = math.exp %91 : vector<8x8xf32>
    %cst_44 = arith.constant dense<0.000000e+00> : vector<8xf32>
    %93 = vector.multi_reduction <add>, %92, %cst_44 [1] : vector<8x8xf32> to vector<8xf32>
    %94 = vector.shape_cast %93 : vector<8xf32> to vector<8x1xf32>
    %95 = tpu.reciprocal %94 {approx = true} : vector<8x1xf32> -> vector<8x1xf32>
    %96 = vector.broadcast %95 : vector<8x1xf32> to vector<8x8xf32>
    %97 = arith.mulf %92, %96 : vector<8x8xf32>
    %cst_45 = arith.constant dense<0.000000e+00> : vector<8x32xf32>
    %98 = tpu.matmul %97, %83, %cst_45 {dimension_numbers = #tpu.dot_dimension_numbers<[1], [0], [0], [1], [0, 0, 1, 1], [], []>} : vector<8x8xf32>, vector<8x32xf32>, vector<8x32xf32> -> vector<8x32xf32>
    %99 = tpu.concatenate %44, %62, %80, %98 in 1 : vector<8x32xf32>, vector<8x32xf32>, vector<8x32xf32>, vector<8x32xf32> -> vector<8x128xf32>
    %100 = vector.extract_strided_slice %1 {offsets = [1, 0], sizes = [1, 8], strides = [1, 1]} : vector<2x8xf32> to vector<1x8xf32>
    %cst_46 = arith.constant 5.000000e-01 : f32
    %101 = vector.broadcast %cst_46 : f32 to vector<1x8xf32>
    %102 = arith.cmpf ogt, %100, %101 : vector<1x8xf32>
    %cst_47 = arith.constant 0.000000e+00 : f32
    %cst_48 = arith.constant -1.000000e+10 : f32
    %103 = vector.broadcast %cst_47 : f32 to vector<1x8xf32>
    %104 = vector.broadcast %cst_48 : f32 to vector<1x8xf32>
    %105 = arith.select %102, %103, %104 : vector<1x8xi1>, vector<1x8xf32>
    %106 = vector.extract_strided_slice %17 {offsets = [8, 0], sizes = [8, 128], strides = [1, 1]} : vector<16x384xf32> to vector<8x128xf32>
    %107 = vector.extract_strided_slice %17 {offsets = [8, 128], sizes = [8, 128], strides = [1, 1]} : vector<16x384xf32> to vector<8x128xf32>
    %108 = vector.extract_strided_slice %17 {offsets = [8, 256], sizes = [8, 128], strides = [1, 1]} : vector<16x384xf32> to vector<8x128xf32>
    %109 = vector.extract_strided_slice %106 {offsets = [0, 0], sizes = [8, 32], strides = [1, 1]} : vector<8x128xf32> to vector<8x32xf32>
    %110 = vector.extract_strided_slice %107 {offsets = [0, 0], sizes = [8, 32], strides = [1, 1]} : vector<8x128xf32> to vector<8x32xf32>
    %111 = vector.extract_strided_slice %108 {offsets = [0, 0], sizes = [8, 32], strides = [1, 1]} : vector<8x128xf32> to vector<8x32xf32>
    %112 = tpu.transpose %110, [1, 0] : vector<8x32xf32> -> vector<32x8xf32>
    %cst_49 = arith.constant dense<0.000000e+00> : vector<8x8xf32>
    %113 = tpu.matmul %109, %112, %cst_49 {dimension_numbers = #tpu.dot_dimension_numbers<[1], [0], [0], [1], [0, 0, 1, 1], [], []>} : vector<8x32xf32>, vector<32x8xf32>, vector<8x8xf32> -> vector<8x8xf32>
    %114 = vector.broadcast %105 : vector<1x8xf32> to vector<8x8xf32>
    %115 = arith.addf %113, %114 : vector<8x8xf32>
    %cst_50 = arith.constant dense<0xFF800000> : vector<8xf32>
    %116 = vector.multi_reduction <maximumf>, %115, %cst_50 [1] : vector<8x8xf32> to vector<8xf32>
    %117 = vector.shape_cast %116 : vector<8xf32> to vector<8x1xf32>
    %118 = vector.broadcast %117 : vector<8x1xf32> to vector<8x8xf32>
    %119 = arith.subf %115, %118 : vector<8x8xf32>
    %120 = math.exp %119 : vector<8x8xf32>
    %cst_51 = arith.constant dense<0.000000e+00> : vector<8xf32>
    %121 = vector.multi_reduction <add>, %120, %cst_51 [1] : vector<8x8xf32> to vector<8xf32>
    %122 = vector.shape_cast %121 : vector<8xf32> to vector<8x1xf32>
    %123 = tpu.reciprocal %122 {approx = true} : vector<8x1xf32> -> vector<8x1xf32>
    %124 = vector.broadcast %123 : vector<8x1xf32> to vector<8x8xf32>
    %125 = arith.mulf %120, %124 : vector<8x8xf32>
    %cst_52 = arith.constant dense<0.000000e+00> : vector<8x32xf32>
    %126 = tpu.matmul %125, %111, %cst_52 {dimension_numbers = #tpu.dot_dimension_numbers<[1], [0], [0], [1], [0, 0, 1, 1], [], []>} : vector<8x8xf32>, vector<8x32xf32>, vector<8x32xf32> -> vector<8x32xf32>
    %127 = vector.extract_strided_slice %106 {offsets = [0, 32], sizes = [8, 32], strides = [1, 1]} : vector<8x128xf32> to vector<8x32xf32>
    %128 = vector.extract_strided_slice %107 {offsets = [0, 32], sizes = [8, 32], strides = [1, 1]} : vector<8x128xf32> to vector<8x32xf32>
    %129 = vector.extract_strided_slice %108 {offsets = [0, 32], sizes = [8, 32], strides = [1, 1]} : vector<8x128xf32> to vector<8x32xf32>
    %130 = tpu.transpose %128, [1, 0] : vector<8x32xf32> -> vector<32x8xf32>
    %cst_53 = arith.constant dense<0.000000e+00> : vector<8x8xf32>
    %131 = tpu.matmul %127, %130, %cst_53 {dimension_numbers = #tpu.dot_dimension_numbers<[1], [0], [0], [1], [0, 0, 1, 1], [], []>} : vector<8x32xf32>, vector<32x8xf32>, vector<8x8xf32> -> vector<8x8xf32>
    %132 = vector.broadcast %105 : vector<1x8xf32> to vector<8x8xf32>
    %133 = arith.addf %131, %132 : vector<8x8xf32>
    %cst_54 = arith.constant dense<0xFF800000> : vector<8xf32>
    %134 = vector.multi_reduction <maximumf>, %133, %cst_54 [1] : vector<8x8xf32> to vector<8xf32>
    %135 = vector.shape_cast %134 : vector<8xf32> to vector<8x1xf32>
    %136 = vector.broadcast %135 : vector<8x1xf32> to vector<8x8xf32>
    %137 = arith.subf %133, %136 : vector<8x8xf32>
    %138 = math.exp %137 : vector<8x8xf32>
    %cst_55 = arith.constant dense<0.000000e+00> : vector<8xf32>
    %139 = vector.multi_reduction <add>, %138, %cst_55 [1] : vector<8x8xf32> to vector<8xf32>
    %140 = vector.shape_cast %139 : vector<8xf32> to vector<8x1xf32>
    %141 = tpu.reciprocal %140 {approx = true} : vector<8x1xf32> -> vector<8x1xf32>
    %142 = vector.broadcast %141 : vector<8x1xf32> to vector<8x8xf32>
    %143 = arith.mulf %138, %142 : vector<8x8xf32>
    %cst_56 = arith.constant dense<0.000000e+00> : vector<8x32xf32>
    %144 = tpu.matmul %143, %129, %cst_56 {dimension_numbers = #tpu.dot_dimension_numbers<[1], [0], [0], [1], [0, 0, 1, 1], [], []>} : vector<8x8xf32>, vector<8x32xf32>, vector<8x32xf32> -> vector<8x32xf32>
    %145 = vector.extract_strided_slice %106 {offsets = [0, 64], sizes = [8, 32], strides = [1, 1]} : vector<8x128xf32> to vector<8x32xf32>
    %146 = vector.extract_strided_slice %107 {offsets = [0, 64], sizes = [8, 32], strides = [1, 1]} : vector<8x128xf32> to vector<8x32xf32>
    %147 = vector.extract_strided_slice %108 {offsets = [0, 64], sizes = [8, 32], strides = [1, 1]} : vector<8x128xf32> to vector<8x32xf32>
    %148 = tpu.transpose %146, [1, 0] : vector<8x32xf32> -> vector<32x8xf32>
    %cst_57 = arith.constant dense<0.000000e+00> : vector<8x8xf32>
    %149 = tpu.matmul %145, %148, %cst_57 {dimension_numbers = #tpu.dot_dimension_numbers<[1], [0], [0], [1], [0, 0, 1, 1], [], []>} : vector<8x32xf32>, vector<32x8xf32>, vector<8x8xf32> -> vector<8x8xf32>
    %150 = vector.broadcast %105 : vector<1x8xf32> to vector<8x8xf32>
    %151 = arith.addf %149, %150 : vector<8x8xf32>
    %cst_58 = arith.constant dense<0xFF800000> : vector<8xf32>
    %152 = vector.multi_reduction <maximumf>, %151, %cst_58 [1] : vector<8x8xf32> to vector<8xf32>
    %153 = vector.shape_cast %152 : vector<8xf32> to vector<8x1xf32>
    %154 = vector.broadcast %153 : vector<8x1xf32> to vector<8x8xf32>
    %155 = arith.subf %151, %154 : vector<8x8xf32>
    %156 = math.exp %155 : vector<8x8xf32>
    %cst_59 = arith.constant dense<0.000000e+00> : vector<8xf32>
    %157 = vector.multi_reduction <add>, %156, %cst_59 [1] : vector<8x8xf32> to vector<8xf32>
    %158 = vector.shape_cast %157 : vector<8xf32> to vector<8x1xf32>
    %159 = tpu.reciprocal %158 {approx = true} : vector<8x1xf32> -> vector<8x1xf32>
    %160 = vector.broadcast %159 : vector<8x1xf32> to vector<8x8xf32>
    %161 = arith.mulf %156, %160 : vector<8x8xf32>
    %cst_60 = arith.constant dense<0.000000e+00> : vector<8x32xf32>
    %162 = tpu.matmul %161, %147, %cst_60 {dimension_numbers = #tpu.dot_dimension_numbers<[1], [0], [0], [1], [0, 0, 1, 1], [], []>} : vector<8x8xf32>, vector<8x32xf32>, vector<8x32xf32> -> vector<8x32xf32>
    %163 = vector.extract_strided_slice %106 {offsets = [0, 96], sizes = [8, 32], strides = [1, 1]} : vector<8x128xf32> to vector<8x32xf32>
    %164 = vector.extract_strided_slice %107 {offsets = [0, 96], sizes = [8, 32], strides = [1, 1]} : vector<8x128xf32> to vector<8x32xf32>
    %165 = vector.extract_strided_slice %108 {offsets = [0, 96], sizes = [8, 32], strides = [1, 1]} : vector<8x128xf32> to vector<8x32xf32>
    %166 = tpu.transpose %164, [1, 0] : vector<8x32xf32> -> vector<32x8xf32>
    %cst_61 = arith.constant dense<0.000000e+00> : vector<8x8xf32>
    %167 = tpu.matmul %163, %166, %cst_61 {dimension_numbers = #tpu.dot_dimension_numbers<[1], [0], [0], [1], [0, 0, 1, 1], [], []>} : vector<8x32xf32>, vector<32x8xf32>, vector<8x8xf32> -> vector<8x8xf32>
    %168 = vector.broadcast %105 : vector<1x8xf32> to vector<8x8xf32>
    %169 = arith.addf %167, %168 : vector<8x8xf32>
    %cst_62 = arith.constant dense<0xFF800000> : vector<8xf32>
    %170 = vector.multi_reduction <maximumf>, %169, %cst_62 [1] : vector<8x8xf32> to vector<8xf32>
    %171 = vector.shape_cast %170 : vector<8xf32> to vector<8x1xf32>
    %172 = vector.broadcast %171 : vector<8x1xf32> to vector<8x8xf32>
    %173 = arith.subf %169, %172 : vector<8x8xf32>
    %174 = math.exp %173 : vector<8x8xf32>
    %cst_63 = arith.constant dense<0.000000e+00> : vector<8xf32>
    %175 = vector.multi_reduction <add>, %174, %cst_63 [1] : vector<8x8xf32> to vector<8xf32>
    %176 = vector.shape_cast %175 : vector<8xf32> to vector<8x1xf32>
    %177 = tpu.reciprocal %176 {approx = true} : vector<8x1xf32> -> vector<8x1xf32>
    %178 = vector.broadcast %177 : vector<8x1xf32> to vector<8x8xf32>
    %179 = arith.mulf %174, %178 : vector<8x8xf32>
    %cst_64 = arith.constant dense<0.000000e+00> : vector<8x32xf32>
    %180 = tpu.matmul %179, %165, %cst_64 {dimension_numbers = #tpu.dot_dimension_numbers<[1], [0], [0], [1], [0, 0, 1, 1], [], []>} : vector<8x8xf32>, vector<8x32xf32>, vector<8x32xf32> -> vector<8x32xf32>
    %181 = tpu.concatenate %126, %144, %162, %180 in 1 : vector<8x32xf32>, vector<8x32xf32>, vector<8x32xf32>, vector<8x32xf32> -> vector<8x128xf32>
    %182 = tpu.concatenate %99, %181 in 0 : vector<8x128xf32>, vector<8x128xf32> -> vector<16x128xf32>
    %183 = arith.truncf %182 : vector<16x128xf32> to vector<16x128xbf16>
    %cst_65 = arith.constant dense<0.000000e+00> : vector<16x128xf32>
    %184 = tpu.matmul %183, %4, %cst_65 {dimension_numbers = #tpu.dot_dimension_numbers<[1], [0], [0], [1], [0, 0, 1, 1], [], []>} : vector<16x128xbf16>, vector<128x128xbf16>, vector<16x128xf32> -> vector<16x128xf32>
    %185 = arith.addf %0, %184 : vector<16x128xf32>
    %186 = vector.broadcast %5 : vector<1x128xf32> to vector<16x128xf32>
    %187 = arith.addf %185, %186 : vector<16x128xf32>
    %cst_66 = arith.constant dense<0.000000e+00> : vector<16xf32>
    %188 = vector.multi_reduction <add>, %187, %cst_66 [1] : vector<16x128xf32> to vector<16xf32>
    %189 = vector.shape_cast %188 : vector<16xf32> to vector<16x1xf32>
    %cst_67 = arith.constant 1.280000e+02 : f32
    %190 = vector.broadcast %cst_67 : f32 to vector<16x1xf32>
    %191 = arith.divf %189, %190 : vector<16x1xf32>
    %192 = vector.broadcast %191 : vector<16x1xf32> to vector<16x128xf32>
    %193 = arith.subf %187, %192 : vector<16x128xf32>
    %194 = arith.mulf %193, %193 : vector<16x128xf32>
    %cst_68 = arith.constant dense<0.000000e+00> : vector<16xf32>
    %195 = vector.multi_reduction <add>, %194, %cst_68 [1] : vector<16x128xf32> to vector<16xf32>
    %196 = vector.shape_cast %195 : vector<16xf32> to vector<16x1xf32>
    %cst_69 = arith.constant 1.280000e+02 : f32
    %197 = vector.broadcast %cst_69 : f32 to vector<16x1xf32>
    %198 = arith.divf %196, %197 : vector<16x1xf32>
    %199 = vector.broadcast %191 : vector<16x1xf32> to vector<16x128xf32>
    %200 = arith.subf %187, %199 : vector<16x128xf32>
    %cst_70 = arith.constant 9.99999974E-6 : f32
    %201 = vector.broadcast %cst_70 : f32 to vector<16x1xf32>
    %202 = arith.addf %198, %201 : vector<16x1xf32>
    %203 = math.rsqrt %202 : vector<16x1xf32>
    %204 = vector.broadcast %203 : vector<16x1xf32> to vector<16x128xf32>
    %205 = arith.mulf %200, %204 : vector<16x128xf32>
    %206 = vector.broadcast %6 : vector<1x128xf32> to vector<16x128xf32>
    %207 = arith.mulf %205, %206 : vector<16x128xf32>
    %208 = vector.broadcast %7 : vector<1x128xf32> to vector<16x128xf32>
    %209 = arith.addf %207, %208 : vector<16x128xf32>
    %210 = arith.truncf %209 : vector<16x128xf32> to vector<16x128xbf16>
    %cst_71 = arith.constant dense<0.000000e+00> : vector<16x256xf32>
    %211 = tpu.matmul %210, %8, %cst_71 {dimension_numbers = #tpu.dot_dimension_numbers<[1], [0], [0], [1], [0, 0, 1, 1], [], []>} : vector<16x128xbf16>, vector<128x256xbf16>, vector<16x256xf32> -> vector<16x256xf32>
    %212 = vector.broadcast %9 : vector<1x256xf32> to vector<16x256xf32>
    %213 = arith.addf %211, %212 : vector<16x256xf32>
    %cst_72 = arith.constant 0.000000e+00 : f32
    %214 = vector.broadcast %cst_72 : f32 to vector<16x256xf32>
    %215 = arith.maximumf %213, %214 : vector<16x256xf32>
    %216 = arith.truncf %215 : vector<16x256xf32> to vector<16x256xbf16>
    %cst_73 = arith.constant dense<0.000000e+00> : vector<16x128xf32>
    %217 = tpu.matmul %216, %10, %cst_73 {dimension_numbers = #tpu.dot_dimension_numbers<[1], [0], [0], [1], [0, 0, 1, 1], [], []>} : vector<16x256xbf16>, vector<256x128xbf16>, vector<16x128xf32> -> vector<16x128xf32>
    %218 = vector.broadcast %11 : vector<1x128xf32> to vector<16x128xf32>
    %219 = arith.addf %217, %218 : vector<16x128xf32>
    %220 = arith.addf %209, %219 : vector<16x128xf32>
    %cst_74 = arith.constant dense<0.000000e+00> : vector<16xf32>
    %221 = vector.multi_reduction <add>, %220, %cst_74 [1] : vector<16x128xf32> to vector<16xf32>
    %222 = vector.shape_cast %221 : vector<16xf32> to vector<16x1xf32>
    %cst_75 = arith.constant 1.280000e+02 : f32
    %223 = vector.broadcast %cst_75 : f32 to vector<16x1xf32>
    %224 = arith.divf %222, %223 : vector<16x1xf32>
    %225 = vector.broadcast %224 : vector<16x1xf32> to vector<16x128xf32>
    %226 = arith.subf %220, %225 : vector<16x128xf32>
    %227 = arith.mulf %226, %226 : vector<16x128xf32>
    %cst_76 = arith.constant dense<0.000000e+00> : vector<16xf32>
    %228 = vector.multi_reduction <add>, %227, %cst_76 [1] : vector<16x128xf32> to vector<16xf32>
    %229 = vector.shape_cast %228 : vector<16xf32> to vector<16x1xf32>
    %cst_77 = arith.constant 1.280000e+02 : f32
    %230 = vector.broadcast %cst_77 : f32 to vector<16x1xf32>
    %231 = arith.divf %229, %230 : vector<16x1xf32>
    %232 = vector.broadcast %224 : vector<16x1xf32> to vector<16x128xf32>
    %233 = arith.subf %220, %232 : vector<16x128xf32>
    %cst_78 = arith.constant 9.99999974E-6 : f32
    %234 = vector.broadcast %cst_78 : f32 to vector<16x1xf32>
    %235 = arith.addf %231, %234 : vector<16x1xf32>
    %236 = math.rsqrt %235 : vector<16x1xf32>
    %237 = vector.broadcast %236 : vector<16x1xf32> to vector<16x128xf32>
    %238 = arith.mulf %233, %237 : vector<16x128xf32>
    %239 = vector.broadcast %12 : vector<1x128xf32> to vector<16x128xf32>
    %240 = arith.mulf %238, %239 : vector<16x128xf32>
    %241 = vector.broadcast %13 : vector<1x128xf32> to vector<16x128xf32>
    %242 = arith.addf %240, %241 : vector<16x128xf32>
    %243 = arith.truncf %242 : vector<16x128xf32> to vector<16x128xbf16>
    %c0_79 = arith.constant 0 : index
    %c0_80 = arith.constant 0 : index
    %244 = vector.load %arg14[%c0_79, %c0_80] : memref<128x384xbf16, #tpu.memory_space<vmem>>, vector<128x384xbf16>
    %cst_81 = arith.constant dense<0.000000e+00> : vector<16x384xf32>
    %245 = tpu.matmul %243, %244, %cst_81 {dimension_numbers = #tpu.dot_dimension_numbers<[1], [0], [0], [1], [0, 0, 1, 1], [], []>} : vector<16x128xbf16>, vector<128x384xbf16>, vector<16x384xf32> -> vector<16x384xf32>
    %c0_82 = arith.constant 0 : index
    %c0_83 = arith.constant 0 : index
    %246 = vector.load %arg15[%c0_82, %c0_83] : memref<1x384xf32, #tpu.memory_space<vmem>>, vector<1x384xf32>
    %247 = vector.broadcast %246 : vector<1x384xf32> to vector<16x384xf32>
    %248 = arith.addf %245, %247 : vector<16x384xf32>
    %c0_84 = arith.constant 0 : index
    %c0_85 = arith.constant 0 : index
    %249 = vector.load %arg19[%c0_84, %c0_85] : memref<16x384xf32, #tpu.memory_space<vmem>>, vector<16x384xf32>
    tpu.vector_store %arg19[%c0_84, %c0_85], %248 {strides = array<i32>} : memref<16x384xf32, #tpu.memory_space<vmem>>, vector<16x384xf32>,
    %250 = vector.extract_strided_slice %248 {offsets = [0, 0], sizes = [16, 128], strides = [1, 1]} : vector<16x384xf32> to vector<16x128xf32>
    %251 = vector.extract_strided_slice %248 {offsets = [0, 128], sizes = [16, 128], strides = [1, 1]} : vector<16x384xf32> to vector<16x128xf32>
    %252 = vector.extract_strided_slice %248 {offsets = [0, 256], sizes = [16, 128], strides = [1, 1]} : vector<16x384xf32> to vector<16x128xf32>
    %253 = arith.addf %250, %252 : vector<16x128xf32>
    %c0_86 = arith.constant 0 : index
    %c0_87 = arith.constant 0 : index
    %c0_88 = arith.constant 0 : index
    %254 = vector.load %arg18[%c0_86, %c0_87, %c0_88] : memref<2x16x128xf32, #tpu.memory_space<vmem>>, vector<1x16x128xf32>
    %255 = vector.shape_cast %254 : vector<1x16x128xf32> to vector<16x128xf32>
    %256 = vector.shape_cast %253 : vector<16x128xf32> to vector<1x16x128xf32>
    tpu.vector_store %arg18[%c0_86, %c0_87, %c0_88], %256 {strides = array<i32>} : memref<2x16x128xf32, #tpu.memory_space<vmem>>, vector<1x16x128xf32>,
    %257 = arith.addf %251, %252 : vector<16x128xf32>
    %c1 = arith.constant 1 : index
    %c0_89 = arith.constant 0 : index
    %c0_90 = arith.constant 0 : index
    %258 = vector.load %arg18[%c1, %c0_89, %c0_90] : memref<2x16x128xf32, #tpu.memory_space<vmem>>, vector<1x16x128xf32>
    %259 = vector.shape_cast %258 : vector<1x16x128xf32> to vector<16x128xf32>
    %260 = vector.shape_cast %257 : vector<16x128xf32> to vector<1x16x128xf32>
    tpu.vector_store %arg18[%c1, %c0_89, %c0_90], %260 {strides = array<i32>} : memref<2x16x128xf32, #tpu.memory_space<vmem>>, vector<1x16x128xf32>,
    %261 = vector.shape_cast %250 : vector<16x128xf32> to vector<2x8x128xf32>
    %cst_91 = arith.constant dense<0.000000e+00> : vector<2x128xf32>
    %262 = vector.multi_reduction <add>, %261, %cst_91 [1] : vector<2x8x128xf32> to vector<2x128xf32>
    %cst_92 = arith.constant 8.000000e+00 : f32
    %263 = vector.broadcast %cst_92 : f32 to vector<2x128xf32>
    %264 = arith.divf %262, %263 : vector<2x128xf32>
    %265 = arith.truncf %264 : vector<2x128xf32> to vector<2x128xbf16>
    %c0_93 = arith.constant 0 : index
    %c0_94 = arith.constant 0 : index
    %266 = vector.load %arg16[%c0_93, %c0_94] : memref<128x128xbf16, #tpu.memory_space<vmem>>, vector<128x128xbf16>
    %cst_95 = arith.constant dense<0.000000e+00> : vector<2x128xf32>
    %267 = tpu.matmul %265, %266, %cst_95 {dimension_numbers = #tpu.dot_dimension_numbers<[1], [0], [0], [1], [0, 0, 1, 1], [], []>} : vector<2x128xbf16>, vector<128x128xbf16>, vector<2x128xf32> -> vector<2x128xf32>
    %c0_96 = arith.constant 0 : index
    %c0_97 = arith.constant 0 : index
    %268 = vector.load %arg17[%c0_96, %c0_97] : memref<1x128xf32, #tpu.memory_space<vmem>>, vector<1x128xf32>
    %269 = vector.broadcast %268 : vector<1x128xf32> to vector<2x128xf32>
    %270 = arith.addf %267, %269 : vector<2x128xf32>
    %c0_98 = arith.constant 0 : index
    %c0_99 = arith.constant 0 : index
    %271 = vector.load %arg20[%c0_98, %c0_99] : memref<2x128xf32, #tpu.memory_space<vmem>>, vector<2x128xf32>
    tpu.vector_store %arg20[%c0_98, %c0_99], %270 {strides = array<i32>} : memref<2x128xf32, #tpu.memory_space<vmem>>, vector<2x128xf32>,
    return
  }
}

module attributes {stable_mosaic.version = 11 : i64} {
  func.func @kern(%arg0: i32, %arg1: memref<1x16x128xf32, #tpu.memory_space<vmem>>, %arg2: memref<1x16x128xf32, #tpu.memory_space<vmem>>, %arg3: memref<2x8xf32, #tpu.memory_space<vmem>>, %arg4: memref<2x8xf32, #tpu.memory_space<vmem>>, %arg5: memref<1x128x384xbf16, #tpu.memory_space<vmem>>, %arg6: memref<1x1x384xf32, #tpu.memory_space<vmem>>, %arg7: memref<1x128x128xbf16, #tpu.memory_space<vmem>>, %arg8: memref<1x1x128xf32, #tpu.memory_space<vmem>>, %arg9: memref<1x1x128xf32, #tpu.memory_space<vmem>>, %arg10: memref<1x1x128xf32, #tpu.memory_space<vmem>>, %arg11: memref<1x128x128xbf16, #tpu.memory_space<vmem>>, %arg12: memref<1x1x128xf32, #tpu.memory_space<vmem>>, %arg13: memref<1x128x256xbf16, #tpu.memory_space<vmem>>, %arg14: memref<1x1x256xf32, #tpu.memory_space<vmem>>, %arg15: memref<1x128x128xbf16, #tpu.memory_space<vmem>>, %arg16: memref<1x1x128xf32, #tpu.memory_space<vmem>>, %arg17: memref<1x1x128xf32, #tpu.memory_space<vmem>>, %arg18: memref<1x1x128xf32, #tpu.memory_space<vmem>>, %arg19: memref<1x128x256xbf16, #tpu.memory_space<vmem>>, %arg20: memref<1x1x256xf32, #tpu.memory_space<vmem>>, %arg21: memref<1x256x128xbf16, #tpu.memory_space<vmem>>, %arg22: memref<1x1x128xf32, #tpu.memory_space<vmem>>, %arg23: memref<1x1x128xf32, #tpu.memory_space<vmem>>, %arg24: memref<1x1x128xf32, #tpu.memory_space<vmem>>, %arg25: memref<1x128x128xbf16, #tpu.memory_space<vmem>>, %arg26: memref<1x1x128xf32, #tpu.memory_space<vmem>>, %arg27: memref<1x16x128xf32, #tpu.memory_space<vmem>>, %arg28: memref<1x16x128xf32, #tpu.memory_space<vmem>>, %arg29: memref<1x16x32xf32, #tpu.memory_space<vmem>>) attributes {dimension_semantics = [#tpu.dimension_semantics<parallel>], iteration_bounds = array<i64: 2>, scalar_prefetch = 0 : i64, scratch_operands = 0 : i64, tpu.core_type = #tpu.core_type<tc>, window_params = [{transform_indices = @transform_0, window_bounds = array<i64: 1, 16, 128>}, {transform_indices = @transform_1, window_bounds = array<i64: 1, 16, 128>}, {pipeline_mode = #tpu.pipeline_mode<synchronous>, transform_indices = @transform_2, window_bounds = array<i64: 2, 8>}, {pipeline_mode = #tpu.pipeline_mode<synchronous>, transform_indices = @transform_3, window_bounds = array<i64: 2, 8>}, {transform_indices = @transform_4, window_bounds = array<i64: 1, 128, 384>}, {transform_indices = @transform_5, window_bounds = array<i64: 1, 1, 384>}, {transform_indices = @transform_6, window_bounds = array<i64: 1, 128, 128>}, {transform_indices = @transform_7, window_bounds = array<i64: 1, 1, 128>}, {transform_indices = @transform_8, window_bounds = array<i64: 1, 1, 128>}, {transform_indices = @transform_9, window_bounds = array<i64: 1, 1, 128>}, {transform_indices = @transform_10, window_bounds = array<i64: 1, 128, 128>}, {transform_indices = @transform_11, window_bounds = array<i64: 1, 1, 128>}, {transform_indices = @transform_12, window_bounds = array<i64: 1, 128, 256>}, {transform_indices = @transform_13, window_bounds = array<i64: 1, 1, 256>}, {transform_indices = @transform_14, window_bounds = array<i64: 1, 128, 128>}, {transform_indices = @transform_15, window_bounds = array<i64: 1, 1, 128>}, {transform_indices = @transform_16, window_bounds = array<i64: 1, 1, 128>}, {transform_indices = @transform_17, window_bounds = array<i64: 1, 1, 128>}, {transform_indices = @transform_18, window_bounds = array<i64: 1, 128, 256>}, {transform_indices = @transform_19, window_bounds = array<i64: 1, 1, 256>}, {transform_indices = @transform_20, window_bounds = array<i64: 1, 256, 128>}, {transform_indices = @transform_21, window_bounds = array<i64: 1, 1, 128>}, {transform_indices = @transform_22, window_bounds = array<i64: 1, 1, 128>}, {transform_indices = @transform_23, window_bounds = array<i64: 1, 1, 128>}, {transform_indices = @transform_24, window_bounds = array<i64: 1, 128, 128>}, {transform_indices = @transform_25, window_bounds = array<i64: 1, 1, 128>}, {transform_indices = @transform_26, window_bounds = array<i64: 1, 16, 128>}, {transform_indices = @transform_27, window_bounds = array<i64: 1, 16, 128>}, {transform_indices = @transform_28, window_bounds = array<i64: 1, 16, 32>}]} {
    %c0 = arith.constant 0 : index
    %c0_0 = arith.constant 0 : index
    %c0_1 = arith.constant 0 : index
    %0 = vector.load %arg5[%c0, %c0_0, %c0_1] : memref<1x128x384xbf16, #tpu.memory_space<vmem>>, vector<1x128x384xbf16>
    %1 = vector.shape_cast %0 : vector<1x128x384xbf16> to vector<128x384xbf16>
    %c0_2 = arith.constant 0 : index
    %c0_3 = arith.constant 0 : index
    %c0_4 = arith.constant 0 : index
    %2 = vector.load %arg6[%c0_2, %c0_3, %c0_4] : memref<1x1x384xf32, #tpu.memory_space<vmem>>, vector<1x1x384xf32>
    %3 = vector.shape_cast %2 : vector<1x1x384xf32> to vector<1x384xf32>
    %c0_5 = arith.constant 0 : index
    %c0_6 = arith.constant 0 : index
    %c0_7 = arith.constant 0 : index
    %4 = vector.load %arg7[%c0_5, %c0_6, %c0_7] : memref<1x128x128xbf16, #tpu.memory_space<vmem>>, vector<1x128x128xbf16>
    %5 = vector.shape_cast %4 : vector<1x128x128xbf16> to vector<128x128xbf16>
    %c0_8 = arith.constant 0 : index
    %c0_9 = arith.constant 0 : index
    %c0_10 = arith.constant 0 : index
    %6 = vector.load %arg8[%c0_8, %c0_9, %c0_10] : memref<1x1x128xf32, #tpu.memory_space<vmem>>, vector<1x1x128xf32>
    %7 = vector.shape_cast %6 : vector<1x1x128xf32> to vector<1x128xf32>
    %c0_11 = arith.constant 0 : index
    %c0_12 = arith.constant 0 : index
    %c0_13 = arith.constant 0 : index
    %8 = vector.load %arg9[%c0_11, %c0_12, %c0_13] : memref<1x1x128xf32, #tpu.memory_space<vmem>>, vector<1x1x128xf32>
    %9 = vector.shape_cast %8 : vector<1x1x128xf32> to vector<1x128xf32>
    %c0_14 = arith.constant 0 : index
    %c0_15 = arith.constant 0 : index
    %c0_16 = arith.constant 0 : index
    %10 = vector.load %arg10[%c0_14, %c0_15, %c0_16] : memref<1x1x128xf32, #tpu.memory_space<vmem>>, vector<1x1x128xf32>
    %11 = vector.shape_cast %10 : vector<1x1x128xf32> to vector<1x128xf32>
    %c0_17 = arith.constant 0 : index
    %c0_18 = arith.constant 0 : index
    %c0_19 = arith.constant 0 : index
    %12 = vector.load %arg11[%c0_17, %c0_18, %c0_19] : memref<1x128x128xbf16, #tpu.memory_space<vmem>>, vector<1x128x128xbf16>
    %13 = vector.shape_cast %12 : vector<1x128x128xbf16> to vector<128x128xbf16>
    %c0_20 = arith.constant 0 : index
    %c0_21 = arith.constant 0 : index
    %c0_22 = arith.constant 0 : index
    %14 = vector.load %arg12[%c0_20, %c0_21, %c0_22] : memref<1x1x128xf32, #tpu.memory_space<vmem>>, vector<1x1x128xf32>
    %15 = vector.shape_cast %14 : vector<1x1x128xf32> to vector<1x128xf32>
    %c0_23 = arith.constant 0 : index
    %c0_24 = arith.constant 0 : index
    %c0_25 = arith.constant 0 : index
    %16 = vector.load %arg13[%c0_23, %c0_24, %c0_25] : memref<1x128x256xbf16, #tpu.memory_space<vmem>>, vector<1x128x256xbf16>
    %17 = vector.shape_cast %16 : vector<1x128x256xbf16> to vector<128x256xbf16>
    %c0_26 = arith.constant 0 : index
    %c0_27 = arith.constant 0 : index
    %c0_28 = arith.constant 0 : index
    %18 = vector.load %arg14[%c0_26, %c0_27, %c0_28] : memref<1x1x256xf32, #tpu.memory_space<vmem>>, vector<1x1x256xf32>
    %19 = vector.shape_cast %18 : vector<1x1x256xf32> to vector<1x256xf32>
    %c0_29 = arith.constant 0 : index
    %c0_30 = arith.constant 0 : index
    %c0_31 = arith.constant 0 : index
    %20 = vector.load %arg15[%c0_29, %c0_30, %c0_31] : memref<1x128x128xbf16, #tpu.memory_space<vmem>>, vector<1x128x128xbf16>
    %21 = vector.shape_cast %20 : vector<1x128x128xbf16> to vector<128x128xbf16>
    %c0_32 = arith.constant 0 : index
    %c0_33 = arith.constant 0 : index
    %c0_34 = arith.constant 0 : index
    %22 = vector.load %arg16[%c0_32, %c0_33, %c0_34] : memref<1x1x128xf32, #tpu.memory_space<vmem>>, vector<1x1x128xf32>
    %23 = vector.shape_cast %22 : vector<1x1x128xf32> to vector<1x128xf32>
    %c0_35 = arith.constant 0 : index
    %c0_36 = arith.constant 0 : index
    %c0_37 = arith.constant 0 : index
    %24 = vector.load %arg17[%c0_35, %c0_36, %c0_37] : memref<1x1x128xf32, #tpu.memory_space<vmem>>, vector<1x1x128xf32>
    %25 = vector.shape_cast %24 : vector<1x1x128xf32> to vector<1x128xf32>
    %c0_38 = arith.constant 0 : index
    %c0_39 = arith.constant 0 : index
    %c0_40 = arith.constant 0 : index
    %26 = vector.load %arg18[%c0_38, %c0_39, %c0_40] : memref<1x1x128xf32, #tpu.memory_space<vmem>>, vector<1x1x128xf32>
    %27 = vector.shape_cast %26 : vector<1x1x128xf32> to vector<1x128xf32>
    %c0_41 = arith.constant 0 : index
    %c0_42 = arith.constant 0 : index
    %c0_43 = arith.constant 0 : index
    %28 = vector.load %arg19[%c0_41, %c0_42, %c0_43] : memref<1x128x256xbf16, #tpu.memory_space<vmem>>, vector<1x128x256xbf16>
    %29 = vector.shape_cast %28 : vector<1x128x256xbf16> to vector<128x256xbf16>
    %c0_44 = arith.constant 0 : index
    %c0_45 = arith.constant 0 : index
    %c0_46 = arith.constant 0 : index
    %30 = vector.load %arg20[%c0_44, %c0_45, %c0_46] : memref<1x1x256xf32, #tpu.memory_space<vmem>>, vector<1x1x256xf32>
    %31 = vector.shape_cast %30 : vector<1x1x256xf32> to vector<1x256xf32>
    %c0_47 = arith.constant 0 : index
    %c0_48 = arith.constant 0 : index
    %c0_49 = arith.constant 0 : index
    %32 = vector.load %arg21[%c0_47, %c0_48, %c0_49] : memref<1x256x128xbf16, #tpu.memory_space<vmem>>, vector<1x256x128xbf16>
    %33 = vector.shape_cast %32 : vector<1x256x128xbf16> to vector<256x128xbf16>
    %c0_50 = arith.constant 0 : index
    %c0_51 = arith.constant 0 : index
    %c0_52 = arith.constant 0 : index
    %34 = vector.load %arg22[%c0_50, %c0_51, %c0_52] : memref<1x1x128xf32, #tpu.memory_space<vmem>>, vector<1x1x128xf32>
    %35 = vector.shape_cast %34 : vector<1x1x128xf32> to vector<1x128xf32>
    %c0_53 = arith.constant 0 : index
    %c0_54 = arith.constant 0 : index
    %c0_55 = arith.constant 0 : index
    %36 = vector.load %arg23[%c0_53, %c0_54, %c0_55] : memref<1x1x128xf32, #tpu.memory_space<vmem>>, vector<1x1x128xf32>
    %37 = vector.shape_cast %36 : vector<1x1x128xf32> to vector<1x128xf32>
    %c0_56 = arith.constant 0 : index
    %c0_57 = arith.constant 0 : index
    %c0_58 = arith.constant 0 : index
    %38 = vector.load %arg24[%c0_56, %c0_57, %c0_58] : memref<1x1x128xf32, #tpu.memory_space<vmem>>, vector<1x1x128xf32>
    %39 = vector.shape_cast %38 : vector<1x1x128xf32> to vector<1x128xf32>
    %c0_59 = arith.constant 0 : index
    %c0_60 = arith.constant 0 : index
    %c0_61 = arith.constant 0 : index
    %40 = vector.load %arg1[%c0_59, %c0_60, %c0_61] : memref<1x16x128xf32, #tpu.memory_space<vmem>>, vector<1x16x128xf32>
    %41 = vector.shape_cast %40 : vector<1x16x128xf32> to vector<16x128xf32>
    %c0_62 = arith.constant 0 : index
    %c0_63 = arith.constant 0 : index
    %c0_64 = arith.constant 0 : index
    %42 = vector.load %arg2[%c0_62, %c0_63, %c0_64] : memref<1x16x128xf32, #tpu.memory_space<vmem>>, vector<1x16x128xf32>
    %43 = vector.shape_cast %42 : vector<1x16x128xf32> to vector<16x128xf32>
    %c0_65 = arith.constant 0 : index
    %c0_66 = arith.constant 0 : index
    %44 = vector.load %arg3[%c0_65, %c0_66] : memref<2x8xf32, #tpu.memory_space<vmem>>, vector<2x8xf32>
    %c0_67 = arith.constant 0 : index
    %c0_68 = arith.constant 0 : index
    %45 = vector.load %arg4[%c0_67, %c0_68] : memref<2x8xf32, #tpu.memory_space<vmem>>, vector<2x8xf32>
    %46 = arith.truncf %41 : vector<16x128xf32> to vector<16x128xbf16>
    %cst = arith.constant dense<0.000000e+00> : vector<16x384xf32>
    %47 = tpu.matmul %46, %1, %cst {dimension_numbers = #tpu.dot_dimension_numbers<[1], [0], [0], [1], [0, 0, 1, 1], [], []>} : vector<16x128xbf16>, vector<128x384xbf16>, vector<16x384xf32> -> vector<16x384xf32>
    %48 = vector.broadcast %3 : vector<1x384xf32> to vector<16x384xf32>
    %49 = arith.addf %47, %48 : vector<16x384xf32>
    %50 = tpu.iota {dimensions = array<i32: 0>} : vector<8x8xi32>
    %51 = tpu.iota {dimensions = array<i32: 1>} : vector<8x8xi32>
    %52 = arith.cmpi sge, %50, %51 : vector<8x8xi32>
    %53 = vector.extract_strided_slice %45 {offsets = [0, 0], sizes = [1, 8], strides = [1, 1]} : vector<2x8xf32> to vector<1x8xf32>
    %cst_69 = arith.constant 5.000000e-01 : f32
    %54 = vector.broadcast %cst_69 : f32 to vector<1x8xf32>
    %55 = arith.cmpf ogt, %53, %54 : vector<1x8xf32>
    %56 = vector.broadcast %55 : vector<1x8xi1> to vector<8x8xi1>
    %57 = arith.andi %52, %56 : vector<8x8xi1>
    %cst_70 = arith.constant 0.000000e+00 : f32
    %cst_71 = arith.constant -1.000000e+10 : f32
    %58 = vector.broadcast %cst_70 : f32 to vector<8x8xf32>
    %59 = vector.broadcast %cst_71 : f32 to vector<8x8xf32>
    %60 = arith.select %57, %58, %59 : vector<8x8xi1>, vector<8x8xf32>
    %61 = vector.extract_strided_slice %49 {offsets = [0, 0], sizes = [8, 128], strides = [1, 1]} : vector<16x384xf32> to vector<8x128xf32>
    %62 = vector.extract_strided_slice %49 {offsets = [0, 128], sizes = [8, 128], strides = [1, 1]} : vector<16x384xf32> to vector<8x128xf32>
    %63 = vector.extract_strided_slice %49 {offsets = [0, 256], sizes = [8, 128], strides = [1, 1]} : vector<16x384xf32> to vector<8x128xf32>
    %64 = vector.extract_strided_slice %61 {offsets = [0, 0], sizes = [8, 32], strides = [1, 1]} : vector<8x128xf32> to vector<8x32xf32>
    %65 = vector.extract_strided_slice %62 {offsets = [0, 0], sizes = [8, 32], strides = [1, 1]} : vector<8x128xf32> to vector<8x32xf32>
    %66 = vector.extract_strided_slice %63 {offsets = [0, 0], sizes = [8, 32], strides = [1, 1]} : vector<8x128xf32> to vector<8x32xf32>
    %67 = tpu.transpose %65, [1, 0] : vector<8x32xf32> -> vector<32x8xf32>
    %cst_72 = arith.constant dense<0.000000e+00> : vector<8x8xf32>
    %68 = tpu.matmul %64, %67, %cst_72 {dimension_numbers = #tpu.dot_dimension_numbers<[1], [0], [0], [1], [0, 0, 1, 1], [], []>} : vector<8x32xf32>, vector<32x8xf32>, vector<8x8xf32> -> vector<8x8xf32>
    %69 = arith.addf %68, %60 : vector<8x8xf32>
    %cst_73 = arith.constant dense<0xFF800000> : vector<8xf32>
    %70 = vector.multi_reduction <maximumf>, %69, %cst_73 [1] : vector<8x8xf32> to vector<8xf32>
    %71 = vector.shape_cast %70 : vector<8xf32> to vector<8x1xf32>
    %72 = vector.broadcast %71 : vector<8x1xf32> to vector<8x8xf32>
    %73 = arith.subf %69, %72 : vector<8x8xf32>
    %74 = math.exp %73 : vector<8x8xf32>
    %cst_74 = arith.constant dense<0.000000e+00> : vector<8xf32>
    %75 = vector.multi_reduction <add>, %74, %cst_74 [1] : vector<8x8xf32> to vector<8xf32>
    %76 = vector.shape_cast %75 : vector<8xf32> to vector<8x1xf32>
    %77 = tpu.reciprocal %76 {approx = true} : vector<8x1xf32> -> vector<8x1xf32>
    %78 = vector.broadcast %77 : vector<8x1xf32> to vector<8x8xf32>
    %79 = arith.mulf %74, %78 : vector<8x8xf32>
    %cst_75 = arith.constant dense<0.000000e+00> : vector<8x32xf32>
    %80 = tpu.matmul %79, %66, %cst_75 {dimension_numbers = #tpu.dot_dimension_numbers<[1], [0], [0], [1], [0, 0, 1, 1], [], []>} : vector<8x8xf32>, vector<8x32xf32>, vector<8x32xf32> -> vector<8x32xf32>
    %81 = vector.extract_strided_slice %61 {offsets = [0, 32], sizes = [8, 32], strides = [1, 1]} : vector<8x128xf32> to vector<8x32xf32>
    %82 = vector.extract_strided_slice %62 {offsets = [0, 32], sizes = [8, 32], strides = [1, 1]} : vector<8x128xf32> to vector<8x32xf32>
    %83 = vector.extract_strided_slice %63 {offsets = [0, 32], sizes = [8, 32], strides = [1, 1]} : vector<8x128xf32> to vector<8x32xf32>
    %84 = tpu.transpose %82, [1, 0] : vector<8x32xf32> -> vector<32x8xf32>
    %cst_76 = arith.constant dense<0.000000e+00> : vector<8x8xf32>
    %85 = tpu.matmul %81, %84, %cst_76 {dimension_numbers = #tpu.dot_dimension_numbers<[1], [0], [0], [1], [0, 0, 1, 1], [], []>} : vector<8x32xf32>, vector<32x8xf32>, vector<8x8xf32> -> vector<8x8xf32>
    %86 = arith.addf %85, %60 : vector<8x8xf32>
    %cst_77 = arith.constant dense<0xFF800000> : vector<8xf32>
    %87 = vector.multi_reduction <maximumf>, %86, %cst_77 [1] : vector<8x8xf32> to vector<8xf32>
    %88 = vector.shape_cast %87 : vector<8xf32> to vector<8x1xf32>
    %89 = vector.broadcast %88 : vector<8x1xf32> to vector<8x8xf32>
    %90 = arith.subf %86, %89 : vector<8x8xf32>
    %91 = math.exp %90 : vector<8x8xf32>
    %cst_78 = arith.constant dense<0.000000e+00> : vector<8xf32>
    %92 = vector.multi_reduction <add>, %91, %cst_78 [1] : vector<8x8xf32> to vector<8xf32>
    %93 = vector.shape_cast %92 : vector<8xf32> to vector<8x1xf32>
    %94 = tpu.reciprocal %93 {approx = true} : vector<8x1xf32> -> vector<8x1xf32>
    %95 = vector.broadcast %94 : vector<8x1xf32> to vector<8x8xf32>
    %96 = arith.mulf %91, %95 : vector<8x8xf32>
    %cst_79 = arith.constant dense<0.000000e+00> : vector<8x32xf32>
    %97 = tpu.matmul %96, %83, %cst_79 {dimension_numbers = #tpu.dot_dimension_numbers<[1], [0], [0], [1], [0, 0, 1, 1], [], []>} : vector<8x8xf32>, vector<8x32xf32>, vector<8x32xf32> -> vector<8x32xf32>
    %98 = vector.extract_strided_slice %61 {offsets = [0, 64], sizes = [8, 32], strides = [1, 1]} : vector<8x128xf32> to vector<8x32xf32>
    %99 = vector.extract_strided_slice %62 {offsets = [0, 64], sizes = [8, 32], strides = [1, 1]} : vector<8x128xf32> to vector<8x32xf32>
    %100 = vector.extract_strided_slice %63 {offsets = [0, 64], sizes = [8, 32], strides = [1, 1]} : vector<8x128xf32> to vector<8x32xf32>
    %101 = tpu.transpose %99, [1, 0] : vector<8x32xf32> -> vector<32x8xf32>
    %cst_80 = arith.constant dense<0.000000e+00> : vector<8x8xf32>
    %102 = tpu.matmul %98, %101, %cst_80 {dimension_numbers = #tpu.dot_dimension_numbers<[1], [0], [0], [1], [0, 0, 1, 1], [], []>} : vector<8x32xf32>, vector<32x8xf32>, vector<8x8xf32> -> vector<8x8xf32>
    %103 = arith.addf %102, %60 : vector<8x8xf32>
    %cst_81 = arith.constant dense<0xFF800000> : vector<8xf32>
    %104 = vector.multi_reduction <maximumf>, %103, %cst_81 [1] : vector<8x8xf32> to vector<8xf32>
    %105 = vector.shape_cast %104 : vector<8xf32> to vector<8x1xf32>
    %106 = vector.broadcast %105 : vector<8x1xf32> to vector<8x8xf32>
    %107 = arith.subf %103, %106 : vector<8x8xf32>
    %108 = math.exp %107 : vector<8x8xf32>
    %cst_82 = arith.constant dense<0.000000e+00> : vector<8xf32>
    %109 = vector.multi_reduction <add>, %108, %cst_82 [1] : vector<8x8xf32> to vector<8xf32>
    %110 = vector.shape_cast %109 : vector<8xf32> to vector<8x1xf32>
    %111 = tpu.reciprocal %110 {approx = true} : vector<8x1xf32> -> vector<8x1xf32>
    %112 = vector.broadcast %111 : vector<8x1xf32> to vector<8x8xf32>
    %113 = arith.mulf %108, %112 : vector<8x8xf32>
    %cst_83 = arith.constant dense<0.000000e+00> : vector<8x32xf32>
    %114 = tpu.matmul %113, %100, %cst_83 {dimension_numbers = #tpu.dot_dimension_numbers<[1], [0], [0], [1], [0, 0, 1, 1], [], []>} : vector<8x8xf32>, vector<8x32xf32>, vector<8x32xf32> -> vector<8x32xf32>
    %115 = vector.extract_strided_slice %61 {offsets = [0, 96], sizes = [8, 32], strides = [1, 1]} : vector<8x128xf32> to vector<8x32xf32>
    %116 = vector.extract_strided_slice %62 {offsets = [0, 96], sizes = [8, 32], strides = [1, 1]} : vector<8x128xf32> to vector<8x32xf32>
    %117 = vector.extract_strided_slice %63 {offsets = [0, 96], sizes = [8, 32], strides = [1, 1]} : vector<8x128xf32> to vector<8x32xf32>
    %118 = tpu.transpose %116, [1, 0] : vector<8x32xf32> -> vector<32x8xf32>
    %cst_84 = arith.constant dense<0.000000e+00> : vector<8x8xf32>
    %119 = tpu.matmul %115, %118, %cst_84 {dimension_numbers = #tpu.dot_dimension_numbers<[1], [0], [0], [1], [0, 0, 1, 1], [], []>} : vector<8x32xf32>, vector<32x8xf32>, vector<8x8xf32> -> vector<8x8xf32>
    %120 = arith.addf %119, %60 : vector<8x8xf32>
    %cst_85 = arith.constant dense<0xFF800000> : vector<8xf32>
    %121 = vector.multi_reduction <maximumf>, %120, %cst_85 [1] : vector<8x8xf32> to vector<8xf32>
    %122 = vector.shape_cast %121 : vector<8xf32> to vector<8x1xf32>
    %123 = vector.broadcast %122 : vector<8x1xf32> to vector<8x8xf32>
    %124 = arith.subf %120, %123 : vector<8x8xf32>
    %125 = math.exp %124 : vector<8x8xf32>
    %cst_86 = arith.constant dense<0.000000e+00> : vector<8xf32>
    %126 = vector.multi_reduction <add>, %125, %cst_86 [1] : vector<8x8xf32> to vector<8xf32>
    %127 = vector.shape_cast %126 : vector<8xf32> to vector<8x1xf32>
    %128 = tpu.reciprocal %127 {approx = true} : vector<8x1xf32> -> vector<8x1xf32>
    %129 = vector.broadcast %128 : vector<8x1xf32> to vector<8x8xf32>
    %130 = arith.mulf %125, %129 : vector<8x8xf32>
    %cst_87 = arith.constant dense<0.000000e+00> : vector<8x32xf32>
    %131 = tpu.matmul %130, %117, %cst_87 {dimension_numbers = #tpu.dot_dimension_numbers<[1], [0], [0], [1], [0, 0, 1, 1], [], []>} : vector<8x8xf32>, vector<8x32xf32>, vector<8x32xf32> -> vector<8x32xf32>
    %132 = tpu.concatenate %80, %97, %114, %131 in 1 : vector<8x32xf32>, vector<8x32xf32>, vector<8x32xf32>, vector<8x32xf32> -> vector<8x128xf32>
    %133 = vector.extract_strided_slice %45 {offsets = [1, 0], sizes = [1, 8], strides = [1, 1]} : vector<2x8xf32> to vector<1x8xf32>
    %cst_88 = arith.constant 5.000000e-01 : f32
    %134 = vector.broadcast %cst_88 : f32 to vector<1x8xf32>
    %135 = arith.cmpf ogt, %133, %134 : vector<1x8xf32>
    %136 = vector.broadcast %135 : vector<1x8xi1> to vector<8x8xi1>
    %137 = arith.andi %52, %136 : vector<8x8xi1>
    %cst_89 = arith.constant 0.000000e+00 : f32
    %cst_90 = arith.constant -1.000000e+10 : f32
    %138 = vector.broadcast %cst_89 : f32 to vector<8x8xf32>
    %139 = vector.broadcast %cst_90 : f32 to vector<8x8xf32>
    %140 = arith.select %137, %138, %139 : vector<8x8xi1>, vector<8x8xf32>
    %141 = vector.extract_strided_slice %49 {offsets = [8, 0], sizes = [8, 128], strides = [1, 1]} : vector<16x384xf32> to vector<8x128xf32>
    %142 = vector.extract_strided_slice %49 {offsets = [8, 128], sizes = [8, 128], strides = [1, 1]} : vector<16x384xf32> to vector<8x128xf32>
    %143 = vector.extract_strided_slice %49 {offsets = [8, 256], sizes = [8, 128], strides = [1, 1]} : vector<16x384xf32> to vector<8x128xf32>
    %144 = vector.extract_strided_slice %141 {offsets = [0, 0], sizes = [8, 32], strides = [1, 1]} : vector<8x128xf32> to vector<8x32xf32>
    %145 = vector.extract_strided_slice %142 {offsets = [0, 0], sizes = [8, 32], strides = [1, 1]} : vector<8x128xf32> to vector<8x32xf32>
    %146 = vector.extract_strided_slice %143 {offsets = [0, 0], sizes = [8, 32], strides = [1, 1]} : vector<8x128xf32> to vector<8x32xf32>
    %147 = tpu.transpose %145, [1, 0] : vector<8x32xf32> -> vector<32x8xf32>
    %cst_91 = arith.constant dense<0.000000e+00> : vector<8x8xf32>
    %148 = tpu.matmul %144, %147, %cst_91 {dimension_numbers = #tpu.dot_dimension_numbers<[1], [0], [0], [1], [0, 0, 1, 1], [], []>} : vector<8x32xf32>, vector<32x8xf32>, vector<8x8xf32> -> vector<8x8xf32>
    %149 = arith.addf %148, %140 : vector<8x8xf32>
    %cst_92 = arith.constant dense<0xFF800000> : vector<8xf32>
    %150 = vector.multi_reduction <maximumf>, %149, %cst_92 [1] : vector<8x8xf32> to vector<8xf32>
    %151 = vector.shape_cast %150 : vector<8xf32> to vector<8x1xf32>
    %152 = vector.broadcast %151 : vector<8x1xf32> to vector<8x8xf32>
    %153 = arith.subf %149, %152 : vector<8x8xf32>
    %154 = math.exp %153 : vector<8x8xf32>
    %cst_93 = arith.constant dense<0.000000e+00> : vector<8xf32>
    %155 = vector.multi_reduction <add>, %154, %cst_93 [1] : vector<8x8xf32> to vector<8xf32>
    %156 = vector.shape_cast %155 : vector<8xf32> to vector<8x1xf32>
    %157 = tpu.reciprocal %156 {approx = true} : vector<8x1xf32> -> vector<8x1xf32>
    %158 = vector.broadcast %157 : vector<8x1xf32> to vector<8x8xf32>
    %159 = arith.mulf %154, %158 : vector<8x8xf32>
    %cst_94 = arith.constant dense<0.000000e+00> : vector<8x32xf32>
    %160 = tpu.matmul %159, %146, %cst_94 {dimension_numbers = #tpu.dot_dimension_numbers<[1], [0], [0], [1], [0, 0, 1, 1], [], []>} : vector<8x8xf32>, vector<8x32xf32>, vector<8x32xf32> -> vector<8x32xf32>
    %161 = vector.extract_strided_slice %141 {offsets = [0, 32], sizes = [8, 32], strides = [1, 1]} : vector<8x128xf32> to vector<8x32xf32>
    %162 = vector.extract_strided_slice %142 {offsets = [0, 32], sizes = [8, 32], strides = [1, 1]} : vector<8x128xf32> to vector<8x32xf32>
    %163 = vector.extract_strided_slice %143 {offsets = [0, 32], sizes = [8, 32], strides = [1, 1]} : vector<8x128xf32> to vector<8x32xf32>
    %164 = tpu.transpose %162, [1, 0] : vector<8x32xf32> -> vector<32x8xf32>
    %cst_95 = arith.constant dense<0.000000e+00> : vector<8x8xf32>
    %165 = tpu.matmul %161, %164, %cst_95 {dimension_numbers = #tpu.dot_dimension_numbers<[1], [0], [0], [1], [0, 0, 1, 1], [], []>} : vector<8x32xf32>, vector<32x8xf32>, vector<8x8xf32> -> vector<8x8xf32>
    %166 = arith.addf %165, %140 : vector<8x8xf32>
    %cst_96 = arith.constant dense<0xFF800000> : vector<8xf32>
    %167 = vector.multi_reduction <maximumf>, %166, %cst_96 [1] : vector<8x8xf32> to vector<8xf32>
    %168 = vector.shape_cast %167 : vector<8xf32> to vector<8x1xf32>
    %169 = vector.broadcast %168 : vector<8x1xf32> to vector<8x8xf32>
    %170 = arith.subf %166, %169 : vector<8x8xf32>
    %171 = math.exp %170 : vector<8x8xf32>
    %cst_97 = arith.constant dense<0.000000e+00> : vector<8xf32>
    %172 = vector.multi_reduction <add>, %171, %cst_97 [1] : vector<8x8xf32> to vector<8xf32>
    %173 = vector.shape_cast %172 : vector<8xf32> to vector<8x1xf32>
    %174 = tpu.reciprocal %173 {approx = true} : vector<8x1xf32> -> vector<8x1xf32>
    %175 = vector.broadcast %174 : vector<8x1xf32> to vector<8x8xf32>
    %176 = arith.mulf %171, %175 : vector<8x8xf32>
    %cst_98 = arith.constant dense<0.000000e+00> : vector<8x32xf32>
    %177 = tpu.matmul %176, %163, %cst_98 {dimension_numbers = #tpu.dot_dimension_numbers<[1], [0], [0], [1], [0, 0, 1, 1], [], []>} : vector<8x8xf32>, vector<8x32xf32>, vector<8x32xf32> -> vector<8x32xf32>
    %178 = vector.extract_strided_slice %141 {offsets = [0, 64], sizes = [8, 32], strides = [1, 1]} : vector<8x128xf32> to vector<8x32xf32>
    %179 = vector.extract_strided_slice %142 {offsets = [0, 64], sizes = [8, 32], strides = [1, 1]} : vector<8x128xf32> to vector<8x32xf32>
    %180 = vector.extract_strided_slice %143 {offsets = [0, 64], sizes = [8, 32], strides = [1, 1]} : vector<8x128xf32> to vector<8x32xf32>
    %181 = tpu.transpose %179, [1, 0] : vector<8x32xf32> -> vector<32x8xf32>
    %cst_99 = arith.constant dense<0.000000e+00> : vector<8x8xf32>
    %182 = tpu.matmul %178, %181, %cst_99 {dimension_numbers = #tpu.dot_dimension_numbers<[1], [0], [0], [1], [0, 0, 1, 1], [], []>} : vector<8x32xf32>, vector<32x8xf32>, vector<8x8xf32> -> vector<8x8xf32>
    %183 = arith.addf %182, %140 : vector<8x8xf32>
    %cst_100 = arith.constant dense<0xFF800000> : vector<8xf32>
    %184 = vector.multi_reduction <maximumf>, %183, %cst_100 [1] : vector<8x8xf32> to vector<8xf32>
    %185 = vector.shape_cast %184 : vector<8xf32> to vector<8x1xf32>
    %186 = vector.broadcast %185 : vector<8x1xf32> to vector<8x8xf32>
    %187 = arith.subf %183, %186 : vector<8x8xf32>
    %188 = math.exp %187 : vector<8x8xf32>
    %cst_101 = arith.constant dense<0.000000e+00> : vector<8xf32>
    %189 = vector.multi_reduction <add>, %188, %cst_101 [1] : vector<8x8xf32> to vector<8xf32>
    %190 = vector.shape_cast %189 : vector<8xf32> to vector<8x1xf32>
    %191 = tpu.reciprocal %190 {approx = true} : vector<8x1xf32> -> vector<8x1xf32>
    %192 = vector.broadcast %191 : vector<8x1xf32> to vector<8x8xf32>
    %193 = arith.mulf %188, %192 : vector<8x8xf32>
    %cst_102 = arith.constant dense<0.000000e+00> : vector<8x32xf32>
    %194 = tpu.matmul %193, %180, %cst_102 {dimension_numbers = #tpu.dot_dimension_numbers<[1], [0], [0], [1], [0, 0, 1, 1], [], []>} : vector<8x8xf32>, vector<8x32xf32>, vector<8x32xf32> -> vector<8x32xf32>
    %195 = vector.extract_strided_slice %141 {offsets = [0, 96], sizes = [8, 32], strides = [1, 1]} : vector<8x128xf32> to vector<8x32xf32>
    %196 = vector.extract_strided_slice %142 {offsets = [0, 96], sizes = [8, 32], strides = [1, 1]} : vector<8x128xf32> to vector<8x32xf32>
    %197 = vector.extract_strided_slice %143 {offsets = [0, 96], sizes = [8, 32], strides = [1, 1]} : vector<8x128xf32> to vector<8x32xf32>
    %198 = tpu.transpose %196, [1, 0] : vector<8x32xf32> -> vector<32x8xf32>
    %cst_103 = arith.constant dense<0.000000e+00> : vector<8x8xf32>
    %199 = tpu.matmul %195, %198, %cst_103 {dimension_numbers = #tpu.dot_dimension_numbers<[1], [0], [0], [1], [0, 0, 1, 1], [], []>} : vector<8x32xf32>, vector<32x8xf32>, vector<8x8xf32> -> vector<8x8xf32>
    %200 = arith.addf %199, %140 : vector<8x8xf32>
    %cst_104 = arith.constant dense<0xFF800000> : vector<8xf32>
    %201 = vector.multi_reduction <maximumf>, %200, %cst_104 [1] : vector<8x8xf32> to vector<8xf32>
    %202 = vector.shape_cast %201 : vector<8xf32> to vector<8x1xf32>
    %203 = vector.broadcast %202 : vector<8x1xf32> to vector<8x8xf32>
    %204 = arith.subf %200, %203 : vector<8x8xf32>
    %205 = math.exp %204 : vector<8x8xf32>
    %cst_105 = arith.constant dense<0.000000e+00> : vector<8xf32>
    %206 = vector.multi_reduction <add>, %205, %cst_105 [1] : vector<8x8xf32> to vector<8xf32>
    %207 = vector.shape_cast %206 : vector<8xf32> to vector<8x1xf32>
    %208 = tpu.reciprocal %207 {approx = true} : vector<8x1xf32> -> vector<8x1xf32>
    %209 = vector.broadcast %208 : vector<8x1xf32> to vector<8x8xf32>
    %210 = arith.mulf %205, %209 : vector<8x8xf32>
    %cst_106 = arith.constant dense<0.000000e+00> : vector<8x32xf32>
    %211 = tpu.matmul %210, %197, %cst_106 {dimension_numbers = #tpu.dot_dimension_numbers<[1], [0], [0], [1], [0, 0, 1, 1], [], []>} : vector<8x8xf32>, vector<8x32xf32>, vector<8x32xf32> -> vector<8x32xf32>
    %212 = tpu.concatenate %160, %177, %194, %211 in 1 : vector<8x32xf32>, vector<8x32xf32>, vector<8x32xf32>, vector<8x32xf32> -> vector<8x128xf32>
    %213 = tpu.concatenate %132, %212 in 0 : vector<8x128xf32>, vector<8x128xf32> -> vector<16x128xf32>
    %214 = arith.truncf %213 : vector<16x128xf32> to vector<16x128xbf16>
    %cst_107 = arith.constant dense<0.000000e+00> : vector<16x128xf32>
    %215 = tpu.matmul %214, %5, %cst_107 {dimension_numbers = #tpu.dot_dimension_numbers<[1], [0], [0], [1], [0, 0, 1, 1], [], []>} : vector<16x128xbf16>, vector<128x128xbf16>, vector<16x128xf32> -> vector<16x128xf32>
    %216 = arith.addf %41, %215 : vector<16x128xf32>
    %217 = vector.broadcast %7 : vector<1x128xf32> to vector<16x128xf32>
    %218 = arith.addf %216, %217 : vector<16x128xf32>
    %cst_108 = arith.constant dense<0.000000e+00> : vector<16xf32>
    %219 = vector.multi_reduction <add>, %218, %cst_108 [1] : vector<16x128xf32> to vector<16xf32>
    %220 = vector.shape_cast %219 : vector<16xf32> to vector<16x1xf32>
    %cst_109 = arith.constant 1.280000e+02 : f32
    %221 = vector.broadcast %cst_109 : f32 to vector<16x1xf32>
    %222 = arith.divf %220, %221 : vector<16x1xf32>
    %223 = vector.broadcast %222 : vector<16x1xf32> to vector<16x128xf32>
    %224 = arith.subf %218, %223 : vector<16x128xf32>
    %225 = arith.mulf %224, %224 : vector<16x128xf32>
    %cst_110 = arith.constant dense<0.000000e+00> : vector<16xf32>
    %226 = vector.multi_reduction <add>, %225, %cst_110 [1] : vector<16x128xf32> to vector<16xf32>
    %227 = vector.shape_cast %226 : vector<16xf32> to vector<16x1xf32>
    %cst_111 = arith.constant 1.280000e+02 : f32
    %228 = vector.broadcast %cst_111 : f32 to vector<16x1xf32>
    %229 = arith.divf %227, %228 : vector<16x1xf32>
    %230 = vector.broadcast %222 : vector<16x1xf32> to vector<16x128xf32>
    %231 = arith.subf %218, %230 : vector<16x128xf32>
    %cst_112 = arith.constant 9.99999974E-6 : f32
    %232 = vector.broadcast %cst_112 : f32 to vector<16x1xf32>
    %233 = arith.addf %229, %232 : vector<16x1xf32>
    %234 = math.rsqrt %233 : vector<16x1xf32>
    %235 = vector.broadcast %234 : vector<16x1xf32> to vector<16x128xf32>
    %236 = arith.mulf %231, %235 : vector<16x128xf32>
    %237 = vector.broadcast %9 : vector<1x128xf32> to vector<16x128xf32>
    %238 = arith.mulf %236, %237 : vector<16x128xf32>
    %239 = vector.broadcast %11 : vector<1x128xf32> to vector<16x128xf32>
    %240 = arith.addf %238, %239 : vector<16x128xf32>
    %241 = arith.truncf %240 : vector<16x128xf32> to vector<16x128xbf16>
    %cst_113 = arith.constant dense<0.000000e+00> : vector<16x128xf32>
    %242 = tpu.matmul %241, %13, %cst_113 {dimension_numbers = #tpu.dot_dimension_numbers<[1], [0], [0], [1], [0, 0, 1, 1], [], []>} : vector<16x128xbf16>, vector<128x128xbf16>, vector<16x128xf32> -> vector<16x128xf32>
    %243 = vector.broadcast %15 : vector<1x128xf32> to vector<16x128xf32>
    %244 = arith.addf %242, %243 : vector<16x128xf32>
    %245 = arith.truncf %43 : vector<16x128xf32> to vector<16x128xbf16>
    %cst_114 = arith.constant dense<0.000000e+00> : vector<16x256xf32>
    %246 = tpu.matmul %245, %17, %cst_114 {dimension_numbers = #tpu.dot_dimension_numbers<[1], [0], [0], [1], [0, 0, 1, 1], [], []>} : vector<16x128xbf16>, vector<128x256xbf16>, vector<16x256xf32> -> vector<16x256xf32>
    %247 = vector.broadcast %19 : vector<1x256xf32> to vector<16x256xf32>
    %248 = arith.addf %246, %247 : vector<16x256xf32>
    %249 = vector.extract_strided_slice %44 {offsets = [0, 0], sizes = [1, 8], strides = [1, 1]} : vector<2x8xf32> to vector<1x8xf32>
    %cst_115 = arith.constant 5.000000e-01 : f32
    %250 = vector.broadcast %cst_115 : f32 to vector<1x8xf32>
    %251 = arith.cmpf ogt, %249, %250 : vector<1x8xf32>
    %cst_116 = arith.constant 0.000000e+00 : f32
    %cst_117 = arith.constant -1.000000e+10 : f32
    %252 = vector.broadcast %cst_116 : f32 to vector<1x8xf32>
    %253 = vector.broadcast %cst_117 : f32 to vector<1x8xf32>
    %254 = arith.select %251, %252, %253 : vector<1x8xi1>, vector<1x8xf32>
    %255 = vector.extract_strided_slice %244 {offsets = [0, 0], sizes = [8, 128], strides = [1, 1]} : vector<16x128xf32> to vector<8x128xf32>
    %256 = vector.extract_strided_slice %248 {offsets = [0, 0], sizes = [8, 128], strides = [1, 1]} : vector<16x256xf32> to vector<8x128xf32>
    %257 = vector.extract_strided_slice %248 {offsets = [0, 128], sizes = [8, 128], strides = [1, 1]} : vector<16x256xf32> to vector<8x128xf32>
    %258 = vector.extract_strided_slice %255 {offsets = [0, 0], sizes = [8, 32], strides = [1, 1]} : vector<8x128xf32> to vector<8x32xf32>
    %259 = vector.extract_strided_slice %256 {offsets = [0, 0], sizes = [8, 32], strides = [1, 1]} : vector<8x128xf32> to vector<8x32xf32>
    %260 = vector.extract_strided_slice %257 {offsets = [0, 0], sizes = [8, 32], strides = [1, 1]} : vector<8x128xf32> to vector<8x32xf32>
    %261 = tpu.transpose %259, [1, 0] : vector<8x32xf32> -> vector<32x8xf32>
    %cst_118 = arith.constant dense<0.000000e+00> : vector<8x8xf32>
    %262 = tpu.matmul %258, %261, %cst_118 {dimension_numbers = #tpu.dot_dimension_numbers<[1], [0], [0], [1], [0, 0, 1, 1], [], []>} : vector<8x32xf32>, vector<32x8xf32>, vector<8x8xf32> -> vector<8x8xf32>
    %263 = vector.broadcast %254 : vector<1x8xf32> to vector<8x8xf32>
    %264 = arith.addf %262, %263 : vector<8x8xf32>
    %cst_119 = arith.constant dense<0xFF800000> : vector<8xf32>
    %265 = vector.multi_reduction <maximumf>, %264, %cst_119 [1] : vector<8x8xf32> to vector<8xf32>
    %266 = vector.shape_cast %265 : vector<8xf32> to vector<8x1xf32>
    %267 = vector.broadcast %266 : vector<8x1xf32> to vector<8x8xf32>
    %268 = arith.subf %264, %267 : vector<8x8xf32>
    %269 = math.exp %268 : vector<8x8xf32>
    %cst_120 = arith.constant dense<0.000000e+00> : vector<8xf32>
    %270 = vector.multi_reduction <add>, %269, %cst_120 [1] : vector<8x8xf32> to vector<8xf32>
    %271 = vector.shape_cast %270 : vector<8xf32> to vector<8x1xf32>
    %272 = vector.broadcast %271 : vector<8x1xf32> to vector<8x8xf32>
    %273 = arith.divf %269, %272 : vector<8x8xf32>
    %cst_121 = arith.constant dense<0.000000e+00> : vector<8x32xf32>
    %274 = tpu.matmul %273, %260, %cst_121 {dimension_numbers = #tpu.dot_dimension_numbers<[1], [0], [0], [1], [0, 0, 1, 1], [], []>} : vector<8x8xf32>, vector<8x32xf32>, vector<8x32xf32> -> vector<8x32xf32>
    %275 = vector.extract_strided_slice %255 {offsets = [0, 32], sizes = [8, 32], strides = [1, 1]} : vector<8x128xf32> to vector<8x32xf32>
    %276 = vector.extract_strided_slice %256 {offsets = [0, 32], sizes = [8, 32], strides = [1, 1]} : vector<8x128xf32> to vector<8x32xf32>
    %277 = vector.extract_strided_slice %257 {offsets = [0, 32], sizes = [8, 32], strides = [1, 1]} : vector<8x128xf32> to vector<8x32xf32>
    %278 = tpu.transpose %276, [1, 0] : vector<8x32xf32> -> vector<32x8xf32>
    %cst_122 = arith.constant dense<0.000000e+00> : vector<8x8xf32>
    %279 = tpu.matmul %275, %278, %cst_122 {dimension_numbers = #tpu.dot_dimension_numbers<[1], [0], [0], [1], [0, 0, 1, 1], [], []>} : vector<8x32xf32>, vector<32x8xf32>, vector<8x8xf32> -> vector<8x8xf32>
    %280 = vector.broadcast %254 : vector<1x8xf32> to vector<8x8xf32>
    %281 = arith.addf %279, %280 : vector<8x8xf32>
    %cst_123 = arith.constant dense<0xFF800000> : vector<8xf32>
    %282 = vector.multi_reduction <maximumf>, %281, %cst_123 [1] : vector<8x8xf32> to vector<8xf32>
    %283 = vector.shape_cast %282 : vector<8xf32> to vector<8x1xf32>
    %284 = vector.broadcast %283 : vector<8x1xf32> to vector<8x8xf32>
    %285 = arith.subf %281, %284 : vector<8x8xf32>
    %286 = math.exp %285 : vector<8x8xf32>
    %cst_124 = arith.constant dense<0.000000e+00> : vector<8xf32>
    %287 = vector.multi_reduction <add>, %286, %cst_124 [1] : vector<8x8xf32> to vector<8xf32>
    %288 = vector.shape_cast %287 : vector<8xf32> to vector<8x1xf32>
    %289 = vector.broadcast %288 : vector<8x1xf32> to vector<8x8xf32>
    %290 = arith.divf %286, %289 : vector<8x8xf32>
    %cst_125 = arith.constant dense<0.000000e+00> : vector<8x32xf32>
    %291 = tpu.matmul %290, %277, %cst_125 {dimension_numbers = #tpu.dot_dimension_numbers<[1], [0], [0], [1], [0, 0, 1, 1], [], []>} : vector<8x8xf32>, vector<8x32xf32>, vector<8x32xf32> -> vector<8x32xf32>
    %292 = vector.extract_strided_slice %255 {offsets = [0, 64], sizes = [8, 32], strides = [1, 1]} : vector<8x128xf32> to vector<8x32xf32>
    %293 = vector.extract_strided_slice %256 {offsets = [0, 64], sizes = [8, 32], strides = [1, 1]} : vector<8x128xf32> to vector<8x32xf32>
    %294 = vector.extract_strided_slice %257 {offsets = [0, 64], sizes = [8, 32], strides = [1, 1]} : vector<8x128xf32> to vector<8x32xf32>
    %295 = tpu.transpose %293, [1, 0] : vector<8x32xf32> -> vector<32x8xf32>
    %cst_126 = arith.constant dense<0.000000e+00> : vector<8x8xf32>
    %296 = tpu.matmul %292, %295, %cst_126 {dimension_numbers = #tpu.dot_dimension_numbers<[1], [0], [0], [1], [0, 0, 1, 1], [], []>} : vector<8x32xf32>, vector<32x8xf32>, vector<8x8xf32> -> vector<8x8xf32>
    %297 = vector.broadcast %254 : vector<1x8xf32> to vector<8x8xf32>
    %298 = arith.addf %296, %297 : vector<8x8xf32>
    %cst_127 = arith.constant dense<0xFF800000> : vector<8xf32>
    %299 = vector.multi_reduction <maximumf>, %298, %cst_127 [1] : vector<8x8xf32> to vector<8xf32>
    %300 = vector.shape_cast %299 : vector<8xf32> to vector<8x1xf32>
    %301 = vector.broadcast %300 : vector<8x1xf32> to vector<8x8xf32>
    %302 = arith.subf %298, %301 : vector<8x8xf32>
    %303 = math.exp %302 : vector<8x8xf32>
    %cst_128 = arith.constant dense<0.000000e+00> : vector<8xf32>
    %304 = vector.multi_reduction <add>, %303, %cst_128 [1] : vector<8x8xf32> to vector<8xf32>
    %305 = vector.shape_cast %304 : vector<8xf32> to vector<8x1xf32>
    %306 = vector.broadcast %305 : vector<8x1xf32> to vector<8x8xf32>
    %307 = arith.divf %303, %306 : vector<8x8xf32>
    %cst_129 = arith.constant dense<0.000000e+00> : vector<8x32xf32>
    %308 = tpu.matmul %307, %294, %cst_129 {dimension_numbers = #tpu.dot_dimension_numbers<[1], [0], [0], [1], [0, 0, 1, 1], [], []>} : vector<8x8xf32>, vector<8x32xf32>, vector<8x32xf32> -> vector<8x32xf32>
    %309 = vector.extract_strided_slice %255 {offsets = [0, 96], sizes = [8, 32], strides = [1, 1]} : vector<8x128xf32> to vector<8x32xf32>
    %310 = vector.extract_strided_slice %256 {offsets = [0, 96], sizes = [8, 32], strides = [1, 1]} : vector<8x128xf32> to vector<8x32xf32>
    %311 = vector.extract_strided_slice %257 {offsets = [0, 96], sizes = [8, 32], strides = [1, 1]} : vector<8x128xf32> to vector<8x32xf32>
    %312 = tpu.transpose %310, [1, 0] : vector<8x32xf32> -> vector<32x8xf32>
    %cst_130 = arith.constant dense<0.000000e+00> : vector<8x8xf32>
    %313 = tpu.matmul %309, %312, %cst_130 {dimension_numbers = #tpu.dot_dimension_numbers<[1], [0], [0], [1], [0, 0, 1, 1], [], []>} : vector<8x32xf32>, vector<32x8xf32>, vector<8x8xf32> -> vector<8x8xf32>
    %314 = vector.broadcast %254 : vector<1x8xf32> to vector<8x8xf32>
    %315 = arith.addf %313, %314 : vector<8x8xf32>
    %cst_131 = arith.constant dense<0xFF800000> : vector<8xf32>
    %316 = vector.multi_reduction <maximumf>, %315, %cst_131 [1] : vector<8x8xf32> to vector<8xf32>
    %317 = vector.shape_cast %316 : vector<8xf32> to vector<8x1xf32>
    %318 = vector.broadcast %317 : vector<8x1xf32> to vector<8x8xf32>
    %319 = arith.subf %315, %318 : vector<8x8xf32>
    %320 = math.exp %319 : vector<8x8xf32>
    %cst_132 = arith.constant dense<0.000000e+00> : vector<8xf32>
    %321 = vector.multi_reduction <add>, %320, %cst_132 [1] : vector<8x8xf32> to vector<8xf32>
    %322 = vector.shape_cast %321 : vector<8xf32> to vector<8x1xf32>
    %323 = vector.broadcast %322 : vector<8x1xf32> to vector<8x8xf32>
    %324 = arith.divf %320, %323 : vector<8x8xf32>
    %cst_133 = arith.constant dense<0.000000e+00> : vector<8x32xf32>
    %325 = tpu.matmul %324, %311, %cst_133 {dimension_numbers = #tpu.dot_dimension_numbers<[1], [0], [0], [1], [0, 0, 1, 1], [], []>} : vector<8x8xf32>, vector<8x32xf32>, vector<8x32xf32> -> vector<8x32xf32>
    %326 = tpu.concatenate %274, %291, %308, %325 in 1 : vector<8x32xf32>, vector<8x32xf32>, vector<8x32xf32>, vector<8x32xf32> -> vector<8x128xf32>
    %327 = tpu.concatenate %273, %290, %307, %324 in 1 : vector<8x8xf32>, vector<8x8xf32>, vector<8x8xf32>, vector<8x8xf32> -> vector<8x32xf32>
    %328 = vector.extract_strided_slice %44 {offsets = [1, 0], sizes = [1, 8], strides = [1, 1]} : vector<2x8xf32> to vector<1x8xf32>
    %cst_134 = arith.constant 5.000000e-01 : f32
    %329 = vector.broadcast %cst_134 : f32 to vector<1x8xf32>
    %330 = arith.cmpf ogt, %328, %329 : vector<1x8xf32>
    %cst_135 = arith.constant 0.000000e+00 : f32
    %cst_136 = arith.constant -1.000000e+10 : f32
    %331 = vector.broadcast %cst_135 : f32 to vector<1x8xf32>
    %332 = vector.broadcast %cst_136 : f32 to vector<1x8xf32>
    %333 = arith.select %330, %331, %332 : vector<1x8xi1>, vector<1x8xf32>
    %334 = vector.extract_strided_slice %244 {offsets = [8, 0], sizes = [8, 128], strides = [1, 1]} : vector<16x128xf32> to vector<8x128xf32>
    %335 = vector.extract_strided_slice %248 {offsets = [8, 0], sizes = [8, 128], strides = [1, 1]} : vector<16x256xf32> to vector<8x128xf32>
    %336 = vector.extract_strided_slice %248 {offsets = [8, 128], sizes = [8, 128], strides = [1, 1]} : vector<16x256xf32> to vector<8x128xf32>
    %337 = vector.extract_strided_slice %334 {offsets = [0, 0], sizes = [8, 32], strides = [1, 1]} : vector<8x128xf32> to vector<8x32xf32>
    %338 = vector.extract_strided_slice %335 {offsets = [0, 0], sizes = [8, 32], strides = [1, 1]} : vector<8x128xf32> to vector<8x32xf32>
    %339 = vector.extract_strided_slice %336 {offsets = [0, 0], sizes = [8, 32], strides = [1, 1]} : vector<8x128xf32> to vector<8x32xf32>
    %340 = tpu.transpose %338, [1, 0] : vector<8x32xf32> -> vector<32x8xf32>
    %cst_137 = arith.constant dense<0.000000e+00> : vector<8x8xf32>
    %341 = tpu.matmul %337, %340, %cst_137 {dimension_numbers = #tpu.dot_dimension_numbers<[1], [0], [0], [1], [0, 0, 1, 1], [], []>} : vector<8x32xf32>, vector<32x8xf32>, vector<8x8xf32> -> vector<8x8xf32>
    %342 = vector.broadcast %333 : vector<1x8xf32> to vector<8x8xf32>
    %343 = arith.addf %341, %342 : vector<8x8xf32>
    %cst_138 = arith.constant dense<0xFF800000> : vector<8xf32>
    %344 = vector.multi_reduction <maximumf>, %343, %cst_138 [1] : vector<8x8xf32> to vector<8xf32>
    %345 = vector.shape_cast %344 : vector<8xf32> to vector<8x1xf32>
    %346 = vector.broadcast %345 : vector<8x1xf32> to vector<8x8xf32>
    %347 = arith.subf %343, %346 : vector<8x8xf32>
    %348 = math.exp %347 : vector<8x8xf32>
    %cst_139 = arith.constant dense<0.000000e+00> : vector<8xf32>
    %349 = vector.multi_reduction <add>, %348, %cst_139 [1] : vector<8x8xf32> to vector<8xf32>
    %350 = vector.shape_cast %349 : vector<8xf32> to vector<8x1xf32>
    %351 = vector.broadcast %350 : vector<8x1xf32> to vector<8x8xf32>
    %352 = arith.divf %348, %351 : vector<8x8xf32>
    %cst_140 = arith.constant dense<0.000000e+00> : vector<8x32xf32>
    %353 = tpu.matmul %352, %339, %cst_140 {dimension_numbers = #tpu.dot_dimension_numbers<[1], [0], [0], [1], [0, 0, 1, 1], [], []>} : vector<8x8xf32>, vector<8x32xf32>, vector<8x32xf32> -> vector<8x32xf32>
    %354 = vector.extract_strided_slice %334 {offsets = [0, 32], sizes = [8, 32], strides = [1, 1]} : vector<8x128xf32> to vector<8x32xf32>
    %355 = vector.extract_strided_slice %335 {offsets = [0, 32], sizes = [8, 32], strides = [1, 1]} : vector<8x128xf32> to vector<8x32xf32>
    %356 = vector.extract_strided_slice %336 {offsets = [0, 32], sizes = [8, 32], strides = [1, 1]} : vector<8x128xf32> to vector<8x32xf32>
    %357 = tpu.transpose %355, [1, 0] : vector<8x32xf32> -> vector<32x8xf32>
    %cst_141 = arith.constant dense<0.000000e+00> : vector<8x8xf32>
    %358 = tpu.matmul %354, %357, %cst_141 {dimension_numbers = #tpu.dot_dimension_numbers<[1], [0], [0], [1], [0, 0, 1, 1], [], []>} : vector<8x32xf32>, vector<32x8xf32>, vector<8x8xf32> -> vector<8x8xf32>
    %359 = vector.broadcast %333 : vector<1x8xf32> to vector<8x8xf32>
    %360 = arith.addf %358, %359 : vector<8x8xf32>
    %cst_142 = arith.constant dense<0xFF800000> : vector<8xf32>
    %361 = vector.multi_reduction <maximumf>, %360, %cst_142 [1] : vector<8x8xf32> to vector<8xf32>
    %362 = vector.shape_cast %361 : vector<8xf32> to vector<8x1xf32>
    %363 = vector.broadcast %362 : vector<8x1xf32> to vector<8x8xf32>
    %364 = arith.subf %360, %363 : vector<8x8xf32>
    %365 = math.exp %364 : vector<8x8xf32>
    %cst_143 = arith.constant dense<0.000000e+00> : vector<8xf32>
    %366 = vector.multi_reduction <add>, %365, %cst_143 [1] : vector<8x8xf32> to vector<8xf32>
    %367 = vector.shape_cast %366 : vector<8xf32> to vector<8x1xf32>
    %368 = vector.broadcast %367 : vector<8x1xf32> to vector<8x8xf32>
    %369 = arith.divf %365, %368 : vector<8x8xf32>
    %cst_144 = arith.constant dense<0.000000e+00> : vector<8x32xf32>
    %370 = tpu.matmul %369, %356, %cst_144 {dimension_numbers = #tpu.dot_dimension_numbers<[1], [0], [0], [1], [0, 0, 1, 1], [], []>} : vector<8x8xf32>, vector<8x32xf32>, vector<8x32xf32> -> vector<8x32xf32>
    %371 = vector.extract_strided_slice %334 {offsets = [0, 64], sizes = [8, 32], strides = [1, 1]} : vector<8x128xf32> to vector<8x32xf32>
    %372 = vector.extract_strided_slice %335 {offsets = [0, 64], sizes = [8, 32], strides = [1, 1]} : vector<8x128xf32> to vector<8x32xf32>
    %373 = vector.extract_strided_slice %336 {offsets = [0, 64], sizes = [8, 32], strides = [1, 1]} : vector<8x128xf32> to vector<8x32xf32>
    %374 = tpu.transpose %372, [1, 0] : vector<8x32xf32> -> vector<32x8xf32>
    %cst_145 = arith.constant dense<0.000000e+00> : vector<8x8xf32>
    %375 = tpu.matmul %371, %374, %cst_145 {dimension_numbers = #tpu.dot_dimension_numbers<[1], [0], [0], [1], [0, 0, 1, 1], [], []>} : vector<8x32xf32>, vector<32x8xf32>, vector<8x8xf32> -> vector<8x8xf32>
    %376 = vector.broadcast %333 : vector<1x8xf32> to vector<8x8xf32>
    %377 = arith.addf %375, %376 : vector<8x8xf32>
    %cst_146 = arith.constant dense<0xFF800000> : vector<8xf32>
    %378 = vector.multi_reduction <maximumf>, %377, %cst_146 [1] : vector<8x8xf32> to vector<8xf32>
    %379 = vector.shape_cast %378 : vector<8xf32> to vector<8x1xf32>
    %380 = vector.broadcast %379 : vector<8x1xf32> to vector<8x8xf32>
    %381 = arith.subf %377, %380 : vector<8x8xf32>
    %382 = math.exp %381 : vector<8x8xf32>
    %cst_147 = arith.constant dense<0.000000e+00> : vector<8xf32>
    %383 = vector.multi_reduction <add>, %382, %cst_147 [1] : vector<8x8xf32> to vector<8xf32>
    %384 = vector.shape_cast %383 : vector<8xf32> to vector<8x1xf32>
    %385 = vector.broadcast %384 : vector<8x1xf32> to vector<8x8xf32>
    %386 = arith.divf %382, %385 : vector<8x8xf32>
    %cst_148 = arith.constant dense<0.000000e+00> : vector<8x32xf32>
    %387 = tpu.matmul %386, %373, %cst_148 {dimension_numbers = #tpu.dot_dimension_numbers<[1], [0], [0], [1], [0, 0, 1, 1], [], []>} : vector<8x8xf32>, vector<8x32xf32>, vector<8x32xf32> -> vector<8x32xf32>
    %388 = vector.extract_strided_slice %334 {offsets = [0, 96], sizes = [8, 32], strides = [1, 1]} : vector<8x128xf32> to vector<8x32xf32>
    %389 = vector.extract_strided_slice %335 {offsets = [0, 96], sizes = [8, 32], strides = [1, 1]} : vector<8x128xf32> to vector<8x32xf32>
    %390 = vector.extract_strided_slice %336 {offsets = [0, 96], sizes = [8, 32], strides = [1, 1]} : vector<8x128xf32> to vector<8x32xf32>
    %391 = tpu.transpose %389, [1, 0] : vector<8x32xf32> -> vector<32x8xf32>
    %cst_149 = arith.constant dense<0.000000e+00> : vector<8x8xf32>
    %392 = tpu.matmul %388, %391, %cst_149 {dimension_numbers = #tpu.dot_dimension_numbers<[1], [0], [0], [1], [0, 0, 1, 1], [], []>} : vector<8x32xf32>, vector<32x8xf32>, vector<8x8xf32> -> vector<8x8xf32>
    %393 = vector.broadcast %333 : vector<1x8xf32> to vector<8x8xf32>
    %394 = arith.addf %392, %393 : vector<8x8xf32>
    %cst_150 = arith.constant dense<0xFF800000> : vector<8xf32>
    %395 = vector.multi_reduction <maximumf>, %394, %cst_150 [1] : vector<8x8xf32> to vector<8xf32>
    %396 = vector.shape_cast %395 : vector<8xf32> to vector<8x1xf32>
    %397 = vector.broadcast %396 : vector<8x1xf32> to vector<8x8xf32>
    %398 = arith.subf %394, %397 : vector<8x8xf32>
    %399 = math.exp %398 : vector<8x8xf32>
    %cst_151 = arith.constant dense<0.000000e+00> : vector<8xf32>
    %400 = vector.multi_reduction <add>, %399, %cst_151 [1] : vector<8x8xf32> to vector<8xf32>
    %401 = vector.shape_cast %400 : vector<8xf32> to vector<8x1xf32>
    %402 = vector.broadcast %401 : vector<8x1xf32> to vector<8x8xf32>
    %403 = arith.divf %399, %402 : vector<8x8xf32>
    %cst_152 = arith.constant dense<0.000000e+00> : vector<8x32xf32>
    %404 = tpu.matmul %403, %390, %cst_152 {dimension_numbers = #tpu.dot_dimension_numbers<[1], [0], [0], [1], [0, 0, 1, 1], [], []>} : vector<8x8xf32>, vector<8x32xf32>, vector<8x32xf32> -> vector<8x32xf32>
    %405 = tpu.concatenate %353, %370, %387, %404 in 1 : vector<8x32xf32>, vector<8x32xf32>, vector<8x32xf32>, vector<8x32xf32> -> vector<8x128xf32>
    %406 = tpu.concatenate %352, %369, %386, %403 in 1 : vector<8x8xf32>, vector<8x8xf32>, vector<8x8xf32>, vector<8x8xf32> -> vector<8x32xf32>
    %407 = tpu.concatenate %326, %405 in 0 : vector<8x128xf32>, vector<8x128xf32> -> vector<16x128xf32>
    %408 = arith.truncf %407 : vector<16x128xf32> to vector<16x128xbf16>
    %cst_153 = arith.constant dense<0.000000e+00> : vector<16x128xf32>
    %409 = tpu.matmul %408, %21, %cst_153 {dimension_numbers = #tpu.dot_dimension_numbers<[1], [0], [0], [1], [0, 0, 1, 1], [], []>} : vector<16x128xbf16>, vector<128x128xbf16>, vector<16x128xf32> -> vector<16x128xf32>
    %410 = arith.addf %240, %409 : vector<16x128xf32>
    %411 = vector.broadcast %23 : vector<1x128xf32> to vector<16x128xf32>
    %412 = arith.addf %410, %411 : vector<16x128xf32>
    %cst_154 = arith.constant dense<0.000000e+00> : vector<16xf32>
    %413 = vector.multi_reduction <add>, %412, %cst_154 [1] : vector<16x128xf32> to vector<16xf32>
    %414 = vector.shape_cast %413 : vector<16xf32> to vector<16x1xf32>
    %cst_155 = arith.constant 1.280000e+02 : f32
    %415 = vector.broadcast %cst_155 : f32 to vector<16x1xf32>
    %416 = arith.divf %414, %415 : vector<16x1xf32>
    %417 = vector.broadcast %416 : vector<16x1xf32> to vector<16x128xf32>
    %418 = arith.subf %412, %417 : vector<16x128xf32>
    %419 = arith.mulf %418, %418 : vector<16x128xf32>
    %cst_156 = arith.constant dense<0.000000e+00> : vector<16xf32>
    %420 = vector.multi_reduction <add>, %419, %cst_156 [1] : vector<16x128xf32> to vector<16xf32>
    %421 = vector.shape_cast %420 : vector<16xf32> to vector<16x1xf32>
    %cst_157 = arith.constant 1.280000e+02 : f32
    %422 = vector.broadcast %cst_157 : f32 to vector<16x1xf32>
    %423 = arith.divf %421, %422 : vector<16x1xf32>
    %424 = vector.broadcast %416 : vector<16x1xf32> to vector<16x128xf32>
    %425 = arith.subf %412, %424 : vector<16x128xf32>
    %cst_158 = arith.constant 9.99999974E-6 : f32
    %426 = vector.broadcast %cst_158 : f32 to vector<16x1xf32>
    %427 = arith.addf %423, %426 : vector<16x1xf32>
    %428 = math.rsqrt %427 : vector<16x1xf32>
    %429 = vector.broadcast %428 : vector<16x1xf32> to vector<16x128xf32>
    %430 = arith.mulf %425, %429 : vector<16x128xf32>
    %431 = vector.broadcast %25 : vector<1x128xf32> to vector<16x128xf32>
    %432 = arith.mulf %430, %431 : vector<16x128xf32>
    %433 = vector.broadcast %27 : vector<1x128xf32> to vector<16x128xf32>
    %434 = arith.addf %432, %433 : vector<16x128xf32>
    %435 = arith.truncf %434 : vector<16x128xf32> to vector<16x128xbf16>
    %cst_159 = arith.constant dense<0.000000e+00> : vector<16x256xf32>
    %436 = tpu.matmul %435, %29, %cst_159 {dimension_numbers = #tpu.dot_dimension_numbers<[1], [0], [0], [1], [0, 0, 1, 1], [], []>} : vector<16x128xbf16>, vector<128x256xbf16>, vector<16x256xf32> -> vector<16x256xf32>
    %437 = vector.broadcast %31 : vector<1x256xf32> to vector<16x256xf32>
    %438 = arith.addf %436, %437 : vector<16x256xf32>
    %cst_160 = arith.constant 0.000000e+00 : f32
    %439 = vector.broadcast %cst_160 : f32 to vector<16x256xf32>
    %440 = arith.maximumf %438, %439 : vector<16x256xf32>
    %441 = arith.truncf %440 : vector<16x256xf32> to vector<16x256xbf16>
    %cst_161 = arith.constant dense<0.000000e+00> : vector<16x128xf32>
    %442 = tpu.matmul %441, %33, %cst_161 {dimension_numbers = #tpu.dot_dimension_numbers<[1], [0], [0], [1], [0, 0, 1, 1], [], []>} : vector<16x256xbf16>, vector<256x128xbf16>, vector<16x128xf32> -> vector<16x128xf32>
    %443 = vector.broadcast %35 : vector<1x128xf32> to vector<16x128xf32>
    %444 = arith.addf %442, %443 : vector<16x128xf32>
    %445 = arith.addf %434, %444 : vector<16x128xf32>
    %cst_162 = arith.constant dense<0.000000e+00> : vector<16xf32>
    %446 = vector.multi_reduction <add>, %445, %cst_162 [1] : vector<16x128xf32> to vector<16xf32>
    %447 = vector.shape_cast %446 : vector<16xf32> to vector<16x1xf32>
    %cst_163 = arith.constant 1.280000e+02 : f32
    %448 = vector.broadcast %cst_163 : f32 to vector<16x1xf32>
    %449 = arith.divf %447, %448 : vector<16x1xf32>
    %450 = vector.broadcast %449 : vector<16x1xf32> to vector<16x128xf32>
    %451 = arith.subf %445, %450 : vector<16x128xf32>
    %452 = arith.mulf %451, %451 : vector<16x128xf32>
    %cst_164 = arith.constant dense<0.000000e+00> : vector<16xf32>
    %453 = vector.multi_reduction <add>, %452, %cst_164 [1] : vector<16x128xf32> to vector<16xf32>
    %454 = vector.shape_cast %453 : vector<16xf32> to vector<16x1xf32>
    %cst_165 = arith.constant 1.280000e+02 : f32
    %455 = vector.broadcast %cst_165 : f32 to vector<16x1xf32>
    %456 = arith.divf %454, %455 : vector<16x1xf32>
    %457 = vector.broadcast %449 : vector<16x1xf32> to vector<16x128xf32>
    %458 = arith.subf %445, %457 : vector<16x128xf32>
    %cst_166 = arith.constant 9.99999974E-6 : f32
    %459 = vector.broadcast %cst_166 : f32 to vector<16x1xf32>
    %460 = arith.addf %456, %459 : vector<16x1xf32>
    %461 = math.rsqrt %460 : vector<16x1xf32>
    %462 = vector.broadcast %461 : vector<16x1xf32> to vector<16x128xf32>
    %463 = arith.mulf %458, %462 : vector<16x128xf32>
    %464 = vector.broadcast %37 : vector<1x128xf32> to vector<16x128xf32>
    %465 = arith.mulf %463, %464 : vector<16x128xf32>
    %466 = vector.broadcast %39 : vector<1x128xf32> to vector<16x128xf32>
    %467 = arith.addf %465, %466 : vector<16x128xf32>
    %c0_167 = arith.constant 0 : index
    %c0_168 = arith.constant 0 : index
    %c0_169 = arith.constant 0 : index
    %468 = vector.load %arg27[%c0_167, %c0_168, %c0_169] : memref<1x16x128xf32, #tpu.memory_space<vmem>>, vector<1x16x128xf32>
    %469 = vector.shape_cast %468 : vector<1x16x128xf32> to vector<16x128xf32>
    %470 = vector.shape_cast %467 : vector<16x128xf32> to vector<1x16x128xf32>
    tpu.vector_store %arg27[%c0_167, %c0_168, %c0_169], %470 {strides = array<i32>} : memref<1x16x128xf32, #tpu.memory_space<vmem>>, vector<1x16x128xf32>,
    %471 = arith.truncf %467 : vector<16x128xf32> to vector<16x128xbf16>
    %c0_170 = arith.constant 0 : index
    %c0_171 = arith.constant 0 : index
    %c0_172 = arith.constant 0 : index
    %472 = vector.load %arg25[%c0_170, %c0_171, %c0_172] : memref<1x128x128xbf16, #tpu.memory_space<vmem>>, vector<1x128x128xbf16>
    %473 = vector.shape_cast %472 : vector<1x128x128xbf16> to vector<128x128xbf16>
    %cst_173 = arith.constant dense<0.000000e+00> : vector<16x128xf32>
    %474 = tpu.matmul %471, %473, %cst_173 {dimension_numbers = #tpu.dot_dimension_numbers<[1], [0], [0], [1], [0, 0, 1, 1], [], []>} : vector<16x128xbf16>, vector<128x128xbf16>, vector<16x128xf32> -> vector<16x128xf32>
    %c0_174 = arith.constant 0 : index
    %c0_175 = arith.constant 0 : index
    %c0_176 = arith.constant 0 : index
    %475 = vector.load %arg26[%c0_174, %c0_175, %c0_176] : memref<1x1x128xf32, #tpu.memory_space<vmem>>, vector<1x1x128xf32>
    %476 = vector.shape_cast %475 : vector<1x1x128xf32> to vector<1x128xf32>
    %477 = vector.broadcast %476 : vector<1x128xf32> to vector<16x128xf32>
    %478 = arith.addf %474, %477 : vector<16x128xf32>
    %c0_177 = arith.constant 0 : index
    %c0_178 = arith.constant 0 : index
    %c0_179 = arith.constant 0 : index
    %479 = vector.load %arg28[%c0_177, %c0_178, %c0_179] : memref<1x16x128xf32, #tpu.memory_space<vmem>>, vector<1x16x128xf32>
    %480 = vector.shape_cast %479 : vector<1x16x128xf32> to vector<16x128xf32>
    %481 = vector.shape_cast %478 : vector<16x128xf32> to vector<1x16x128xf32>
    tpu.vector_store %arg28[%c0_177, %c0_178, %c0_179], %481 {strides = array<i32>} : memref<1x16x128xf32, #tpu.memory_space<vmem>>, vector<1x16x128xf32>,
    %482 = tpu.concatenate %327, %406 in 0 : vector<8x32xf32>, vector<8x32xf32> -> vector<16x32xf32>
    %c0_180 = arith.constant 0 : index
    %c0_181 = arith.constant 0 : index
    %c0_182 = arith.constant 0 : index
    %483 = vector.load %arg29[%c0_180, %c0_181, %c0_182] : memref<1x16x32xf32, #tpu.memory_space<vmem>>, vector<1x16x32xf32>
    %484 = vector.shape_cast %483 : vector<1x16x32xf32> to vector<16x32xf32>
    %485 = vector.shape_cast %482 : vector<16x32xf32> to vector<1x16x32xf32>
    tpu.vector_store %arg29[%c0_180, %c0_181, %c0_182], %485 {strides = array<i32>} : memref<1x16x32xf32, #tpu.memory_space<vmem>>, vector<1x16x32xf32>,
    return
  }
  func.func @transform_0(%arg0: i32) -> (i32, i32, i32) {
    %c0_i32 = arith.constant 0 : i32
    %c0_i32_0 = arith.constant 0 : i32
    %c0_i32_1 = arith.constant 0 : i32
    return %arg0, %c0_i32, %c0_i32_0 : i32, i32, i32
  }
  func.func @transform_1(%arg0: i32) -> (i32, i32, i32) {
    %c0_i32 = arith.constant 0 : i32
    %c0_i32_0 = arith.constant 0 : i32
    %c0_i32_1 = arith.constant 0 : i32
    return %arg0, %c0_i32, %c0_i32_0 : i32, i32, i32
  }
  func.func @transform_2(%arg0: i32) -> (i32, i32) {
    %c0_i32 = arith.constant 0 : i32
    %c0_i32_0 = arith.constant 0 : i32
    %c0_i32_1 = arith.constant 0 : i32
    return %c0_i32, %c0_i32_0 : i32, i32
  }
  func.func @transform_3(%arg0: i32) -> (i32, i32) {
    %c0_i32 = arith.constant 0 : i32
    %c0_i32_0 = arith.constant 0 : i32
    %c0_i32_1 = arith.constant 0 : i32
    return %c0_i32, %c0_i32_0 : i32, i32
  }
  func.func @transform_4(%arg0: i32) -> (i32, i32, i32) {
    %c0_i32 = arith.constant 0 : i32
    %c0_i32_0 = arith.constant 0 : i32
    %c0_i32_1 = arith.constant 0 : i32
    return %arg0, %c0_i32, %c0_i32_0 : i32, i32, i32
  }
  func.func @transform_5(%arg0: i32) -> (i32, i32, i32) {
    %c0_i32 = arith.constant 0 : i32
    %c0_i32_0 = arith.constant 0 : i32
    %c0_i32_1 = arith.constant 0 : i32
    return %arg0, %c0_i32, %c0_i32_0 : i32, i32, i32
  }
  func.func @transform_6(%arg0: i32) -> (i32, i32, i32) {
    %c0_i32 = arith.constant 0 : i32
    %c0_i32_0 = arith.constant 0 : i32
    %c0_i32_1 = arith.constant 0 : i32
    return %arg0, %c0_i32, %c0_i32_0 : i32, i32, i32
  }
  func.func @transform_7(%arg0: i32) -> (i32, i32, i32) {
    %c0_i32 = arith.constant 0 : i32
    %c0_i32_0 = arith.constant 0 : i32
    %c0_i32_1 = arith.constant 0 : i32
    return %arg0, %c0_i32, %c0_i32_0 : i32, i32, i32
  }
  func.func @transform_8(%arg0: i32) -> (i32, i32, i32) {
    %c0_i32 = arith.constant 0 : i32
    %c0_i32_0 = arith.constant 0 : i32
    %c0_i32_1 = arith.constant 0 : i32
    return %arg0, %c0_i32, %c0_i32_0 : i32, i32, i32
  }
  func.func @transform_9(%arg0: i32) -> (i32, i32, i32) {
    %c0_i32 = arith.constant 0 : i32
    %c0_i32_0 = arith.constant 0 : i32
    %c0_i32_1 = arith.constant 0 : i32
    return %arg0, %c0_i32, %c0_i32_0 : i32, i32, i32
  }
  func.func @transform_10(%arg0: i32) -> (i32, i32, i32) {
    %c0_i32 = arith.constant 0 : i32
    %c0_i32_0 = arith.constant 0 : i32
    %c0_i32_1 = arith.constant 0 : i32
    return %arg0, %c0_i32, %c0_i32_0 : i32, i32, i32
  }
  func.func @transform_11(%arg0: i32) -> (i32, i32, i32) {
    %c0_i32 = arith.constant 0 : i32
    %c0_i32_0 = arith.constant 0 : i32
    %c0_i32_1 = arith.constant 0 : i32
    return %arg0, %c0_i32, %c0_i32_0 : i32, i32, i32
  }
  func.func @transform_12(%arg0: i32) -> (i32, i32, i32) {
    %c0_i32 = arith.constant 0 : i32
    %c0_i32_0 = arith.constant 0 : i32
    %c0_i32_1 = arith.constant 0 : i32
    return %arg0, %c0_i32, %c0_i32_0 : i32, i32, i32
  }
  func.func @transform_13(%arg0: i32) -> (i32, i32, i32) {
    %c0_i32 = arith.constant 0 : i32
    %c0_i32_0 = arith.constant 0 : i32
    %c0_i32_1 = arith.constant 0 : i32
    return %arg0, %c0_i32, %c0_i32_0 : i32, i32, i32
  }
  func.func @transform_14(%arg0: i32) -> (i32, i32, i32) {
    %c0_i32 = arith.constant 0 : i32
    %c0_i32_0 = arith.constant 0 : i32
    %c0_i32_1 = arith.constant 0 : i32
    return %arg0, %c0_i32, %c0_i32_0 : i32, i32, i32
  }
  func.func @transform_15(%arg0: i32) -> (i32, i32, i32) {
    %c0_i32 = arith.constant 0 : i32
    %c0_i32_0 = arith.constant 0 : i32
    %c0_i32_1 = arith.constant 0 : i32
    return %arg0, %c0_i32, %c0_i32_0 : i32, i32, i32
  }
  func.func @transform_16(%arg0: i32) -> (i32, i32, i32) {
    %c0_i32 = arith.constant 0 : i32
    %c0_i32_0 = arith.constant 0 : i32
    %c0_i32_1 = arith.constant 0 : i32
    return %arg0, %c0_i32, %c0_i32_0 : i32, i32, i32
  }
  func.func @transform_17(%arg0: i32) -> (i32, i32, i32) {
    %c0_i32 = arith.constant 0 : i32
    %c0_i32_0 = arith.constant 0 : i32
    %c0_i32_1 = arith.constant 0 : i32
    return %arg0, %c0_i32, %c0_i32_0 : i32, i32, i32
  }
  func.func @transform_18(%arg0: i32) -> (i32, i32, i32) {
    %c0_i32 = arith.constant 0 : i32
    %c0_i32_0 = arith.constant 0 : i32
    %c0_i32_1 = arith.constant 0 : i32
    return %arg0, %c0_i32, %c0_i32_0 : i32, i32, i32
  }
  func.func @transform_19(%arg0: i32) -> (i32, i32, i32) {
    %c0_i32 = arith.constant 0 : i32
    %c0_i32_0 = arith.constant 0 : i32
    %c0_i32_1 = arith.constant 0 : i32
    return %arg0, %c0_i32, %c0_i32_0 : i32, i32, i32
  }
  func.func @transform_20(%arg0: i32) -> (i32, i32, i32) {
    %c0_i32 = arith.constant 0 : i32
    %c0_i32_0 = arith.constant 0 : i32
    %c0_i32_1 = arith.constant 0 : i32
    return %arg0, %c0_i32, %c0_i32_0 : i32, i32, i32
  }
  func.func @transform_21(%arg0: i32) -> (i32, i32, i32) {
    %c0_i32 = arith.constant 0 : i32
    %c0_i32_0 = arith.constant 0 : i32
    %c0_i32_1 = arith.constant 0 : i32
    return %arg0, %c0_i32, %c0_i32_0 : i32, i32, i32
  }
  func.func @transform_22(%arg0: i32) -> (i32, i32, i32) {
    %c0_i32 = arith.constant 0 : i32
    %c0_i32_0 = arith.constant 0 : i32
    %c0_i32_1 = arith.constant 0 : i32
    return %arg0, %c0_i32, %c0_i32_0 : i32, i32, i32
  }
  func.func @transform_23(%arg0: i32) -> (i32, i32, i32) {
    %c0_i32 = arith.constant 0 : i32
    %c0_i32_0 = arith.constant 0 : i32
    %c0_i32_1 = arith.constant 0 : i32
    return %arg0, %c0_i32, %c0_i32_0 : i32, i32, i32
  }
  func.func @transform_24(%arg0: i32) -> (i32, i32, i32) {
    %c0_i32 = arith.constant 0 : i32
    %c0_i32_0 = arith.constant 0 : i32
    %c0_i32_1 = arith.constant 0 : i32
    return %arg0, %c0_i32, %c0_i32_0 : i32, i32, i32
  }
  func.func @transform_25(%arg0: i32) -> (i32, i32, i32) {
    %c0_i32 = arith.constant 0 : i32
    %c0_i32_0 = arith.constant 0 : i32
    %c0_i32_1 = arith.constant 0 : i32
    return %arg0, %c0_i32, %c0_i32_0 : i32, i32, i32
  }
  func.func @transform_26(%arg0: i32) -> (i32, i32, i32) {
    %c0_i32 = arith.constant 0 : i32
    %c0_i32_0 = arith.constant 0 : i32
    %c0_i32_1 = arith.constant 0 : i32
    return %arg0, %c0_i32, %c0_i32_0 : i32, i32, i32
  }
  func.func @transform_27(%arg0: i32) -> (i32, i32, i32) {
    %c0_i32 = arith.constant 0 : i32
    %c0_i32_0 = arith.constant 0 : i32
    %c0_i32_1 = arith.constant 0 : i32
    return %arg0, %c0_i32, %c0_i32_0 : i32, i32, i32
  }
  func.func @transform_28(%arg0: i32) -> (i32, i32, i32) {
    %c0_i32 = arith.constant 0 : i32
    %c0_i32_0 = arith.constant 0 : i32
    %c0_i32_1 = arith.constant 0 : i32
    return %arg0, %c0_i32, %c0_i32_0 : i32, i32, i32
  }
}

</mosaic_0001>

<llo_original>
// kernel: seq2seq_forward.2
$region0: #{seq2seq_forward.2}
  #allocation0 [shape = 'u32[]', space=smem, size = 0x4, offset = 0x4, fixed_abs, tag = 'smem constant byte address 0x4 - core index']
  #allocation1 [shape = 'u32[72,128]{1,0:T(1,128)}', space=vmem, size = 0x9000, scoped, tag = 'internal scratch']
  %s0 = inlined_call_operand.vmem [shape: f32[16,128], index: 0, kind: input, shape index: {}]
  %s1 = inlined_call_operand.vmem [shape: f32[2,8], index: 1, kind: input, shape index: {}]
  %s2 = inlined_call_operand.hbm [shape: bf16[128,384], index: 2, kind: input, shape index: {}]
  %s3 = inlined_call_operand.vmem [shape: f32[1,384], index: 3, kind: input, shape index: {}]
  %s4 = inlined_call_operand.hbm [shape: bf16[128,128], index: 4, kind: input, shape index: {}]
  %s5 = inlined_call_operand.vmem [shape: f32[1,128], index: 5, kind: input, shape index: {}]
  %s6 = inlined_call_operand.vmem [shape: f32[1,128], index: 6, kind: input, shape index: {}]
  %s7 = inlined_call_operand.vmem [shape: f32[1,128], index: 7, kind: input, shape index: {}]
  %s8 = inlined_call_operand.vmem [shape: bf16[128,256], index: 8, kind: input, shape index: {}]
  %s9 = inlined_call_operand.vmem [shape: f32[1,256], index: 9, kind: input, shape index: {}]
  %s10 = inlined_call_operand.hbm [shape: bf16[256,128], index: 10, kind: input, shape index: {}]
  %s11 = inlined_call_operand.vmem [shape: f32[1,128], index: 11, kind: input, shape index: {}]
  %s12 = inlined_call_operand.vmem [shape: f32[1,128], index: 12, kind: input, shape index: {}]
  %s13 = inlined_call_operand.vmem [shape: f32[1,128], index: 13, kind: input, shape index: {}]
  %s14 = inlined_call_operand.hbm [shape: bf16[128,384], index: 14, kind: input, shape index: {}]
  %s15 = inlined_call_operand.vmem [shape: f32[1,384], index: 15, kind: input, shape index: {}]
  %s16 = inlined_call_operand.hbm [shape: bf16[128,128], index: 16, kind: input, shape index: {}]
  %s17 = inlined_call_operand.vmem [shape: f32[1,128], index: 17, kind: input, shape index: {}]
  %s18 = inlined_call_operand.vmem [shape: f32[2,16,128], index: 18, kind: output, shape index: {0}]
  %s19 = inlined_call_operand.vmem [shape: f32[16,384], index: 19, kind: output, shape index: {1}]
  %s20 = inlined_call_operand.hbm [shape: f32[2,128], index: 20, kind: output, shape index: {2}]
  %21 = xla_tuple %s18, %s19, %s20
  %s22 = sld [smem:[#allocation0]]
  $region118: #{seq2seq_forward.2} parent=0
    _
  %s24 = ssub.s32 1, %s22
  %s25 = scalar_select 0, %s24, %s22
  $region1: #{seq2seq_forward.2} parent=0
    #allocation2 [shape = 'u8[98304]{0}', space=vmem, size = 0x18000, scoped, tag = 'input window, operand 2, single buffered']
    #allocation3 [shape = 's32[1]{0}', space=sflag, size = 0x4, scoped, tag = 'scoped memory for seq2seq_forward.2']
    #allocation4 [shape = 's32[1]{0}', space=sflag, size = 0x4, scoped, tag = 'scoped memory for seq2seq_forward.2']
    #allocation5 [shape = 'u8[32768]{0}', space=vmem, size = 0x8000, scoped, tag = 'input window, operand 4, single buffered']
    #allocation6 [shape = 's32[1]{0}', space=sflag, size = 0x4, scoped, tag = 'scoped memory for seq2seq_forward.2']
    #allocation7 [shape = 'u8[65536]{0}', space=vmem, size = 0x10000, scoped, tag = 'input window, operand 10, single buffered']
    #allocation8 [shape = 'u8[98304]{0}', space=vmem, size = 0x18000, scoped, tag = 'input window, operand 14, single buffered']
    #allocation9 [shape = 's32[1]{0}', space=sflag, size = 0x4, scoped, tag = 'scoped memory for seq2seq_forward.2']
    #allocation10 [shape = 'u8[32768]{0}', space=vmem, size = 0x8000, scoped, tag = 'input window, operand 16, single buffered']
    #allocation11 [shape = 'u8[1024]{0}', space=vmem, size = 0x400, scoped, tag = 'output window, operand 2, single buffered']
    %26 = vsyncpa [#allocation3], 0
    %27 = vsyncpa [#allocation6], 0
    %28 = vsyncpa [#allocation9], 0
    %29 = vsyncpa [#allocation4], 0
    // Predicated region
    $region2: #{seq2seq_forward.2} parent=1 // pred_check
      _
    $region3: #{seq2seq_forward.2} parent=1 // pred_check_branch
      %31 = sbr.rel (0) target = $region5
    $region4: #{seq2seq_forward.2} parent=1 // pred_region
      _
    $region5: #{seq2seq_forward.2} parent=1 // pred_fallthru
      _
    // Predicated region
    $region6: #{seq2seq_forward.2} parent=1 // pred_check
      _
    $region7: #{seq2seq_forward.2} parent=1 // pred_check_branch
      %33 = sbr.rel (0) target = $region9
    $region8: #{seq2seq_forward.2} parent=1 // pred_region
      _
    $region9: #{seq2seq_forward.2} parent=1 // pred_fallthru
      _
    // Predicated region
    $region10: #{seq2seq_forward.2} parent=1 // pred_check
      _
    $region11: #{seq2seq_forward.2} parent=1 // pred_check_branch
      %35 = sbr.rel (0) target = $region13
    $region12: #{seq2seq_forward.2} parent=1 // pred_region
      %37 = vsyncadd [#allocation3], 0
      %s38 = sshll.u32 %s2, 4
      %s39 = int_to_ptr.hbm [resolvable:$true] %s38
      %s40 = sshll.u32 [#allocation2], 4
      %s41 = int_to_ptr.vmem [resolvable:$true] %s40
      %46 = dma.hbm_to_vmem [thread:$0]  %s39, 3072, %s41, [#allocation3], 192, 192, 12
    $region13: #{seq2seq_forward.2} parent=1 // pred_fallthru
      _
    // Predicated region
    $region14: #{seq2seq_forward.2} parent=1 // pred_check
      _
    $region15: #{seq2seq_forward.2} parent=1 // pred_check_branch
      %48 = sbr.rel (0) target = $region17
    $region16: #{seq2seq_forward.2} parent=1 // pred_region
      _
    $region17: #{seq2seq_forward.2} parent=1 // pred_fallthru
      _
    // Predicated region
    $region18: #{seq2seq_forward.2} parent=1 // pred_check
      _
    $region19: #{seq2seq_forward.2} parent=1 // pred_check_branch
      %50 = sbr.rel (0) target = $region21
    $region20: #{seq2seq_forward.2} parent=1 // pred_region
      %52 = vsyncadd [#allocation6], 0
      %s53 = sshll.u32 %s4, 4
      %s54 = int_to_ptr.hbm [resolvable:$true] %s53
      %s55 = sshll.u32 [#allocation5], 4
      %s56 = int_to_ptr.vmem [resolvable:$true] %s55
      %61 = dma.hbm_to_vmem [thread:$0]  %s54, 1024, %s56, [#allocation6], 64, 64, 4
    $region21: #{seq2seq_forward.2} parent=1 // pred_fallthru
      _
    // Predicated region
    $region22: #{seq2seq_forward.2} parent=1 // pred_check
      _
    $region23: #{seq2seq_forward.2} parent=1 // pred_check_branch
      %63 = sbr.rel (0) target = $region25
    $region24: #{seq2seq_forward.2} parent=1 // pred_region
      _
    $region25: #{seq2seq_forward.2} parent=1 // pred_fallthru
      _
    // Predicated region
    $region26: #{seq2seq_forward.2} parent=1 // pred_check
      _
    $region27: #{seq2seq_forward.2} parent=1 // pred_check_branch
      %65 = sbr.rel (0) target = $region29
    $region28: #{seq2seq_forward.2} parent=1 // pred_region
      _
    $region29: #{seq2seq_forward.2} parent=1 // pred_fallthru
      _
    // Predicated region
    $region30: #{seq2seq_forward.2} parent=1 // pred_check
      _
    $region31: #{seq2seq_forward.2} parent=1 // pred_check_branch
      %67 = sbr.rel (0) target = $region33
    $region32: #{seq2seq_forward.2} parent=1 // pred_region
      _
    $region33: #{seq2seq_forward.2} parent=1 // pred_fallthru
      _
    // Predicated region
    $region34: #{seq2seq_forward.2} parent=1 // pred_check
      _
    $region35: #{seq2seq_forward.2} parent=1 // pred_check_branch
      %69 = sbr.rel (0) target = $region37
    $region36: #{seq2seq_forward.2} parent=1 // pred_region
      _
    $region37: #{seq2seq_forward.2} parent=1 // pred_fallthru
      _
    // Predicated region
    $region38: #{seq2seq_forward.2} parent=1 // pred_check
      _
    $region39: #{seq2seq_forward.2} parent=1 // pred_check_branch
      %71 = sbr.rel (0) target = $region41
    $region40: #{seq2seq_forward.2} parent=1 // pred_region
      _
    $region41: #{seq2seq_forward.2} parent=1 // pred_fallthru
      _
    // Predicated region
    $region42: #{seq2seq_forward.2} parent=1 // pred_check
      _
    $region43: #{seq2seq_forward.2} parent=1 // pred_check_branch
      %73 = sbr.rel (0) target = $region45
    $region44: #{seq2seq_forward.2} parent=1 // pred_region
      %75 = vsyncadd [#allocation6], 0
      %s76 = sshll.u32 %s10, 4
      %s77 = int_to_ptr.hbm [resolvable:$true] %s76
      %s78 = sshll.u32 [#allocation7], 4
      %s79 = int_to_ptr.vmem [resolvable:$true] %s78
      %84 = dma.hbm_to_vmem [thread:$0]  %s77, 2048, %s79, [#allocation6], 64, 64, 4
    $region45: #{seq2seq_forward.2} parent=1 // pred_fallthru
      _
    // Predicated region
    $region46: #{seq2seq_forward.2} parent=1 // pred_check
      _
    $region47: #{seq2seq_forward.2} parent=1 // pred_check_branch
      %86 = sbr.rel (0) target = $region49
    $region48: #{seq2seq_forward.2} parent=1 // pred_region
      _
    $region49: #{seq2seq_forward.2} parent=1 // pred_fallthru
      _
    // Predicated region
    $region50: #{seq2seq_forward.2} parent=1 // pred_check
      _
    $region51: #{seq2seq_forward.2} parent=1 // pred_check_branch
      %88 = sbr.rel (0) target = $region53
    $region52: #{seq2seq_forward.2} parent=1 // pred_region
      _
    $region53: #{seq2seq_forward.2} parent=1 // pred_fallthru
      _
    // Predicated region
    $region54: #{seq2seq_forward.2} parent=1 // pred_check
      _
    $region55: #{seq2seq_forward.2} parent=1 // pred_check_branch
      %90 = sbr.rel (0) target = $region57
    $region56: #{seq2seq_forward.2} parent=1 // pred_region
      _
    $region57: #{seq2seq_forward.2} parent=1 // pred_fallthru
      _
    // Predicated region
    $region58: #{seq2seq_forward.2} parent=1 // pred_check
      _
    $region59: #{seq2seq_forward.2} parent=1 // pred_check_branch
      %92 = sbr.rel (0) target = $region61
    $region60: #{seq2seq_forward.2} parent=1 // pred_region
      %94 = vsyncadd [#allocation9], 0
      %s95 = sshll.u32 %s14, 4
      %s96 = int_to_ptr.hbm [resolvable:$true] %s95
      %s97 = sshll.u32 [#allocation8], 4
      %s98 = int_to_ptr.vmem [resolvable:$true] %s97
      %103 = dma.hbm_to_vmem [thread:$0]  %s96, 3072, %s98, [#allocation9], 192, 192, 12
    $region61: #{seq2seq_forward.2} parent=1 // pred_fallthru
      _
    // Predicated region
    $region62: #{seq2seq_forward.2} parent=1 // pred_check
      _
    $region63: #{seq2seq_forward.2} parent=1 // pred_check_branch
      %105 = sbr.rel (0) target = $region65
    $region64: #{seq2seq_forward.2} parent=1 // pred_region
      _
    $region65: #{seq2seq_forward.2} parent=1 // pred_fallthru
      _
    // Predicated region
    $region66: #{seq2seq_forward.2} parent=1 // pred_check
      _
    $region67: #{seq2seq_forward.2} parent=1 // pred_check_branch
      %107 = sbr.rel (0) target = $region69
    $region68: #{seq2seq_forward.2} parent=1 // pred_region
      %109 = vsyncadd [#allocation9], 0
      %s110 = sshll.u32 %s16, 4
      %s111 = int_to_ptr.hbm [resolvable:$true] %s110
      %s112 = sshll.u32 [#allocation10], 4
      %s113 = int_to_ptr.vmem [resolvable:$true] %s112
      %118 = dma.hbm_to_vmem [thread:$0]  %s111, 1024, %s113, [#allocation9], 64, 64, 4
    $region69: #{seq2seq_forward.2} parent=1 // pred_fallthru
      _
    // Predicated region
    $region70: #{seq2seq_forward.2} parent=1 // pred_check
      _
    $region71: #{seq2seq_forward.2} parent=1 // pred_check_branch
      %120 = sbr.rel (0) target = $region73
    $region72: #{seq2seq_forward.2} parent=1 // pred_region
      _
    $region73: #{seq2seq_forward.2} parent=1 // pred_fallthru
      _
    // Predicated region
    $region74: #{seq2seq_forward.2} parent=1 // pred_check
      _
    $region75: #{seq2seq_forward.2} parent=1 // pred_check_branch
      %122 = sbr.rel (0) target = $region77
    $region76: #{seq2seq_forward.2} parent=1 // pred_region
      %124 = dma.done [#allocation3], 3072
    $region77: #{seq2seq_forward.2} parent=1 // pred_fallthru
      _
    // Predicated region
    $region78: #{seq2seq_forward.2} parent=1 // pred_check
      _
    $region79: #{seq2seq_forward.2} parent=1 // pred_check_branch
      %126 = sbr.rel (0) target = $region81
    $region80: #{seq2seq_forward.2} parent=1 // pred_region
      %128 = dma.done [#allocation6], 1024
    $region81: #{seq2seq_forward.2} parent=1 // pred_fallthru
      _
    // Predicated region
    $region82: #{seq2seq_forward.2} parent=1 // pred_check
      _
    $region83: #{seq2seq_forward.2} parent=1 // pred_check_branch
      %130 = sbr.rel (0) target = $region85
    $region84: #{seq2seq_forward.2} parent=1 // pred_region
      %132 = dma.done [#allocation6], 2048
    $region85: #{seq2seq_forward.2} parent=1 // pred_fallthru
      _
    // Predicated region
    $region86: #{seq2seq_forward.2} parent=1 // pred_check
      _
    $region87: #{seq2seq_forward.2} parent=1 // pred_check_branch
      %134 = sbr.rel (0) target = $region89
    $region88: #{seq2seq_forward.2} parent=1 // pred_region
      %136 = dma.done [#allocation9], 3072
    $region89: #{seq2seq_forward.2} parent=1 // pred_fallthru
      _
    // Predicated region
    $region90: #{seq2seq_forward.2} parent=1 // pred_check
      _
    $region91: #{seq2seq_forward.2} parent=1 // pred_check_branch
      %138 = sbr.rel (0) target = $region93
    $region92: #{seq2seq_forward.2} parent=1 // pred_region
      %140 = dma.done [#allocation9], 1024
    $region93: #{seq2seq_forward.2} parent=1 // pred_fallthru
      _
    %v141 = vld [vmem:[%s0] sm:$0xff]
    %v142 = vld [vmem:[%s0 + $0x8] sm:$0xff]
    %v143 = vld [vmem:[%s1] sm:$0x3]
    %v144 = vld [vmem:[#allocation2] sm:$0xff]
    %v145 = vld [vmem:[#allocation2 + $0x8] sm:$0xf]
    %v146 = vld [vmem:[#allocation2 + $0xc] sm:$0xff]
    %v147 = vld [vmem:[#allocation2 + $0x14] sm:$0xf]
    %v148 = vld [vmem:[#allocation2 + $0x18] sm:$0xff]
    %v149 = vld [vmem:[#allocation2 + $0x20] sm:$0xf]
    %v150 = vld [vmem:[#allocation2 + $0x24] sm:$0xff]
    %v151 = vld [vmem:[#allocation2 + $0x2c] sm:$0xf]
    %v152 = vld [vmem:[#allocation2 + $0x30] sm:$0xff]
    %v153 = vld [vmem:[#allocation2 + $0x38] sm:$0xf]
    %v154 = vld [vmem:[#allocation2 + $0x3c] sm:$0xff]
    %v155 = vld [vmem:[#allocation2 + $0x44] sm:$0xf]
    %v156 = vld [vmem:[#allocation2 + $0x48] sm:$0xff]
    %v157 = vld [vmem:[#allocation2 + $0x50] sm:$0xf]
    %v158 = vld [vmem:[#allocation2 + $0x54] sm:$0xff]
    %v159 = vld [vmem:[#allocation2 + $0x5c] sm:$0xf]
    %v160 = vld [vmem:[#allocation2 + $0x60] sm:$0xff]
    %v161 = vld [vmem:[#allocation2 + $0x68] sm:$0xf]
    %v162 = vld [vmem:[#allocation2 + $0x6c] sm:$0xff]
    %v163 = vld [vmem:[#allocation2 + $0x74] sm:$0xf]
    %v164 = vld [vmem:[#allocation2 + $0x78] sm:$0xff]
    %v165 = vld [vmem:[#allocation2 + $0x80] sm:$0xf]
    %v166 = vld [vmem:[#allocation2 + $0x84] sm:$0xff]
    %v167 = vld [vmem:[#allocation2 + $0x8c] sm:$0xf]
    %v168 = vld [vmem:[#allocation2 + $0x90] sm:$0xff]
    %v169 = vld [vmem:[#allocation2 + $0x98] sm:$0xf]
    %v170 = vld [vmem:[#allocation2 + $0x9c] sm:$0xff]
    %v171 = vld [vmem:[#allocation2 + $0xa4] sm:$0xf]
    %v172 = vld [vmem:[#allocation2 + $0xa8] sm:$0xff]
    %v173 = vld [vmem:[#allocation2 + $0xb0] sm:$0xf]
    %v174 = vld [vmem:[#allocation2 + $0xb4] sm:$0xff]
    %v175 = vld [vmem:[#allocation2 + $0xbc] sm:$0xf]
    %v176 = vld [vmem:[%s3] sm:$0x7]
    %v177 = vld [vmem:[#allocation5] sm:$0xf]
    %v178 = vld [vmem:[#allocation5 + $0x4] sm:$0xf]
    %v179 = vld [vmem:[#allocation5 + $0x8] sm:$0xf]
    %v180 = vld [vmem:[#allocation5 + $0xc] sm:$0xf]
    %v181 = vld [vmem:[#allocation5 + $0x10] sm:$0xf]
    %v182 = vld [vmem:[#allocation5 + $0x14] sm:$0xf]
    %v183 = vld [vmem:[#allocation5 + $0x18] sm:$0xf]
    %v184 = vld [vmem:[#allocation5 + $0x1c] sm:$0xf]
    %v185 = vld [vmem:[#allocation5 + $0x20] sm:$0xf]
    %v186 = vld [vmem:[#allocation5 + $0x24] sm:$0xf]
    %v187 = vld [vmem:[#allocation5 + $0x28] sm:$0xf]
    %v188 = vld [vmem:[#allocation5 + $0x2c] sm:$0xf]
    %v189 = vld [vmem:[#allocation5 + $0x30] sm:$0xf]
    %v190 = vld [vmem:[#allocation5 + $0x34] sm:$0xf]
    %v191 = vld [vmem:[#allocation5 + $0x38] sm:$0xf]
    %v192 = vld [vmem:[#allocation5 + $0x3c] sm:$0xf]
    %v193 = vld [vmem:[%s5] sm:$0x1]
    %v194 = vld [vmem:[%s6] sm:$0x1]
    %v195 = vld [vmem:[%s7] sm:$0x1]
    %v196 = vld [vmem:[%s8] sm:$0xff]
    %v197 = vld [vmem:[%s8 + $0x8] sm:$0xff]
    %v198 = vld [vmem:[%s8 + $0x10] sm:$0xff]
    %v199 = vld [vmem:[%s8 + $0x18] sm:$0xff]
    %v200 = vld [vmem:[%s8 + $0x20] sm:$0xff]
    %v201 = vld [vmem:[%s8 + $0x28] sm:$0xff]
    %v202 = vld [vmem:[%s8 + $0x30] sm:$0xff]
    %v203 = vld [vmem:[%s8 + $0x38] sm:$0xff]
    %v204 = vld [vmem:[%s8 + $0x40] sm:$0xff]
    %v205 = vld [vmem:[%s8 + $0x48] sm:$0xff]
    %v206 = vld [vmem:[%s8 + $0x50] sm:$0xff]
    %v207 = vld [vmem:[%s8 + $0x58] sm:$0xff]
    %v208 = vld [vmem:[%s8 + $0x60] sm:$0xff]
    %v209 = vld [vmem:[%s8 + $0x68] sm:$0xff]
    %v210 = vld [vmem:[%s8 + $0x70] sm:$0xff]
    %v211 = vld [vmem:[%s8 + $0x78] sm:$0xff]
    %v212 = vld [vmem:[%s9] sm:$0x3]
    %v213 = vld [vmem:[#allocation7] sm:$0xf]
    %v214 = vld [vmem:[#allocation7 + $0x4] sm:$0xf]
    %v215 = vld [vmem:[#allocation7 + $0x8] sm:$0xf]
    %v216 = vld [vmem:[#allocation7 + $0xc] sm:$0xf]
    %v217 = vld [vmem:[#allocation7 + $0x10] sm:$0xf]
    %v218 = vld [vmem:[#allocation7 + $0x14] sm:$0xf]
    %v219 = vld [vmem:[#allocation7 + $0x18] sm:$0xf]
    %v220 = vld [vmem:[#allocation7 + $0x1c] sm:$0xf]
    %v221 = vld [vmem:[#allocation7 + $0x20] sm:$0xf]
    %v222 = vld [vmem:[#allocation7 + $0x24] sm:$0xf]
    %v223 = vld [vmem:[#allocation7 + $0x28] sm:$0xf]
    %v224 = vld [vmem:[#allocation7 + $0x2c] sm:$0xf]
    %v225 = vld [vmem:[#allocation7 + $0x30] sm:$0xf]
    %v226 = vld [vmem:[#allocation7 + $0x34] sm:$0xf]
    %v227 = vld [vmem:[#allocation7 + $0x38] sm:$0xf]
    %v228 = vld [vmem:[#allocation7 + $0x3c] sm:$0xf]
    %v229 = vld [vmem:[#allocation7 + $0x40] sm:$0xf]
    %v230 = vld [vmem:[#allocation7 + $0x44] sm:$0xf]
    %v231 = vld [vmem:[#allocation7 + $0x48] sm:$0xf]
    %v232 = vld [vmem:[#allocation7 + $0x4c] sm:$0xf]
    %v233 = vld [vmem:[#allocation7 + $0x50] sm:$0xf]
    %v234 = vld [vmem:[#allocation7 + $0x54] sm:$0xf]
    %v235 = vld [vmem:[#allocation7 + $0x58] sm:$0xf]
    %v236 = vld [vmem:[#allocation7 + $0x5c] sm:$0xf]
    %v237 = vld [vmem:[#allocation7 + $0x60] sm:$0xf]
    %v238 = vld [vmem:[#allocation7 + $0x64] sm:$0xf]
    %v239 = vld [vmem:[#allocation7 + $0x68] sm:$0xf]
    %v240 = vld [vmem:[#allocation7 + $0x6c] sm:$0xf]
    %v241 = vld [vmem:[#allocation7 + $0x70] sm:$0xf]
    %v242 = vld [vmem:[#allocation7 + $0x74] sm:$0xf]
    %v243 = vld [vmem:[#allocation7 + $0x78] sm:$0xf]
    %v244 = vld [vmem:[#allocation7 + $0x7c] sm:$0xf]
    %v245 = vld [vmem:[%s11] sm:$0x1]
    %v246 = vld [vmem:[%s12] sm:$0x1]
    %v247 = vld [vmem:[%s13] sm:$0x1]
    %v248 = vpack.c.bf16 %v142, %v141
    %v250 = vperm.slane %v176, 0
    %v251 = vperm.slane %v176, 1
    %v252 = vperm.slane %v176, 2
    %v288 = vunpack.c.l.b16 %v144
    %v289 = vunpack.c.h.b16 %v144
    %v290 = vunpack.c.l.b16 %v145
    %v291 = vunpack.c.l.b16 %v146
    %v292 = vunpack.c.h.b16 %v146
    %v293 = vunpack.c.l.b16 %v147
    %v294 = vunpack.c.l.b16 %v148
    %v295 = vunpack.c.h.b16 %v148
    %v296 = vunpack.c.l.b16 %v149
    %v297 = vunpack.c.l.b16 %v150
    %v298 = vunpack.c.h.b16 %v150
    %v299 = vunpack.c.l.b16 %v151
    %v300 = vunpack.c.l.b16 %v152
    %v301 = vunpack.c.h.b16 %v152
    %v302 = vunpack.c.l.b16 %v153
    %v303 = vunpack.c.l.b16 %v154
    %v304 = vunpack.c.h.b16 %v154
    %v305 = vunpack.c.l.b16 %v155
    %v306 = vunpack.c.l.b16 %v156
    %v307 = vunpack.c.h.b16 %v156
    %v308 = vunpack.c.l.b16 %v157
    %v309 = vunpack.c.l.b16 %v158
    %v310 = vunpack.c.h.b16 %v158
    %v311 = vunpack.c.l.b16 %v159
    %v312 = vunpack.c.l.b16 %v160
    %v313 = vunpack.c.h.b16 %v160
    %v314 = vunpack.c.l.b16 %v161
    %v315 = vunpack.c.l.b16 %v162
    %v316 = vunpack.c.h.b16 %v162
    %v317 = vunpack.c.l.b16 %v163
    %v318 = vunpack.c.l.b16 %v164
    %v319 = vunpack.c.h.b16 %v164
    %v320 = vunpack.c.l.b16 %v165
    %v321 = vunpack.c.l.b16 %v166
    %v322 = vunpack.c.h.b16 %v166
    %v323 = vunpack.c.l.b16 %v167
    %v324 = vunpack.c.l.b16 %v168
    %v325 = vunpack.c.h.b16 %v168
    %v326 = vunpack.c.l.b16 %v169
    %v327 = vunpack.c.l.b16 %v170
    %v328 = vunpack.c.h.b16 %v170
    %v329 = vunpack.c.l.b16 %v171
    %v330 = vunpack.c.l.b16 %v172
    %v331 = vunpack.c.h.b16 %v172
    %v332 = vunpack.c.l.b16 %v173
    %v333 = vunpack.c.l.b16 %v174
    %v334 = vunpack.c.h.b16 %v174
    %v335 = vunpack.c.l.b16 %v175
    %v336 = vpack.c.b16 %v291, %v288
    %v337 = vpack.c.b16 %v292, %v289
    %v338 = vpack.c.b16 %v293, %v290
    %v339 = vpack.c.b16 %v297, %v294
    %v340 = vpack.c.b16 %v298, %v295
    %v341 = vpack.c.b16 %v299, %v296
    %v342 = vpack.c.b16 %v303, %v300
    %v343 = vpack.c.b16 %v304, %v301
    %v344 = vpack.c.b16 %v305, %v302
    %v345 = vpack.c.b16 %v309, %v306
    %v346 = vpack.c.b16 %v310, %v307
    %v347 = vpack.c.b16 %v311, %v308
    %v348 = vpack.c.b16 %v315, %v312
    %v349 = vpack.c.b16 %v316, %v313
    %v350 = vpack.c.b16 %v317, %v314
    %v351 = vpack.c.b16 %v321, %v318
    %v352 = vpack.c.b16 %v322, %v319
    %v353 = vpack.c.b16 %v323, %v320
    %v354 = vpack.c.b16 %v327, %v324
    %v355 = vpack.c.b16 %v328, %v325
    %v356 = vpack.c.b16 %v329, %v326
    %v357 = vpack.c.b16 %v333, %v330
    %v358 = vpack.c.b16 %v334, %v331
    %v359 = vpack.c.b16 %v335, %v332
    %384 = vmatpush.bf16.msra.mxu0 %v357
    %385 = vmatpush.bf16.msra.mxu0 %v354
    %386 = vmatpush.bf16.msra.mxu0 %v351
    %387 = vmatpush.bf16.msra.mxu0 %v348
    %388 = vmatpush.bf16.msra.mxu0 %v345
    %389 = vmatpush.bf16.msra.mxu0 %v342
    %390 = vmatpush.bf16.msra.mxu0 %v339
    %391 = vmatpush.bf16.msra.mxu0 %v336
    %392 = vmatmul.bf16.gmra.mxu0 %v248
    %v393 = vpop.f32.mrf.mxu0
    %v394 = vadd.f32 %v250, %v393
    %v395 = vpop.f32.mrf.mxu0
    %v396 = vadd.f32 %v250, %v395
    %397 = vdwg.mxu0
    %398 = vmatpush.bf16.msra.mxu0 %v358
    %399 = vmatpush.bf16.msra.mxu0 %v355
    %400 = vmatpush.bf16.msra.mxu0 %v352
    %401 = vmatpush.bf16.msra.mxu0 %v349
    %402 = vmatpush.bf16.msra.mxu0 %v346
    %403 = vmatpush.bf16.msra.mxu0 %v343
    %404 = vmatpush.bf16.msra.mxu0 %v340
    %405 = vmatpush.bf16.msra.mxu0 %v337
    %406 = vmatmul.bf16.gmra.mxu0 %v248
    %v407 = vpop.f32.mrf.mxu0
    %v408 = vadd.f32 %v251, %v407
    %v409 = vpop.f32.mrf.mxu0
    %v410 = vadd.f32 %v251, %v409
    %411 = vdwg.mxu0
    %412 = vmatpush.bf16.msra.mxu0 %v359
    %413 = vmatpush.bf16.msra.mxu0 %v356
    %414 = vmatpush.bf16.msra.mxu0 %v353
    %415 = vmatpush.bf16.msra.mxu0 %v350
    %416 = vmatpush.bf16.msra.mxu0 %v347
    %417 = vmatpush.bf16.msra.mxu0 %v344
    %418 = vmatpush.bf16.msra.mxu0 %v341
    %419 = vmatpush.bf16.msra.mxu0 %v338
    %420 = vmatmul.bf16.gmra.mxu0 %v248
    %v421 = vpop.f32.mrf.mxu0
    %v422 = vadd.f32 %v252, %v421
    %v423 = vpop.f32.mrf.mxu0
    %v424 = vadd.f32 %v252, %v423
    %425 = vdwg.mxu0
    %vm426 = vcmp.gt.f32.partialorder %v143, 0.5
    %v427 = vsel %vm426, 0.0, -1e+10
    %v428 = vperm.slane %v427, 0
    %vm429 = vcmask 261120
    %v431 = vsel %vm429, %v394, 0
    %v434 = vsel %vm429, %v408, 0
    %436 = vmatpush.xpose.msra.mxu0 0.0
    %437 = vmatpush.xpose.msra.mxu0 0.0
    %438 = vmatpush.xpose.msra.mxu0 0.0
    %439 = vmatpush.xpose.msra.mxu0 0.0
    %440 = vmatpush.xpose.msra.mxu0 0.0
    %441 = vmatpush.xpose.msra.mxu0 0.0
    %442 = vmatpush.xpose.msra.mxu0 0.0
    %443 = vmatpush.xpose.msra.mxu0 0.0
    %444 = vmatpush.xpose.msra.mxu0 0.0
    %445 = vmatpush.xpose.msra.mxu0 0.0
    %446 = vmatpush.xpose.msra.mxu0 0.0
    %447 = vmatpush.xpose.msra.mxu0 0.0
    %448 = vmatpush.xpose.msra.mxu0 0.0
    %449 = vmatpush.xpose.msra.mxu0 0.0
    %450 = vmatpush.xpose.msra.mxu0 0.0
    %451 = vmatpush.xpose.msra.mxu0 %v434
    %452 = vmatmul.f32.gmra.mxu0 %v431
    %v453 = vpop.f32.mrf.mxu0
    %v454 = vadd.f32 %v428, %v453
    %455 = vdwg.mxu0
    %vm456 = vcmask 64512
    %v457 = vsel %vm456, %v454, -inf
    %458 = vmax.xlane.f32.xlu0 %v457
    %v459 = vpop.xlane.xlu0 %458
    %v460 = vsub.f32 %v454, %v459
    %v461 = vmul.f32 %v460, 1.442695
    %v462 = vpow.pop %v461
    %v463 = vsel %vm456, %v462, 0.0
    %464 = vadd.xlane.f32.xlu0 %v463
    %v465 = vpop.xlane.xlu0 %464
    %v466 = vrcp.pop %v465
    %v467 = vmul.f32 %v462, %v466
    %v469 = vsel %vm456, %v467, 0
    %471 = vmatpush.msra.mxu0 0.0
    %472 = vmatpush.msra.mxu0 0.0
    %473 = vmatpush.msra.mxu0 0.0
    %474 = vmatpush.msra.mxu0 0.0
    %475 = vmatpush.msra.mxu0 0.0
    %476 = vmatpush.msra.mxu0 0.0
    %477 = vmatpush.msra.mxu0 0.0
    %478 = vmatpush.msra.mxu0 0.0
    %479 = vmatpush.msra.mxu0 0.0
    %480 = vmatpush.msra.mxu0 0.0
    %481 = vmatpush.msra.mxu0 0.0
    %482 = vmatpush.msra.mxu0 0.0
    %483 = vmatpush.msra.mxu0 0.0
    %484 = vmatpush.msra.mxu0 0.0
    %485 = vmatpush.msra.mxu0 0.0
    %486 = vmatpush.msra.mxu0 %v422
    %487 = vmatmul.f32.gmra.mxu0 %v469
    %v488 = vpop.f32.mrf.mxu0
    %v489 = vadd.f32 0.0, %v488
    %490 = vdwg.mxu0
    %491 = vrot.lane.b32.xlu0 %v394, 96
    %v492 = vpop.permute.xlu0 %491
    %493 = vrot.lane.b32.xlu0 %v408, 96
    %v494 = vpop.permute.xlu0 %493
    %v495 = vsel %vm429, %v492, 0
    %v497 = vsel %vm429, %v494, 0
    %499 = vmatpush.xpose.msra.mxu0 0.0
    %500 = vmatpush.xpose.msra.mxu0 0.0
    %501 = vmatpush.xpose.msra.mxu0 0.0
    %502 = vmatpush.xpose.msra.mxu0 0.0
    %503 = vmatpush.xpose.msra.mxu0 0.0
    %504 = vmatpush.xpose.msra.mxu0 0.0
    %505 = vmatpush.xpose.msra.mxu0 0.0
    %506 = vmatpush.xpose.msra.mxu0 0.0
    %507 = vmatpush.xpose.msra.mxu0 0.0
    %508 = vmatpush.xpose.msra.mxu0 0.0
    %509 = vmatpush.xpose.msra.mxu0 0.0
    %510 = vmatpush.xpose.msra.mxu0 0.0
    %511 = vmatpush.xpose.msra.mxu0 0.0
    %512 = vmatpush.xpose.msra.mxu0 0.0
    %513 = vmatpush.xpose.msra.mxu0 0.0
    %514 = vmatpush.xpose.msra.mxu0 %v497
    %515 = vmatmul.f32.gmra.mxu0 %v495
    %v516 = vpop.f32.mrf.mxu0
    %v517 = vadd.f32 %v428, %v516
    %518 = vdwg.mxu0
    %v519 = vsel %vm456, %v517, -inf
    %520 = vmax.xlane.f32.xlu0 %v519
    %v521 = vpop.xlane.xlu0 %520
    %v522 = vsub.f32 %v517, %v521
    %v523 = vmul.f32 %v522, 1.442695
    %v524 = vpow.pop %v523
    %v525 = vsel %vm456, %v524, 0.0
    %526 = vadd.xlane.f32.xlu0 %v525
    %v527 = vpop.xlane.xlu0 %526
    %v528 = vrcp.pop %v527
    %v529 = vmul.f32 %v524, %v528
    %531 = vrot.lane.b32.xlu0 %v422, 96
    %v532 = vpop.permute.xlu0 %531
    %v535 = vsel %vm456, %v529, 0
    %537 = vmatpush.msra.mxu0 0.0
    %538 = vmatpush.msra.mxu0 0.0
    %539 = vmatpush.msra.mxu0 0.0
    %540 = vmatpush.msra.mxu0 0.0
    %541 = vmatpush.msra.mxu0 0.0
    %542 = vmatpush.msra.mxu0 0.0
    %543 = vmatpush.msra.mxu0 0.0
    %544 = vmatpush.msra.mxu0 0.0
    %545 = vmatpush.msra.mxu0 0.0
    %546 = vmatpush.msra.mxu0 0.0
    %547 = vmatpush.msra.mxu0 0.0
    %548 = vmatpush.msra.mxu0 0.0
    %549 = vmatpush.msra.mxu0 0.0
    %550 = vmatpush.msra.mxu0 0.0
    %551 = vmatpush.msra.mxu0 0.0
    %552 = vmatpush.msra.mxu0 %v532
    %553 = vmatmul.f32.gmra.mxu0 %v535
    %v554 = vpop.f32.mrf.mxu0
    %v555 = vadd.f32 0.0, %v554
    %556 = vdwg.mxu0
    %557 = vrot.lane.b32.xlu0 %v394, 64
    %v558 = vpop.permute.xlu0 %557
    %559 = vrot.lane.b32.xlu0 %v408, 64
    %v560 = vpop.permute.xlu0 %559
    %v561 = vsel %vm429, %v558, 0
    %v563 = vsel %vm429, %v560, 0
    %565 = vmatpush.xpose.msra.mxu0 0.0
    %566 = vmatpush.xpose.msra.mxu0 0.0
    %567 = vmatpush.xpose.msra.mxu0 0.0
    %568 = vmatpush.xpose.msra.mxu0 0.0
    %569 = vmatpush.xpose.msra.mxu0 0.0
    %570 = vmatpush.xpose.msra.mxu0 0.0
    %571 = vmatpush.xpose.msra.mxu0 0.0
    %572 = vmatpush.xpose.msra.mxu0 0.0
    %573 = vmatpush.xpose.msra.mxu0 0.0
    %574 = vmatpush.xpose.msra.mxu0 0.0
    %575 = vmatpush.xpose.msra.mxu0 0.0
    %576 = vmatpush.xpose.msra.mxu0 0.0
    %577 = vmatpush.xpose.msra.mxu0 0.0
    %578 = vmatpush.xpose.msra.mxu0 0.0
    %579 = vmatpush.xpose.msra.mxu0 0.0
    %580 = vmatpush.xpose.msra.mxu0 %v563
    %581 = vmatmul.f32.gmra.mxu0 %v561
    %v582 = vpop.f32.mrf.mxu0
    %v583 = vadd.f32 %v428, %v582
    %584 = vdwg.mxu0
    %v585 = vsel %vm456, %v583, -inf
    %586 = vmax.xlane.f32.xlu0 %v585
    %v587 = vpop.xlane.xlu0 %586
    %v588 = vsub.f32 %v583, %v587
    %v589 = vmul.f32 %v588, 1.442695
    %v590 = vpow.pop %v589
    %v591 = vsel %vm456, %v590, 0.0
    %592 = vadd.xlane.f32.xlu0 %v591
    %v593 = vpop.xlane.xlu0 %592
    %v594 = vrcp.pop %v593
    %v595 = vmul.f32 %v590, %v594
    %596 = vrot.lane.b32.xlu0 %v422, 64
    %v597 = vpop.permute.xlu0 %596
    %v600 = vsel %vm456, %v595, 0
    %602 = vmatpush.msra.mxu0 0.0
    %603 = vmatpush.msra.mxu0 0.0
    %604 = vmatpush.msra.mxu0 0.0
    %605 = vmatpush.msra.mxu0 0.0
    %606 = vmatpush.msra.mxu0 0.0
    %607 = vmatpush.msra.mxu0 0.0
    %608 = vmatpush.msra.mxu0 0.0
    %609 = vmatpush.msra.mxu0 0.0
    %610 = vmatpush.msra.mxu0 0.0
    %611 = vmatpush.msra.mxu0 0.0
    %612 = vmatpush.msra.mxu0 0.0
    %613 = vmatpush.msra.mxu0 0.0
    %614 = vmatpush.msra.mxu0 0.0
    %615 = vmatpush.msra.mxu0 0.0
    %616 = vmatpush.msra.mxu0 0.0
    %617 = vmatpush.msra.mxu0 %v597
    %618 = vmatmul.f32.gmra.mxu0 %v600
    %v619 = vpop.f32.mrf.mxu0
    %v620 = vadd.f32 0.0, %v619
    %621 = vdwg.mxu0
    %622 = vrot.lane.b32.xlu0 %v394, 32
    %v623 = vpop.permute.xlu0 %622
    %624 = vrot.lane.b32.xlu0 %v408, 32
    %v625 = vpop.permute.xlu0 %624
    %v626 = vsel %vm429, %v623, 0
    %v628 = vsel %vm429, %v625, 0
    %630 = vmatpush.xpose.msra.mxu0 0.0
    %631 = vmatpush.xpose.msra.mxu0 0.0
    %632 = vmatpush.xpose.msra.mxu0 0.0
    %633 = vmatpush.xpose.msra.mxu0 0.0
    %634 = vmatpush.xpose.msra.mxu0 0.0
    %635 = vmatpush.xpose.msra.mxu0 0.0
    %636 = vmatpush.xpose.msra.mxu0 0.0
    %637 = vmatpush.xpose.msra.mxu0 0.0
    %638 = vmatpush.xpose.msra.mxu0 0.0
    %639 = vmatpush.xpose.msra.mxu0 0.0
    %640 = vmatpush.xpose.msra.mxu0 0.0
    %641 = vmatpush.xpose.msra.mxu0 0.0
    %642 = vmatpush.xpose.msra.mxu0 0.0
    %643 = vmatpush.xpose.msra.mxu0 0.0
    %644 = vmatpush.xpose.msra.mxu0 0.0
    %645 = vmatpush.xpose.msra.mxu0 %v628
    %646 = vmatmul.f32.gmra.mxu0 %v626
    %v647 = vpop.f32.mrf.mxu0
    %v648 = vadd.f32 %v428, %v647
    %649 = vdwg.mxu0
    %v650 = vsel %vm456, %v648, -inf
    %651 = vmax.xlane.f32.xlu0 %v650
    %v652 = vpop.xlane.xlu0 %651
    %v653 = vsub.f32 %v648, %v652
    %v654 = vmul.f32 %v653, 1.442695
    %v655 = vpow.pop %v654
    %v656 = vsel %vm456, %v655, 0.0
    %657 = vadd.xlane.f32.xlu0 %v656
    %v658 = vpop.xlane.xlu0 %657
    %v659 = vrcp.pop %v658
    %v660 = vmul.f32 %v655, %v659
    %661 = vrot.lane.b32.xlu0 %v422, 32
    %v662 = vpop.permute.xlu0 %661
    %v665 = vsel %vm456, %v660, 0
    %667 = vmatpush.msra.mxu0 0.0
    %668 = vmatpush.msra.mxu0 0.0
    %669 = vmatpush.msra.mxu0 0.0
    %670 = vmatpush.msra.mxu0 0.0
    %671 = vmatpush.msra.mxu0 0.0
    %672 = vmatpush.msra.mxu0 0.0
    %673 = vmatpush.msra.mxu0 0.0
    %674 = vmatpush.msra.mxu0 0.0
    %675 = vmatpush.msra.mxu0 0.0
    %676 = vmatpush.msra.mxu0 0.0
    %677 = vmatpush.msra.mxu0 0.0
    %678 = vmatpush.msra.mxu0 0.0
    %679 = vmatpush.msra.mxu0 0.0
    %680 = vmatpush.msra.mxu0 0.0
    %681 = vmatpush.msra.mxu0 0.0
    %682 = vmatpush.msra.mxu0 %v662
    %683 = vmatmul.f32.gmra.mxu0 %v665
    %v684 = vpop.f32.mrf.mxu0
    %v685 = vadd.f32 0.0, %v684
    %686 = vdwg.mxu0
    %688 = vrot.lane.b32.xlu0 %v555, 32
    %v689 = vpop.permute.xlu0 %688
    %692 = vrot.lane.b32.xlu0 %v620, 64
    %v693 = vpop.permute.xlu0 %692
    %696 = vrot.lane.b32.xlu0 %v685, 96
    %v697 = vpop.permute.xlu0 %696
    %v699 = vsel %vm429, %v489, %v689
    %vm700 = vcmask 523264
    %v701 = vsel %vm700, %v699, %v693
    %vm702 = vcmask 785408
    %v703 = vsel %vm702, %v701, %v697
    %v704 = vperm.slane %v427, 1
    %v706 = vsel %vm429, %v396, 0
    %v709 = vsel %vm429, %v410, 0
    %711 = vmatpush.xpose.msra.mxu0 0.0
    %712 = vmatpush.xpose.msra.mxu0 0.0
    %713 = vmatpush.xpose.msra.mxu0 0.0
    %714 = vmatpush.xpose.msra.mxu0 0.0
    %715 = vmatpush.xpose.msra.mxu0 0.0
    %716 = vmatpush.xpose.msra.mxu0 0.0
    %717 = vmatpush.xpose.msra.mxu0 0.0
    %718 = vmatpush.xpose.msra.mxu0 0.0
    %719 = vmatpush.xpose.msra.mxu0 0.0
    %720 = vmatpush.xpose.msra.mxu0 0.0
    %721 = vmatpush.xpose.msra.mxu0 0.0
    %722 = vmatpush.xpose.msra.mxu0 0.0
    %723 = vmatpush.xpose.msra.mxu0 0.0
    %724 = vmatpush.xpose.msra.mxu0 0.0
    %725 = vmatpush.xpose.msra.mxu0 0.0
    %726 = vmatpush.xpose.msra.mxu0 %v709
    %727 = vmatmul.f32.gmra.mxu0 %v706
    %v728 = vpop.f32.mrf.mxu0
    %v729 = vadd.f32 %v704, %v728
    %730 = vdwg.mxu0
    %v731 = vsel %vm456, %v729, -inf
    %732 = vmax.xlane.f32.xlu0 %v731
    %v733 = vpop.xlane.xlu0 %732
    %v734 = vsub.f32 %v729, %v733
    %v735 = vmul.f32 %v734, 1.442695
    %v736 = vpow.pop %v735
    %v737 = vsel %vm456, %v736, 0.0
    %738 = vadd.xlane.f32.xlu0 %v737
    %v739 = vpop.xlane.xlu0 %738
    %v740 = vrcp.pop %v739
    %v741 = vmul.f32 %v736, %v740
    %v743 = vsel %vm456, %v741, 0
    %745 = vmatpush.msra.mxu0 0.0
    %746 = vmatpush.msra.mxu0 0.0
    %747 = vmatpush.msra.mxu0 0.0
    %748 = vmatpush.msra.mxu0 0.0
    %749 = vmatpush.msra.mxu0 0.0
    %750 = vmatpush.msra.mxu0 0.0
    %751 = vmatpush.msra.mxu0 0.0
    %752 = vmatpush.msra.mxu0 0.0
    %753 = vmatpush.msra.mxu0 0.0
    %754 = vmatpush.msra.mxu0 0.0
    %755 = vmatpush.msra.mxu0 0.0
    %756 = vmatpush.msra.mxu0 0.0
    %757 = vmatpush.msra.mxu0 0.0
    %758 = vmatpush.msra.mxu0 0.0
    %759 = vmatpush.msra.mxu0 0.0
    %760 = vmatpush.msra.mxu0 %v424
    %761 = vmatmul.f32.gmra.mxu0 %v743
    %v762 = vpop.f32.mrf.mxu0
    %v763 = vadd.f32 0.0, %v762
    %764 = vdwg.mxu0
    %765 = vrot.lane.b32.xlu0 %v396, 96
    %v766 = vpop.permute.xlu0 %765
    %767 = vrot.lane.b32.xlu0 %v410, 96
    %v768 = vpop.permute.xlu0 %767
    %v769 = vsel %vm429, %v766, 0
    %v771 = vsel %vm429, %v768, 0
    %773 = vmatpush.xpose.msra.mxu0 0.0
    %774 = vmatpush.xpose.msra.mxu0 0.0
    %775 = vmatpush.xpose.msra.mxu0 0.0
    %776 = vmatpush.xpose.msra.mxu0 0.0
    %777 = vmatpush.xpose.msra.mxu0 0.0
    %778 = vmatpush.xpose.msra.mxu0 0.0
    %779 = vmatpush.xpose.msra.mxu0 0.0
    %780 = vmatpush.xpose.msra.mxu0 0.0
    %781 = vmatpush.xpose.msra.mxu0 0.0
    %782 = vmatpush.xpose.msra.mxu0 0.0
    %783 = vmatpush.xpose.msra.mxu0 0.0
    %784 = vmatpush.xpose.msra.mxu0 0.0
    %785 = vmatpush.xpose.msra.mxu0 0.0
    %786 = vmatpush.xpose.msra.mxu0 0.0
    %787 = vmatpush.xpose.msra.mxu0 0.0
    %788 = vmatpush.xpose.msra.mxu0 %v771
    %789 = vmatmul.f32.gmra.mxu0 %v769
    %v790 = vpop.f32.mrf.mxu0
    %v791 = vadd.f32 %v704, %v790
    %792 = vdwg.mxu0
    %v793 = vsel %vm456, %v791, -inf
    %794 = vmax.xlane.f32.xlu0 %v793
    %v795 = vpop.xlane.xlu0 %794
    %v796 = vsub.f32 %v791, %v795
    %v797 = vmul.f32 %v796, 1.442695
    %v798 = vpow.pop %v797
    %v799 = vsel %vm456, %v798, 0.0
    %800 = vadd.xlane.f32.xlu0 %v799
    %v801 = vpop.xlane.xlu0 %800
    %v802 = vrcp.pop %v801
    %v803 = vmul.f32 %v798, %v802
    %805 = vrot.lane.b32.xlu0 %v424, 96
    %v806 = vpop.permute.xlu0 %805
    %v809 = vsel %vm456, %v803, 0
    %811 = vmatpush.msra.mxu0 0.0
    %812 = vmatpush.msra.mxu0 0.0
    %813 = vmatpush.msra.mxu0 0.0
    %814 = vmatpush.msra.mxu0 0.0
    %815 = vmatpush.msra.mxu0 0.0
    %816 = vmatpush.msra.mxu0 0.0
    %817 = vmatpush.msra.mxu0 0.0
    %818 = vmatpush.msra.mxu0 0.0
    %819 = vmatpush.msra.mxu0 0.0
    %820 = vmatpush.msra.mxu0 0.0
    %821 = vmatpush.msra.mxu0 0.0
    %822 = vmatpush.msra.mxu0 0.0
    %823 = vmatpush.msra.mxu0 0.0
    %824 = vmatpush.msra.mxu0 0.0
    %825 = vmatpush.msra.mxu0 0.0
    %826 = vmatpush.msra.mxu0 %v806
    %827 = vmatmul.f32.gmra.mxu0 %v809
    %v828 = vpop.f32.mrf.mxu0
    %v829 = vadd.f32 0.0, %v828
    %830 = vdwg.mxu0
    %831 = vrot.lane.b32.xlu0 %v396, 64
    %v832 = vpop.permute.xlu0 %831
    %833 = vrot.lane.b32.xlu0 %v410, 64
    %v834 = vpop.permute.xlu0 %833
    %v835 = vsel %vm429, %v832, 0
    %v837 = vsel %vm429, %v834, 0
    %839 = vmatpush.xpose.msra.mxu0 0.0
    %840 = vmatpush.xpose.msra.mxu0 0.0
    %841 = vmatpush.xpose.msra.mxu0 0.0
    %842 = vmatpush.xpose.msra.mxu0 0.0
    %843 = vmatpush.xpose.msra.mxu0 0.0
    %844 = vmatpush.xpose.msra.mxu0 0.0
    %845 = vmatpush.xpose.msra.mxu0 0.0
    %846 = vmatpush.xpose.msra.mxu0 0.0
    %847 = vmatpush.xpose.msra.mxu0 0.0
    %848 = vmatpush.xpose.msra.mxu0 0.0
    %849 = vmatpush.xpose.msra.mxu0 0.0
    %850 = vmatpush.xpose.msra.mxu0 0.0
    %851 = vmatpush.xpose.msra.mxu0 0.0
    %852 = vmatpush.xpose.msra.mxu0 0.0
    %853 = vmatpush.xpose.msra.mxu0 0.0
    %854 = vmatpush.xpose.msra.mxu0 %v837
    %855 = vmatmul.f32.gmra.mxu0 %v835
    %v856 = vpop.f32.mrf.mxu0
    %v857 = vadd.f32 %v704, %v856
    %858 = vdwg.mxu0
    %v859 = vsel %vm456, %v857, -inf
    %860 = vmax.xlane.f32.xlu0 %v859
    %v861 = vpop.xlane.xlu0 %860
    %v862 = vsub.f32 %v857, %v861
    %v863 = vmul.f32 %v862, 1.442695
    %v864 = vpow.pop %v863
    %v865 = vsel %vm456, %v864, 0.0
    %866 = vadd.xlane.f32.xlu0 %v865
    %v867 = vpop.xlane.xlu0 %866
    %v868 = vrcp.pop %v867
    %v869 = vmul.f32 %v864, %v868
    %870 = vrot.lane.b32.xlu0 %v424, 64
    %v871 = vpop.permute.xlu0 %870
    %v874 = vsel %vm456, %v869, 0
    %876 = vmatpush.msra.mxu0 0.0
    %877 = vmatpush.msra.mxu0 0.0
    %878 = vmatpush.msra.mxu0 0.0
    %879 = vmatpush.msra.mxu0 0.0
    %880 = vmatpush.msra.mxu0 0.0
    %881 = vmatpush.msra.mxu0 0.0
    %882 = vmatpush.msra.mxu0 0.0
    %883 = vmatpush.msra.mxu0 0.0
    %884 = vmatpush.msra.mxu0 0.0
    %885 = vmatpush.msra.mxu0 0.0
    %886 = vmatpush.msra.mxu0 0.0
    %887 = vmatpush.msra.mxu0 0.0
    %888 = vmatpush.msra.mxu0 0.0
    %889 = vmatpush.msra.mxu0 0.0
    %890 = vmatpush.msra.mxu0 0.0
    %891 = vmatpush.msra.mxu0 %v871
    %892 = vmatmul.f32.gmra.mxu0 %v874
    %v893 = vpop.f32.mrf.mxu0
    %v894 = vadd.f32 0.0, %v893
    %895 = vdwg.mxu0
    %896 = vrot.lane.b32.xlu0 %v396, 32
    %v897 = vpop.permute.xlu0 %896
    %898 = vrot.lane.b32.xlu0 %v410, 32
    %v899 = vpop.permute.xlu0 %898
    %v900 = vsel %vm429, %v897, 0
    %v902 = vsel %vm429, %v899, 0
    %904 = vmatpush.xpose.msra.mxu0 0.0
    %905 = vmatpush.xpose.msra.mxu0 0.0
    %906 = vmatpush.xpose.msra.mxu0 0.0
    %907 = vmatpush.xpose.msra.mxu0 0.0
    %908 = vmatpush.xpose.msra.mxu0 0.0
    %909 = vmatpush.xpose.msra.mxu0 0.0
    %910 = vmatpush.xpose.msra.mxu0 0.0
    %911 = vmatpush.xpose.msra.mxu0 0.0
    %912 = vmatpush.xpose.msra.mxu0 0.0
    %913 = vmatpush.xpose.msra.mxu0 0.0
    %914 = vmatpush.xpose.msra.mxu0 0.0
    %915 = vmatpush.xpose.msra.mxu0 0.0
    %916 = vmatpush.xpose.msra.mxu0 0.0
    %917 = vmatpush.xpose.msra.mxu0 0.0
    %918 = vmatpush.xpose.msra.mxu0 0.0
    %919 = vmatpush.xpose.msra.mxu0 %v902
    %920 = vmatmul.f32.gmra.mxu0 %v900
    %v921 = vpop.f32.mrf.mxu0
    %v922 = vadd.f32 %v704, %v921
    %923 = vdwg.mxu0
    %v924 = vsel %vm456, %v922, -inf
    %925 = vmax.xlane.f32.xlu0 %v924
    %v926 = vpop.xlane.xlu0 %925
    %v927 = vsub.f32 %v922, %v926
    %v928 = vmul.f32 %v927, 1.442695
    %v929 = vpow.pop %v928
    %v930 = vsel %vm456, %v929, 0.0
    %931 = vadd.xlane.f32.xlu0 %v930
    %v932 = vpop.xlane.xlu0 %931
    %v933 = vrcp.pop %v932
    %v934 = vmul.f32 %v929, %v933
    %935 = vrot.lane.b32.xlu0 %v424, 32
    %v936 = vpop.permute.xlu0 %935
    %v939 = vsel %vm456, %v934, 0
    %941 = vmatpush.msra.mxu0 0.0
    %942 = vmatpush.msra.mxu0 0.0
    %943 = vmatpush.msra.mxu0 0.0
    %944 = vmatpush.msra.mxu0 0.0
    %945 = vmatpush.msra.mxu0 0.0
    %946 = vmatpush.msra.mxu0 0.0
    %947 = vmatpush.msra.mxu0 0.0
    %948 = vmatpush.msra.mxu0 0.0
    %949 = vmatpush.msra.mxu0 0.0
    %950 = vmatpush.msra.mxu0 0.0
    %951 = vmatpush.msra.mxu0 0.0
    %952 = vmatpush.msra.mxu0 0.0
    %953 = vmatpush.msra.mxu0 0.0
    %954 = vmatpush.msra.mxu0 0.0
    %955 = vmatpush.msra.mxu0 0.0
    %956 = vmatpush.msra.mxu0 %v936
    %957 = vmatmul.f32.gmra.mxu0 %v939
    %v958 = vpop.f32.mrf.mxu0
    %v959 = vadd.f32 0.0, %v958
    %960 = vdwg.mxu0
    %962 = vrot.lane.b32.xlu0 %v829, 32
    %v963 = vpop.permute.xlu0 %962
    %966 = vrot.lane.b32.xlu0 %v894, 64
    %v967 = vpop.permute.xlu0 %966
    %970 = vrot.lane.b32.xlu0 %v959, 96
    %v971 = vpop.permute.xlu0 %970
    %v973 = vsel %vm429, %v763, %v963
    %v974 = vsel %vm700, %v973, %v967
    %v975 = vsel %vm702, %v974, %v971
    %v976 = vpack.c.bf16 %v975, %v703
    %v993 = vunpack.c.l.b16 %v177
    %v994 = vunpack.c.l.b16 %v178
    %v995 = vunpack.c.l.b16 %v179
    %v996 = vunpack.c.l.b16 %v180
    %v997 = vunpack.c.l.b16 %v181
    %v998 = vunpack.c.l.b16 %v182
    %v999 = vunpack.c.l.b16 %v183
    %v1000 = vunpack.c.l.b16 %v184
    %v1001 = vunpack.c.l.b16 %v185
    %v1002 = vunpack.c.l.b16 %v186
    %v1003 = vunpack.c.l.b16 %v187
    %v1004 = vunpack.c.l.b16 %v188
    %v1005 = vunpack.c.l.b16 %v189
    %v1006 = vunpack.c.l.b16 %v190
    %v1007 = vunpack.c.l.b16 %v191
    %v1008 = vunpack.c.l.b16 %v192
    %v1009 = vpack.c.b16 %v994, %v993
    %v1010 = vpack.c.b16 %v996, %v995
    %v1011 = vpack.c.b16 %v998, %v997
    %v1012 = vpack.c.b16 %v1000, %v999
    %v1013 = vpack.c.b16 %v1002, %v1001
    %v1014 = vpack.c.b16 %v1004, %v1003
    %v1015 = vpack.c.b16 %v1006, %v1005
    %v1016 = vpack.c.b16 %v1008, %v1007
    %1025 = vmatpush.bf16.msra.mxu0 %v1016
    %1026 = vmatpush.bf16.msra.mxu0 %v1015
    %1027 = vmatpush.bf16.msra.mxu0 %v1014
    %1028 = vmatpush.bf16.msra.mxu0 %v1013
    %1029 = vmatpush.bf16.msra.mxu0 %v1012
    %1030 = vmatpush.bf16.msra.mxu0 %v1011
    %1031 = vmatpush.bf16.msra.mxu0 %v1010
    %1032 = vmatpush.bf16.msra.mxu0 %v1009
    %1033 = vmatmul.bf16.gmra.mxu0 %v976
    %v1034 = vpop.f32.mrf.mxu0
    %v1035 = vadd.f32 0.0, %v1034
    %v1036 = vpop.f32.mrf.mxu0
    %v1037 = vadd.f32 0.0, %v1036
    %1038 = vdwg.mxu0
    %v1039 = vadd.f32 %v141, %v1035
    %v1040 = vadd.f32 %v142, %v1037
    %v1042 = vperm.slane %v193, 0
    %v1044 = vadd.f32 %v1039, %v1042
    %v1045 = vadd.f32 %v1040, %v1042
    %1046 = vadd.xlane.f32.xlu0 %v1044
    %v1047 = vpop.xlane.xlu0 %1046
    %1048 = vadd.xlane.f32.xlu0 %v1045
    %v1049 = vpop.xlane.xlu0 %1048
    %v1050 = vrcp.pop 128.0
    %v1051 = vmul.f32 128.0, %v1050
    %v1052 = vsub.f32 1.0, %v1051
    %v1053 = vmul.f32 %v1050, %v1052
    %v1054 = vadd.f32 %v1050, %v1053
    %vm1055 = vweird.f32 %v1050
    %v1056 = vsel %vm1055, %v1050, %v1054
    %v1057 = vmul.f32 %v1047, %v1056
    %v1058 = vmul.f32 %v1049, %v1056
    %v1059 = vsub.f32 %v1044, %v1057
    %v1060 = vsub.f32 %v1045, %v1058
    %v1061 = vmul.f32 %v1059, %v1059
    %v1062 = vmul.f32 %v1060, %v1060
    %1063 = vadd.xlane.f32.xlu0 %v1061
    %v1064 = vpop.xlane.xlu0 %1063
    %1065 = vadd.xlane.f32.xlu0 %v1062
    %v1066 = vpop.xlane.xlu0 %1065
    %v1067 = vmul.f32 %v1064, %v1056
    %v1068 = vmul.f32 %v1066, %v1056
    %v1069 = vadd.f32 %v1067, 1e-05
    %v1070 = vadd.f32 %v1068, 1e-05
    %v1071 = vrsqrt.pop %v1069
    %v1072 = vmul.f32 %v1071, %v1069
    %v1073 = vmul.f32 %v1072, %v1071
    %v1074 = vmul.f32 0.5, %v1073
    %v1075 = vsub.f32 1.5, %v1074
    %v1076 = vmul.f32 %v1071, %v1075
    %vm1077 = vweird.f32 %v1069
    %vm1078 = vweird.f32 %v1071
    %vm1079 = vmor %vm1077, %vm1078
    %v1080 = vsel %vm1079, %v1071, %v1076
    %v1081 = vrsqrt.pop %v1070
    %v1082 = vmul.f32 %v1081, %v1070
    %v1083 = vmul.f32 %v1082, %v1081
    %v1084 = vmul.f32 0.5, %v1083
    %v1085 = vsub.f32 1.5, %v1084
    %v1086 = vmul.f32 %v1081, %v1085
    %vm1087 = vweird.f32 %v1070
    %vm1088 = vweird.f32 %v1081
    %vm1089 = vmor %vm1087, %vm1088
    %v1090 = vsel %vm1089, %v1081, %v1086
    %v1091 = vmul.f32 %v1059, %v1080
    %v1092 = vmul.f32 %v1060, %v1090
    %v1094 = vperm.slane %v194, 0
    %v1096 = vmul.f32 %v1091, %v1094
    %v1097 = vmul.f32 %v1092, %v1094
    %v1099 = vperm.slane %v195, 0
    %v1101 = vadd.f32 %v1096, %v1099
    %v1102 = vadd.f32 %v1097, %v1099
    %v1103 = vpack.c.bf16 %v1102, %v1101
    %v1105 = vperm.slane %v212, 0
    %v1106 = vperm.slane %v212, 1
    %v1125 = vunpack.c.l.b16 %v196
    %v1126 = vunpack.c.h.b16 %v196
    %v1127 = vunpack.c.l.b16 %v197
    %v1128 = vunpack.c.h.b16 %v197
    %v1129 = vunpack.c.l.b16 %v198
    %v1130 = vunpack.c.h.b16 %v198
    %v1131 = vunpack.c.l.b16 %v199
    %v1132 = vunpack.c.h.b16 %v199
    %v1133 = vunpack.c.l.b16 %v200
    %v1134 = vunpack.c.h.b16 %v200
    %v1135 = vunpack.c.l.b16 %v201
    %v1136 = vunpack.c.h.b16 %v201
    %v1137 = vunpack.c.l.b16 %v202
    %v1138 = vunpack.c.h.b16 %v202
    %v1139 = vunpack.c.l.b16 %v203
    %v1140 = vunpack.c.h.b16 %v203
    %v1141 = vunpack.c.l.b16 %v204
    %v1142 = vunpack.c.h.b16 %v204
    %v1143 = vunpack.c.l.b16 %v205
    %v1144 = vunpack.c.h.b16 %v205
    %v1145 = vunpack.c.l.b16 %v206
    %v1146 = vunpack.c.h.b16 %v206
    %v1147 = vunpack.c.l.b16 %v207
    %v1148 = vunpack.c.h.b16 %v207
    %v1149 = vunpack.c.l.b16 %v208
    %v1150 = vunpack.c.h.b16 %v208
    %v1151 = vunpack.c.l.b16 %v209
    %v1152 = vunpack.c.h.b16 %v209
    %v1153 = vunpack.c.l.b16 %v210
    %v1154 = vunpack.c.h.b16 %v210
    %v1155 = vunpack.c.l.b16 %v211
    %v1156 = vunpack.c.h.b16 %v211
    %v1157 = vpack.c.b16 %v1127, %v1125
    %v1158 = vpack.c.b16 %v1128, %v1126
    %v1159 = vpack.c.b16 %v1131, %v1129
    %v1160 = vpack.c.b16 %v1132, %v1130
    %v1161 = vpack.c.b16 %v1135, %v1133
    %v1162 = vpack.c.b16 %v1136, %v1134
    %v1163 = vpack.c.b16 %v1139, %v1137
    %v1164 = vpack.c.b16 %v1140, %v1138
    %v1165 = vpack.c.b16 %v1143, %v1141
    %v1166 = vpack.c.b16 %v1144, %v1142
    %v1167 = vpack.c.b16 %v1147, %v1145
    %v1168 = vpack.c.b16 %v1148, %v1146
    %v1169 = vpack.c.b16 %v1151, %v1149
    %v1170 = vpack.c.b16 %v1152, %v1150
    %v1171 = vpack.c.b16 %v1155, %v1153
    %v1172 = vpack.c.b16 %v1156, %v1154
    %1189 = vmatpush.bf16.msra.mxu0 %v1171
    %1190 = vmatpush.bf16.msra.mxu0 %v1169
    %1191 = vmatpush.bf16.msra.mxu0 %v1167
    %1192 = vmatpush.bf16.msra.mxu0 %v1165
    %1193 = vmatpush.bf16.msra.mxu0 %v1163
    %1194 = vmatpush.bf16.msra.mxu0 %v1161
    %1195 = vmatpush.bf16.msra.mxu0 %v1159
    %1196 = vmatpush.bf16.msra.mxu0 %v1157
    %1197 = vmatmul.bf16.gmra.mxu0 %v1103
    %v1198 = vpop.f32.mrf.mxu0
    %v1199 = vadd.f32 %v1105, %v1198
    %v1200 = vpop.f32.mrf.mxu0
    %v1201 = vadd.f32 %v1105, %v1200
    %1202 = vdwg.mxu0
    %1203 = vmatpush.bf16.msra.mxu0 %v1172
    %1204 = vmatpush.bf16.msra.mxu0 %v1170
    %1205 = vmatpush.bf16.msra.mxu0 %v1168
    %1206 = vmatpush.bf16.msra.mxu0 %v1166
    %1207 = vmatpush.bf16.msra.mxu0 %v1164
    %1208 = vmatpush.bf16.msra.mxu0 %v1162
    %1209 = vmatpush.bf16.msra.mxu0 %v1160
    %1210 = vmatpush.bf16.msra.mxu0 %v1158
    %1211 = vmatmul.bf16.gmra.mxu0 %v1103
    %v1212 = vpop.f32.mrf.mxu0
    %v1213 = vadd.f32 %v1106, %v1212
    %v1214 = vpop.f32.mrf.mxu0
    %v1215 = vadd.f32 %v1106, %v1214
    %1216 = vdwg.mxu0
    %v1217 = vmax.f32 %v1199, 0.0
    %v1218 = vmax.f32 %v1213, 0.0
    %v1219 = vmax.f32 %v1201, 0.0
    %v1220 = vmax.f32 %v1215, 0.0
    %v1221 = vpack.c.bf16 %v1219, %v1217
    %v1222 = vpack.c.bf16 %v1220, %v1218
    %v1224 = vperm.slane %v245, 0
    %v1258 = vunpack.c.l.b16 %v213
    %v1259 = vunpack.c.l.b16 %v214
    %v1260 = vunpack.c.l.b16 %v215
    %v1261 = vunpack.c.l.b16 %v216
    %v1262 = vunpack.c.l.b16 %v217
    %v1263 = vunpack.c.l.b16 %v218
    %v1264 = vunpack.c.l.b16 %v219
    %v1265 = vunpack.c.l.b16 %v220
    %v1266 = vunpack.c.l.b16 %v221
    %v1267 = vunpack.c.l.b16 %v222
    %v1268 = vunpack.c.l.b16 %v223
    %v1269 = vunpack.c.l.b16 %v224
    %v1270 = vunpack.c.l.b16 %v225
    %v1271 = vunpack.c.l.b16 %v226
    %v1272 = vunpack.c.l.b16 %v227
    %v1273 = vunpack.c.l.b16 %v228
    %v1274 = vunpack.c.l.b16 %v229
    %v1275 = vunpack.c.l.b16 %v230
    %v1276 = vunpack.c.l.b16 %v231
    %v1277 = vunpack.c.l.b16 %v232
    %v1278 = vunpack.c.l.b16 %v233
    %v1279 = vunpack.c.l.b16 %v234
    %v1280 = vunpack.c.l.b16 %v235
    %v1281 = vunpack.c.l.b16 %v236
    %v1282 = vunpack.c.l.b16 %v237
    %v1283 = vunpack.c.l.b16 %v238
    %v1284 = vunpack.c.l.b16 %v239
    %v1285 = vunpack.c.l.b16 %v240
    %v1286 = vunpack.c.l.b16 %v241
    %v1287 = vunpack.c.l.b16 %v242
    %v1288 = vunpack.c.l.b16 %v243
    %v1289 = vunpack.c.l.b16 %v244
    %v1290 = vpack.c.b16 %v1259, %v1258
    %v1291 = vpack.c.b16 %v1261, %v1260
    %v1292 = vpack.c.b16 %v1263, %v1262
    %v1293 = vpack.c.b16 %v1265, %v1264
    %v1294 = vpack.c.b16 %v1267, %v1266
    %v1295 = vpack.c.b16 %v1269, %v1268
    %v1296 = vpack.c.b16 %v1271, %v1270
    %v1297 = vpack.c.b16 %v1273, %v1272
    %v1298 = vpack.c.b16 %v1275, %v1274
    %v1299 = vpack.c.b16 %v1277, %v1276
    %v1300 = vpack.c.b16 %v1279, %v1278
    %v1301 = vpack.c.b16 %v1281, %v1280
    %v1302 = vpack.c.b16 %v1283, %v1282
    %v1303 = vpack.c.b16 %v1285, %v1284
    %v1304 = vpack.c.b16 %v1287, %v1286
    %v1305 = vpack.c.b16 %v1289, %v1288
    %1322 = vmatpush.bf16.msra.mxu0 %v1297
    %1323 = vmatpush.bf16.msra.mxu0 %v1296
    %1324 = vmatpush.bf16.msra.mxu0 %v1295
    %1325 = vmatpush.bf16.msra.mxu0 %v1294
    %1326 = vmatpush.bf16.msra.mxu0 %v1293
    %1327 = vmatpush.bf16.msra.mxu0 %v1292
    %1328 = vmatpush.bf16.msra.mxu0 %v1291
    %1329 = vmatpush.bf16.msra.mxu0 %v1290
    %1330 = vmatmul.bf16.gmra.mxu0 %v1221
    %v1331 = vpop.f32.mrf.mxu0
    %v1332 = vadd.f32 %v1224, %v1331
    %v1333 = vpop.f32.mrf.mxu0
    %v1334 = vadd.f32 %v1224, %v1333
    %1335 = vdwg.mxu0
    %1336 = vmatpush.bf16.msra.mxu0 %v1305
    %1337 = vmatpush.bf16.msra.mxu0 %v1304
    %1338 = vmatpush.bf16.msra.mxu0 %v1303
    %1339 = vmatpush.bf16.msra.mxu0 %v1302
    %1340 = vmatpush.bf16.msra.mxu0 %v1301
    %1341 = vmatpush.bf16.msra.mxu0 %v1300
    %1342 = vmatpush.bf16.msra.mxu0 %v1299
    %1343 = vmatpush.bf16.msra.mxu0 %v1298
    %1344 = vmatmul.bf16.gmra.mxu0 %v1222
    %v1345 = vpop.f32.mrf.mxu0
    %v1346 = vadd.f32 %v1332, %v1345
    %v1347 = vpop.f32.mrf.mxu0
    %v1348 = vadd.f32 %v1334, %v1347
    %1349 = vdwg.mxu0
    %v1350 = vadd.f32 %v1101, %v1346
    %v1351 = vadd.f32 %v1102, %v1348
    %1352 = vadd.xlane.f32.xlu0 %v1350
    %v1353 = vpop.xlane.xlu0 %1352
    %1354 = vadd.xlane.f32.xlu0 %v1351
    %v1355 = vpop.xlane.xlu0 %1354
    %v1356 = vmul.f32 %v1353, %v1056
    %v1357 = vmul.f32 %v1355, %v1056
    %v1358 = vsub.f32 %v1350, %v1356
    %v1359 = vsub.f32 %v1351, %v1357
    %v1360 = vmul.f32 %v1358, %v1358
    %v1361 = vmul.f32 %v1359, %v1359
    %1362 = vadd.xlane.f32.xlu0 %v1360
    %v1363 = vpop.xlane.xlu0 %1362
    %1364 = vadd.xlane.f32.xlu0 %v1361
    %v1365 = vpop.xlane.xlu0 %1364
    %v1366 = vmul.f32 %v1363, %v1056
    %v1367 = vmul.f32 %v1365, %v1056
    %v1368 = vadd.f32 %v1366, 1e-05
    %v1369 = vadd.f32 %v1367, 1e-05
    %v1370 = vrsqrt.pop %v1368
    %v1371 = vmul.f32 %v1370, %v1368
    %v1372 = vmul.f32 %v1371, %v1370
    %v1373 = vmul.f32 0.5, %v1372
    %v1374 = vsub.f32 1.5, %v1373
    %v1375 = vmul.f32 %v1370, %v1374
    %vm1376 = vweird.f32 %v1368
    %vm1377 = vweird.f32 %v1370
    %vm1378 = vmor %vm1376, %vm1377
    %v1379 = vsel %vm1378, %v1370, %v1375
    %v1380 = vrsqrt.pop %v1369
    %v1381 = vmul.f32 %v1380, %v1369
    %v1382 = vmul.f32 %v1381, %v1380
    %v1383 = vmul.f32 0.5, %v1382
    %v1384 = vsub.f32 1.5, %v1383
    %v1385 = vmul.f32 %v1380, %v1384
    %vm1386 = vweird.f32 %v1369
    %vm1387 = vweird.f32 %v1380
    %vm1388 = vmor %vm1386, %vm1387
    %v1389 = vsel %vm1388, %v1380, %v1385
    %v1390 = vmul.f32 %v1358, %v1379
    %v1391 = vmul.f32 %v1359, %v1389
    %v1393 = vperm.slane %v246, 0
    %v1395 = vmul.f32 %v1390, %v1393
    %v1396 = vmul.f32 %v1391, %v1393
    %v1398 = vperm.slane %v247, 0
    %v1400 = vadd.f32 %v1395, %v1398
    %v1401 = vadd.f32 %v1396, %v1398
    %v1402 = vpack.c.bf16 %v1401, %v1400
    %v1403 = vld [vmem:[#allocation8] sm:$0xff]
    %v1404 = vld [vmem:[#allocation8 + $0x8] sm:$0xf]
    %v1405 = vld [vmem:[#allocation8 + $0xc] sm:$0xff]
    %v1406 = vld [vmem:[#allocation8 + $0x14] sm:$0xf]
    %v1407 = vld [vmem:[#allocation8 + $0x18] sm:$0xff]
    %v1408 = vld [vmem:[#allocation8 + $0x20] sm:$0xf]
    %v1409 = vld [vmem:[#allocation8 + $0x24] sm:$0xff]
    %v1410 = vld [vmem:[#allocation8 + $0x2c] sm:$0xf]
    %v1411 = vld [vmem:[#allocation8 + $0x30] sm:$0xff]
    %v1412 = vld [vmem:[#allocation8 + $0x38] sm:$0xf]
    %v1413 = vld [vmem:[#allocation8 + $0x3c] sm:$0xff]
    %v1414 = vld [vmem:[#allocation8 + $0x44] sm:$0xf]
    %v1415 = vld [vmem:[#allocation8 + $0x48] sm:$0xff]
    %v1416 = vld [vmem:[#allocation8 + $0x50] sm:$0xf]
    %v1417 = vld [vmem:[#allocation8 + $0x54] sm:$0xff]
    %v1418 = vld [vmem:[#allocation8 + $0x5c] sm:$0xf]
    %v1419 = vld [vmem:[#allocation8 + $0x60] sm:$0xff]
    %v1420 = vld [vmem:[#allocation8 + $0x68] sm:$0xf]
    %v1421 = vld [vmem:[#allocation8 + $0x6c] sm:$0xff]
    %v1422 = vld [vmem:[#allocation8 + $0x74] sm:$0xf]
    %v1423 = vld [vmem:[#allocation8 + $0x78] sm:$0xff]
    %v1424 = vld [vmem:[#allocation8 + $0x80] sm:$0xf]
    %v1425 = vld [vmem:[#allocation8 + $0x84] sm:$0xff]
    %v1426 = vld [vmem:[#allocation8 + $0x8c] sm:$0xf]
    %v1427 = vld [vmem:[#allocation8 + $0x90] sm:$0xff]
    %v1428 = vld [vmem:[#allocation8 + $0x98] sm:$0xf]
    %v1429 = vld [vmem:[#allocation8 + $0x9c] sm:$0xff]
    %v1430 = vld [vmem:[#allocation8 + $0xa4] sm:$0xf]
    %v1431 = vld [vmem:[#allocation8 + $0xa8] sm:$0xff]
    %v1432 = vld [vmem:[#allocation8 + $0xb0] sm:$0xf]
    %v1433 = vld [vmem:[#allocation8 + $0xb4] sm:$0xff]
    %v1434 = vld [vmem:[#allocation8 + $0xbc] sm:$0xf]
    %v1435 = vld [vmem:[%s15] sm:$0x7]
    %v1437 = vperm.slane %v1435, 0
    %v1438 = vperm.slane %v1435, 1
    %v1439 = vperm.slane %v1435, 2
    %v1475 = vunpack.c.l.b16 %v1403
    %v1476 = vunpack.c.h.b16 %v1403
    %v1477 = vunpack.c.l.b16 %v1404
    %v1478 = vunpack.c.l.b16 %v1405
    %v1479 = vunpack.c.h.b16 %v1405
    %v1480 = vunpack.c.l.b16 %v1406
    %v1481 = vunpack.c.l.b16 %v1407
    %v1482 = vunpack.c.h.b16 %v1407
    %v1483 = vunpack.c.l.b16 %v1408
    %v1484 = vunpack.c.l.b16 %v1409
    %v1485 = vunpack.c.h.b16 %v1409
    %v1486 = vunpack.c.l.b16 %v1410
    %v1487 = vunpack.c.l.b16 %v1411
    %v1488 = vunpack.c.h.b16 %v1411
    %v1489 = vunpack.c.l.b16 %v1412
    %v1490 = vunpack.c.l.b16 %v1413
    %v1491 = vunpack.c.h.b16 %v1413
    %v1492 = vunpack.c.l.b16 %v1414
    %v1493 = vunpack.c.l.b16 %v1415
    %v1494 = vunpack.c.h.b16 %v1415
    %v1495 = vunpack.c.l.b16 %v1416
    %v1496 = vunpack.c.l.b16 %v1417
    %v1497 = vunpack.c.h.b16 %v1417
    %v1498 = vunpack.c.l.b16 %v1418
    %v1499 = vunpack.c.l.b16 %v1419
    %v1500 = vunpack.c.h.b16 %v1419
    %v1501 = vunpack.c.l.b16 %v1420
    %v1502 = vunpack.c.l.b16 %v1421
    %v1503 = vunpack.c.h.b16 %v1421
    %v1504 = vunpack.c.l.b16 %v1422
    %v1505 = vunpack.c.l.b16 %v1423
    %v1506 = vunpack.c.h.b16 %v1423
    %v1507 = vunpack.c.l.b16 %v1424
    %v1508 = vunpack.c.l.b16 %v1425
    %v1509 = vunpack.c.h.b16 %v1425
    %v1510 = vunpack.c.l.b16 %v1426
    %v1511 = vunpack.c.l.b16 %v1427
    %v1512 = vunpack.c.h.b16 %v1427
    %v1513 = vunpack.c.l.b16 %v1428
    %v1514 = vunpack.c.l.b16 %v1429
    %v1515 = vunpack.c.h.b16 %v1429
    %v1516 = vunpack.c.l.b16 %v1430
    %v1517 = vunpack.c.l.b16 %v1431
    %v1518 = vunpack.c.h.b16 %v1431
    %v1519 = vunpack.c.l.b16 %v1432
    %v1520 = vunpack.c.l.b16 %v1433
    %v1521 = vunpack.c.h.b16 %v1433
    %v1522 = vunpack.c.l.b16 %v1434
    %v1523 = vpack.c.b16 %v1478, %v1475
    %v1524 = vpack.c.b16 %v1479, %v1476
    %v1525 = vpack.c.b16 %v1480, %v1477
    %v1526 = vpack.c.b16 %v1484, %v1481
    %v1527 = vpack.c.b16 %v1485, %v1482
    %v1528 = vpack.c.b16 %v1486, %v1483
    %v1529 = vpack.c.b16 %v1490, %v1487
    %v1530 = vpack.c.b16 %v1491, %v1488
    %v1531 = vpack.c.b16 %v1492, %v1489
    %v1532 = vpack.c.b16 %v1496, %v1493
    %v1533 = vpack.c.b16 %v1497, %v1494
    %v1534 = vpack.c.b16 %v1498, %v1495
    %v1535 = vpack.c.b16 %v1502, %v1499
    %v1536 = vpack.c.b16 %v1503, %v1500
    %v1537 = vpack.c.b16 %v1504, %v1501
    %v1538 = vpack.c.b16 %v1508, %v1505
    %v1539 = vpack.c.b16 %v1509, %v1506
    %v1540 = vpack.c.b16 %v1510, %v1507
    %v1541 = vpack.c.b16 %v1514, %v1511
    %v1542 = vpack.c.b16 %v1515, %v1512
    %v1543 = vpack.c.b16 %v1516, %v1513
    %v1544 = vpack.c.b16 %v1520, %v1517
    %v1545 = vpack.c.b16 %v1521, %v1518
    %v1546 = vpack.c.b16 %v1522, %v1519
    %1571 = vmatpush.bf16.msra.mxu0 %v1544
    %1572 = vmatpush.bf16.msra.mxu0 %v1541
    %1573 = vmatpush.bf16.msra.mxu0 %v1538
    %1574 = vmatpush.bf16.msra.mxu0 %v1535
    %1575 = vmatpush.bf16.msra.mxu0 %v1532
    %1576 = vmatpush.bf16.msra.mxu0 %v1529
    %1577 = vmatpush.bf16.msra.mxu0 %v1526
    %1578 = vmatpush.bf16.msra.mxu0 %v1523
    %1579 = vmatmul.bf16.gmra.mxu0 %v1402
    %v1580 = vpop.f32.mrf.mxu0
    %v1581 = vadd.f32 %v1437, %v1580
    %v1582 = vpop.f32.mrf.mxu0
    %v1583 = vadd.f32 %v1437, %v1582
    %1584 = vdwg.mxu0
    %1585 = vmatpush.bf16.msra.mxu0 %v1545
    %1586 = vmatpush.bf16.msra.mxu0 %v1542
    %1587 = vmatpush.bf16.msra.mxu0 %v1539
    %1588 = vmatpush.bf16.msra.mxu0 %v1536
    %1589 = vmatpush.bf16.msra.mxu0 %v1533
    %1590 = vmatpush.bf16.msra.mxu0 %v1530
    %1591 = vmatpush.bf16.msra.mxu0 %v1527
    %1592 = vmatpush.bf16.msra.mxu0 %v1524
    %1593 = vmatmul.bf16.gmra.mxu0 %v1402
    %v1594 = vpop.f32.mrf.mxu0
    %v1595 = vadd.f32 %v1438, %v1594
    %v1596 = vpop.f32.mrf.mxu0
    %v1597 = vadd.f32 %v1438, %v1596
    %1598 = vdwg.mxu0
    %1599 = vmatpush.bf16.msra.mxu0 %v1546
    %1600 = vmatpush.bf16.msra.mxu0 %v1543
    %1601 = vmatpush.bf16.msra.mxu0 %v1540
    %1602 = vmatpush.bf16.msra.mxu0 %v1537
    %1603 = vmatpush.bf16.msra.mxu0 %v1534
    %1604 = vmatpush.bf16.msra.mxu0 %v1531
    %1605 = vmatpush.bf16.msra.mxu0 %v1528
    %1606 = vmatpush.bf16.msra.mxu0 %v1525
    %1607 = vmatmul.bf16.gmra.mxu0 %v1402
    %v1608 = vpop.f32.mrf.mxu0
    %v1609 = vadd.f32 %v1439, %v1608
    %v1610 = vpop.f32.mrf.mxu0
    %v1611 = vadd.f32 %v1439, %v1610
    %1612 = vdwg.mxu0
    %1613 = vst [vmem:[%s19] sm:$0xff] %v1581
    %1614 = vst [vmem:[%s19 + $0x8] sm:$0xff] %v1595
    %1615 = vst [vmem:[%s19 + $0x10] sm:$0xff] %v1609
    %1616 = vst [vmem:[%s19 + $0x18] sm:$0xff] %v1583
    %1617 = vst [vmem:[%s19 + $0x20] sm:$0xff] %v1597
    %1618 = vst [vmem:[%s19 + $0x28] sm:$0xff] %v1611
    %v1619 = vadd.f32 %v1581, %v1609
    %v1620 = vadd.f32 %v1583, %v1611
    %1621 = vst [vmem:[%s18] sm:$0xff] %v1619
    %1622 = vst [vmem:[%s18 + $0x8] sm:$0xff] %v1620
    %v1623 = vadd.f32 %v1595, %v1609
    %v1624 = vadd.f32 %v1597, %v1611
    %s1625 = scalar_lea.vmem %s18, 16
    %1626 = vst [vmem:[%s1625] sm:$0xff] %v1623
    %1627 = vst [vmem:[%s1625 + $0x8] sm:$0xff] %v1624
    %v1628 = vrot.slane %v1581, 4
    %v1629 = vadd.f32 %v1581, %v1628
    %v1630 = vrot.slane %v1629, 2
    %v1631 = vadd.f32 %v1629, %v1630
    %v1632 = vrot.slane %v1631, 1
    %v1633 = vadd.f32 %v1631, %v1632
    %v1634 = vrot.slane %v1583, 4
    %v1635 = vadd.f32 %v1583, %v1634
    %v1636 = vrot.slane %v1635, 2
    %v1637 = vadd.f32 %v1635, %v1636
    %v1638 = vrot.slane %v1637, 1
    %v1639 = vadd.f32 %v1637, %v1638
    %v1640 = vrcp.pop 8.0
    %v1641 = vmul.f32 8.0, %v1640
    %v1642 = vsub.f32 1.0, %v1641
    %v1643 = vmul.f32 %v1640, %v1642
    %v1644 = vadd.f32 %v1640, %v1643
    %vm1645 = vweird.f32 %v1640
    %v1646 = vsel %vm1645, %v1640, %v1644
    %v1647 = vmul.f32 %v1633, %v1646
    %v1648 = vmul.f32 %v1639, %v1646
    %v1649 = vpack.c.bf16 %v1647, %v1647
    %v1650 = vpack.c.bf16 %v1648, %v1648
    %v1651 = vld [vmem:[#allocation10] sm:$0xf]
    %v1652 = vld [vmem:[#allocation10 + $0x4] sm:$0xf]
    %v1653 = vld [vmem:[#allocation10 + $0x8] sm:$0xf]
    %v1654 = vld [vmem:[#allocation10 + $0xc] sm:$0xf]
    %v1655 = vld [vmem:[#allocation10 + $0x10] sm:$0xf]
    %v1656 = vld [vmem:[#allocation10 + $0x14] sm:$0xf]
    %v1657 = vld [vmem:[#allocation10 + $0x18] sm:$0xf]
    %v1658 = vld [vmem:[#allocation10 + $0x1c] sm:$0xf]
    %v1659 = vld [vmem:[#allocation10 + $0x20] sm:$0xf]
    %v1660 = vld [vmem:[#allocation10 + $0x24] sm:$0xf]
    %v1661 = vld [vmem:[#allocation10 + $0x28] sm:$0xf]
    %v1662 = vld [vmem:[#allocation10 + $0x2c] sm:$0xf]
    %v1663 = vld [vmem:[#allocation10 + $0x30] sm:$0xf]
    %v1664 = vld [vmem:[#allocation10 + $0x34] sm:$0xf]
    %v1665 = vld [vmem:[#allocation10 + $0x38] sm:$0xf]
    %v1666 = vld [vmem:[#allocation10 + $0x3c] sm:$0xf]
    %v1667 = vld [vmem:[%s17] sm:$0x1]
    %v1669 = vperm.slane %v1667, 0
    %v1673 = vunpack.c.l.b16 %v1649
    %v1674 = vunpack.c.l.b16 %v1650
    %vm1675 = vcmask 1041409
    %v1676 = vsel %vm1675, %v1674, %v1673
    %v1677 = vpack.c.b16 %v1676, %v1676
    %v1695 = vunpack.c.l.b16 %v1651
    %v1696 = vunpack.c.l.b16 %v1652
    %v1697 = vunpack.c.l.b16 %v1653
    %v1698 = vunpack.c.l.b16 %v1654
    %v1699 = vunpack.c.l.b16 %v1655
    %v1700 = vunpack.c.l.b16 %v1656
    %v1701 = vunpack.c.l.b16 %v1657
    %v1702 = vunpack.c.l.b16 %v1658
    %v1703 = vunpack.c.l.b16 %v1659
    %v1704 = vunpack.c.l.b16 %v1660
    %v1705 = vunpack.c.l.b16 %v1661
    %v1706 = vunpack.c.l.b16 %v1662
    %v1707 = vunpack.c.l.b16 %v1663
    %v1708 = vunpack.c.l.b16 %v1664
    %v1709 = vunpack.c.l.b16 %v1665
    %v1710 = vunpack.c.l.b16 %v1666
    %v1711 = vpack.c.b16 %v1696, %v1695
    %v1712 = vpack.c.b16 %v1698, %v1697
    %v1713 = vpack.c.b16 %v1700, %v1699
    %v1714 = vpack.c.b16 %v1702, %v1701
    %v1715 = vpack.c.b16 %v1704, %v1703
    %v1716 = vpack.c.b16 %v1706, %v1705
    %v1717 = vpack.c.b16 %v1708, %v1707
    %v1718 = vpack.c.b16 %v1710, %v1709
    %1727 = vmatpush.bf16.msra.mxu0 %v1718
    %1728 = vmatpush.bf16.msra.mxu0 %v1717
    %1729 = vmatpush.bf16.msra.mxu0 %v1716
    %1730 = vmatpush.bf16.msra.mxu0 %v1715
    %1731 = vmatpush.bf16.msra.mxu0 %v1714
    %1732 = vmatpush.bf16.msra.mxu0 %v1713
    %1733 = vmatpush.bf16.msra.mxu0 %v1712
    %1734 = vmatpush.bf16.msra.mxu0 %v1711
    %1735 = vmatmul.bf16.gmra.mxu0 %v1677
    %v1736 = vpop.f32.mrf.mxu0
    %v1737 = vadd.f32 %v1669, %v1736
    %v1738 = vpop.f32.mrf.mxu0
    %1739 = vdwg.mxu0
    %1740 = vst [vmem:[#allocation11] sm:$0x3] %v1737
    // Predicated region
    $region94: #{seq2seq_forward.2} parent=1 // pred_check
      _
    $region95: #{seq2seq_forward.2} parent=1 // pred_check_branch
      %1742 = sbr.rel (0) target = $region97
    $region96: #{seq2seq_forward.2} parent=1 // pred_region
      _
    $region97: #{seq2seq_forward.2} parent=1 // pred_fallthru
      _
    // Predicated region
    $region98: #{seq2seq_forward.2} parent=1 // pred_check
      _
    $region99: #{seq2seq_forward.2} parent=1 // pred_check_branch
      %1744 = sbr.rel (0) target = $region101
    $region100: #{seq2seq_forward.2} parent=1 // pred_region
      _
    $region101: #{seq2seq_forward.2} parent=1 // pred_fallthru
      _
    // Predicated region
    $region102: #{seq2seq_forward.2} parent=1 // pred_check
      _
    $region103: #{seq2seq_forward.2} parent=1 // pred_check_branch
      %1746 = sbr.rel (0) target = $region105
    $region104: #{seq2seq_forward.2} parent=1 // pred_region
      %1748 = vsyncadd [#allocation4], 0
      %s1750 = sshll.u32 [#allocation11], 4
      %s1751 = int_to_ptr.vmem [resolvable:$true] %s1750
      %s1752 = sshll.u32 %s20, 4
      %s1753 = int_to_ptr.hbm [resolvable:$true] %s1752
      %1755 = dma.vmem_to_hbm [thread:$0]  %s1751, 32, %s1753, [#allocation4]
    $region105: #{seq2seq_forward.2} parent=1 // pred_fallthru
      _
    // Predicated region
    $region106: #{seq2seq_forward.2} parent=1 // pred_check
      _
    $region107: #{seq2seq_forward.2} parent=1 // pred_check_branch
      %1757 = sbr.rel (0) target = $region109
    $region108: #{seq2seq_forward.2} parent=1 // pred_region
      _
    $region109: #{seq2seq_forward.2} parent=1 // pred_fallthru
      _
    // Predicated region
    $region110: #{seq2seq_forward.2} parent=1 // pred_check
      _
    $region111: #{seq2seq_forward.2} parent=1 // pred_check_branch
      %1759 = sbr.rel (0) target = $region113
    $region112: #{seq2seq_forward.2} parent=1 // pred_region
      _
    $region113: #{seq2seq_forward.2} parent=1 // pred_fallthru
      _
    // Predicated region
    $region114: #{seq2seq_forward.2} parent=1 // pred_check
      _
    $region115: #{seq2seq_forward.2} parent=1 // pred_check_branch
      %1761 = sbr.rel (0) target = $region117
    $region116: #{seq2seq_forward.2} parent=1 // pred_region
      %1763 = dma.done [#allocation4], 32
    $region117: #{seq2seq_forward.2} parent=1 // pred_fallthru
      _
    %1764 = vsyncpa [#allocation3], 1
    %1765 = vsyncpa [#allocation6], 1
    %1766 = vsyncpa [#allocation9], 1
    %1767 = vsyncpa [#allocation4], 1

// kernel: seq2seq_forward.3
$region0: #{seq2seq_forward.3}
  #allocation0 [shape = 'u32[]', space=smem, size = 0x4, offset = 0x4, fixed_abs, tag = 'smem constant byte address 0x4 - core index']
  #allocation1 [shape = 'u32[72,128]{1,0:T(1,128)}', space=vmem, size = 0x9000, scoped, tag = 'internal scratch']
  %s0 = inlined_call_operand.vmem [shape: f32[2,16,128], index: 0, kind: input, shape index: {}]
  %s1 = inlined_call_operand.vmem [shape: f32[2,16,128], index: 1, kind: input, shape index: {}]
  %s2 = inlined_call_operand.vmem [shape: f32[2,8], index: 2, kind: input, shape index: {}]
  %s3 = inlined_call_operand.vmem [shape: f32[2,8], index: 3, kind: input, shape index: {}]
  %s4 = inlined_call_operand.vmem [shape: bf16[2,128,384], index: 4, kind: input, shape index: {}]
  %s5 = inlined_call_operand.vmem [shape: f32[2,1,384], index: 5, kind: input, shape index: {}]
  %s6 = inlined_call_operand.vmem [shape: bf16[2,128,128], index: 6, kind: input, shape index: {}]
  %s7 = inlined_call_operand.vmem [shape: f32[2,1,128], index: 7, kind: input, shape index: {}]
  %s8 = inlined_call_operand.vmem [shape: f32[2,1,128], index: 8, kind: input, shape index: {}]
  %s9 = inlined_call_operand.vmem [shape: f32[2,1,128], index: 9, kind: input, shape index: {}]
  %s10 = inlined_call_operand.hbm [shape: bf16[2,128,128], index: 10, kind: input, shape index: {}]
  %s11 = inlined_call_operand.vmem [shape: f32[2,1,128], index: 11, kind: input, shape index: {}]
  %s12 = inlined_call_operand.hbm [shape: bf16[2,128,256], index: 12, kind: input, shape index: {}]
  %s13 = inlined_call_operand.vmem [shape: f32[2,1,256], index: 13, kind: input, shape index: {}]
  %s14 = inlined_call_operand.hbm [shape: bf16[2,128,128], index: 14, kind: input, shape index: {}]
  %s15 = inlined_call_operand.vmem [shape: f32[2,1,128], index: 15, kind: input, shape index: {}]
  %s16 = inlined_call_operand.vmem [shape: f32[2,1,128], index: 16, kind: input, shape index: {}]
  %s17 = inlined_call_operand.vmem [shape: f32[2,1,128], index: 17, kind: input, shape index: {}]
  %s18 = inlined_call_operand.hbm [shape: bf16[2,128,256], index: 18, kind: input, shape index: {}]
  %s19 = inlined_call_operand.vmem [shape: f32[2,1,256], index: 19, kind: input, shape index: {}]
  %s20 = inlined_call_operand.hbm [shape: bf16[2,256,128], index: 20, kind: input, shape index: {}]
  %s21 = inlined_call_operand.vmem [shape: f32[2,1,128], index: 21, kind: input, shape index: {}]
  %s22 = inlined_call_operand.vmem [shape: f32[2,1,128], index: 22, kind: input, shape index: {}]
  %s23 = inlined_call_operand.vmem [shape: f32[2,1,128], index: 23, kind: input, shape index: {}]
  %s24 = inlined_call_operand.hbm [shape: bf16[2,128,128], index: 24, kind: input, shape index: {}]
  %s25 = inlined_call_operand.vmem [shape: f32[2,1,128], index: 25, kind: input, shape index: {}]
  %s26 = inlined_call_operand.hbm [shape: f32[2,16,128], index: 26, kind: output, shape index: {0}]
  %s27 = inlined_call_operand.vmem [shape: f32[2,16,128], index: 27, kind: output, shape index: {1}]
  %s28 = inlined_call_operand.vmem [shape: f32[2,16,32], index: 28, kind: output, shape index: {2}]
  %29 = xla_tuple %s26, %s27, %s28
  %s30 = sld [smem:[#allocation0]]
  $region177: #{seq2seq_forward.3} parent=0
    _
  %s32 = ssub.s32 1, %s30
  %s33 = scalar_select 0, %s32, %s30
  $region1: #{seq2seq_forward.3} parent=0
    #allocation2 [shape = 'u8[65536]{0}', space=vmem, size = 0x10000, scoped, tag = 'input window, operand 10']
    #allocation3 [shape = 's32[2]{0}', space=sflag, size = 0x8, scoped, tag = 'scoped memory for seq2seq_forward.3']
    #allocation4 [shape = 's32[2]{0}', space=sflag, size = 0x8, scoped, tag = 'scoped memory for seq2seq_forward.3']
    #allocation5 [shape = 'u8[131072]{0}', space=vmem, size = 0x20000, scoped, tag = 'input window, operand 12']
    #allocation6 [shape = 's32[2]{0}', space=sflag, size = 0x8, scoped, tag = 'scoped memory for seq2seq_forward.3']
    #allocation7 [shape = 'u8[65536]{0}', space=vmem, size = 0x10000, scoped, tag = 'input window, operand 14']
    #allocation8 [shape = 'u8[131072]{0}', space=vmem, size = 0x20000, scoped, tag = 'input window, operand 18']
    #allocation9 [shape = 's32[2]{0}', space=sflag, size = 0x8, scoped, tag = 'scoped memory for seq2seq_forward.3']
    #allocation10 [shape = 'u8[131072]{0}', space=vmem, size = 0x20000, scoped, tag = 'input window, operand 20']
    #allocation11 [shape = 'u8[65536]{0}', space=vmem, size = 0x10000, scoped, tag = 'input window, operand 24']
    #allocation12 [shape = 's32[2]{0}', space=sflag, size = 0x8, scoped, tag = 'scoped memory for seq2seq_forward.3']
    #allocation13 [shape = 'u8[16384]{0}', space=vmem, size = 0x4000, scoped, tag = 'output window, operand 0']
    %34 = vsyncpa [#allocation3], 0
    %s35 = scalar_lea.sflag [#allocation3], 1
    %36 = vsyncpa %s35, 0
    %37 = vsyncpa [#allocation6], 0
    %s38 = scalar_lea.sflag [#allocation6], 1
    %39 = vsyncpa %s38, 0
    %40 = vsyncpa [#allocation9], 0
    %s41 = scalar_lea.sflag [#allocation9], 1
    %42 = vsyncpa %s41, 0
    %43 = vsyncpa [#allocation12], 0
    %s44 = scalar_lea.sflag [#allocation12], 1
    %45 = vsyncpa %s44, 0
    %46 = vsyncpa [#allocation4], 0
    %s47 = scalar_lea.sflag [#allocation4], 1
    %48 = vsyncpa %s47, 0
    loop: start=0, step=1, limit=4
    $region2: #{seq2seq_forward.3} parent=1 // loop_pre_header
      _
    $region3: #{seq2seq_forward.3} parent=1 // loop_header
      %s50 = sphi 0, %s54
      %p51 = scmp.ge.s32.totalorder %s50, 4
      %s60 = sphi 0, %s62
      %s63 = sphi 0, %s60
      %s64 = sphi 0, %s63
      %s80 = sphi 0, %s64
      %s86 = sphi 0, %s88
      %s89 = sphi 0, %s86
      %s90 = sphi 0, %s89
      %s106 = sphi 0, %s90
      %s110 = sphi 0, %s110
      %s112 = sphi 0, %s110
      %s113 = sphi 0, %s112
      %s127 = sphi 0, %s113
      %s131 = sphi 0, %s131
      %s133 = sphi 0, %s131
      %s134 = sphi 0, %s133
      %s148 = sphi 0, %s134
      %s154 = sphi 0, %s156
      %s157 = sphi 0, %s154
      %s158 = sphi 0, %s157
      %s174 = sphi 0, %s158
      %s180 = sphi 0, %s182
      %s183 = sphi 0, %s180
      %s184 = sphi 0, %s183
      %s200 = sphi 0, %s184
      %s206 = sphi 0, %s208
      %s209 = sphi 0, %s206
      %s210 = sphi 0, %s209
      %s226 = sphi 0, %s210
      %s232 = sphi 0, %s234
      %s235 = sphi 0, %s232
      %s236 = sphi 0, %s235
      %s252 = sphi 0, %s236
      %s258 = sphi 0, %s260
      %s261 = sphi 0, %s258
      %s262 = sphi 0, %s261
      %s278 = sphi 0, %s262
      %s284 = sphi 0, %s286
      %s287 = sphi 0, %s284
      %s288 = sphi 0, %s287
      %s304 = sphi 0, %s288
      %s310 = sphi 0, %s312
      %s313 = sphi 0, %s310
      %s314 = sphi 0, %s313
      %s330 = sphi 0, %s314
      %s336 = sphi 0, %s338
      %s339 = sphi 0, %s336
      %s340 = sphi 0, %s339
      %s356 = sphi 0, %s340
      %s362 = sphi 0, %s364
      %s365 = sphi 0, %s362
      %s366 = sphi 0, %s365
      %s382 = sphi 0, %s366
      %s388 = sphi 0, %s390
      %s391 = sphi 0, %s388
      %s392 = sphi 0, %s391
      %s408 = sphi 0, %s392
      %s414 = sphi 0, %s416
      %s417 = sphi 0, %s414
      %s418 = sphi 0, %s417
      %s434 = sphi 0, %s418
      %s440 = sphi 0, %s442
      %s443 = sphi 0, %s440
      %s444 = sphi 0, %s443
      %s460 = sphi 0, %s444
      %s466 = sphi 0, %s468
      %s469 = sphi 0, %s466
      %s470 = sphi 0, %s469
      %s486 = sphi 0, %s470
      %s492 = sphi 0, %s494
      %s495 = sphi 0, %s492
      %s496 = sphi 0, %s495
      %s512 = sphi 0, %s496
      %s518 = sphi 0, %s520
      %s521 = sphi 0, %s518
      %s522 = sphi 0, %s521
      %s538 = sphi 0, %s522
      %s544 = sphi 0, %s546
      %s547 = sphi 0, %s544
      %s548 = sphi 0, %s547
      %s564 = sphi 0, %s548
      %s570 = sphi 0, %s572
      %s573 = sphi 0, %s570
      %s574 = sphi 0, %s573
      %s590 = sphi 0, %s574
      %s596 = sphi 0, %s598
      %s599 = sphi 0, %s596
      %s600 = sphi 0, %s599
      %s616 = sphi 0, %s600
      %s622 = sphi 0, %s624
      %s625 = sphi 0, %s622
      %s626 = sphi 0, %s625
      %s642 = sphi 0, %s626
      %s648 = sphi 0, %s650
      %s651 = sphi 0, %s648
      %s652 = sphi 0, %s651
      %s668 = sphi 0, %s652
      %s674 = sphi 0, %s676
      %s677 = sphi 0, %s674
      %s678 = sphi 0, %s677
      %s694 = sphi 0, %s678
      %s700 = sphi 0, %s702
      %s703 = sphi 0, %s700
      %s704 = sphi 0, %s703
      %s720 = sphi 0, %s704
      %s726 = sphi 0, %s728
      %s729 = sphi 0, %s726
      %s730 = sphi 0, %s729
      %s746 = sphi 0, %s730
      %s752 = sphi 0, %s754
      %s755 = sphi 0, %s752
      %s756 = sphi 0, %s755
      %s772 = sphi 0, %s756
      %s778 = sphi 0, %s780
      %s781 = sphi 0, %s778
      %s782 = sphi 0, %s781
      %s798 = sphi 0, %s782
    $region4: #{seq2seq_forward.3} parent=1 // loop_header_branch
      %53 = sbr.rel (%p51) target = $region8
    $region5: #{seq2seq_forward.3} parent=1 // loop_body
      %s55 = ssub.s32 %s50, 1
      %s56 = ssub.s32 %s50, 2
      %s57 = sadd.s32 %s50, 1
      %s58 = ssub.s32 %s50, %s57
      %p59 = scmp.eq.s32.totalorder %s58, 0
      %s61 = sadd.s32 %s60, 1
      %s62 = scalar_select %p59, %s60, %s61
      %p65 = pneg %p59
      %p66 = scmp.eq.s32.totalorder %s50, 1
      %p67 = por %p65, %p66
      %p68 = scmp.ne.s32.totalorder %s60, %s63
      %p69 = scmp.eq.s32.totalorder %s50, 0
      %p70 = por %p68, %p69
      %p71 = scmp.ne.s32.totalorder %s60, %s63
      %p72 = scmp.eq.s32.totalorder %s55, 1
      %p73 = por %p71, %p72
      %p74 = scmp.ne.s32.totalorder %s63, %s64
      %p75 = scmp.eq.s32.totalorder %s55, 0
      %p76 = por %p74, %p75
      %p77 = scmp.ne.s32.totalorder %s63, %s64
      %p78 = scmp.eq.s32.totalorder %s56, 1
      %p79 = por %p77, %p78
      %p81 = scmp.ne.s32.totalorder %s64, %s80
      %p82 = scmp.eq.s32.totalorder %s56, 0
      %p83 = por %p81, %p82
      %s84 = ssub.s32 %s50, %s57
      %p85 = scmp.eq.s32.totalorder %s84, 0
      %s87 = sadd.s32 %s86, 1
      %s88 = scalar_select %p85, %s86, %s87
      %p91 = pneg %p85
      %p92 = scmp.eq.s32.totalorder %s50, 1
      %p93 = por %p91, %p92
      %p94 = scmp.ne.s32.totalorder %s86, %s89
      %p95 = scmp.eq.s32.totalorder %s50, 0
      %p96 = por %p94, %p95
      %p97 = scmp.ne.s32.totalorder %s86, %s89
      %p98 = scmp.eq.s32.totalorder %s55, 1
      %p99 = por %p97, %p98
      %p100 = scmp.ne.s32.totalorder %s89, %s90
      %p101 = scmp.eq.s32.totalorder %s55, 0
      %p102 = por %p100, %p101
      %p103 = scmp.ne.s32.totalorder %s89, %s90
      %p104 = scmp.eq.s32.totalorder %s56, 1
      %p105 = por %p103, %p104
      %p107 = scmp.ne.s32.totalorder %s90, %s106
      %p108 = scmp.eq.s32.totalorder %s56, 0
      %p109 = por %p107, %p108
      %s111 = sadd.s32 %s110, 1
      %p114 = scmp.eq.s32.totalorder %s50, 1
      %p115 = scmp.ne.s32.totalorder %s110, %s112
      %p116 = scmp.eq.s32.totalorder %s50, 0
      %p117 = por %p115, %p116
      %p118 = scmp.ne.s32.totalorder %s110, %s112
      %p119 = scmp.eq.s32.totalorder %s55, 1
      %p120 = por %p118, %p119
      %p121 = scmp.ne.s32.totalorder %s112, %s113
      %p122 = scmp.eq.s32.totalorder %s55, 0
      %p123 = por %p121, %p122
      %p124 = scmp.ne.s32.totalorder %s112, %s113
      %p125 = scmp.eq.s32.totalorder %s56, 1
      %p126 = por %p124, %p125
      %p128 = scmp.ne.s32.totalorder %s113, %s127
      %p129 = scmp.eq.s32.totalorder %s56, 0
      %p130 = por %p128, %p129
      %s132 = sadd.s32 %s131, 1
      %p135 = scmp.eq.s32.totalorder %s50, 1
      %p136 = scmp.ne.s32.totalorder %s131, %s133
      %p137 = scmp.eq.s32.totalorder %s50, 0
      %p138 = por %p136, %p137
      %p139 = scmp.ne.s32.totalorder %s131, %s133
      %p140 = scmp.eq.s32.totalorder %s55, 1
      %p141 = por %p139, %p140
      %p142 = scmp.ne.s32.totalorder %s133, %s134
      %p143 = scmp.eq.s32.totalorder %s55, 0
      %p144 = por %p142, %p143
      %p145 = scmp.ne.s32.totalorder %s133, %s134
      %p146 = scmp.eq.s32.totalorder %s56, 1
      %p147 = por %p145, %p146
      %p149 = scmp.ne.s32.totalorder %s134, %s148
      %p150 = scmp.eq.s32.totalorder %s56, 0
      %p151 = por %p149, %p150
      %s152 = ssub.s32 %s50, %s57
      %p153 = scmp.eq.s32.totalorder %s152, 0
      %s155 = sadd.s32 %s154, 1
      %s156 = scalar_select %p153, %s154, %s155
      %p159 = pneg %p153
      %p160 = scmp.eq.s32.totalorder %s50, 1
      %p161 = por %p159, %p160
      %p162 = scmp.ne.s32.totalorder %s154, %s157
      %p163 = scmp.eq.s32.totalorder %s50, 0
      %p164 = por %p162, %p163
      %p165 = scmp.ne.s32.totalorder %s154, %s157
      %p166 = scmp.eq.s32.totalorder %s55, 1
      %p167 = por %p165, %p166
      %p168 = scmp.ne.s32.totalorder %s157, %s158
      %p169 = scmp.eq.s32.totalorder %s55, 0
      %p170 = por %p168, %p169
      %p171 = scmp.ne.s32.totalorder %s157, %s158
      %p172 = scmp.eq.s32.totalorder %s56, 1
      %p173 = por %p171, %p172
      %p175 = scmp.ne.s32.totalorder %s158, %s174
      %p176 = scmp.eq.s32.totalorder %s56, 0
      %p177 = por %p175, %p176
      %s178 = ssub.s32 %s50, %s57
      %p179 = scmp.eq.s32.totalorder %s178, 0
      %s181 = sadd.s32 %s180, 1
      %s182 = scalar_select %p179, %s180, %s181
      %p185 = pneg %p179
      %p186 = scmp.eq.s32.totalorder %s50, 1
      %p187 = por %p185, %p186
      %p188 = scmp.ne.s32.totalorder %s180, %s183
      %p189 = scmp.eq.s32.totalorder %s50, 0
      %p190 = por %p188, %p189
      %p191 = scmp.ne.s32.totalorder %s180, %s183
      %p192 = scmp.eq.s32.totalorder %s55, 1
      %p193 = por %p191, %p192
      %p194 = scmp.ne.s32.totalorder %s183, %s184
      %p195 = scmp.eq.s32.totalorder %s55, 0
      %p196 = por %p194, %p195
      %p197 = scmp.ne.s32.totalorder %s183, %s184
      %p198 = scmp.eq.s32.totalorder %s56, 1
      %p199 = por %p197, %p198
      %p201 = scmp.ne.s32.totalorder %s184, %s200
      %p202 = scmp.eq.s32.totalorder %s56, 0
      %p203 = por %p201, %p202
      %s204 = ssub.s32 %s50, %s57
      %p205 = scmp.eq.s32.totalorder %s204, 0
      %s207 = sadd.s32 %s206, 1
      %s208 = scalar_select %p205, %s206, %s207
      %p211 = pneg %p205
      %p212 = scmp.eq.s32.totalorder %s50, 1
      %p213 = por %p211, %p212
      %p214 = scmp.ne.s32.totalorder %s206, %s209
      %p215 = scmp.eq.s32.totalorder %s50, 0
      %p216 = por %p214, %p215
      %p217 = scmp.ne.s32.totalorder %s206, %s209
      %p218 = scmp.eq.s32.totalorder %s55, 1
      %p219 = por %p217, %p218
      %p220 = scmp.ne.s32.totalorder %s209, %s210
      %p221 = scmp.eq.s32.totalorder %s55, 0
      %p222 = por %p220, %p221
      %p223 = scmp.ne.s32.totalorder %s209, %s210
      %p224 = scmp.eq.s32.totalorder %s56, 1
      %p225 = por %p223, %p224
      %p227 = scmp.ne.s32.totalorder %s210, %s226
      %p228 = scmp.eq.s32.totalorder %s56, 0
      %p229 = por %p227, %p228
      %s230 = ssub.s32 %s50, %s57
      %p231 = scmp.eq.s32.totalorder %s230, 0
      %s233 = sadd.s32 %s232, 1
      %s234 = scalar_select %p231, %s232, %s233
      %p237 = pneg %p231
      %p238 = scmp.eq.s32.totalorder %s50, 1
      %p239 = por %p237, %p238
      %p240 = scmp.ne.s32.totalorder %s232, %s235
      %p241 = scmp.eq.s32.totalorder %s50, 0
      %p242 = por %p240, %p241
      %p243 = scmp.ne.s32.totalorder %s232, %s235
      %p244 = scmp.eq.s32.totalorder %s55, 1
      %p245 = por %p243, %p244
      %p246 = scmp.ne.s32.totalorder %s235, %s236
      %p247 = scmp.eq.s32.totalorder %s55, 0
      %p248 = por %p246, %p247
      %p249 = scmp.ne.s32.totalorder %s235, %s236
      %p250 = scmp.eq.s32.totalorder %s56, 1
      %p251 = por %p249, %p250
      %p253 = scmp.ne.s32.totalorder %s236, %s252
      %p254 = scmp.eq.s32.totalorder %s56, 0
      %p255 = por %p253, %p254
      %s256 = ssub.s32 %s50, %s57
      %p257 = scmp.eq.s32.totalorder %s256, 0
      %s259 = sadd.s32 %s258, 1
      %s260 = scalar_select %p257, %s258, %s259
      %p263 = pneg %p257
      %p264 = scmp.eq.s32.totalorder %s50, 1
      %p265 = por %p263, %p264
      %p266 = scmp.ne.s32.totalorder %s258, %s261
      %p267 = scmp.eq.s32.totalorder %s50, 0
      %p268 = por %p266, %p267
      %p269 = scmp.ne.s32.totalorder %s258, %s261
      %p270 = scmp.eq.s32.totalorder %s55, 1
      %p271 = por %p269, %p270
      %p272 = scmp.ne.s32.totalorder %s261, %s262
      %p273 = scmp.eq.s32.totalorder %s55, 0
      %p274 = por %p272, %p273
      %p275 = scmp.ne.s32.totalorder %s261, %s262
      %p276 = scmp.eq.s32.totalorder %s56, 1
      %p277 = por %p275, %p276
      %p279 = scmp.ne.s32.totalorder %s262, %s278
      %p280 = scmp.eq.s32.totalorder %s56, 0
      %p281 = por %p279, %p280
      %s282 = ssub.s32 %s50, %s57
      %p283 = scmp.eq.s32.totalorder %s282, 0
      %s285 = sadd.s32 %s284, 1
      %s286 = scalar_select %p283, %s284, %s285
      %p289 = pneg %p283
      %p290 = scmp.eq.s32.totalorder %s50, 1
      %p291 = por %p289, %p290
      %p292 = scmp.ne.s32.totalorder %s284, %s287
      %p293 = scmp.eq.s32.totalorder %s50, 0
      %p294 = por %p292, %p293
      %p295 = scmp.ne.s32.totalorder %s284, %s287
      %p296 = scmp.eq.s32.totalorder %s55, 1
      %p297 = por %p295, %p296
      %p298 = scmp.ne.s32.totalorder %s287, %s288
      %p299 = scmp.eq.s32.totalorder %s55, 0
      %p300 = por %p298, %p299
      %p301 = scmp.ne.s32.totalorder %s287, %s288
      %p302 = scmp.eq.s32.totalorder %s56, 1
      %p303 = por %p301, %p302
      %p305 = scmp.ne.s32.totalorder %s288, %s304
      %p306 = scmp.eq.s32.totalorder %s56, 0
      %p307 = por %p305, %p306
      %s308 = ssub.s32 %s50, %s57
      %p309 = scmp.eq.s32.totalorder %s308, 0
      %s311 = sadd.s32 %s310, 1
      %s312 = scalar_select %p309, %s310, %s311
      %p315 = pneg %p309
      %p316 = scmp.eq.s32.totalorder %s50, 1
      %p317 = por %p315, %p316
      %p318 = scmp.ne.s32.totalorder %s310, %s313
      %p319 = scmp.eq.s32.totalorder %s50, 0
      %p320 = por %p318, %p319
      %p321 = scmp.ne.s32.totalorder %s310, %s313
      %p322 = scmp.eq.s32.totalorder %s55, 1
      %p323 = por %p321, %p322
      %p324 = scmp.ne.s32.totalorder %s313, %s314
      %p325 = scmp.eq.s32.totalorder %s55, 0
      %p326 = por %p324, %p325
      %p327 = scmp.ne.s32.totalorder %s313, %s314
      %p328 = scmp.eq.s32.totalorder %s56, 1
      %p329 = por %p327, %p328
      %p331 = scmp.ne.s32.totalorder %s314, %s330
      %p332 = scmp.eq.s32.totalorder %s56, 0
      %p333 = por %p331, %p332
      %s334 = ssub.s32 %s50, %s57
      %p335 = scmp.eq.s32.totalorder %s334, 0
      %s337 = sadd.s32 %s336, 1
      %s338 = scalar_select %p335, %s336, %s337
      %p341 = pneg %p335
      %p342 = scmp.eq.s32.totalorder %s50, 1
      %p343 = por %p341, %p342
      %p344 = scmp.ne.s32.totalorder %s336, %s339
      %p345 = scmp.eq.s32.totalorder %s50, 0
      %p346 = por %p344, %p345
      %p347 = scmp.ne.s32.totalorder %s336, %s339
      %p348 = scmp.eq.s32.totalorder %s55, 1
      %p349 = por %p347, %p348
      %p350 = scmp.ne.s32.totalorder %s339, %s340
      %p351 = scmp.eq.s32.totalorder %s55, 0
      %p352 = por %p350, %p351
      %p353 = scmp.ne.s32.totalorder %s339, %s340
      %p354 = scmp.eq.s32.totalorder %s56, 1
      %p355 = por %p353, %p354
      %p357 = scmp.ne.s32.totalorder %s340, %s356
      %p358 = scmp.eq.s32.totalorder %s56, 0
      %p359 = por %p357, %p358
      %s360 = ssub.s32 %s50, %s57
      %p361 = scmp.eq.s32.totalorder %s360, 0
      %s363 = sadd.s32 %s362, 1
      %s364 = scalar_select %p361, %s362, %s363
      %p367 = pneg %p361
      %p368 = scmp.eq.s32.totalorder %s50, 1
      %p369 = por %p367, %p368
      %p370 = scmp.ne.s32.totalorder %s362, %s365
      %p371 = scmp.eq.s32.totalorder %s50, 0
      %p372 = por %p370, %p371
      %p373 = scmp.ne.s32.totalorder %s362, %s365
      %p374 = scmp.eq.s32.totalorder %s55, 1
      %p375 = por %p373, %p374
      %p376 = scmp.ne.s32.totalorder %s365, %s366
      %p377 = scmp.eq.s32.totalorder %s55, 0
      %p378 = por %p376, %p377
      %p379 = scmp.ne.s32.totalorder %s365, %s366
      %p380 = scmp.eq.s32.totalorder %s56, 1
      %p381 = por %p379, %p380
      %p383 = scmp.ne.s32.totalorder %s366, %s382
      %p384 = scmp.eq.s32.totalorder %s56, 0
      %p385 = por %p383, %p384
      %s386 = ssub.s32 %s50, %s57
      %p387 = scmp.eq.s32.totalorder %s386, 0
      %s389 = sadd.s32 %s388, 1
      %s390 = scalar_select %p387, %s388, %s389
      %p393 = pneg %p387
      %p394 = scmp.eq.s32.totalorder %s50, 1
      %p395 = por %p393, %p394
      %p396 = scmp.ne.s32.totalorder %s388, %s391
      %p397 = scmp.eq.s32.totalorder %s50, 0
      %p398 = por %p396, %p397
      %p399 = scmp.ne.s32.totalorder %s388, %s391
      %p400 = scmp.eq.s32.totalorder %s55, 1
      %p401 = por %p399, %p400
      %p402 = scmp.ne.s32.totalorder %s391, %s392
      %p403 = scmp.eq.s32.totalorder %s55, 0
      %p404 = por %p402, %p403
      %p405 = scmp.ne.s32.totalorder %s391, %s392
      %p406 = scmp.eq.s32.totalorder %s56, 1
      %p407 = por %p405, %p406
      %p409 = scmp.ne.s32.totalorder %s392, %s408
      %p410 = scmp.eq.s32.totalorder %s56, 0
      %p411 = por %p409, %p410
      %s412 = ssub.s32 %s50, %s57
      %p413 = scmp.eq.s32.totalorder %s412, 0
      %s415 = sadd.s32 %s414, 1
      %s416 = scalar_select %p413, %s414, %s415
      %p419 = pneg %p413
      %p420 = scmp.eq.s32.totalorder %s50, 1
      %p421 = por %p419, %p420
      %p422 = scmp.ne.s32.totalorder %s414, %s417
      %p423 = scmp.eq.s32.totalorder %s50, 0
      %p424 = por %p422, %p423
      %p425 = scmp.ne.s32.totalorder %s414, %s417
      %p426 = scmp.eq.s32.totalorder %s55, 1
      %p427 = por %p425, %p426
      %p428 = scmp.ne.s32.totalorder %s417, %s418
      %p429 = scmp.eq.s32.totalorder %s55, 0
      %p430 = por %p428, %p429
      %p431 = scmp.ne.s32.totalorder %s417, %s418
      %p432 = scmp.eq.s32.totalorder %s56, 1
      %p433 = por %p431, %p432
      %p435 = scmp.ne.s32.totalorder %s418, %s434
      %p436 = scmp.eq.s32.totalorder %s56, 0
      %p437 = por %p435, %p436
      %s438 = ssub.s32 %s50, %s57
      %p439 = scmp.eq.s32.totalorder %s438, 0
      %s441 = sadd.s32 %s440, 1
      %s442 = scalar_select %p439, %s440, %s441
      %p445 = pneg %p439
      %p446 = scmp.eq.s32.totalorder %s50, 1
      %p447 = por %p445, %p446
      %p448 = scmp.ne.s32.totalorder %s440, %s443
      %p449 = scmp.eq.s32.totalorder %s50, 0
      %p450 = por %p448, %p449
      %p451 = scmp.ne.s32.totalorder %s440, %s443
      %p452 = scmp.eq.s32.totalorder %s55, 1
      %p453 = por %p451, %p452
      %p454 = scmp.ne.s32.totalorder %s443, %s444
      %p455 = scmp.eq.s32.totalorder %s55, 0
      %p456 = por %p454, %p455
      %p457 = scmp.ne.s32.totalorder %s443, %s444
      %p458 = scmp.eq.s32.totalorder %s56, 1
      %p459 = por %p457, %p458
      %p461 = scmp.ne.s32.totalorder %s444, %s460
      %p462 = scmp.eq.s32.totalorder %s56, 0
      %p463 = por %p461, %p462
      %s464 = ssub.s32 %s50, %s57
      %p465 = scmp.eq.s32.totalorder %s464, 0
      %s467 = sadd.s32 %s466, 1
      %s468 = scalar_select %p465, %s466, %s467
      %p471 = pneg %p465
      %p472 = scmp.eq.s32.totalorder %s50, 1
      %p473 = por %p471, %p472
      %p474 = scmp.ne.s32.totalorder %s466, %s469
      %p475 = scmp.eq.s32.totalorder %s50, 0
      %p476 = por %p474, %p475
      %p477 = scmp.ne.s32.totalorder %s466, %s469
      %p478 = scmp.eq.s32.totalorder %s55, 1
      %p479 = por %p477, %p478
      %p480 = scmp.ne.s32.totalorder %s469, %s470
      %p481 = scmp.eq.s32.totalorder %s55, 0
      %p482 = por %p480, %p481
      %p483 = scmp.ne.s32.totalorder %s469, %s470
      %p484 = scmp.eq.s32.totalorder %s56, 1
      %p485 = por %p483, %p484
      %p487 = scmp.ne.s32.totalorder %s470, %s486
      %p488 = scmp.eq.s32.totalorder %s56, 0
      %p489 = por %p487, %p488
      %s490 = ssub.s32 %s50, %s57
      %p491 = scmp.eq.s32.totalorder %s490, 0
      %s493 = sadd.s32 %s492, 1
      %s494 = scalar_select %p491, %s492, %s493
      %p497 = pneg %p491
      %p498 = scmp.eq.s32.totalorder %s50, 1
      %p499 = por %p497, %p498
      %p500 = scmp.ne.s32.totalorder %s492, %s495
      %p501 = scmp.eq.s32.totalorder %s50, 0
      %p502 = por %p500, %p501
      %p503 = scmp.ne.s32.totalorder %s492, %s495
      %p504 = scmp.eq.s32.totalorder %s55, 1
      %p505 = por %p503, %p504
      %p506 = scmp.ne.s32.totalorder %s495, %s496
      %p507 = scmp.eq.s32.totalorder %s55, 0
      %p508 = por %p506, %p507
      %p509 = scmp.ne.s32.totalorder %s495, %s496
      %p510 = scmp.eq.s32.totalorder %s56, 1
      %p511 = por %p509, %p510
      %p513 = scmp.ne.s32.totalorder %s496, %s512
      %p514 = scmp.eq.s32.totalorder %s56, 0
      %p515 = por %p513, %p514
      %s516 = ssub.s32 %s50, %s57
      %p517 = scmp.eq.s32.totalorder %s516, 0
      %s519 = sadd.s32 %s518, 1
      %s520 = scalar_select %p517, %s518, %s519
      %p523 = pneg %p517
      %p524 = scmp.eq.s32.totalorder %s50, 1
      %p525 = por %p523, %p524
      %p526 = scmp.ne.s32.totalorder %s518, %s521
      %p527 = scmp.eq.s32.totalorder %s50, 0
      %p528 = por %p526, %p527
      %p529 = scmp.ne.s32.totalorder %s518, %s521
      %p530 = scmp.eq.s32.totalorder %s55, 1
      %p531 = por %p529, %p530
      %p532 = scmp.ne.s32.totalorder %s521, %s522
      %p533 = scmp.eq.s32.totalorder %s55, 0
      %p534 = por %p532, %p533
      %p535 = scmp.ne.s32.totalorder %s521, %s522
      %p536 = scmp.eq.s32.totalorder %s56, 1
      %p537 = por %p535, %p536
      %p539 = scmp.ne.s32.totalorder %s522, %s538
      %p540 = scmp.eq.s32.totalorder %s56, 0
      %p541 = por %p539, %p540
      %s542 = ssub.s32 %s50, %s57
      %p543 = scmp.eq.s32.totalorder %s542, 0
      %s545 = sadd.s32 %s544, 1
      %s546 = scalar_select %p543, %s544, %s545
      %p549 = pneg %p543
      %p550 = scmp.eq.s32.totalorder %s50, 1
      %p551 = por %p549, %p550
      %p552 = scmp.ne.s32.totalorder %s544, %s547
      %p553 = scmp.eq.s32.totalorder %s50, 0
      %p554 = por %p552, %p553
      %p555 = scmp.ne.s32.totalorder %s544, %s547
      %p556 = scmp.eq.s32.totalorder %s55, 1
      %p557 = por %p555, %p556
      %p558 = scmp.ne.s32.totalorder %s547, %s548
      %p559 = scmp.eq.s32.totalorder %s55, 0
      %p560 = por %p558, %p559
      %p561 = scmp.ne.s32.totalorder %s547, %s548
      %p562 = scmp.eq.s32.totalorder %s56, 1
      %p563 = por %p561, %p562
      %p565 = scmp.ne.s32.totalorder %s548, %s564
      %p566 = scmp.eq.s32.totalorder %s56, 0
      %p567 = por %p565, %p566
      %s568 = ssub.s32 %s50, %s57
      %p569 = scmp.eq.s32.totalorder %s568, 0
      %s571 = sadd.s32 %s570, 1
      %s572 = scalar_select %p569, %s570, %s571
      %p575 = pneg %p569
      %p576 = scmp.eq.s32.totalorder %s50, 1
      %p577 = por %p575, %p576
      %p578 = scmp.ne.s32.totalorder %s570, %s573
      %p579 = scmp.eq.s32.totalorder %s50, 0
      %p580 = por %p578, %p579
      %p581 = scmp.ne.s32.totalorder %s570, %s573
      %p582 = scmp.eq.s32.totalorder %s55, 1
      %p583 = por %p581, %p582
      %p584 = scmp.ne.s32.totalorder %s573, %s574
      %p585 = scmp.eq.s32.totalorder %s55, 0
      %p586 = por %p584, %p585
      %p587 = scmp.ne.s32.totalorder %s573, %s574
      %p588 = scmp.eq.s32.totalorder %s56, 1
      %p589 = por %p587, %p588
      %p591 = scmp.ne.s32.totalorder %s574, %s590
      %p592 = scmp.eq.s32.totalorder %s56, 0
      %p593 = por %p591, %p592
      %s594 = ssub.s32 %s50, %s57
      %p595 = scmp.eq.s32.totalorder %s594, 0
      %s597 = sadd.s32 %s596, 1
      %s598 = scalar_select %p595, %s596, %s597
      %p601 = pneg %p595
      %p602 = scmp.eq.s32.totalorder %s50, 1
      %p603 = por %p601, %p602
      %p604 = scmp.ne.s32.totalorder %s596, %s599
      %p605 = scmp.eq.s32.totalorder %s50, 0
      %p606 = por %p604, %p605
      %p607 = scmp.ne.s32.totalorder %s596, %s599
      %p608 = scmp.eq.s32.totalorder %s55, 1
      %p609 = por %p607, %p608
      %p610 = scmp.ne.s32.totalorder %s599, %s600
      %p611 = scmp.eq.s32.totalorder %s55, 0
      %p612 = por %p610, %p611
      %p613 = scmp.ne.s32.totalorder %s599, %s600
      %p614 = scmp.eq.s32.totalorder %s56, 1
      %p615 = por %p613, %p614
      %p617 = scmp.ne.s32.totalorder %s600, %s616
      %p618 = scmp.eq.s32.totalorder %s56, 0
      %p619 = por %p617, %p618
      %s620 = ssub.s32 %s50, %s57
      %p621 = scmp.eq.s32.totalorder %s620, 0
      %s623 = sadd.s32 %s622, 1
      %s624 = scalar_select %p621, %s622, %s623
      %p627 = pneg %p621
      %p628 = scmp.eq.s32.totalorder %s50, 1
      %p629 = por %p627, %p628
      %p630 = scmp.ne.s32.totalorder %s622, %s625
      %p631 = scmp.eq.s32.totalorder %s50, 0
      %p632 = por %p630, %p631
      %p633 = scmp.ne.s32.totalorder %s622, %s625
      %p634 = scmp.eq.s32.totalorder %s55, 1
      %p635 = por %p633, %p634
      %p636 = scmp.ne.s32.totalorder %s625, %s626
      %p637 = scmp.eq.s32.totalorder %s55, 0
      %p638 = por %p636, %p637
      %p639 = scmp.ne.s32.totalorder %s625, %s626
      %p640 = scmp.eq.s32.totalorder %s56, 1
      %p641 = por %p639, %p640
      %p643 = scmp.ne.s32.totalorder %s626, %s642
      %p644 = scmp.eq.s32.totalorder %s56, 0
      %p645 = por %p643, %p644
      %s646 = ssub.s32 %s50, %s57
      %p647 = scmp.eq.s32.totalorder %s646, 0
      %s649 = sadd.s32 %s648, 1
      %s650 = scalar_select %p647, %s648, %s649
      %p653 = pneg %p647
      %p654 = scmp.eq.s32.totalorder %s50, 1
      %p655 = por %p653, %p654
      %p656 = scmp.ne.s32.totalorder %s648, %s651
      %p657 = scmp.eq.s32.totalorder %s50, 0
      %p658 = por %p656, %p657
      %p659 = scmp.ne.s32.totalorder %s648, %s651
      %p660 = scmp.eq.s32.totalorder %s55, 1
      %p661 = por %p659, %p660
      %p662 = scmp.ne.s32.totalorder %s651, %s652
      %p663 = scmp.eq.s32.totalorder %s55, 0
      %p664 = por %p662, %p663
      %p665 = scmp.ne.s32.totalorder %s651, %s652
      %p666 = scmp.eq.s32.totalorder %s56, 1
      %p667 = por %p665, %p666
      %p669 = scmp.ne.s32.totalorder %s652, %s668
      %p670 = scmp.eq.s32.totalorder %s56, 0
      %p671 = por %p669, %p670
      %s672 = ssub.s32 %s50, %s57
      %p673 = scmp.eq.s32.totalorder %s672, 0
      %s675 = sadd.s32 %s674, 1
      %s676 = scalar_select %p673, %s674, %s675
      %p679 = pneg %p673
      %p680 = scmp.eq.s32.totalorder %s50, 1
      %p681 = por %p679, %p680
      %p682 = scmp.ne.s32.totalorder %s674, %s677
      %p683 = scmp.eq.s32.totalorder %s50, 0
      %p684 = por %p682, %p683
      %p685 = scmp.ne.s32.totalorder %s674, %s677
      %p686 = scmp.eq.s32.totalorder %s55, 1
      %p687 = por %p685, %p686
      %p688 = scmp.ne.s32.totalorder %s677, %s678
      %p689 = scmp.eq.s32.totalorder %s55, 0
      %p690 = por %p688, %p689
      %p691 = scmp.ne.s32.totalorder %s677, %s678
      %p692 = scmp.eq.s32.totalorder %s56, 1
      %p693 = por %p691, %p692
      %p695 = scmp.ne.s32.totalorder %s678, %s694
      %p696 = scmp.eq.s32.totalorder %s56, 0
      %p697 = por %p695, %p696
      %s698 = ssub.s32 %s50, %s57
      %p699 = scmp.eq.s32.totalorder %s698, 0
      %s701 = sadd.s32 %s700, 1
      %s702 = scalar_select %p699, %s700, %s701
      %p705 = pneg %p699
      %p706 = scmp.eq.s32.totalorder %s50, 1
      %p707 = por %p705, %p706
      %p708 = scmp.ne.s32.totalorder %s700, %s703
      %p709 = scmp.eq.s32.totalorder %s50, 0
      %p710 = por %p708, %p709
      %p711 = scmp.ne.s32.totalorder %s700, %s703
      %p712 = scmp.eq.s32.totalorder %s55, 1
      %p713 = por %p711, %p712
      %p714 = scmp.ne.s32.totalorder %s703, %s704
      %p715 = scmp.eq.s32.totalorder %s55, 0
      %p716 = por %p714, %p715
      %p717 = scmp.ne.s32.totalorder %s703, %s704
      %p718 = scmp.eq.s32.totalorder %s56, 1
      %p719 = por %p717, %p718
      %p721 = scmp.ne.s32.totalorder %s704, %s720
      %p722 = scmp.eq.s32.totalorder %s56, 0
      %p723 = por %p721, %p722
      %s724 = ssub.s32 %s50, %s57
      %p725 = scmp.eq.s32.totalorder %s724, 0
      %s727 = sadd.s32 %s726, 1
      %s728 = scalar_select %p725, %s726, %s727
      %p731 = pneg %p725
      %p732 = scmp.eq.s32.totalorder %s50, 1
      %p733 = por %p731, %p732
      %p734 = scmp.ne.s32.totalorder %s726, %s729
      %p735 = scmp.eq.s32.totalorder %s50, 0
      %p736 = por %p734, %p735
      %p737 = scmp.ne.s32.totalorder %s726, %s729
      %p738 = scmp.eq.s32.totalorder %s55, 1
      %p739 = por %p737, %p738
      %p740 = scmp.ne.s32.totalorder %s729, %s730
      %p741 = scmp.eq.s32.totalorder %s55, 0
      %p742 = por %p740, %p741
      %p743 = scmp.ne.s32.totalorder %s729, %s730
      %p744 = scmp.eq.s32.totalorder %s56, 1
      %p745 = por %p743, %p744
      %p747 = scmp.ne.s32.totalorder %s730, %s746
      %p748 = scmp.eq.s32.totalorder %s56, 0
      %p749 = por %p747, %p748
      %s750 = ssub.s32 %s50, %s57
      %p751 = scmp.eq.s32.totalorder %s750, 0
      %s753 = sadd.s32 %s752, 1
      %s754 = scalar_select %p751, %s752, %s753
      %p757 = pneg %p751
      %p758 = scmp.eq.s32.totalorder %s50, 1
      %p759 = por %p757, %p758
      %p760 = scmp.ne.s32.totalorder %s752, %s755
      %p761 = scmp.eq.s32.totalorder %s50, 0
      %p762 = por %p760, %p761
      %p763 = scmp.ne.s32.totalorder %s752, %s755
      %p764 = scmp.eq.s32.totalorder %s55, 1
      %p765 = por %p763, %p764
      %p766 = scmp.ne.s32.totalorder %s755, %s756
      %p767 = scmp.eq.s32.totalorder %s55, 0
      %p768 = por %p766, %p767
      %p769 = scmp.ne.s32.totalorder %s755, %s756
      %p770 = scmp.eq.s32.totalorder %s56, 1
      %p771 = por %p769, %p770
      %p773 = scmp.ne.s32.totalorder %s756, %s772
      %p774 = scmp.eq.s32.totalorder %s56, 0
      %p775 = por %p773, %p774
      %s776 = ssub.s32 %s50, %s57
      %p777 = scmp.eq.s32.totalorder %s776, 0
      %s779 = sadd.s32 %s778, 1
      %s780 = scalar_select %p777, %s778, %s779
      %p783 = pneg %p777
      %p784 = scmp.eq.s32.totalorder %s50, 1
      %p785 = por %p783, %p784
      %p786 = scmp.ne.s32.totalorder %s778, %s781
      %p787 = scmp.eq.s32.totalorder %s50, 0
      %p788 = por %p786, %p787
      %p789 = scmp.ne.s32.totalorder %s778, %s781
      %p790 = scmp.eq.s32.totalorder %s55, 1
      %p791 = por %p789, %p790
      %p792 = scmp.ne.s32.totalorder %s781, %s782
      %p793 = scmp.eq.s32.totalorder %s55, 0
      %p794 = por %p792, %p793
      %p795 = scmp.ne.s32.totalorder %s781, %s782
      %p796 = scmp.eq.s32.totalorder %s56, 1
      %p797 = por %p795, %p796
      %p799 = scmp.ne.s32.totalorder %s782, %s798
      %p800 = scmp.eq.s32.totalorder %s56, 0
      %p801 = por %p799, %p800
      %p802 = scmp.le.s32.totalorder 1, %s50
      %p803 = scmp.lt.s32.totalorder %s50, 3
      %p804 = pnand %p802, %p803
      %p805 = pneg %p804
      // Predicated region
      $region9: #{seq2seq_forward.3} parent=5 // pred_check
        _
      $region10: #{seq2seq_forward.3} parent=5 // pred_check_branch
        %807 = sbr.rel (%p804) target = $region12
      $region11: #{seq2seq_forward.3} parent=5 // pred_region
        %s808 = ssub.s32 %s50, 1
        // Predicated region
        $region13: #{seq2seq_forward.3} parent=11 // pred_check
          %p809 = pneg %p123
        $region14: #{seq2seq_forward.3} parent=11 // pred_check_branch
          %811 = sbr.rel (%p809) target = $region16
        $region15: #{seq2seq_forward.3} parent=11 // pred_region
          _
        $region16: #{seq2seq_forward.3} parent=11 // pred_fallthru
          _
        // Predicated region
        $region17: #{seq2seq_forward.3} parent=11 // pred_check
          %p812 = pneg %p144
        $region18: #{seq2seq_forward.3} parent=11 // pred_check_branch
          %814 = sbr.rel (%p812) target = $region20
        $region19: #{seq2seq_forward.3} parent=11 // pred_region
          _
        $region20: #{seq2seq_forward.3} parent=11 // pred_fallthru
          _
      $region12: #{seq2seq_forward.3} parent=5 // pred_fallthru
        _
      %p815 = scmp.lt.s32.totalorder %s50, 2
      // Predicated region
      $region21: #{seq2seq_forward.3} parent=5 // pred_check
        %p816 = pneg %p815
      $region22: #{seq2seq_forward.3} parent=5 // pred_check_branch
        %818 = sbr.rel (%p816) target = $region24
      $region23: #{seq2seq_forward.3} parent=5 // pred_region
        // Predicated region
        $region25: #{seq2seq_forward.3} parent=23 // pred_check
          %p819 = pneg %p70
        $region26: #{seq2seq_forward.3} parent=23 // pred_check_branch
          %821 = sbr.rel (%p819) target = $region28
        $region27: #{seq2seq_forward.3} parent=23 // pred_region
          %p822 = scmp.lt.s32.totalorder %s50, 1
          %s823 = scalar_select %p822, %s50, 1
          %s824 = smul.addr %s823, 2
          %s825 = smul.addr %s824, 8
          %s826 = scalar_lea.vmem %s0, %s825
        $region28: #{seq2seq_forward.3} parent=23 // pred_fallthru
          _
        // Predicated region
        $region29: #{seq2seq_forward.3} parent=23 // pred_check
          %p827 = pneg %p96
        $region30: #{seq2seq_forward.3} parent=23 // pred_check_branch
          %829 = sbr.rel (%p827) target = $region32
        $region31: #{seq2seq_forward.3} parent=23 // pred_region
          %p830 = scmp.lt.s32.totalorder %s50, 1
          %s831 = scalar_select %p830, %s50, 1
          %s832 = smul.addr %s831, 2
          %s833 = smul.addr %s832, 8
          %s834 = scalar_lea.vmem %s1, %s833
        $region32: #{seq2seq_forward.3} parent=23 // pred_fallthru
          _
        // Predicated region
        $region33: #{seq2seq_forward.3} parent=23 // pred_check
          %p835 = pneg %p164
        $region34: #{seq2seq_forward.3} parent=23 // pred_check_branch
          %837 = sbr.rel (%p835) target = $region36
        $region35: #{seq2seq_forward.3} parent=23 // pred_region
          %p838 = scmp.lt.s32.totalorder %s50, 1
          %s839 = scalar_select %p838, %s50, 1
          %s840 = smul.addr %s839, 48
          %s841 = smul.addr %s840, 4
          %s842 = scalar_lea.vmem %s4, %s841
        $region36: #{seq2seq_forward.3} parent=23 // pred_fallthru
          _
        // Predicated region
        $region37: #{seq2seq_forward.3} parent=23 // pred_check
          %p843 = pneg %p190
        $region38: #{seq2seq_forward.3} parent=23 // pred_check_branch
          %845 = sbr.rel (%p843) target = $region40
        $region39: #{seq2seq_forward.3} parent=23 // pred_region
          %p846 = scmp.lt.s32.totalorder %s50, 1
          %s847 = scalar_select %p846, %s50, 1
          %s848 = smul.addr %s847, 3
          %s849 = scalar_lea.vmem %s5, %s848
        $region40: #{seq2seq_forward.3} parent=23 // pred_fallthru
          _
        // Predicated region
        $region41: #{seq2seq_forward.3} parent=23 // pred_check
          %p850 = pneg %p216
        $region42: #{seq2seq_forward.3} parent=23 // pred_check_branch
          %852 = sbr.rel (%p850) target = $region44
        $region43: #{seq2seq_forward.3} parent=23 // pred_region
          %p853 = scmp.lt.s32.totalorder %s50, 1
          %s854 = scalar_select %p853, %s50, 1
          %s855 = smul.addr %s854, 16
          %s856 = smul.addr %s855, 4
          %s857 = scalar_lea.vmem %s6, %s856
        $region44: #{seq2seq_forward.3} parent=23 // pred_fallthru
          _
        // Predicated region
        $region45: #{seq2seq_forward.3} parent=23 // pred_check
          %p858 = pneg %p242
        $region46: #{seq2seq_forward.3} parent=23 // pred_check_branch
          %860 = sbr.rel (%p858) target = $region48
        $region47: #{seq2seq_forward.3} parent=23 // pred_region
          %p861 = scmp.lt.s32.totalorder %s50, 1
          %s862 = scalar_select %p861, %s50, 1
          %s863 = scalar_lea.vmem %s7, %s862
        $region48: #{seq2seq_forward.3} parent=23 // pred_fallthru
          _
        // Predicated region
        $region49: #{seq2seq_forward.3} parent=23 // pred_check
          %p864 = pneg %p268
        $region50: #{seq2seq_forward.3} parent=23 // pred_check_branch
          %866 = sbr.rel (%p864) target = $region52
        $region51: #{seq2seq_forward.3} parent=23 // pred_region
          %p867 = scmp.lt.s32.totalorder %s50, 1
          %s868 = scalar_select %p867, %s50, 1
          %s869 = scalar_lea.vmem %s8, %s868
        $region52: #{seq2seq_forward.3} parent=23 // pred_fallthru
          _
        // Predicated region
        $region53: #{seq2seq_forward.3} parent=23 // pred_check
          %p870 = pneg %p294
        $region54: #{seq2seq_forward.3} parent=23 // pred_check_branch
          %872 = sbr.rel (%p870) target = $region56
        $region55: #{seq2seq_forward.3} parent=23 // pred_region
          %p873 = scmp.lt.s32.totalorder %s50, 1
          %s874 = scalar_select %p873, %s50, 1
          %s875 = scalar_lea.vmem %s9, %s874
        $region56: #{seq2seq_forward.3} parent=23 // pred_fallthru
          _
        // Predicated region
        $region57: #{seq2seq_forward.3} parent=23 // pred_check
          %p876 = pneg %p320
        $region58: #{seq2seq_forward.3} parent=23 // pred_check_branch
          %878 = sbr.rel (%p876) target = $region60
        $region59: #{seq2seq_forward.3} parent=23 // pred_region
          %s879 = sand.u32 %s310, 1
          %s880 = scalar_lea.sflag [#allocation3], %s879
          %s881 = sand.u32 %s310, 1
          %s882 = smul.addr %s881, 64
          %s883 = scalar_lea.vmem [#allocation2], %s882
          %885 = vsyncadd %s880, 0
          %s886 = smul.addr %s50, 16
          %s887 = smul.addr %s886, 4
          %s888 = scalar_lea.hbm %s10, %s887
          %s889 = sshll.u32 %s888, 4
          %s890 = int_to_ptr.hbm [resolvable:$true] %s889
          %s891 = sshll.u32 %s883, 4
          %s892 = int_to_ptr.vmem [resolvable:$true] %s891
          %897 = dma.hbm_to_vmem [thread:$0]  %s890, 1024, %s892, %s880, 64, 64, 4
        $region60: #{seq2seq_forward.3} parent=23 // pred_fallthru
          _
        // Predicated region
        $region61: #{seq2seq_forward.3} parent=23 // pred_check
          %p898 = pneg %p346
        $region62: #{seq2seq_forward.3} parent=23 // pred_check_branch
          %900 = sbr.rel (%p898) target = $region64
        $region63: #{seq2seq_forward.3} parent=23 // pred_region
          %p901 = scmp.lt.s32.totalorder %s50, 1
          %s902 = scalar_select %p901, %s50, 1
          %s903 = scalar_lea.vmem %s11, %s902
        $region64: #{seq2seq_forward.3} parent=23 // pred_fallthru
          _
        // Predicated region
        $region65: #{seq2seq_forward.3} parent=23 // pred_check
          %p904 = pneg %p372
        $region66: #{seq2seq_forward.3} parent=23 // pred_check_branch
          %906 = sbr.rel (%p904) target = $region68
        $region67: #{seq2seq_forward.3} parent=23 // pred_region
          %s907 = sand.u32 %s50, 1
          %s908 = scalar_lea.sflag [#allocation6], %s907
          %s909 = sand.u32 %s362, 1
          %s910 = smul.addr %s909, 128
          %s911 = scalar_lea.vmem [#allocation5], %s910
          %913 = vsyncadd %s908, 0
          %s914 = smul.addr %s50, 32
          %s915 = smul.addr %s914, 4
          %s916 = scalar_lea.hbm %s12, %s915
          %s917 = sshll.u32 %s916, 4
          %s918 = int_to_ptr.hbm [resolvable:$true] %s917
          %s919 = sshll.u32 %s911, 4
          %s920 = int_to_ptr.vmem [resolvable:$true] %s919
          %925 = dma.hbm_to_vmem [thread:$0]  %s918, 2048, %s920, %s908, 128, 128, 8
        $region68: #{seq2seq_forward.3} parent=23 // pred_fallthru
          _
        // Predicated region
        $region69: #{seq2seq_forward.3} parent=23 // pred_check
          %p926 = pneg %p398
        $region70: #{seq2seq_forward.3} parent=23 // pred_check_branch
          %928 = sbr.rel (%p926) target = $region72
        $region71: #{seq2seq_forward.3} parent=23 // pred_region
          %p929 = scmp.lt.s32.totalorder %s50, 1
          %s930 = scalar_select %p929, %s50, 1
          %s931 = smul.addr %s930, 2
          %s932 = scalar_lea.vmem %s13, %s931
        $region72: #{seq2seq_forward.3} parent=23 // pred_fallthru
          _
        // Predicated region
        $region73: #{seq2seq_forward.3} parent=23 // pred_check
          %p933 = pneg %p424
        $region74: #{seq2seq_forward.3} parent=23 // pred_check_branch
          %935 = sbr.rel (%p933) target = $region76
        $region75: #{seq2seq_forward.3} parent=23 // pred_region
          %s936 = sand.u32 %s50, 1
          %s937 = scalar_lea.sflag [#allocation6], %s936
          %s938 = sand.u32 %s414, 1
          %s939 = smul.addr %s938, 64
          %s940 = scalar_lea.vmem [#allocation7], %s939
          %942 = vsyncadd %s937, 0
          %s943 = smul.addr %s50, 16
          %s944 = smul.addr %s943, 4
          %s945 = scalar_lea.hbm %s14, %s944
          %s946 = sshll.u32 %s945, 4
          %s947 = int_to_ptr.hbm [resolvable:$true] %s946
          %s948 = sshll.u32 %s940, 4
          %s949 = int_to_ptr.vmem [resolvable:$true] %s948
          %954 = dma.hbm_to_vmem [thread:$0]  %s947, 1024, %s949, %s937, 64, 64, 4
        $region76: #{seq2seq_forward.3} parent=23 // pred_fallthru
          _
        // Predicated region
        $region77: #{seq2seq_forward.3} parent=23 // pred_check
          %p955 = pneg %p450
        $region78: #{seq2seq_forward.3} parent=23 // pred_check_branch
          %957 = sbr.rel (%p955) target = $region80
        $region79: #{seq2seq_forward.3} parent=23 // pred_region
          %p958 = scmp.lt.s32.totalorder %s50, 1
          %s959 = scalar_select %p958, %s50, 1
          %s960 = scalar_lea.vmem %s15, %s959
        $region80: #{seq2seq_forward.3} parent=23 // pred_fallthru
          _
        // Predicated region
        $region81: #{seq2seq_forward.3} parent=23 // pred_check
          %p961 = pneg %p476
        $region82: #{seq2seq_forward.3} parent=23 // pred_check_branch
          %963 = sbr.rel (%p961) target = $region84
        $region83: #{seq2seq_forward.3} parent=23 // pred_region
          %p964 = scmp.lt.s32.totalorder %s50, 1
          %s965 = scalar_select %p964, %s50, 1
          %s966 = scalar_lea.vmem %s16, %s965
        $region84: #{seq2seq_forward.3} parent=23 // pred_fallthru
          _
        // Predicated region
        $region85: #{seq2seq_forward.3} parent=23 // pred_check
          %p967 = pneg %p502
        $region86: #{seq2seq_forward.3} parent=23 // pred_check_branch
          %969 = sbr.rel (%p967) target = $region88
        $region87: #{seq2seq_forward.3} parent=23 // pred_region
          %p970 = scmp.lt.s32.totalorder %s50, 1
          %s971 = scalar_select %p970, %s50, 1
          %s972 = scalar_lea.vmem %s17, %s971
        $region88: #{seq2seq_forward.3} parent=23 // pred_fallthru
          _
        // Predicated region
        $region89: #{seq2seq_forward.3} parent=23 // pred_check
          %p973 = pneg %p528
        $region90: #{seq2seq_forward.3} parent=23 // pred_check_branch
          %975 = sbr.rel (%p973) target = $region92
        $region91: #{seq2seq_forward.3} parent=23 // pred_region
          %s976 = sand.u32 %s50, 1
          %s977 = scalar_lea.sflag [#allocation9], %s976
          %s978 = sand.u32 %s518, 1
          %s979 = smul.addr %s978, 128
          %s980 = scalar_lea.vmem [#allocation8], %s979
          %982 = vsyncadd %s977, 0
          %s983 = smul.addr %s50, 32
          %s984 = smul.addr %s983, 4
          %s985 = scalar_lea.hbm %s18, %s984
          %s986 = sshll.u32 %s985, 4
          %s987 = int_to_ptr.hbm [resolvable:$true] %s986
          %s988 = sshll.u32 %s980, 4
          %s989 = int_to_ptr.vmem [resolvable:$true] %s988
          %994 = dma.hbm_to_vmem [thread:$0]  %s987, 2048, %s989, %s977, 128, 128, 8
        $region92: #{seq2seq_forward.3} parent=23 // pred_fallthru
          _
        // Predicated region
        $region93: #{seq2seq_forward.3} parent=23 // pred_check
          %p995 = pneg %p554
        $region94: #{seq2seq_forward.3} parent=23 // pred_check_branch
          %997 = sbr.rel (%p995) target = $region96
        $region95: #{seq2seq_forward.3} parent=23 // pred_region
          %p998 = scmp.lt.s32.totalorder %s50, 1
          %s999 = scalar_select %p998, %s50, 1
          %s1000 = smul.addr %s999, 2
          %s1001 = scalar_lea.vmem %s19, %s1000
        $region96: #{seq2seq_forward.3} parent=23 // pred_fallthru
          _
        // Predicated region
        $region97: #{seq2seq_forward.3} parent=23 // pred_check
          %p1002 = pneg %p580
        $region98: #{seq2seq_forward.3} parent=23 // pred_check_branch
          %1004 = sbr.rel (%p1002) target = $region100
        $region99: #{seq2seq_forward.3} parent=23 // pred_region
          %s1005 = sand.u32 %s50, 1
          %s1006 = scalar_lea.sflag [#allocation9], %s1005
          %s1007 = sand.u32 %s570, 1
          %s1008 = smul.addr %s1007, 128
          %s1009 = scalar_lea.vmem [#allocation10], %s1008
          %1011 = vsyncadd %s1006, 0
          %s1012 = smul.addr %s50, 32
          %s1013 = smul.addr %s1012, 4
          %s1014 = scalar_lea.hbm %s20, %s1013
          %s1015 = sshll.u32 %s1014, 4
          %s1016 = int_to_ptr.hbm [resolvable:$true] %s1015
          %s1017 = sshll.u32 %s1009, 4
          %s1018 = int_to_ptr.vmem [resolvable:$true] %s1017
          %1023 = dma.hbm_to_vmem [thread:$0]  %s1016, 2048, %s1018, %s1006, 64, 64, 4
        $region100: #{seq2seq_forward.3} parent=23 // pred_fallthru
          _
        // Predicated region
        $region101: #{seq2seq_forward.3} parent=23 // pred_check
          %p1024 = pneg %p606
        $region102: #{seq2seq_forward.3} parent=23 // pred_check_branch
          %1026 = sbr.rel (%p1024) target = $region104
        $region103: #{seq2seq_forward.3} parent=23 // pred_region
          %p1027 = scmp.lt.s32.totalorder %s50, 1
          %s1028 = scalar_select %p1027, %s50, 1
          %s1029 = scalar_lea.vmem %s21, %s1028
        $region104: #{seq2seq_forward.3} parent=23 // pred_fallthru
          _
        // Predicated region
        $region105: #{seq2seq_forward.3} parent=23 // pred_check
          %p1030 = pneg %p632
        $region106: #{seq2seq_forward.3} parent=23 // pred_check_branch
          %1032 = sbr.rel (%p1030) target = $region108
        $region107: #{seq2seq_forward.3} parent=23 // pred_region
          %p1033 = scmp.lt.s32.totalorder %s50, 1
          %s1034 = scalar_select %p1033, %s50, 1
          %s1035 = scalar_lea.vmem %s22, %s1034
        $region108: #{seq2seq_forward.3} parent=23 // pred_fallthru
          _
        // Predicated region
        $region109: #{seq2seq_forward.3} parent=23 // pred_check
          %p1036 = pneg %p658
        $region110: #{seq2seq_forward.3} parent=23 // pred_check_branch
          %1038 = sbr.rel (%p1036) target = $region112
        $region111: #{seq2seq_forward.3} parent=23 // pred_region
          %p1039 = scmp.lt.s32.totalorder %s50, 1
          %s1040 = scalar_select %p1039, %s50, 1
          %s1041 = scalar_lea.vmem %s23, %s1040
        $region112: #{seq2seq_forward.3} parent=23 // pred_fallthru
          _
        // Predicated region
        $region113: #{seq2seq_forward.3} parent=23 // pred_check
          %p1042 = pneg %p684
        $region114: #{seq2seq_forward.3} parent=23 // pred_check_branch
          %1044 = sbr.rel (%p1042) target = $region116
        $region115: #{seq2seq_forward.3} parent=23 // pred_region
          %s1045 = sand.u32 %s674, 1
          %s1046 = scalar_lea.sflag [#allocation12], %s1045
          %s1047 = sand.u32 %s674, 1
          %s1048 = smul.addr %s1047, 64
          %s1049 = scalar_lea.vmem [#allocation11], %s1048
          %1051 = vsyncadd %s1046, 0
          %s1052 = smul.addr %s50, 16
          %s1053 = smul.addr %s1052, 4
          %s1054 = scalar_lea.hbm %s24, %s1053
          %s1055 = sshll.u32 %s1054, 4
          %s1056 = int_to_ptr.hbm [resolvable:$true] %s1055
          %s1057 = sshll.u32 %s1049, 4
          %s1058 = int_to_ptr.vmem [resolvable:$true] %s1057
          %1063 = dma.hbm_to_vmem [thread:$0]  %s1056, 1024, %s1058, %s1046, 64, 64, 4
        $region116: #{seq2seq_forward.3} parent=23 // pred_fallthru
          _
        // Predicated region
        $region117: #{seq2seq_forward.3} parent=23 // pred_check
          %p1064 = pneg %p710
        $region118: #{seq2seq_forward.3} parent=23 // pred_check_branch
          %1066 = sbr.rel (%p1064) target = $region120
        $region119: #{seq2seq_forward.3} parent=23 // pred_region
          %p1067 = scmp.lt.s32.totalorder %s50, 1
          %s1068 = scalar_select %p1067, %s50, 1
          %s1069 = scalar_lea.vmem %s25, %s1068
        $region120: #{seq2seq_forward.3} parent=23 // pred_fallthru
          _
      $region24: #{seq2seq_forward.3} parent=5 // pred_fallthru
        _
      %p1070 = scmp.le.s32.totalorder 1, %s50
      %p1071 = scmp.lt.s32.totalorder %s50, 3
      %p1072 = pnand %p1070, %p1071
      %p1073 = pneg %p1072
      // Predicated region
      $region121: #{seq2seq_forward.3} parent=5 // pred_check
        _
      $region122: #{seq2seq_forward.3} parent=5 // pred_check_branch
        %1075 = sbr.rel (%p1072) target = $region124
      $region123: #{seq2seq_forward.3} parent=5 // pred_region
        %s1076 = ssub.s32 %s50, 1
        %s1077 = sand.u32 %s313, 1
        %s1078 = scalar_lea.sflag [#allocation3], %s1077
        %s1079 = sand.u32 %s313, 1
        %s1080 = smul.addr %s1079, 64
        %s1081 = scalar_lea.vmem [#allocation2], %s1080
        // Predicated region
        $region125: #{seq2seq_forward.3} parent=123 // pred_check
          %p1082 = pneg %p326
        $region126: #{seq2seq_forward.3} parent=123 // pred_check_branch
          %1084 = sbr.rel (%p1082) target = $region128
        $region127: #{seq2seq_forward.3} parent=123 // pred_region
          %1086 = dma.done %s1078, 1024
        $region128: #{seq2seq_forward.3} parent=123 // pred_fallthru
          _
        %s1087 = sand.u32 %s55, 1
        %s1088 = scalar_lea.sflag [#allocation6], %s1087
        %s1089 = sand.u32 %s365, 1
        %s1090 = smul.addr %s1089, 128
        %s1091 = scalar_lea.vmem [#allocation5], %s1090
        // Predicated region
        $region129: #{seq2seq_forward.3} parent=123 // pred_check
          %p1092 = pneg %p378
        $region130: #{seq2seq_forward.3} parent=123 // pred_check_branch
          %1094 = sbr.rel (%p1092) target = $region132
        $region131: #{seq2seq_forward.3} parent=123 // pred_region
          %1096 = dma.done %s1088, 2048
        $region132: #{seq2seq_forward.3} parent=123 // pred_fallthru
          _
        %s1097 = sand.u32 %s55, 1
        %s1098 = scalar_lea.sflag [#allocation6], %s1097
        %s1099 = sand.u32 %s417, 1
        %s1100 = smul.addr %s1099, 64
        %s1101 = scalar_lea.vmem [#allocation7], %s1100
        // Predicated region
        $region133: #{seq2seq_forward.3} parent=123 // pred_check
          %p1102 = pneg %p430
        $region134: #{seq2seq_forward.3} parent=123 // pred_check_branch
          %1104 = sbr.rel (%p1102) target = $region136
        $region135: #{seq2seq_forward.3} parent=123 // pred_region
          %1106 = dma.done %s1098, 1024
        $region136: #{seq2seq_forward.3} parent=123 // pred_fallthru
          _
        %s1107 = sand.u32 %s55, 1
        %s1108 = scalar_lea.sflag [#allocation9], %s1107
        %s1109 = sand.u32 %s521, 1
        %s1110 = smul.addr %s1109, 128
        %s1111 = scalar_lea.vmem [#allocation8], %s1110
        // Predicated region
        $region137: #{seq2seq_forward.3} parent=123 // pred_check
          %p1112 = pneg %p534
        $region138: #{seq2seq_forward.3} parent=123 // pred_check_branch
          %1114 = sbr.rel (%p1112) target = $region140
        $region139: #{seq2seq_forward.3} parent=123 // pred_region
          %1116 = dma.done %s1108, 2048
        $region140: #{seq2seq_forward.3} parent=123 // pred_fallthru
          _
        %s1117 = sand.u32 %s55, 1
        %s1118 = scalar_lea.sflag [#allocation9], %s1117
        %s1119 = sand.u32 %s573, 1
        %s1120 = smul.addr %s1119, 128
        %s1121 = scalar_lea.vmem [#allocation10], %s1120
        // Predicated region
        $region141: #{seq2seq_forward.3} parent=123 // pred_check
          %p1122 = pneg %p586
        $region142: #{seq2seq_forward.3} parent=123 // pred_check_branch
          %1124 = sbr.rel (%p1122) target = $region144
        $region143: #{seq2seq_forward.3} parent=123 // pred_region
          %1126 = dma.done %s1118, 2048
        $region144: #{seq2seq_forward.3} parent=123 // pred_fallthru
          _
        %s1127 = sand.u32 %s677, 1
        %s1128 = scalar_lea.sflag [#allocation12], %s1127
        %s1129 = sand.u32 %s677, 1
        %s1130 = smul.addr %s1129, 64
        %s1131 = scalar_lea.vmem [#allocation11], %s1130
        // Predicated region
        $region145: #{seq2seq_forward.3} parent=123 // pred_check
          %p1132 = pneg %p690
        $region146: #{seq2seq_forward.3} parent=123 // pred_check_branch
          %1134 = sbr.rel (%p1132) target = $region148
        $region147: #{seq2seq_forward.3} parent=123 // pred_region
          %1136 = dma.done %s1128, 1024
        $region148: #{seq2seq_forward.3} parent=123 // pred_fallthru
          _
        %p1137 = scmp.lt.s32.totalorder %s55, 1
        %s1138 = scalar_select %p1137, %s55, 1
        %s1139 = smul.addr %s1138, 2
        %s1140 = smul.addr %s1139, 8
        %s1141 = scalar_lea.vmem %s0, %s1140
        %p1142 = pneg %p76
        %p1143 = pneg %p73
        %p1144 = scmp.lt.s32.totalorder %s55, 1
        %s1145 = scalar_select %p1144, %s55, 1
        %s1146 = smul.addr %s1145, 2
        %s1147 = smul.addr %s1146, 8
        %s1148 = scalar_lea.vmem %s1, %s1147
        %p1149 = pneg %p102
        %p1150 = pneg %p99
        %p1151 = pneg %p123
        %p1152 = pneg %p120
        %p1153 = pneg %p144
        %p1154 = pneg %p141
        %p1155 = scmp.lt.s32.totalorder %s55, 1
        %s1156 = scalar_select %p1155, %s55, 1
        %s1157 = smul.addr %s1156, 48
        %s1158 = smul.addr %s1157, 4
        %s1159 = scalar_lea.vmem %s4, %s1158
        %p1160 = pneg %p170
        %p1161 = pneg %p167
        %p1162 = scmp.lt.s32.totalorder %s55, 1
        %s1163 = scalar_select %p1162, %s55, 1
        %s1164 = smul.addr %s1163, 3
        %s1165 = scalar_lea.vmem %s5, %s1164
        %p1166 = pneg %p196
        %p1167 = pneg %p193
        %p1168 = scmp.lt.s32.totalorder %s55, 1
        %s1169 = scalar_select %p1168, %s55, 1
        %s1170 = smul.addr %s1169, 16
        %s1171 = smul.addr %s1170, 4
        %s1172 = scalar_lea.vmem %s6, %s1171
        %p1173 = pneg %p222
        %p1174 = pneg %p219
        %p1175 = scmp.lt.s32.totalorder %s55, 1
        %s1176 = scalar_select %p1175, %s55, 1
        %s1177 = scalar_lea.vmem %s7, %s1176
        %p1178 = pneg %p248
        %p1179 = pneg %p245
        %p1180 = scmp.lt.s32.totalorder %s55, 1
        %s1181 = scalar_select %p1180, %s55, 1
        %s1182 = scalar_lea.vmem %s8, %s1181
        %p1183 = pneg %p274
        %p1184 = pneg %p271
        %p1185 = scmp.lt.s32.totalorder %s55, 1
        %s1186 = scalar_select %p1185, %s55, 1
        %s1187 = scalar_lea.vmem %s9, %s1186
        %p1188 = pneg %p300
        %p1189 = pneg %p297
        %s1190 = sand.u32 %s313, 1
        %s1191 = scalar_lea.sflag [#allocation3], %s1190
        %s1192 = sand.u32 %s313, 1
        %s1193 = smul.addr %s1192, 64
        %s1194 = scalar_lea.vmem [#allocation2], %s1193
        %p1195 = pneg %p326
        %p1196 = pneg %p323
        %p1197 = scmp.lt.s32.totalorder %s55, 1
        %s1198 = scalar_select %p1197, %s55, 1
        %s1199 = scalar_lea.vmem %s11, %s1198
        %p1200 = pneg %p352
        %p1201 = pneg %p349
        %s1202 = sand.u32 %s55, 1
        %s1203 = scalar_lea.sflag [#allocation6], %s1202
        %s1204 = sand.u32 %s365, 1
        %s1205 = smul.addr %s1204, 128
        %s1206 = scalar_lea.vmem [#allocation5], %s1205
        %p1207 = pneg %p378
        %p1208 = pneg %p375
        %p1209 = scmp.lt.s32.totalorder %s55, 1
        %s1210 = scalar_select %p1209, %s55, 1
        %s1211 = smul.addr %s1210, 2
        %s1212 = scalar_lea.vmem %s13, %s1211
        %p1213 = pneg %p404
        %p1214 = pneg %p401
        %s1215 = sand.u32 %s55, 1
        %s1216 = scalar_lea.sflag [#allocation6], %s1215
        %s1217 = sand.u32 %s417, 1
        %s1218 = smul.addr %s1217, 64
        %s1219 = scalar_lea.vmem [#allocation7], %s1218
        %p1220 = pneg %p430
        %p1221 = pneg %p427
        %p1222 = scmp.lt.s32.totalorder %s55, 1
        %s1223 = scalar_select %p1222, %s55, 1
        %s1224 = scalar_lea.vmem %s15, %s1223
        %p1225 = pneg %p456
        %p1226 = pneg %p453
        %p1227 = scmp.lt.s32.totalorder %s55, 1
        %s1228 = scalar_select %p1227, %s55, 1
        %s1229 = scalar_lea.vmem %s16, %s1228
        %p1230 = pneg %p482
        %p1231 = pneg %p479
        %p1232 = scmp.lt.s32.totalorder %s55, 1
        %s1233 = scalar_select %p1232, %s55, 1
        %s1234 = scalar_lea.vmem %s17, %s1233
        %p1235 = pneg %p508
        %p1236 = pneg %p505
        %s1237 = sand.u32 %s55, 1
        %s1238 = scalar_lea.sflag [#allocation9], %s1237
        %s1239 = sand.u32 %s521, 1
        %s1240 = smul.addr %s1239, 128
        %s1241 = scalar_lea.vmem [#allocation8], %s1240
        %p1242 = pneg %p534
        %p1243 = pneg %p531
        %p1244 = scmp.lt.s32.totalorder %s55, 1
        %s1245 = scalar_select %p1244, %s55, 1
        %s1246 = smul.addr %s1245, 2
        %s1247 = scalar_lea.vmem %s19, %s1246
        %p1248 = pneg %p560
        %p1249 = pneg %p557
        %s1250 = sand.u32 %s55, 1
        %s1251 = scalar_lea.sflag [#allocation9], %s1250
        %s1252 = sand.u32 %s573, 1
        %s1253 = smul.addr %s1252, 128
        %s1254 = scalar_lea.vmem [#allocation10], %s1253
        %p1255 = pneg %p586
        %p1256 = pneg %p583
        %p1257 = scmp.lt.s32.totalorder %s55, 1
        %s1258 = scalar_select %p1257, %s55, 1
        %s1259 = scalar_lea.vmem %s21, %s1258
        %p1260 = pneg %p612
        %p1261 = pneg %p609
        %p1262 = scmp.lt.s32.totalorder %s55, 1
        %s1263 = scalar_select %p1262, %s55, 1
        %s1264 = scalar_lea.vmem %s22, %s1263
        %p1265 = pneg %p638
        %p1266 = pneg %p635
        %p1267 = scmp.lt.s32.totalorder %s55, 1
        %s1268 = scalar_select %p1267, %s55, 1
        %s1269 = scalar_lea.vmem %s23, %s1268
        %p1270 = pneg %p664
        %p1271 = pneg %p661
        %s1272 = sand.u32 %s677, 1
        %s1273 = scalar_lea.sflag [#allocation12], %s1272
        %s1274 = sand.u32 %s677, 1
        %s1275 = smul.addr %s1274, 64
        %s1276 = scalar_lea.vmem [#allocation11], %s1275
        %p1277 = pneg %p690
        %p1278 = pneg %p687
        %p1279 = scmp.lt.s32.totalorder %s55, 1
        %s1280 = scalar_select %p1279, %s55, 1
        %s1281 = scalar_lea.vmem %s25, %s1280
        %p1282 = pneg %p716
        %p1283 = pneg %p713
        %p1284 = pneg %p742
        %p1285 = pneg %p739
        %s1286 = sand.u32 %s729, 1
        %s1287 = scalar_lea.sflag [#allocation4], %s1286
        %s1288 = sand.u32 %s729, 1
        %s1289 = smul.addr %s1288, 16
        %s1290 = scalar_lea.vmem [#allocation13], %s1289
        %p1291 = pneg %p768
        %p1292 = pneg %p765
        %p1293 = scmp.lt.s32.totalorder %s55, 1
        %s1294 = scalar_select %p1293, %s55, 1
        %s1295 = smul.addr %s1294, 2
        %s1296 = smul.addr %s1295, 8
        %s1297 = scalar_lea.vmem %s27, %s1296
        %p1298 = pneg %p794
        %p1299 = pneg %p791
        %p1300 = scmp.lt.s32.totalorder %s55, 1
        %s1301 = scalar_select %p1300, %s55, 1
        %s1302 = smul.addr %s1301, 2
        %s1303 = smul.addr %s1302, 8
        %s1304 = scalar_lea.vmem %s28, %s1303
        %p1305 = scmp.lt.s32.totalorder %s55, 1
        %s1306 = scalar_select %p1305, %s55, 1
        %s1307 = smul.addr %s1306, 2
        %s1308 = smul.addr %s1307, 8
        %s1309 = scalar_lea.vmem %s0, %s1308
        %p1310 = scmp.lt.s32.totalorder %s55, 1
        %s1311 = scalar_select %p1310, %s55, 1
        %s1312 = smul.addr %s1311, 2
        %s1313 = smul.addr %s1312, 8
        %s1314 = scalar_lea.vmem %s1, %s1313
        %p1315 = scmp.lt.s32.totalorder %s55, 1
        %s1316 = scalar_select %p1315, %s55, 1
        %s1317 = smul.addr %s1316, 48
        %s1318 = smul.addr %s1317, 4
        %s1319 = scalar_lea.vmem %s4, %s1318
        %p1320 = scmp.lt.s32.totalorder %s55, 1
        %s1321 = scalar_select %p1320, %s55, 1
        %s1322 = smul.addr %s1321, 3
        %s1323 = scalar_lea.vmem %s5, %s1322
        %p1324 = scmp.lt.s32.totalorder %s55, 1
        %s1325 = scalar_select %p1324, %s55, 1
        %s1326 = smul.addr %s1325, 16
        %s1327 = smul.addr %s1326, 4
        %s1328 = scalar_lea.vmem %s6, %s1327
        %p1329 = scmp.lt.s32.totalorder %s55, 1
        %s1330 = scalar_select %p1329, %s55, 1
        %s1331 = scalar_lea.vmem %s7, %s1330
        %p1332 = scmp.lt.s32.totalorder %s55, 1
        %s1333 = scalar_select %p1332, %s55, 1
        %s1334 = scalar_lea.vmem %s8, %s1333
        %p1335 = scmp.lt.s32.totalorder %s55, 1
        %s1336 = scalar_select %p1335, %s55, 1
        %s1337 = scalar_lea.vmem %s9, %s1336
        %p1338 = scmp.lt.s32.totalorder %s55, 1
        %s1339 = scalar_select %p1338, %s55, 1
        %s1340 = scalar_lea.vmem %s11, %s1339
        %p1341 = scmp.lt.s32.totalorder %s55, 1
        %s1342 = scalar_select %p1341, %s55, 1
        %s1343 = smul.addr %s1342, 2
        %s1344 = scalar_lea.vmem %s13, %s1343
        %p1345 = scmp.lt.s32.totalorder %s55, 1
        %s1346 = scalar_select %p1345, %s55, 1
        %s1347 = scalar_lea.vmem %s15, %s1346
        %p1348 = scmp.lt.s32.totalorder %s55, 1
        %s1349 = scalar_select %p1348, %s55, 1
        %s1350 = scalar_lea.vmem %s16, %s1349
        %p1351 = scmp.lt.s32.totalorder %s55, 1
        %s1352 = scalar_select %p1351, %s55, 1
        %s1353 = scalar_lea.vmem %s17, %s1352
        %p1354 = scmp.lt.s32.totalorder %s55, 1
        %s1355 = scalar_select %p1354, %s55, 1
        %s1356 = smul.addr %s1355, 2
        %s1357 = scalar_lea.vmem %s19, %s1356
        %p1358 = scmp.lt.s32.totalorder %s55, 1
        %s1359 = scalar_select %p1358, %s55, 1
        %s1360 = scalar_lea.vmem %s21, %s1359
        %p1361 = scmp.lt.s32.totalorder %s55, 1
        %s1362 = scalar_select %p1361, %s55, 1
        %s1363 = scalar_lea.vmem %s22, %s1362
        %p1364 = scmp.lt.s32.totalorder %s55, 1
        %s1365 = scalar_select %p1364, %s55, 1
        %s1366 = scalar_lea.vmem %s23, %s1365
        %p1367 = scmp.lt.s32.totalorder %s55, 1
        %s1368 = scalar_select %p1367, %s55, 1
        %s1369 = scalar_lea.vmem %s25, %s1368
        %p1370 = scmp.lt.s32.totalorder %s55, 1
        %s1371 = scalar_select %p1370, %s55, 1
        %s1372 = smul.addr %s1371, 2
        %s1373 = smul.addr %s1372, 8
        %s1374 = scalar_lea.vmem %s27, %s1373
        %p1375 = scmp.lt.s32.totalorder %s55, 1
        %s1376 = scalar_select %p1375, %s55, 1
        %s1377 = smul.addr %s1376, 2
        %s1378 = smul.addr %s1377, 8
        %s1379 = scalar_lea.vmem %s28, %s1378
        %v1380 = vld [vmem:[%s1319] sm:$0xff]
        %v1381 = vld [vmem:[%s1319 + $0x8] sm:$0xf]
        %v1382 = vld [vmem:[%s1319 + $0xc] sm:$0xff]
        %v1383 = vld [vmem:[%s1319 + $0x14] sm:$0xf]
        %v1384 = vld [vmem:[%s1319 + $0x18] sm:$0xff]
        %v1385 = vld [vmem:[%s1319 + $0x20] sm:$0xf]
        %v1386 = vld [vmem:[%s1319 + $0x24] sm:$0xff]
        %v1387 = vld [vmem:[%s1319 + $0x2c] sm:$0xf]
        %v1388 = vld [vmem:[%s1319 + $0x30] sm:$0xff]
        %v1389 = vld [vmem:[%s1319 + $0x38] sm:$0xf]
        %v1390 = vld [vmem:[%s1319 + $0x3c] sm:$0xff]
        %v1391 = vld [vmem:[%s1319 + $0x44] sm:$0xf]
        %v1392 = vld [vmem:[%s1319 + $0x48] sm:$0xff]
        %v1393 = vld [vmem:[%s1319 + $0x50] sm:$0xf]
        %v1394 = vld [vmem:[%s1319 + $0x54] sm:$0xff]
        %v1395 = vld [vmem:[%s1319 + $0x5c] sm:$0xf]
        %v1396 = vld [vmem:[%s1319 + $0x60] sm:$0xff]
        %v1397 = vld [vmem:[%s1319 + $0x68] sm:$0xf]
        %v1398 = vld [vmem:[%s1319 + $0x6c] sm:$0xff]
        %v1399 = vld [vmem:[%s1319 + $0x74] sm:$0xf]
        %v1400 = vld [vmem:[%s1319 + $0x78] sm:$0xff]
        %v1401 = vld [vmem:[%s1319 + $0x80] sm:$0xf]
        %v1402 = vld [vmem:[%s1319 + $0x84] sm:$0xff]
        %v1403 = vld [vmem:[%s1319 + $0x8c] sm:$0xf]
        %v1404 = vld [vmem:[%s1319 + $0x90] sm:$0xff]
        %v1405 = vld [vmem:[%s1319 + $0x98] sm:$0xf]
        %v1406 = vld [vmem:[%s1319 + $0x9c] sm:$0xff]
        %v1407 = vld [vmem:[%s1319 + $0xa4] sm:$0xf]
        %v1408 = vld [vmem:[%s1319 + $0xa8] sm:$0xff]
        %v1409 = vld [vmem:[%s1319 + $0xb0] sm:$0xf]
        %v1410 = vld [vmem:[%s1319 + $0xb4] sm:$0xff]
        %v1411 = vld [vmem:[%s1319 + $0xbc] sm:$0xf]
        %v1412 = vld [vmem:[%s1323] sm:$0x7]
        %v1413 = vld [vmem:[%s1328] sm:$0xf]
        %v1414 = vld [vmem:[%s1328 + $0x4] sm:$0xf]
        %v1415 = vld [vmem:[%s1328 + $0x8] sm:$0xf]
        %v1416 = vld [vmem:[%s1328 + $0xc] sm:$0xf]
        %v1417 = vld [vmem:[%s1328 + $0x10] sm:$0xf]
        %v1418 = vld [vmem:[%s1328 + $0x14] sm:$0xf]
        %v1419 = vld [vmem:[%s1328 + $0x18] sm:$0xf]
        %v1420 = vld [vmem:[%s1328 + $0x1c] sm:$0xf]
        %v1421 = vld [vmem:[%s1328 + $0x20] sm:$0xf]
        %v1422 = vld [vmem:[%s1328 + $0x24] sm:$0xf]
        %v1423 = vld [vmem:[%s1328 + $0x28] sm:$0xf]
        %v1424 = vld [vmem:[%s1328 + $0x2c] sm:$0xf]
        %v1425 = vld [vmem:[%s1328 + $0x30] sm:$0xf]
        %v1426 = vld [vmem:[%s1328 + $0x34] sm:$0xf]
        %v1427 = vld [vmem:[%s1328 + $0x38] sm:$0xf]
        %v1428 = vld [vmem:[%s1328 + $0x3c] sm:$0xf]
        %v1429 = vld [vmem:[%s1331] sm:$0x1]
        %v1430 = vld [vmem:[%s1334] sm:$0x1]
        %v1431 = vld [vmem:[%s1337] sm:$0x1]
        %v1432 = vld [vmem:[%s1081] sm:$0xf]
        %v1433 = vld [vmem:[%s1081 + $0x4] sm:$0xf]
        %v1434 = vld [vmem:[%s1081 + $0x8] sm:$0xf]
        %v1435 = vld [vmem:[%s1081 + $0xc] sm:$0xf]
        %v1436 = vld [vmem:[%s1081 + $0x10] sm:$0xf]
        %v1437 = vld [vmem:[%s1081 + $0x14] sm:$0xf]
        %v1438 = vld [vmem:[%s1081 + $0x18] sm:$0xf]
        %v1439 = vld [vmem:[%s1081 + $0x1c] sm:$0xf]
        %v1440 = vld [vmem:[%s1081 + $0x20] sm:$0xf]
        %v1441 = vld [vmem:[%s1081 + $0x24] sm:$0xf]
        %v1442 = vld [vmem:[%s1081 + $0x28] sm:$0xf]
        %v1443 = vld [vmem:[%s1081 + $0x2c] sm:$0xf]
        %v1444 = vld [vmem:[%s1081 + $0x30] sm:$0xf]
        %v1445 = vld [vmem:[%s1081 + $0x34] sm:$0xf]
        %v1446 = vld [vmem:[%s1081 + $0x38] sm:$0xf]
        %v1447 = vld [vmem:[%s1081 + $0x3c] sm:$0xf]
        %v1448 = vld [vmem:[%s1340] sm:$0x1]
        %v1449 = vld [vmem:[%s1091] sm:$0xff]
        %v1450 = vld [vmem:[%s1091 + $0x8] sm:$0xff]
        %v1451 = vld [vmem:[%s1091 + $0x10] sm:$0xff]
        %v1452 = vld [vmem:[%s1091 + $0x18] sm:$0xff]
        %v1453 = vld [vmem:[%s1091 + $0x20] sm:$0xff]
        %v1454 = vld [vmem:[%s1091 + $0x28] sm:$0xff]
        %v1455 = vld [vmem:[%s1091 + $0x30] sm:$0xff]
        %v1456 = vld [vmem:[%s1091 + $0x38] sm:$0xff]
        %v1457 = vld [vmem:[%s1091 + $0x40] sm:$0xff]
        %v1458 = vld [vmem:[%s1091 + $0x48] sm:$0xff]
        %v1459 = vld [vmem:[%s1091 + $0x50] sm:$0xff]
        %v1460 = vld [vmem:[%s1091 + $0x58] sm:$0xff]
        %v1461 = vld [vmem:[%s1091 + $0x60] sm:$0xff]
        %v1462 = vld [vmem:[%s1091 + $0x68] sm:$0xff]
        %v1463 = vld [vmem:[%s1091 + $0x70] sm:$0xff]
        %v1464 = vld [vmem:[%s1091 + $0x78] sm:$0xff]
        %v1465 = vld [vmem:[%s1344] sm:$0x3]
        %v1466 = vld [vmem:[%s1101] sm:$0xf]
        %v1467 = vld [vmem:[%s1101 + $0x4] sm:$0xf]
        %v1468 = vld [vmem:[%s1101 + $0x8] sm:$0xf]
        %v1469 = vld [vmem:[%s1101 + $0xc] sm:$0xf]
        %v1470 = vld [vmem:[%s1101 + $0x10] sm:$0xf]
        %v1471 = vld [vmem:[%s1101 + $0x14] sm:$0xf]
        %v1472 = vld [vmem:[%s1101 + $0x18] sm:$0xf]
        %v1473 = vld [vmem:[%s1101 + $0x1c] sm:$0xf]
        %v1474 = vld [vmem:[%s1101 + $0x20] sm:$0xf]
        %v1475 = vld [vmem:[%s1101 + $0x24] sm:$0xf]
        %v1476 = vld [vmem:[%s1101 + $0x28] sm:$0xf]
        %v1477 = vld [vmem:[%s1101 + $0x2c] sm:$0xf]
        %v1478 = vld [vmem:[%s1101 + $0x30] sm:$0xf]
        %v1479 = vld [vmem:[%s1101 + $0x34] sm:$0xf]
        %v1480 = vld [vmem:[%s1101 + $0x38] sm:$0xf]
        %v1481 = vld [vmem:[%s1101 + $0x3c] sm:$0xf]
        %v1482 = vld [vmem:[%s1347] sm:$0x1]
        %v1483 = vld [vmem:[%s1350] sm:$0x1]
        %v1484 = vld [vmem:[%s1353] sm:$0x1]
        %v1485 = vld [vmem:[%s1111] sm:$0xff]
        %v1486 = vld [vmem:[%s1111 + $0x8] sm:$0xff]
        %v1487 = vld [vmem:[%s1111 + $0x10] sm:$0xff]
        %v1488 = vld [vmem:[%s1111 + $0x18] sm:$0xff]
        %v1489 = vld [vmem:[%s1111 + $0x20] sm:$0xff]
        %v1490 = vld [vmem:[%s1111 + $0x28] sm:$0xff]
        %v1491 = vld [vmem:[%s1111 + $0x30] sm:$0xff]
        %v1492 = vld [vmem:[%s1111 + $0x38] sm:$0xff]
        %v1493 = vld [vmem:[%s1111 + $0x40] sm:$0xff]
        %v1494 = vld [vmem:[%s1111 + $0x48] sm:$0xff]
        %v1495 = vld [vmem:[%s1111 + $0x50] sm:$0xff]
        %v1496 = vld [vmem:[%s1111 + $0x58] sm:$0xff]
        %v1497 = vld [vmem:[%s1111 + $0x60] sm:$0xff]
        %v1498 = vld [vmem:[%s1111 + $0x68] sm:$0xff]
        %v1499 = vld [vmem:[%s1111 + $0x70] sm:$0xff]
        %v1500 = vld [vmem:[%s1111 + $0x78] sm:$0xff]
        %v1501 = vld [vmem:[%s1357] sm:$0x3]
        %v1502 = vld [vmem:[%s1121] sm:$0xf]
        %v1503 = vld [vmem:[%s1121 + $0x4] sm:$0xf]
        %v1504 = vld [vmem:[%s1121 + $0x8] sm:$0xf]
        %v1505 = vld [vmem:[%s1121 + $0xc] sm:$0xf]
        %v1506 = vld [vmem:[%s1121 + $0x10] sm:$0xf]
        %v1507 = vld [vmem:[%s1121 + $0x14] sm:$0xf]
        %v1508 = vld [vmem:[%s1121 + $0x18] sm:$0xf]
        %v1509 = vld [vmem:[%s1121 + $0x1c] sm:$0xf]
        %v1510 = vld [vmem:[%s1121 + $0x20] sm:$0xf]
        %v1511 = vld [vmem:[%s1121 + $0x24] sm:$0xf]
        %v1512 = vld [vmem:[%s1121 + $0x28] sm:$0xf]
        %v1513 = vld [vmem:[%s1121 + $0x2c] sm:$0xf]
        %v1514 = vld [vmem:[%s1121 + $0x30] sm:$0xf]
        %v1515 = vld [vmem:[%s1121 + $0x34] sm:$0xf]
        %v1516 = vld [vmem:[%s1121 + $0x38] sm:$0xf]
        %v1517 = vld [vmem:[%s1121 + $0x3c] sm:$0xf]
        %v1518 = vld [vmem:[%s1121 + $0x40] sm:$0xf]
        %v1519 = vld [vmem:[%s1121 + $0x44] sm:$0xf]
        %v1520 = vld [vmem:[%s1121 + $0x48] sm:$0xf]
        %v1521 = vld [vmem:[%s1121 + $0x4c] sm:$0xf]
        %v1522 = vld [vmem:[%s1121 + $0x50] sm:$0xf]
        %v1523 = vld [vmem:[%s1121 + $0x54] sm:$0xf]
        %v1524 = vld [vmem:[%s1121 + $0x58] sm:$0xf]
        %v1525 = vld [vmem:[%s1121 + $0x5c] sm:$0xf]
        %v1526 = vld [vmem:[%s1121 + $0x60] sm:$0xf]
        %v1527 = vld [vmem:[%s1121 + $0x64] sm:$0xf]
        %v1528 = vld [vmem:[%s1121 + $0x68] sm:$0xf]
        %v1529 = vld [vmem:[%s1121 + $0x6c] sm:$0xf]
        %v1530 = vld [vmem:[%s1121 + $0x70] sm:$0xf]
        %v1531 = vld [vmem:[%s1121 + $0x74] sm:$0xf]
        %v1532 = vld [vmem:[%s1121 + $0x78] sm:$0xf]
        %v1533 = vld [vmem:[%s1121 + $0x7c] sm:$0xf]
        %v1534 = vld [vmem:[%s1360] sm:$0x1]
        %v1535 = vld [vmem:[%s1363] sm:$0x1]
        %v1536 = vld [vmem:[%s1366] sm:$0x1]
        %v1537 = vld [vmem:[%s1309] sm:$0xff]
        %v1538 = vld [vmem:[%s1309 + $0x8] sm:$0xff]
        %v1539 = vld [vmem:[%s1314] sm:$0xff]
        %v1540 = vld [vmem:[%s1314 + $0x8] sm:$0xff]
        %v1541 = vld [vmem:[%s2] sm:$0x3]
        %v1542 = vld [vmem:[%s3] sm:$0x3]
        %v1543 = vpack.c.bf16 %v1538, %v1537
        %v1545 = vperm.slane %v1412, 0
        %v1546 = vperm.slane %v1412, 1
        %v1547 = vperm.slane %v1412, 2
        %v1583 = vunpack.c.l.b16 %v1380
        %v1584 = vunpack.c.h.b16 %v1380
        %v1585 = vunpack.c.l.b16 %v1381
        %v1586 = vunpack.c.l.b16 %v1382
        %v1587 = vunpack.c.h.b16 %v1382
        %v1588 = vunpack.c.l.b16 %v1383
        %v1589 = vunpack.c.l.b16 %v1384
        %v1590 = vunpack.c.h.b16 %v1384
        %v1591 = vunpack.c.l.b16 %v1385
        %v1592 = vunpack.c.l.b16 %v1386
        %v1593 = vunpack.c.h.b16 %v1386
        %v1594 = vunpack.c.l.b16 %v1387
        %v1595 = vunpack.c.l.b16 %v1388
        %v1596 = vunpack.c.h.b16 %v1388
        %v1597 = vunpack.c.l.b16 %v1389
        %v1598 = vunpack.c.l.b16 %v1390
        %v1599 = vunpack.c.h.b16 %v1390
        %v1600 = vunpack.c.l.b16 %v1391
        %v1601 = vunpack.c.l.b16 %v1392
        %v1602 = vunpack.c.h.b16 %v1392
        %v1603 = vunpack.c.l.b16 %v1393
        %v1604 = vunpack.c.l.b16 %v1394
        %v1605 = vunpack.c.h.b16 %v1394
        %v1606 = vunpack.c.l.b16 %v1395
        %v1607 = vunpack.c.l.b16 %v1396
        %v1608 = vunpack.c.h.b16 %v1396
        %v1609 = vunpack.c.l.b16 %v1397
        %v1610 = vunpack.c.l.b16 %v1398
        %v1611 = vunpack.c.h.b16 %v1398
        %v1612 = vunpack.c.l.b16 %v1399
        %v1613 = vunpack.c.l.b16 %v1400
        %v1614 = vunpack.c.h.b16 %v1400
        %v1615 = vunpack.c.l.b16 %v1401
        %v1616 = vunpack.c.l.b16 %v1402
        %v1617 = vunpack.c.h.b16 %v1402
        %v1618 = vunpack.c.l.b16 %v1403
        %v1619 = vunpack.c.l.b16 %v1404
        %v1620 = vunpack.c.h.b16 %v1404
        %v1621 = vunpack.c.l.b16 %v1405
        %v1622 = vunpack.c.l.b16 %v1406
        %v1623 = vunpack.c.h.b16 %v1406
        %v1624 = vunpack.c.l.b16 %v1407
        %v1625 = vunpack.c.l.b16 %v1408
        %v1626 = vunpack.c.h.b16 %v1408
        %v1627 = vunpack.c.l.b16 %v1409
        %v1628 = vunpack.c.l.b16 %v1410
        %v1629 = vunpack.c.h.b16 %v1410
        %v1630 = vunpack.c.l.b16 %v1411
        %v1631 = vpack.c.b16 %v1586, %v1583
        %v1632 = vpack.c.b16 %v1587, %v1584
        %v1633 = vpack.c.b16 %v1588, %v1585
        %v1634 = vpack.c.b16 %v1592, %v1589
        %v1635 = vpack.c.b16 %v1593, %v1590
        %v1636 = vpack.c.b16 %v1594, %v1591
        %v1637 = vpack.c.b16 %v1598, %v1595
        %v1638 = vpack.c.b16 %v1599, %v1596
        %v1639 = vpack.c.b16 %v1600, %v1597
        %v1640 = vpack.c.b16 %v1604, %v1601
        %v1641 = vpack.c.b16 %v1605, %v1602
        %v1642 = vpack.c.b16 %v1606, %v1603
        %v1643 = vpack.c.b16 %v1610, %v1607
        %v1644 = vpack.c.b16 %v1611, %v1608
        %v1645 = vpack.c.b16 %v1612, %v1609
        %v1646 = vpack.c.b16 %v1616, %v1613
        %v1647 = vpack.c.b16 %v1617, %v1614
        %v1648 = vpack.c.b16 %v1618, %v1615
        %v1649 = vpack.c.b16 %v1622, %v1619
        %v1650 = vpack.c.b16 %v1623, %v1620
        %v1651 = vpack.c.b16 %v1624, %v1621
        %v1652 = vpack.c.b16 %v1628, %v1625
        %v1653 = vpack.c.b16 %v1629, %v1626
        %v1654 = vpack.c.b16 %v1630, %v1627
        %1679 = vmatpush.bf16.msra.mxu0 %v1652
        %1680 = vmatpush.bf16.msra.mxu0 %v1649
        %1681 = vmatpush.bf16.msra.mxu0 %v1646
        %1682 = vmatpush.bf16.msra.mxu0 %v1643
        %1683 = vmatpush.bf16.msra.mxu0 %v1640
        %1684 = vmatpush.bf16.msra.mxu0 %v1637
        %1685 = vmatpush.bf16.msra.mxu0 %v1634
        %1686 = vmatpush.bf16.msra.mxu0 %v1631
        %1687 = vmatmul.bf16.gmra.mxu0 %v1543
        %v1688 = vpop.f32.mrf.mxu0
        %v1689 = vadd.f32 %v1545, %v1688
        %v1690 = vpop.f32.mrf.mxu0
        %v1691 = vadd.f32 %v1545, %v1690
        %1692 = vdwg.mxu0
        %1693 = vmatpush.bf16.msra.mxu0 %v1653
        %1694 = vmatpush.bf16.msra.mxu0 %v1650
        %1695 = vmatpush.bf16.msra.mxu0 %v1647
        %1696 = vmatpush.bf16.msra.mxu0 %v1644
        %1697 = vmatpush.bf16.msra.mxu0 %v1641
        %1698 = vmatpush.bf16.msra.mxu0 %v1638
        %1699 = vmatpush.bf16.msra.mxu0 %v1635
        %1700 = vmatpush.bf16.msra.mxu0 %v1632
        %1701 = vmatmul.bf16.gmra.mxu0 %v1543
        %v1702 = vpop.f32.mrf.mxu0
        %v1703 = vadd.f32 %v1546, %v1702
        %v1704 = vpop.f32.mrf.mxu0
        %v1705 = vadd.f32 %v1546, %v1704
        %1706 = vdwg.mxu0
        %1707 = vmatpush.bf16.msra.mxu0 %v1654
        %1708 = vmatpush.bf16.msra.mxu0 %v1651
        %1709 = vmatpush.bf16.msra.mxu0 %v1648
        %1710 = vmatpush.bf16.msra.mxu0 %v1645
        %1711 = vmatpush.bf16.msra.mxu0 %v1642
        %1712 = vmatpush.bf16.msra.mxu0 %v1639
        %1713 = vmatpush.bf16.msra.mxu0 %v1636
        %1714 = vmatpush.bf16.msra.mxu0 %v1633
        %1715 = vmatmul.bf16.gmra.mxu0 %v1543
        %v1716 = vpop.f32.mrf.mxu0
        %v1717 = vadd.f32 %v1547, %v1716
        %v1718 = vpop.f32.mrf.mxu0
        %v1719 = vadd.f32 %v1547, %v1718
        %1720 = vdwg.mxu0
        %v1721 = vlaneseq
        %v1722 = vshrl.u32 %v1721, 7
        %v1723 = vlaneseq
        %v1724 = vand.u32 %v1723, 127
        %vm1725 = vcmp.ge.s32.totalorder %v1722, %v1724
        %vm1726 = vcmp.gt.f32.partialorder %v1542, 0.5
        %v1727 = vsel %vm1726, 1, 0
        %v1728 = vperm.slane %v1727, 0
        %vm1729 = vcmp.eq.s32.totalorder %v1728, 1
        %vm1730 = vmand %vm1725, %vm1729
        %v1731 = vsel %vm1730, 0.0, -1e+10
        %vm1732 = vcmask 261120
        %v1734 = vsel %vm1732, %v1689, 0
        %v1737 = vsel %vm1732, %v1703, 0
        %1739 = vmatpush.xpose.msra.mxu0 0.0
        %1740 = vmatpush.xpose.msra.mxu0 0.0
        %1741 = vmatpush.xpose.msra.mxu0 0.0
        %1742 = vmatpush.xpose.msra.mxu0 0.0
        %1743 = vmatpush.xpose.msra.mxu0 0.0
        %1744 = vmatpush.xpose.msra.mxu0 0.0
        %1745 = vmatpush.xpose.msra.mxu0 0.0
        %1746 = vmatpush.xpose.msra.mxu0 0.0
        %1747 = vmatpush.xpose.msra.mxu0 0.0
        %1748 = vmatpush.xpose.msra.mxu0 0.0
        %1749 = vmatpush.xpose.msra.mxu0 0.0
        %1750 = vmatpush.xpose.msra.mxu0 0.0
        %1751 = vmatpush.xpose.msra.mxu0 0.0
        %1752 = vmatpush.xpose.msra.mxu0 0.0
        %1753 = vmatpush.xpose.msra.mxu0 0.0
        %1754 = vmatpush.xpose.msra.mxu0 %v1737
        %1755 = vmatmul.f32.gmra.mxu0 %v1734
        %v1756 = vpop.f32.mrf.mxu0
        %v1757 = vadd.f32 %v1731, %v1756
        %1758 = vdwg.mxu0
        %vm1759 = vcmask 64512
        %v1760 = vsel %vm1759, %v1757, -inf
        %1761 = vmax.xlane.f32.xlu0 %v1760
        %v1762 = vpop.xlane.xlu0 %1761
        %v1763 = vsub.f32 %v1757, %v1762
        %v1764 = vmul.f32 %v1763, 1.442695
        %v1765 = vpow.pop %v1764
        %v1766 = vsel %vm1759, %v1765, 0.0
        %1767 = vadd.xlane.f32.xlu0 %v1766
        %v1768 = vpop.xlane.xlu0 %1767
        %v1769 = vrcp.pop %v1768
        %v1770 = vmul.f32 %v1765, %v1769
        %v1772 = vsel %vm1759, %v1770, 0
        %1774 = vmatpush.msra.mxu0 0.0
        %1775 = vmatpush.msra.mxu0 0.0
        %1776 = vmatpush.msra.mxu0 0.0
        %1777 = vmatpush.msra.mxu0 0.0
        %1778 = vmatpush.msra.mxu0 0.0
        %1779 = vmatpush.msra.mxu0 0.0
        %1780 = vmatpush.msra.mxu0 0.0
        %1781 = vmatpush.msra.mxu0 0.0
        %1782 = vmatpush.msra.mxu0 0.0
        %1783 = vmatpush.msra.mxu0 0.0
        %1784 = vmatpush.msra.mxu0 0.0
        %1785 = vmatpush.msra.mxu0 0.0
        %1786 = vmatpush.msra.mxu0 0.0
        %1787 = vmatpush.msra.mxu0 0.0
        %1788 = vmatpush.msra.mxu0 0.0
        %1789 = vmatpush.msra.mxu0 %v1717
        %1790 = vmatmul.f32.gmra.mxu0 %v1772
        %v1791 = vpop.f32.mrf.mxu0
        %v1792 = vadd.f32 0.0, %v1791
        %1793 = vdwg.mxu0
        %1794 = vrot.lane.b32.xlu0 %v1689, 96
        %v1795 = vpop.permute.xlu0 %1794
        %1796 = vrot.lane.b32.xlu0 %v1703, 96
        %v1797 = vpop.permute.xlu0 %1796
        %v1798 = vsel %vm1732, %v1795, 0
        %v1800 = vsel %vm1732, %v1797, 0
        %1802 = vmatpush.xpose.msra.mxu0 0.0
        %1803 = vmatpush.xpose.msra.mxu0 0.0
        %1804 = vmatpush.xpose.msra.mxu0 0.0
        %1805 = vmatpush.xpose.msra.mxu0 0.0
        %1806 = vmatpush.xpose.msra.mxu0 0.0
        %1807 = vmatpush.xpose.msra.mxu0 0.0
        %1808 = vmatpush.xpose.msra.mxu0 0.0
        %1809 = vmatpush.xpose.msra.mxu0 0.0
        %1810 = vmatpush.xpose.msra.mxu0 0.0
        %1811 = vmatpush.xpose.msra.mxu0 0.0
        %1812 = vmatpush.xpose.msra.mxu0 0.0
        %1813 = vmatpush.xpose.msra.mxu0 0.0
        %1814 = vmatpush.xpose.msra.mxu0 0.0
        %1815 = vmatpush.xpose.msra.mxu0 0.0
        %1816 = vmatpush.xpose.msra.mxu0 0.0
        %1817 = vmatpush.xpose.msra.mxu0 %v1800
        %1818 = vmatmul.f32.gmra.mxu0 %v1798
        %v1819 = vpop.f32.mrf.mxu0
        %v1820 = vadd.f32 %v1731, %v1819
        %1821 = vdwg.mxu0
        %v1822 = vsel %vm1759, %v1820, -inf
        %1823 = vmax.xlane.f32.xlu0 %v1822
        %v1824 = vpop.xlane.xlu0 %1823
        %v1825 = vsub.f32 %v1820, %v1824
        %v1826 = vmul.f32 %v1825, 1.442695
        %v1827 = vpow.pop %v1826
        %v1828 = vsel %vm1759, %v1827, 0.0
        %1829 = vadd.xlane.f32.xlu0 %v1828
        %v1830 = vpop.xlane.xlu0 %1829
        %v1831 = vrcp.pop %v1830
        %v1832 = vmul.f32 %v1827, %v1831
        %1834 = vrot.lane.b32.xlu0 %v1717, 96
        %v1835 = vpop.permute.xlu0 %1834
        %v1838 = vsel %vm1759, %v1832, 0
        %1840 = vmatpush.msra.mxu0 0.0
        %1841 = vmatpush.msra.mxu0 0.0
        %1842 = vmatpush.msra.mxu0 0.0
        %1843 = vmatpush.msra.mxu0 0.0
        %1844 = vmatpush.msra.mxu0 0.0
        %1845 = vmatpush.msra.mxu0 0.0
        %1846 = vmatpush.msra.mxu0 0.0
        %1847 = vmatpush.msra.mxu0 0.0
        %1848 = vmatpush.msra.mxu0 0.0
        %1849 = vmatpush.msra.mxu0 0.0
        %1850 = vmatpush.msra.mxu0 0.0
        %1851 = vmatpush.msra.mxu0 0.0
        %1852 = vmatpush.msra.mxu0 0.0
        %1853 = vmatpush.msra.mxu0 0.0
        %1854 = vmatpush.msra.mxu0 0.0
        %1855 = vmatpush.msra.mxu0 %v1835
        %1856 = vmatmul.f32.gmra.mxu0 %v1838
        %v1857 = vpop.f32.mrf.mxu0
        %v1858 = vadd.f32 0.0, %v1857
        %1859 = vdwg.mxu0
        %1860 = vrot.lane.b32.xlu0 %v1689, 64
        %v1861 = vpop.permute.xlu0 %1860
        %1862 = vrot.lane.b32.xlu0 %v1703, 64
        %v1863 = vpop.permute.xlu0 %1862
        %v1864 = vsel %vm1732, %v1861, 0
        %v1866 = vsel %vm1732, %v1863, 0
        %1868 = vmatpush.xpose.msra.mxu0 0.0
        %1869 = vmatpush.xpose.msra.mxu0 0.0
        %1870 = vmatpush.xpose.msra.mxu0 0.0
        %1871 = vmatpush.xpose.msra.mxu0 0.0
        %1872 = vmatpush.xpose.msra.mxu0 0.0
        %1873 = vmatpush.xpose.msra.mxu0 0.0
        %1874 = vmatpush.xpose.msra.mxu0 0.0
        %1875 = vmatpush.xpose.msra.mxu0 0.0
        %1876 = vmatpush.xpose.msra.mxu0 0.0
        %1877 = vmatpush.xpose.msra.mxu0 0.0
        %1878 = vmatpush.xpose.msra.mxu0 0.0
        %1879 = vmatpush.xpose.msra.mxu0 0.0
        %1880 = vmatpush.xpose.msra.mxu0 0.0
        %1881 = vmatpush.xpose.msra.mxu0 0.0
        %1882 = vmatpush.xpose.msra.mxu0 0.0
        %1883 = vmatpush.xpose.msra.mxu0 %v1866
        %1884 = vmatmul.f32.gmra.mxu0 %v1864
        %v1885 = vpop.f32.mrf.mxu0
        %v1886 = vadd.f32 %v1731, %v1885
        %1887 = vdwg.mxu0
        %v1888 = vsel %vm1759, %v1886, -inf
        %1889 = vmax.xlane.f32.xlu0 %v1888
        %v1890 = vpop.xlane.xlu0 %1889
        %v1891 = vsub.f32 %v1886, %v1890
        %v1892 = vmul.f32 %v1891, 1.442695
        %v1893 = vpow.pop %v1892
        %v1894 = vsel %vm1759, %v1893, 0.0
        %1895 = vadd.xlane.f32.xlu0 %v1894
        %v1896 = vpop.xlane.xlu0 %1895
        %v1897 = vrcp.pop %v1896
        %v1898 = vmul.f32 %v1893, %v1897
        %1899 = vrot.lane.b32.xlu0 %v1717, 64
        %v1900 = vpop.permute.xlu0 %1899
        %v1903 = vsel %vm1759, %v1898, 0
        %1905 = vmatpush.msra.mxu0 0.0
        %1906 = vmatpush.msra.mxu0 0.0
        %1907 = vmatpush.msra.mxu0 0.0
        %1908 = vmatpush.msra.mxu0 0.0
        %1909 = vmatpush.msra.mxu0 0.0
        %1910 = vmatpush.msra.mxu0 0.0
        %1911 = vmatpush.msra.mxu0 0.0
        %1912 = vmatpush.msra.mxu0 0.0
        %1913 = vmatpush.msra.mxu0 0.0
        %1914 = vmatpush.msra.mxu0 0.0
        %1915 = vmatpush.msra.mxu0 0.0
        %1916 = vmatpush.msra.mxu0 0.0
        %1917 = vmatpush.msra.mxu0 0.0
        %1918 = vmatpush.msra.mxu0 0.0
        %1919 = vmatpush.msra.mxu0 0.0
        %1920 = vmatpush.msra.mxu0 %v1900
        %1921 = vmatmul.f32.gmra.mxu0 %v1903
        %v1922 = vpop.f32.mrf.mxu0
        %v1923 = vadd.f32 0.0, %v1922
        %1924 = vdwg.mxu0
        %1925 = vrot.lane.b32.xlu0 %v1689, 32
        %v1926 = vpop.permute.xlu0 %1925
        %1927 = vrot.lane.b32.xlu0 %v1703, 32
        %v1928 = vpop.permute.xlu0 %1927
        %v1929 = vsel %vm1732, %v1926, 0
        %v1931 = vsel %vm1732, %v1928, 0
        %1933 = vmatpush.xpose.msra.mxu0 0.0
        %1934 = vmatpush.xpose.msra.mxu0 0.0
        %1935 = vmatpush.xpose.msra.mxu0 0.0
        %1936 = vmatpush.xpose.msra.mxu0 0.0
        %1937 = vmatpush.xpose.msra.mxu0 0.0
        %1938 = vmatpush.xpose.msra.mxu0 0.0
        %1939 = vmatpush.xpose.msra.mxu0 0.0
        %1940 = vmatpush.xpose.msra.mxu0 0.0
        %1941 = vmatpush.xpose.msra.mxu0 0.0
        %1942 = vmatpush.xpose.msra.mxu0 0.0
        %1943 = vmatpush.xpose.msra.mxu0 0.0
        %1944 = vmatpush.xpose.msra.mxu0 0.0
        %1945 = vmatpush.xpose.msra.mxu0 0.0
        %1946 = vmatpush.xpose.msra.mxu0 0.0
        %1947 = vmatpush.xpose.msra.mxu0 0.0
        %1948 = vmatpush.xpose.msra.mxu0 %v1931
        %1949 = vmatmul.f32.gmra.mxu0 %v1929
        %v1950 = vpop.f32.mrf.mxu0
        %v1951 = vadd.f32 %v1731, %v1950
        %1952 = vdwg.mxu0
        %v1953 = vsel %vm1759, %v1951, -inf
        %1954 = vmax.xlane.f32.xlu0 %v1953
        %v1955 = vpop.xlane.xlu0 %1954
        %v1956 = vsub.f32 %v1951, %v1955
        %v1957 = vmul.f32 %v1956, 1.442695
        %v1958 = vpow.pop %v1957
        %v1959 = vsel %vm1759, %v1958, 0.0
        %1960 = vadd.xlane.f32.xlu0 %v1959
        %v1961 = vpop.xlane.xlu0 %1960
        %v1962 = vrcp.pop %v1961
        %v1963 = vmul.f32 %v1958, %v1962
        %1964 = vrot.lane.b32.xlu0 %v1717, 32
        %v1965 = vpop.permute.xlu0 %1964
        %v1968 = vsel %vm1759, %v1963, 0
        %1970 = vmatpush.msra.mxu0 0.0
        %1971 = vmatpush.msra.mxu0 0.0
        %1972 = vmatpush.msra.mxu0 0.0
        %1973 = vmatpush.msra.mxu0 0.0
        %1974 = vmatpush.msra.mxu0 0.0
        %1975 = vmatpush.msra.mxu0 0.0
        %1976 = vmatpush.msra.mxu0 0.0
        %1977 = vmatpush.msra.mxu0 0.0
        %1978 = vmatpush.msra.mxu0 0.0
        %1979 = vmatpush.msra.mxu0 0.0
        %1980 = vmatpush.msra.mxu0 0.0
        %1981 = vmatpush.msra.mxu0 0.0
        %1982 = vmatpush.msra.mxu0 0.0
        %1983 = vmatpush.msra.mxu0 0.0
        %1984 = vmatpush.msra.mxu0 0.0
        %1985 = vmatpush.msra.mxu0 %v1965
        %1986 = vmatmul.f32.gmra.mxu0 %v1968
        %v1987 = vpop.f32.mrf.mxu0
        %v1988 = vadd.f32 0.0, %v1987
        %1989 = vdwg.mxu0
        %1991 = vrot.lane.b32.xlu0 %v1858, 32
        %v1992 = vpop.permute.xlu0 %1991
        %1995 = vrot.lane.b32.xlu0 %v1923, 64
        %v1996 = vpop.permute.xlu0 %1995
        %1999 = vrot.lane.b32.xlu0 %v1988, 96
        %v2000 = vpop.permute.xlu0 %1999
        %v2002 = vsel %vm1732, %v1792, %v1992
        %vm2003 = vcmask 523264
        %v2004 = vsel %vm2003, %v2002, %v1996
        %vm2005 = vcmask 785408
        %v2006 = vsel %vm2005, %v2004, %v2000
        %v2007 = vperm.slane %v1727, 1
        %vm2008 = vcmp.eq.s32.totalorder %v2007, 1
        %vm2009 = vmand %vm1725, %vm2008
        %v2010 = vsel %vm2009, 0.0, -1e+10
        %v2012 = vsel %vm1732, %v1691, 0
        %v2015 = vsel %vm1732, %v1705, 0
        %2017 = vmatpush.xpose.msra.mxu0 0.0
        %2018 = vmatpush.xpose.msra.mxu0 0.0
        %2019 = vmatpush.xpose.msra.mxu0 0.0
        %2020 = vmatpush.xpose.msra.mxu0 0.0
        %2021 = vmatpush.xpose.msra.mxu0 0.0
        %2022 = vmatpush.xpose.msra.mxu0 0.0
        %2023 = vmatpush.xpose.msra.mxu0 0.0
        %2024 = vmatpush.xpose.msra.mxu0 0.0
        %2025 = vmatpush.xpose.msra.mxu0 0.0
        %2026 = vmatpush.xpose.msra.mxu0 0.0
        %2027 = vmatpush.xpose.msra.mxu0 0.0
        %2028 = vmatpush.xpose.msra.mxu0 0.0
        %2029 = vmatpush.xpose.msra.mxu0 0.0
        %2030 = vmatpush.xpose.msra.mxu0 0.0
        %2031 = vmatpush.xpose.msra.mxu0 0.0
        %2032 = vmatpush.xpose.msra.mxu0 %v2015
        %2033 = vmatmul.f32.gmra.mxu0 %v2012
        %v2034 = vpop.f32.mrf.mxu0
        %v2035 = vadd.f32 %v2010, %v2034
        %2036 = vdwg.mxu0
        %v2037 = vsel %vm1759, %v2035, -inf
        %2038 = vmax.xlane.f32.xlu0 %v2037
        %v2039 = vpop.xlane.xlu0 %2038
        %v2040 = vsub.f32 %v2035, %v2039
        %v2041 = vmul.f32 %v2040, 1.442695
        %v2042 = vpow.pop %v2041
        %v2043 = vsel %vm1759, %v2042, 0.0
        %2044 = vadd.xlane.f32.xlu0 %v2043
        %v2045 = vpop.xlane.xlu0 %2044
        %v2046 = vrcp.pop %v2045
        %v2047 = vmul.f32 %v2042, %v2046
        %v2049 = vsel %vm1759, %v2047, 0
        %2051 = vmatpush.msra.mxu0 0.0
        %2052 = vmatpush.msra.mxu0 0.0
        %2053 = vmatpush.msra.mxu0 0.0
        %2054 = vmatpush.msra.mxu0 0.0
        %2055 = vmatpush.msra.mxu0 0.0
        %2056 = vmatpush.msra.mxu0 0.0
        %2057 = vmatpush.msra.mxu0 0.0
        %2058 = vmatpush.msra.mxu0 0.0
        %2059 = vmatpush.msra.mxu0 0.0
        %2060 = vmatpush.msra.mxu0 0.0
        %2061 = vmatpush.msra.mxu0 0.0
        %2062 = vmatpush.msra.mxu0 0.0
        %2063 = vmatpush.msra.mxu0 0.0
        %2064 = vmatpush.msra.mxu0 0.0
        %2065 = vmatpush.msra.mxu0 0.0
        %2066 = vmatpush.msra.mxu0 %v1719
        %2067 = vmatmul.f32.gmra.mxu0 %v2049
        %v2068 = vpop.f32.mrf.mxu0
        %v2069 = vadd.f32 0.0, %v2068
        %2070 = vdwg.mxu0
        %2071 = vrot.lane.b32.xlu0 %v1691, 96
        %v2072 = vpop.permute.xlu0 %2071
        %2073 = vrot.lane.b32.xlu0 %v1705, 96
        %v2074 = vpop.permute.xlu0 %2073
        %v2075 = vsel %vm1732, %v2072, 0
        %v2077 = vsel %vm1732, %v2074, 0
        %2079 = vmatpush.xpose.msra.mxu0 0.0
        %2080 = vmatpush.xpose.msra.mxu0 0.0
        %2081 = vmatpush.xpose.msra.mxu0 0.0
        %2082 = vmatpush.xpose.msra.mxu0 0.0
        %2083 = vmatpush.xpose.msra.mxu0 0.0
        %2084 = vmatpush.xpose.msra.mxu0 0.0
        %2085 = vmatpush.xpose.msra.mxu0 0.0
        %2086 = vmatpush.xpose.msra.mxu0 0.0
        %2087 = vmatpush.xpose.msra.mxu0 0.0
        %2088 = vmatpush.xpose.msra.mxu0 0.0
        %2089 = vmatpush.xpose.msra.mxu0 0.0
        %2090 = vmatpush.xpose.msra.mxu0 0.0
        %2091 = vmatpush.xpose.msra.mxu0 0.0
        %2092 = vmatpush.xpose.msra.mxu0 0.0
        %2093 = vmatpush.xpose.msra.mxu0 0.0
        %2094 = vmatpush.xpose.msra.mxu0 %v2077
        %2095 = vmatmul.f32.gmra.mxu0 %v2075
        %v2096 = vpop.f32.mrf.mxu0
        %v2097 = vadd.f32 %v2010, %v2096
        %2098 = vdwg.mxu0
        %v2099 = vsel %vm1759, %v2097, -inf
        %2100 = vmax.xlane.f32.xlu0 %v2099
        %v2101 = vpop.xlane.xlu0 %2100
        %v2102 = vsub.f32 %v2097, %v2101
        %v2103 = vmul.f32 %v2102, 1.442695
        %v2104 = vpow.pop %v2103
        %v2105 = vsel %vm1759, %v2104, 0.0
        %2106 = vadd.xlane.f32.xlu0 %v2105
        %v2107 = vpop.xlane.xlu0 %2106
        %v2108 = vrcp.pop %v2107
        %v2109 = vmul.f32 %v2104, %v2108
        %2111 = vrot.lane.b32.xlu0 %v1719, 96
        %v2112 = vpop.permute.xlu0 %2111
        %v2115 = vsel %vm1759, %v2109, 0
        %2117 = vmatpush.msra.mxu0 0.0
        %2118 = vmatpush.msra.mxu0 0.0
        %2119 = vmatpush.msra.mxu0 0.0
        %2120 = vmatpush.msra.mxu0 0.0
        %2121 = vmatpush.msra.mxu0 0.0
        %2122 = vmatpush.msra.mxu0 0.0
        %2123 = vmatpush.msra.mxu0 0.0
        %2124 = vmatpush.msra.mxu0 0.0
        %2125 = vmatpush.msra.mxu0 0.0
        %2126 = vmatpush.msra.mxu0 0.0
        %2127 = vmatpush.msra.mxu0 0.0
        %2128 = vmatpush.msra.mxu0 0.0
        %2129 = vmatpush.msra.mxu0 0.0
        %2130 = vmatpush.msra.mxu0 0.0
        %2131 = vmatpush.msra.mxu0 0.0
        %2132 = vmatpush.msra.mxu0 %v2112
        %2133 = vmatmul.f32.gmra.mxu0 %v2115
        %v2134 = vpop.f32.mrf.mxu0
        %v2135 = vadd.f32 0.0, %v2134
        %2136 = vdwg.mxu0
        %2137 = vrot.lane.b32.xlu0 %v1691, 64
        %v2138 = vpop.permute.xlu0 %2137
        %2139 = vrot.lane.b32.xlu0 %v1705, 64
        %v2140 = vpop.permute.xlu0 %2139
        %v2141 = vsel %vm1732, %v2138, 0
        %v2143 = vsel %vm1732, %v2140, 0
        %2145 = vmatpush.xpose.msra.mxu0 0.0
        %2146 = vmatpush.xpose.msra.mxu0 0.0
        %2147 = vmatpush.xpose.msra.mxu0 0.0
        %2148 = vmatpush.xpose.msra.mxu0 0.0
        %2149 = vmatpush.xpose.msra.mxu0 0.0
        %2150 = vmatpush.xpose.msra.mxu0 0.0
        %2151 = vmatpush.xpose.msra.mxu0 0.0
        %2152 = vmatpush.xpose.msra.mxu0 0.0
        %2153 = vmatpush.xpose.msra.mxu0 0.0
        %2154 = vmatpush.xpose.msra.mxu0 0.0
        %2155 = vmatpush.xpose.msra.mxu0 0.0
        %2156 = vmatpush.xpose.msra.mxu0 0.0
        %2157 = vmatpush.xpose.msra.mxu0 0.0
        %2158 = vmatpush.xpose.msra.mxu0 0.0
        %2159 = vmatpush.xpose.msra.mxu0 0.0
        %2160 = vmatpush.xpose.msra.mxu0 %v2143
        %2161 = vmatmul.f32.gmra.mxu0 %v2141
        %v2162 = vpop.f32.mrf.mxu0
        %v2163 = vadd.f32 %v2010, %v2162
        %2164 = vdwg.mxu0
        %v2165 = vsel %vm1759, %v2163, -inf
        %2166 = vmax.xlane.f32.xlu0 %v2165
        %v2167 = vpop.xlane.xlu0 %2166
        %v2168 = vsub.f32 %v2163, %v2167
        %v2169 = vmul.f32 %v2168, 1.442695
        %v2170 = vpow.pop %v2169
        %v2171 = vsel %vm1759, %v2170, 0.0
        %2172 = vadd.xlane.f32.xlu0 %v2171
        %v2173 = vpop.xlane.xlu0 %2172
        %v2174 = vrcp.pop %v2173
        %v2175 = vmul.f32 %v2170, %v2174
        %2176 = vrot.lane.b32.xlu0 %v1719, 64
        %v2177 = vpop.permute.xlu0 %2176
        %v2180 = vsel %vm1759, %v2175, 0
        %2182 = vmatpush.msra.mxu0 0.0
        %2183 = vmatpush.msra.mxu0 0.0
        %2184 = vmatpush.msra.mxu0 0.0
        %2185 = vmatpush.msra.mxu0 0.0
        %2186 = vmatpush.msra.mxu0 0.0
        %2187 = vmatpush.msra.mxu0 0.0
        %2188 = vmatpush.msra.mxu0 0.0
        %2189 = vmatpush.msra.mxu0 0.0
        %2190 = vmatpush.msra.mxu0 0.0
        %2191 = vmatpush.msra.mxu0 0.0
        %2192 = vmatpush.msra.mxu0 0.0
        %2193 = vmatpush.msra.mxu0 0.0
        %2194 = vmatpush.msra.mxu0 0.0
        %2195 = vmatpush.msra.mxu0 0.0
        %2196 = vmatpush.msra.mxu0 0.0
        %2197 = vmatpush.msra.mxu0 %v2177
        %2198 = vmatmul.f32.gmra.mxu0 %v2180
        %v2199 = vpop.f32.mrf.mxu0
        %v2200 = vadd.f32 0.0, %v2199
        %2201 = vdwg.mxu0
        %2202 = vrot.lane.b32.xlu0 %v1691, 32
        %v2203 = vpop.permute.xlu0 %2202
        %2204 = vrot.lane.b32.xlu0 %v1705, 32
        %v2205 = vpop.permute.xlu0 %2204
        %v2206 = vsel %vm1732, %v2203, 0
        %v2208 = vsel %vm1732, %v2205, 0
        %2210 = vmatpush.xpose.msra.mxu0 0.0
        %2211 = vmatpush.xpose.msra.mxu0 0.0
        %2212 = vmatpush.xpose.msra.mxu0 0.0
        %2213 = vmatpush.xpose.msra.mxu0 0.0
        %2214 = vmatpush.xpose.msra.mxu0 0.0
        %2215 = vmatpush.xpose.msra.mxu0 0.0
        %2216 = vmatpush.xpose.msra.mxu0 0.0
        %2217 = vmatpush.xpose.msra.mxu0 0.0
        %2218 = vmatpush.xpose.msra.mxu0 0.0
        %2219 = vmatpush.xpose.msra.mxu0 0.0
        %2220 = vmatpush.xpose.msra.mxu0 0.0
        %2221 = vmatpush.xpose.msra.mxu0 0.0
        %2222 = vmatpush.xpose.msra.mxu0 0.0
        %2223 = vmatpush.xpose.msra.mxu0 0.0
        %2224 = vmatpush.xpose.msra.mxu0 0.0
        %2225 = vmatpush.xpose.msra.mxu0 %v2208
        %2226 = vmatmul.f32.gmra.mxu0 %v2206
        %v2227 = vpop.f32.mrf.mxu0
        %v2228 = vadd.f32 %v2010, %v2227
        %2229 = vdwg.mxu0
        %v2230 = vsel %vm1759, %v2228, -inf
        %2231 = vmax.xlane.f32.xlu0 %v2230
        %v2232 = vpop.xlane.xlu0 %2231
        %v2233 = vsub.f32 %v2228, %v2232
        %v2234 = vmul.f32 %v2233, 1.442695
        %v2235 = vpow.pop %v2234
        %v2236 = vsel %vm1759, %v2235, 0.0
        %2237 = vadd.xlane.f32.xlu0 %v2236
        %v2238 = vpop.xlane.xlu0 %2237
        %v2239 = vrcp.pop %v2238
        %v2240 = vmul.f32 %v2235, %v2239
        %2241 = vrot.lane.b32.xlu0 %v1719, 32
        %v2242 = vpop.permute.xlu0 %2241
        %v2245 = vsel %vm1759, %v2240, 0
        %2247 = vmatpush.msra.mxu0 0.0
        %2248 = vmatpush.msra.mxu0 0.0
        %2249 = vmatpush.msra.mxu0 0.0
        %2250 = vmatpush.msra.mxu0 0.0
        %2251 = vmatpush.msra.mxu0 0.0
        %2252 = vmatpush.msra.mxu0 0.0
        %2253 = vmatpush.msra.mxu0 0.0
        %2254 = vmatpush.msra.mxu0 0.0
        %2255 = vmatpush.msra.mxu0 0.0
        %2256 = vmatpush.msra.mxu0 0.0
        %2257 = vmatpush.msra.mxu0 0.0
        %2258 = vmatpush.msra.mxu0 0.0
        %2259 = vmatpush.msra.mxu0 0.0
        %2260 = vmatpush.msra.mxu0 0.0
        %2261 = vmatpush.msra.mxu0 0.0
        %2262 = vmatpush.msra.mxu0 %v2242
        %2263 = vmatmul.f32.gmra.mxu0 %v2245
        %v2264 = vpop.f32.mrf.mxu0
        %v2265 = vadd.f32 0.0, %v2264
        %2266 = vdwg.mxu0
        %2268 = vrot.lane.b32.xlu0 %v2135, 32
        %v2269 = vpop.permute.xlu0 %2268
        %2272 = vrot.lane.b32.xlu0 %v2200, 64
        %v2273 = vpop.permute.xlu0 %2272
        %2276 = vrot.lane.b32.xlu0 %v2265, 96
        %v2277 = vpop.permute.xlu0 %2276
        %v2279 = vsel %vm1732, %v2069, %v2269
        %v2280 = vsel %vm2003, %v2279, %v2273
        %v2281 = vsel %vm2005, %v2280, %v2277
        %v2282 = vpack.c.bf16 %v2281, %v2006
        %v2299 = vunpack.c.l.b16 %v1413
        %v2300 = vunpack.c.l.b16 %v1414
        %v2301 = vunpack.c.l.b16 %v1415
        %v2302 = vunpack.c.l.b16 %v1416
        %v2303 = vunpack.c.l.b16 %v1417
        %v2304 = vunpack.c.l.b16 %v1418
        %v2305 = vunpack.c.l.b16 %v1419
        %v2306 = vunpack.c.l.b16 %v1420
        %v2307 = vunpack.c.l.b16 %v1421
        %v2308 = vunpack.c.l.b16 %v1422
        %v2309 = vunpack.c.l.b16 %v1423
        %v2310 = vunpack.c.l.b16 %v1424
        %v2311 = vunpack.c.l.b16 %v1425
        %v2312 = vunpack.c.l.b16 %v1426
        %v2313 = vunpack.c.l.b16 %v1427
        %v2314 = vunpack.c.l.b16 %v1428
        %v2315 = vpack.c.b16 %v2300, %v2299
        %v2316 = vpack.c.b16 %v2302, %v2301
        %v2317 = vpack.c.b16 %v2304, %v2303
        %v2318 = vpack.c.b16 %v2306, %v2305
        %v2319 = vpack.c.b16 %v2308, %v2307
        %v2320 = vpack.c.b16 %v2310, %v2309
        %v2321 = vpack.c.b16 %v2312, %v2311
        %v2322 = vpack.c.b16 %v2314, %v2313
        %2331 = vmatpush.bf16.msra.mxu0 %v2322
        %2332 = vmatpush.bf16.msra.mxu0 %v2321
        %2333 = vmatpush.bf16.msra.mxu0 %v2320
        %2334 = vmatpush.bf16.msra.mxu0 %v2319
        %2335 = vmatpush.bf16.msra.mxu0 %v2318
        %2336 = vmatpush.bf16.msra.mxu0 %v2317
        %2337 = vmatpush.bf16.msra.mxu0 %v2316
        %2338 = vmatpush.bf16.msra.mxu0 %v2315
        %2339 = vmatmul.bf16.gmra.mxu0 %v2282
        %v2340 = vpop.f32.mrf.mxu0
        %v2341 = vadd.f32 0.0, %v2340
        %v2342 = vpop.f32.mrf.mxu0
        %v2343 = vadd.f32 0.0, %v2342
        %2344 = vdwg.mxu0
        %v2345 = vadd.f32 %v1537, %v2341
        %v2346 = vadd.f32 %v1538, %v2343
        %v2348 = vperm.slane %v1429, 0
        %v2350 = vadd.f32 %v2345, %v2348
        %v2351 = vadd.f32 %v2346, %v2348
        %2352 = vadd.xlane.f32.xlu0 %v2350
        %v2353 = vpop.xlane.xlu0 %2352
        %2354 = vadd.xlane.f32.xlu0 %v2351
        %v2355 = vpop.xlane.xlu0 %2354
        %v2356 = vrcp.pop 128.0
        %v2357 = vmul.f32 128.0, %v2356
        %v2358 = vsub.f32 1.0, %v2357
        %v2359 = vmul.f32 %v2356, %v2358
        %v2360 = vadd.f32 %v2356, %v2359
        %vm2361 = vweird.f32 %v2356
        %v2362 = vsel %vm2361, %v2356, %v2360
        %v2363 = vmul.f32 %v2353, %v2362
        %v2364 = vmul.f32 %v2355, %v2362
        %v2365 = vsub.f32 %v2350, %v2363
        %v2366 = vsub.f32 %v2351, %v2364
        %v2367 = vmul.f32 %v2365, %v2365
        %v2368 = vmul.f32 %v2366, %v2366
        %2369 = vadd.xlane.f32.xlu0 %v2367
        %v2370 = vpop.xlane.xlu0 %2369
        %2371 = vadd.xlane.f32.xlu0 %v2368
        %v2372 = vpop.xlane.xlu0 %2371
        %v2373 = vmul.f32 %v2370, %v2362
        %v2374 = vmul.f32 %v2372, %v2362
        %v2375 = vadd.f32 %v2373, 1e-05
        %v2376 = vadd.f32 %v2374, 1e-05
        %v2377 = vrsqrt.pop %v2375
        %v2378 = vmul.f32 %v2377, %v2375
        %v2379 = vmul.f32 %v2378, %v2377
        %v2380 = vmul.f32 0.5, %v2379
        %v2381 = vsub.f32 1.5, %v2380
        %v2382 = vmul.f32 %v2377, %v2381
        %vm2383 = vweird.f32 %v2375
        %vm2384 = vweird.f32 %v2377
        %vm2385 = vmor %vm2383, %vm2384
        %v2386 = vsel %vm2385, %v2377, %v2382
        %v2387 = vrsqrt.pop %v2376
        %v2388 = vmul.f32 %v2387, %v2376
        %v2389 = vmul.f32 %v2388, %v2387
        %v2390 = vmul.f32 0.5, %v2389
        %v2391 = vsub.f32 1.5, %v2390
        %v2392 = vmul.f32 %v2387, %v2391
        %vm2393 = vweird.f32 %v2376
        %vm2394 = vweird.f32 %v2387
        %vm2395 = vmor %vm2393, %vm2394
        %v2396 = vsel %vm2395, %v2387, %v2392
        %v2397 = vmul.f32 %v2365, %v2386
        %v2398 = vmul.f32 %v2366, %v2396
        %v2400 = vperm.slane %v1430, 0
        %v2402 = vmul.f32 %v2397, %v2400
        %v2403 = vmul.f32 %v2398, %v2400
        %v2405 = vperm.slane %v1431, 0
        %v2407 = vadd.f32 %v2402, %v2405
        %v2408 = vadd.f32 %v2403, %v2405
        %v2409 = vpack.c.bf16 %v2408, %v2407
        %v2411 = vperm.slane %v1448, 0
        %v2429 = vunpack.c.l.b16 %v1432
        %v2430 = vunpack.c.l.b16 %v1433
        %v2431 = vunpack.c.l.b16 %v1434
        %v2432 = vunpack.c.l.b16 %v1435
        %v2433 = vunpack.c.l.b16 %v1436
        %v2434 = vunpack.c.l.b16 %v1437
        %v2435 = vunpack.c.l.b16 %v1438
        %v2436 = vunpack.c.l.b16 %v1439
        %v2437 = vunpack.c.l.b16 %v1440
        %v2438 = vunpack.c.l.b16 %v1441
        %v2439 = vunpack.c.l.b16 %v1442
        %v2440 = vunpack.c.l.b16 %v1443
        %v2441 = vunpack.c.l.b16 %v1444
        %v2442 = vunpack.c.l.b16 %v1445
        %v2443 = vunpack.c.l.b16 %v1446
        %v2444 = vunpack.c.l.b16 %v1447
        %v2445 = vpack.c.b16 %v2430, %v2429
        %v2446 = vpack.c.b16 %v2432, %v2431
        %v2447 = vpack.c.b16 %v2434, %v2433
        %v2448 = vpack.c.b16 %v2436, %v2435
        %v2449 = vpack.c.b16 %v2438, %v2437
        %v2450 = vpack.c.b16 %v2440, %v2439
        %v2451 = vpack.c.b16 %v2442, %v2441
        %v2452 = vpack.c.b16 %v2444, %v2443
        %2461 = vmatpush.bf16.msra.mxu0 %v2452
        %2462 = vmatpush.bf16.msra.mxu0 %v2451
        %2463 = vmatpush.bf16.msra.mxu0 %v2450
        %2464 = vmatpush.bf16.msra.mxu0 %v2449
        %2465 = vmatpush.bf16.msra.mxu0 %v2448
        %2466 = vmatpush.bf16.msra.mxu0 %v2447
        %2467 = vmatpush.bf16.msra.mxu0 %v2446
        %2468 = vmatpush.bf16.msra.mxu0 %v2445
        %2469 = vmatmul.bf16.gmra.mxu0 %v2409
        %v2470 = vpop.f32.mrf.mxu0
        %v2471 = vadd.f32 %v2411, %v2470
        %v2472 = vpop.f32.mrf.mxu0
        %v2473 = vadd.f32 %v2411, %v2472
        %2474 = vdwg.mxu0
        %v2475 = vpack.c.bf16 %v1540, %v1539
        %v2477 = vperm.slane %v1465, 0
        %v2478 = vperm.slane %v1465, 1
        %v2497 = vunpack.c.l.b16 %v1449
        %v2498 = vunpack.c.h.b16 %v1449
        %v2499 = vunpack.c.l.b16 %v1450
        %v2500 = vunpack.c.h.b16 %v1450
        %v2501 = vunpack.c.l.b16 %v1451
        %v2502 = vunpack.c.h.b16 %v1451
        %v2503 = vunpack.c.l.b16 %v1452
        %v2504 = vunpack.c.h.b16 %v1452
        %v2505 = vunpack.c.l.b16 %v1453
        %v2506 = vunpack.c.h.b16 %v1453
        %v2507 = vunpack.c.l.b16 %v1454
        %v2508 = vunpack.c.h.b16 %v1454
        %v2509 = vunpack.c.l.b16 %v1455
        %v2510 = vunpack.c.h.b16 %v1455
        %v2511 = vunpack.c.l.b16 %v1456
        %v2512 = vunpack.c.h.b16 %v1456
        %v2513 = vunpack.c.l.b16 %v1457
        %v2514 = vunpack.c.h.b16 %v1457
        %v2515 = vunpack.c.l.b16 %v1458
        %v2516 = vunpack.c.h.b16 %v1458
        %v2517 = vunpack.c.l.b16 %v1459
        %v2518 = vunpack.c.h.b16 %v1459
        %v2519 = vunpack.c.l.b16 %v1460
        %v2520 = vunpack.c.h.b16 %v1460
        %v2521 = vunpack.c.l.b16 %v1461
        %v2522 = vunpack.c.h.b16 %v1461
        %v2523 = vunpack.c.l.b16 %v1462
        %v2524 = vunpack.c.h.b16 %v1462
        %v2525 = vunpack.c.l.b16 %v1463
        %v2526 = vunpack.c.h.b16 %v1463
        %v2527 = vunpack.c.l.b16 %v1464
        %v2528 = vunpack.c.h.b16 %v1464
        %v2529 = vpack.c.b16 %v2499, %v2497
        %v2530 = vpack.c.b16 %v2500, %v2498
        %v2531 = vpack.c.b16 %v2503, %v2501
        %v2532 = vpack.c.b16 %v2504, %v2502
        %v2533 = vpack.c.b16 %v2507, %v2505
        %v2534 = vpack.c.b16 %v2508, %v2506
        %v2535 = vpack.c.b16 %v2511, %v2509
        %v2536 = vpack.c.b16 %v2512, %v2510
        %v2537 = vpack.c.b16 %v2515, %v2513
        %v2538 = vpack.c.b16 %v2516, %v2514
        %v2539 = vpack.c.b16 %v2519, %v2517
        %v2540 = vpack.c.b16 %v2520, %v2518
        %v2541 = vpack.c.b16 %v2523, %v2521
        %v2542 = vpack.c.b16 %v2524, %v2522
        %v2543 = vpack.c.b16 %v2527, %v2525
        %v2544 = vpack.c.b16 %v2528, %v2526
        %2561 = vmatpush.bf16.msra.mxu0 %v2543
        %2562 = vmatpush.bf16.msra.mxu0 %v2541
        %2563 = vmatpush.bf16.msra.mxu0 %v2539
        %2564 = vmatpush.bf16.msra.mxu0 %v2537
        %2565 = vmatpush.bf16.msra.mxu0 %v2535
        %2566 = vmatpush.bf16.msra.mxu0 %v2533
        %2567 = vmatpush.bf16.msra.mxu0 %v2531
        %2568 = vmatpush.bf16.msra.mxu0 %v2529
        %2569 = vmatmul.bf16.gmra.mxu0 %v2475
        %v2570 = vpop.f32.mrf.mxu0
        %v2571 = vadd.f32 %v2477, %v2570
        %v2572 = vpop.f32.mrf.mxu0
        %v2573 = vadd.f32 %v2477, %v2572
        %2574 = vdwg.mxu0
        %2575 = vmatpush.bf16.msra.mxu0 %v2544
        %2576 = vmatpush.bf16.msra.mxu0 %v2542
        %2577 = vmatpush.bf16.msra.mxu0 %v2540
        %2578 = vmatpush.bf16.msra.mxu0 %v2538
        %2579 = vmatpush.bf16.msra.mxu0 %v2536
        %2580 = vmatpush.bf16.msra.mxu0 %v2534
        %2581 = vmatpush.bf16.msra.mxu0 %v2532
        %2582 = vmatpush.bf16.msra.mxu0 %v2530
        %2583 = vmatmul.bf16.gmra.mxu0 %v2475
        %v2584 = vpop.f32.mrf.mxu0
        %v2585 = vadd.f32 %v2478, %v2584
        %v2586 = vpop.f32.mrf.mxu0
        %v2587 = vadd.f32 %v2478, %v2586
        %2588 = vdwg.mxu0
        %vm2589 = vcmp.gt.f32.partialorder %v1541, 0.5
        %v2590 = vsel %vm2589, 0.0, -1e+10
        %v2591 = vperm.slane %v2590, 0
        %v2593 = vsel %vm1732, %v2471, 0
        %v2596 = vsel %vm1732, %v2571, 0
        %2598 = vmatpush.xpose.msra.mxu0 0.0
        %2599 = vmatpush.xpose.msra.mxu0 0.0
        %2600 = vmatpush.xpose.msra.mxu0 0.0
        %2601 = vmatpush.xpose.msra.mxu0 0.0
        %2602 = vmatpush.xpose.msra.mxu0 0.0
        %2603 = vmatpush.xpose.msra.mxu0 0.0
        %2604 = vmatpush.xpose.msra.mxu0 0.0
        %2605 = vmatpush.xpose.msra.mxu0 0.0
        %2606 = vmatpush.xpose.msra.mxu0 0.0
        %2607 = vmatpush.xpose.msra.mxu0 0.0
        %2608 = vmatpush.xpose.msra.mxu0 0.0
        %2609 = vmatpush.xpose.msra.mxu0 0.0
        %2610 = vmatpush.xpose.msra.mxu0 0.0
        %2611 = vmatpush.xpose.msra.mxu0 0.0
        %2612 = vmatpush.xpose.msra.mxu0 0.0
        %2613 = vmatpush.xpose.msra.mxu0 %v2596
        %2614 = vmatmul.f32.gmra.mxu0 %v2593
        %v2615 = vpop.f32.mrf.mxu0
        %v2616 = vadd.f32 %v2591, %v2615
        %2617 = vdwg.mxu0
        %v2618 = vsel %vm1759, %v2616, -inf
        %2619 = vmax.xlane.f32.xlu0 %v2618
        %v2620 = vpop.xlane.xlu0 %2619
        %v2621 = vsub.f32 %v2616, %v2620
        %v2622 = vmul.f32 %v2621, 1.442695
        %v2623 = vpow.pop %v2622
        %v2624 = vsel %vm1759, %v2623, 0.0
        %2625 = vadd.xlane.f32.xlu0 %v2624
        %v2626 = vpop.xlane.xlu0 %2625
        %v2627 = vrcp.pop %v2626
        %v2628 = vmul.f32 %v2626, %v2627
        %v2629 = vsub.f32 1.0, %v2628
        %v2630 = vmul.f32 %v2627, %v2629
        %v2631 = vadd.f32 %v2627, %v2630
        %vm2632 = vweird.f32 %v2626
        %vm2633 = vweird.f32 %v2627
        %vm2634 = vmor %vm2632, %vm2633
        %v2635 = vsel %vm2634, %v2627, %v2631
        %v2636 = vand.u32 2147483647, %v2626
        %vm2637 = vcmp.eq.f32.partialorder %v2636, 8.507059e+37
        %v2638 = vand.u32 %v2626, 2147483648
        %v2639 = vor.u32 1.1754944e-38, %v2638
        %v2640 = vsel %vm2637, %v2639, %v2635
        %v2641 = vmul.f32 %v2623, %v2640
        %v2643 = vsel %vm1759, %v2641, 0
        %2645 = vmatpush.msra.mxu0 0.0
        %2646 = vmatpush.msra.mxu0 0.0
        %2647 = vmatpush.msra.mxu0 0.0
        %2648 = vmatpush.msra.mxu0 0.0
        %2649 = vmatpush.msra.mxu0 0.0
        %2650 = vmatpush.msra.mxu0 0.0
        %2651 = vmatpush.msra.mxu0 0.0
        %2652 = vmatpush.msra.mxu0 0.0
        %2653 = vmatpush.msra.mxu0 0.0
        %2654 = vmatpush.msra.mxu0 0.0
        %2655 = vmatpush.msra.mxu0 0.0
        %2656 = vmatpush.msra.mxu0 0.0
        %2657 = vmatpush.msra.mxu0 0.0
        %2658 = vmatpush.msra.mxu0 0.0
        %2659 = vmatpush.msra.mxu0 0.0
        %2660 = vmatpush.msra.mxu0 %v2585
        %2661 = vmatmul.f32.gmra.mxu0 %v2643
        %v2662 = vpop.f32.mrf.mxu0
        %v2663 = vadd.f32 0.0, %v2662
        %2664 = vdwg.mxu0
        %2665 = vrot.lane.b32.xlu0 %v2471, 96
        %v2666 = vpop.permute.xlu0 %2665
        %2667 = vrot.lane.b32.xlu0 %v2571, 96
        %v2668 = vpop.permute.xlu0 %2667
        %v2669 = vsel %vm1732, %v2666, 0
        %v2671 = vsel %vm1732, %v2668, 0
        %2673 = vmatpush.xpose.msra.mxu0 0.0
        %2674 = vmatpush.xpose.msra.mxu0 0.0
        %2675 = vmatpush.xpose.msra.mxu0 0.0
        %2676 = vmatpush.xpose.msra.mxu0 0.0
        %2677 = vmatpush.xpose.msra.mxu0 0.0
        %2678 = vmatpush.xpose.msra.mxu0 0.0
        %2679 = vmatpush.xpose.msra.mxu0 0.0
        %2680 = vmatpush.xpose.msra.mxu0 0.0
        %2681 = vmatpush.xpose.msra.mxu0 0.0
        %2682 = vmatpush.xpose.msra.mxu0 0.0
        %2683 = vmatpush.xpose.msra.mxu0 0.0
        %2684 = vmatpush.xpose.msra.mxu0 0.0
        %2685 = vmatpush.xpose.msra.mxu0 0.0
        %2686 = vmatpush.xpose.msra.mxu0 0.0
        %2687 = vmatpush.xpose.msra.mxu0 0.0
        %2688 = vmatpush.xpose.msra.mxu0 %v2671
        %2689 = vmatmul.f32.gmra.mxu0 %v2669
        %v2690 = vpop.f32.mrf.mxu0
        %v2691 = vadd.f32 %v2591, %v2690
        %2692 = vdwg.mxu0
        %v2693 = vsel %vm1759, %v2691, -inf
        %2694 = vmax.xlane.f32.xlu0 %v2693
        %v2695 = vpop.xlane.xlu0 %2694
        %v2696 = vsub.f32 %v2691, %v2695
        %v2697 = vmul.f32 %v2696, 1.442695
        %v2698 = vpow.pop %v2697
        %v2699 = vsel %vm1759, %v2698, 0.0
        %2700 = vadd.xlane.f32.xlu0 %v2699
        %v2701 = vpop.xlane.xlu0 %2700
        %v2702 = vrcp.pop %v2701
        %v2703 = vmul.f32 %v2701, %v2702
        %v2704 = vsub.f32 1.0, %v2703
        %v2705 = vmul.f32 %v2702, %v2704
        %v2706 = vadd.f32 %v2702, %v2705
        %vm2707 = vweird.f32 %v2701
        %vm2708 = vweird.f32 %v2702
        %vm2709 = vmor %vm2707, %vm2708
        %v2710 = vsel %vm2709, %v2702, %v2706
        %v2711 = vand.u32 2147483647, %v2701
        %vm2712 = vcmp.eq.f32.partialorder %v2711, 8.507059e+37
        %v2713 = vand.u32 %v2701, 2147483648
        %v2714 = vor.u32 1.1754944e-38, %v2713
        %v2715 = vsel %vm2712, %v2714, %v2710
        %v2716 = vmul.f32 %v2698, %v2715
        %2718 = vrot.lane.b32.xlu0 %v2585, 96
        %v2719 = vpop.permute.xlu0 %2718
        %v2722 = vsel %vm1759, %v2716, 0
        %2724 = vmatpush.msra.mxu0 0.0
        %2725 = vmatpush.msra.mxu0 0.0
        %2726 = vmatpush.msra.mxu0 0.0
        %2727 = vmatpush.msra.mxu0 0.0
        %2728 = vmatpush.msra.mxu0 0.0
        %2729 = vmatpush.msra.mxu0 0.0
        %2730 = vmatpush.msra.mxu0 0.0
        %2731 = vmatpush.msra.mxu0 0.0
        %2732 = vmatpush.msra.mxu0 0.0
        %2733 = vmatpush.msra.mxu0 0.0
        %2734 = vmatpush.msra.mxu0 0.0
        %2735 = vmatpush.msra.mxu0 0.0
        %2736 = vmatpush.msra.mxu0 0.0
        %2737 = vmatpush.msra.mxu0 0.0
        %2738 = vmatpush.msra.mxu0 0.0
        %2739 = vmatpush.msra.mxu0 %v2719
        %2740 = vmatmul.f32.gmra.mxu0 %v2722
        %v2741 = vpop.f32.mrf.mxu0
        %v2742 = vadd.f32 0.0, %v2741
        %2743 = vdwg.mxu0
        %2744 = vrot.lane.b32.xlu0 %v2471, 64
        %v2745 = vpop.permute.xlu0 %2744
        %2746 = vrot.lane.b32.xlu0 %v2571, 64
        %v2747 = vpop.permute.xlu0 %2746
        %v2748 = vsel %vm1732, %v2745, 0
        %v2750 = vsel %vm1732, %v2747, 0
        %2752 = vmatpush.xpose.msra.mxu0 0.0
        %2753 = vmatpush.xpose.msra.mxu0 0.0
        %2754 = vmatpush.xpose.msra.mxu0 0.0
        %2755 = vmatpush.xpose.msra.mxu0 0.0
        %2756 = vmatpush.xpose.msra.mxu0 0.0
        %2757 = vmatpush.xpose.msra.mxu0 0.0
        %2758 = vmatpush.xpose.msra.mxu0 0.0
        %2759 = vmatpush.xpose.msra.mxu0 0.0
        %2760 = vmatpush.xpose.msra.mxu0 0.0
        %2761 = vmatpush.xpose.msra.mxu0 0.0
        %2762 = vmatpush.xpose.msra.mxu0 0.0
        %2763 = vmatpush.xpose.msra.mxu0 0.0
        %2764 = vmatpush.xpose.msra.mxu0 0.0
        %2765 = vmatpush.xpose.msra.mxu0 0.0
        %2766 = vmatpush.xpose.msra.mxu0 0.0
        %2767 = vmatpush.xpose.msra.mxu0 %v2750
        %2768 = vmatmul.f32.gmra.mxu0 %v2748
        %v2769 = vpop.f32.mrf.mxu0
        %v2770 = vadd.f32 %v2591, %v2769
        %2771 = vdwg.mxu0
        %v2772 = vsel %vm1759, %v2770, -inf
        %2773 = vmax.xlane.f32.xlu0 %v2772
        %v2774 = vpop.xlane.xlu0 %2773
        %v2775 = vsub.f32 %v2770, %v2774
        %v2776 = vmul.f32 %v2775, 1.442695
        %v2777 = vpow.pop %v2776
        %v2778 = vsel %vm1759, %v2777, 0.0
        %2779 = vadd.xlane.f32.xlu0 %v2778
        %v2780 = vpop.xlane.xlu0 %2779
        %v2781 = vrcp.pop %v2780
        %v2782 = vmul.f32 %v2780, %v2781
        %v2783 = vsub.f32 1.0, %v2782
        %v2784 = vmul.f32 %v2781, %v2783
        %v2785 = vadd.f32 %v2781, %v2784
        %vm2786 = vweird.f32 %v2780
        %vm2787 = vweird.f32 %v2781
        %vm2788 = vmor %vm2786, %vm2787
        %v2789 = vsel %vm2788, %v2781, %v2785
        %v2790 = vand.u32 2147483647, %v2780
        %vm2791 = vcmp.eq.f32.partialorder %v2790, 8.507059e+37
        %v2792 = vand.u32 %v2780, 2147483648
        %v2793 = vor.u32 1.1754944e-38, %v2792
        %v2794 = vsel %vm2791, %v2793, %v2789
        %v2795 = vmul.f32 %v2777, %v2794
        %2796 = vrot.lane.b32.xlu0 %v2585, 64
        %v2797 = vpop.permute.xlu0 %2796
        %v2800 = vsel %vm1759, %v2795, 0
        %2802 = vmatpush.msra.mxu0 0.0
        %2803 = vmatpush.msra.mxu0 0.0
        %2804 = vmatpush.msra.mxu0 0.0
        %2805 = vmatpush.msra.mxu0 0.0
        %2806 = vmatpush.msra.mxu0 0.0
        %2807 = vmatpush.msra.mxu0 0.0
        %2808 = vmatpush.msra.mxu0 0.0
        %2809 = vmatpush.msra.mxu0 0.0
        %2810 = vmatpush.msra.mxu0 0.0
        %2811 = vmatpush.msra.mxu0 0.0
        %2812 = vmatpush.msra.mxu0 0.0
        %2813 = vmatpush.msra.mxu0 0.0
        %2814 = vmatpush.msra.mxu0 0.0
        %2815 = vmatpush.msra.mxu0 0.0
        %2816 = vmatpush.msra.mxu0 0.0
        %2817 = vmatpush.msra.mxu0 %v2797
        %2818 = vmatmul.f32.gmra.mxu0 %v2800
        %v2819 = vpop.f32.mrf.mxu0
        %v2820 = vadd.f32 0.0, %v2819
        %2821 = vdwg.mxu0
        %2822 = vrot.lane.b32.xlu0 %v2471, 32
        %v2823 = vpop.permute.xlu0 %2822
        %2824 = vrot.lane.b32.xlu0 %v2571, 32
        %v2825 = vpop.permute.xlu0 %2824
        %v2826 = vsel %vm1732, %v2823, 0
        %v2828 = vsel %vm1732, %v2825, 0
        %2830 = vmatpush.xpose.msra.mxu0 0.0
        %2831 = vmatpush.xpose.msra.mxu0 0.0
        %2832 = vmatpush.xpose.msra.mxu0 0.0
        %2833 = vmatpush.xpose.msra.mxu0 0.0
        %2834 = vmatpush.xpose.msra.mxu0 0.0
        %2835 = vmatpush.xpose.msra.mxu0 0.0
        %2836 = vmatpush.xpose.msra.mxu0 0.0
        %2837 = vmatpush.xpose.msra.mxu0 0.0
        %2838 = vmatpush.xpose.msra.mxu0 0.0
        %2839 = vmatpush.xpose.msra.mxu0 0.0
        %2840 = vmatpush.xpose.msra.mxu0 0.0
        %2841 = vmatpush.xpose.msra.mxu0 0.0
        %2842 = vmatpush.xpose.msra.mxu0 0.0
        %2843 = vmatpush.xpose.msra.mxu0 0.0
        %2844 = vmatpush.xpose.msra.mxu0 0.0
        %2845 = vmatpush.xpose.msra.mxu0 %v2828
        %2846 = vmatmul.f32.gmra.mxu0 %v2826
        %v2847 = vpop.f32.mrf.mxu0
        %v2848 = vadd.f32 %v2591, %v2847
        %2849 = vdwg.mxu0
        %v2850 = vsel %vm1759, %v2848, -inf
        %2851 = vmax.xlane.f32.xlu0 %v2850
        %v2852 = vpop.xlane.xlu0 %2851
        %v2853 = vsub.f32 %v2848, %v2852
        %v2854 = vmul.f32 %v2853, 1.442695
        %v2855 = vpow.pop %v2854
        %v2856 = vsel %vm1759, %v2855, 0.0
        %2857 = vadd.xlane.f32.xlu0 %v2856
        %v2858 = vpop.xlane.xlu0 %2857
        %v2859 = vrcp.pop %v2858
        %v2860 = vmul.f32 %v2858, %v2859
        %v2861 = vsub.f32 1.0, %v2860
        %v2862 = vmul.f32 %v2859, %v2861
        %v2863 = vadd.f32 %v2859, %v2862
        %vm2864 = vweird.f32 %v2858
        %vm2865 = vweird.f32 %v2859
        %vm2866 = vmor %vm2864, %vm2865
        %v2867 = vsel %vm2866, %v2859, %v2863
        %v2868 = vand.u32 2147483647, %v2858
        %vm2869 = vcmp.eq.f32.partialorder %v2868, 8.507059e+37
        %v2870 = vand.u32 %v2858, 2147483648
        %v2871 = vor.u32 1.1754944e-38, %v2870
        %v2872 = vsel %vm2869, %v2871, %v2867
        %v2873 = vmul.f32 %v2855, %v2872
        %2874 = vrot.lane.b32.xlu0 %v2585, 32
        %v2875 = vpop.permute.xlu0 %2874
        %v2878 = vsel %vm1759, %v2873, 0
        %2880 = vmatpush.msra.mxu0 0.0
        %2881 = vmatpush.msra.mxu0 0.0
        %2882 = vmatpush.msra.mxu0 0.0
        %2883 = vmatpush.msra.mxu0 0.0
        %2884 = vmatpush.msra.mxu0 0.0
        %2885 = vmatpush.msra.mxu0 0.0
        %2886 = vmatpush.msra.mxu0 0.0
        %2887 = vmatpush.msra.mxu0 0.0
        %2888 = vmatpush.msra.mxu0 0.0
        %2889 = vmatpush.msra.mxu0 0.0
        %2890 = vmatpush.msra.mxu0 0.0
        %2891 = vmatpush.msra.mxu0 0.0
        %2892 = vmatpush.msra.mxu0 0.0
        %2893 = vmatpush.msra.mxu0 0.0
        %2894 = vmatpush.msra.mxu0 0.0
        %2895 = vmatpush.msra.mxu0 %v2875
        %2896 = vmatmul.f32.gmra.mxu0 %v2878
        %v2897 = vpop.f32.mrf.mxu0
        %v2898 = vadd.f32 0.0, %v2897
        %2899 = vdwg.mxu0
        %2901 = vrot.lane.b32.xlu0 %v2742, 32
        %v2902 = vpop.permute.xlu0 %2901
        %2905 = vrot.lane.b32.xlu0 %v2820, 64
        %v2906 = vpop.permute.xlu0 %2905
        %2909 = vrot.lane.b32.xlu0 %v2898, 96
        %v2910 = vpop.permute.xlu0 %2909
        %v2912 = vsel %vm1732, %v2663, %v2902
        %v2913 = vsel %vm2003, %v2912, %v2906
        %v2914 = vsel %vm2005, %v2913, %v2910
        %2915 = vrot.lane.b32.xlu0 %v2716, 8
        %v2916 = vpop.permute.xlu0 %2915
        %2918 = vrot.lane.b32.xlu0 %v2795, 16
        %v2919 = vpop.permute.xlu0 %2918
        %2921 = vrot.lane.b32.xlu0 %v2873, 24
        %v2922 = vpop.permute.xlu0 %2921
        %v2924 = vsel %vm1759, %v2641, %v2916
        %vm2925 = vcmask 130048
        %v2926 = vsel %vm2925, %v2924, %v2919
        %vm2927 = vcmask 195584
        %v2928 = vsel %vm2927, %v2926, %v2922
        %v2929 = vperm.slane %v2590, 1
        %v2931 = vsel %vm1732, %v2473, 0
        %v2934 = vsel %vm1732, %v2573, 0
        %2936 = vmatpush.xpose.msra.mxu0 0.0
        %2937 = vmatpush.xpose.msra.mxu0 0.0
        %2938 = vmatpush.xpose.msra.mxu0 0.0
        %2939 = vmatpush.xpose.msra.mxu0 0.0
        %2940 = vmatpush.xpose.msra.mxu0 0.0
        %2941 = vmatpush.xpose.msra.mxu0 0.0
        %2942 = vmatpush.xpose.msra.mxu0 0.0
        %2943 = vmatpush.xpose.msra.mxu0 0.0
        %2944 = vmatpush.xpose.msra.mxu0 0.0
        %2945 = vmatpush.xpose.msra.mxu0 0.0
        %2946 = vmatpush.xpose.msra.mxu0 0.0
        %2947 = vmatpush.xpose.msra.mxu0 0.0
        %2948 = vmatpush.xpose.msra.mxu0 0.0
        %2949 = vmatpush.xpose.msra.mxu0 0.0
        %2950 = vmatpush.xpose.msra.mxu0 0.0
        %2951 = vmatpush.xpose.msra.mxu0 %v2934
        %2952 = vmatmul.f32.gmra.mxu0 %v2931
        %v2953 = vpop.f32.mrf.mxu0
        %v2954 = vadd.f32 %v2929, %v2953
        %2955 = vdwg.mxu0
        %v2956 = vsel %vm1759, %v2954, -inf
        %2957 = vmax.xlane.f32.xlu0 %v2956
        %v2958 = vpop.xlane.xlu0 %2957
        %v2959 = vsub.f32 %v2954, %v2958
        %v2960 = vmul.f32 %v2959, 1.442695
        %v2961 = vpow.pop %v2960
        %v2962 = vsel %vm1759, %v2961, 0.0
        %2963 = vadd.xlane.f32.xlu0 %v2962
        %v2964 = vpop.xlane.xlu0 %2963
        %v2965 = vrcp.pop %v2964
        %v2966 = vmul.f32 %v2964, %v2965
        %v2967 = vsub.f32 1.0, %v2966
        %v2968 = vmul.f32 %v2965, %v2967
        %v2969 = vadd.f32 %v2965, %v2968
        %vm2970 = vweird.f32 %v2964
        %vm2971 = vweird.f32 %v2965
        %vm2972 = vmor %vm2970, %vm2971
        %v2973 = vsel %vm2972, %v2965, %v2969
        %v2974 = vand.u32 2147483647, %v2964
        %vm2975 = vcmp.eq.f32.partialorder %v2974, 8.507059e+37
        %v2976 = vand.u32 %v2964, 2147483648
        %v2977 = vor.u32 1.1754944e-38, %v2976
        %v2978 = vsel %vm2975, %v2977, %v2973
        %v2979 = vmul.f32 %v2961, %v2978
        %v2981 = vsel %vm1759, %v2979, 0
        %2983 = vmatpush.msra.mxu0 0.0
        %2984 = vmatpush.msra.mxu0 0.0
        %2985 = vmatpush.msra.mxu0 0.0
        %2986 = vmatpush.msra.mxu0 0.0
        %2987 = vmatpush.msra.mxu0 0.0
        %2988 = vmatpush.msra.mxu0 0.0
        %2989 = vmatpush.msra.mxu0 0.0
        %2990 = vmatpush.msra.mxu0 0.0
        %2991 = vmatpush.msra.mxu0 0.0
        %2992 = vmatpush.msra.mxu0 0.0
        %2993 = vmatpush.msra.mxu0 0.0
        %2994 = vmatpush.msra.mxu0 0.0
        %2995 = vmatpush.msra.mxu0 0.0
        %2996 = vmatpush.msra.mxu0 0.0
        %2997 = vmatpush.msra.mxu0 0.0
        %2998 = vmatpush.msra.mxu0 %v2587
        %2999 = vmatmul.f32.gmra.mxu0 %v2981
        %v3000 = vpop.f32.mrf.mxu0
        %v3001 = vadd.f32 0.0, %v3000
        %3002 = vdwg.mxu0
        %3003 = vrot.lane.b32.xlu0 %v2473, 96
        %v3004 = vpop.permute.xlu0 %3003
        %3005 = vrot.lane.b32.xlu0 %v2573, 96
        %v3006 = vpop.permute.xlu0 %3005
        %v3007 = vsel %vm1732, %v3004, 0
        %v3009 = vsel %vm1732, %v3006, 0
        %3011 = vmatpush.xpose.msra.mxu0 0.0
        %3012 = vmatpush.xpose.msra.mxu0 0.0
        %3013 = vmatpush.xpose.msra.mxu0 0.0
        %3014 = vmatpush.xpose.msra.mxu0 0.0
        %3015 = vmatpush.xpose.msra.mxu0 0.0
        %3016 = vmatpush.xpose.msra.mxu0 0.0
        %3017 = vmatpush.xpose.msra.mxu0 0.0
        %3018 = vmatpush.xpose.msra.mxu0 0.0
        %3019 = vmatpush.xpose.msra.mxu0 0.0
        %3020 = vmatpush.xpose.msra.mxu0 0.0
        %3021 = vmatpush.xpose.msra.mxu0 0.0
        %3022 = vmatpush.xpose.msra.mxu0 0.0
        %3023 = vmatpush.xpose.msra.mxu0 0.0
        %3024 = vmatpush.xpose.msra.mxu0 0.0
        %3025 = vmatpush.xpose.msra.mxu0 0.0
        %3026 = vmatpush.xpose.msra.mxu0 %v3009
        %3027 = vmatmul.f32.gmra.mxu0 %v3007
        %v3028 = vpop.f32.mrf.mxu0
        %v3029 = vadd.f32 %v2929, %v3028
        %3030 = vdwg.mxu0
        %v3031 = vsel %vm1759, %v3029, -inf
        %3032 = vmax.xlane.f32.xlu0 %v3031
        %v3033 = vpop.xlane.xlu0 %3032
        %v3034 = vsub.f32 %v3029, %v3033
        %v3035 = vmul.f32 %v3034, 1.442695
        %v3036 = vpow.pop %v3035
        %v3037 = vsel %vm1759, %v3036, 0.0
        %3038 = vadd.xlane.f32.xlu0 %v3037
        %v3039 = vpop.xlane.xlu0 %3038
        %v3040 = vrcp.pop %v3039
        %v3041 = vmul.f32 %v3039, %v3040
        %v3042 = vsub.f32 1.0, %v3041
        %v3043 = vmul.f32 %v3040, %v3042
        %v3044 = vadd.f32 %v3040, %v3043
        %vm3045 = vweird.f32 %v3039
        %vm3046 = vweird.f32 %v3040
        %vm3047 = vmor %vm3045, %vm3046
        %v3048 = vsel %vm3047, %v3040, %v3044
        %v3049 = vand.u32 2147483647, %v3039
        %vm3050 = vcmp.eq.f32.partialorder %v3049, 8.507059e+37
        %v3051 = vand.u32 %v3039, 2147483648
        %v3052 = vor.u32 1.1754944e-38, %v3051
        %v3053 = vsel %vm3050, %v3052, %v3048
        %v3054 = vmul.f32 %v3036, %v3053
        %3056 = vrot.lane.b32.xlu0 %v2587, 96
        %v3057 = vpop.permute.xlu0 %3056
        %v3060 = vsel %vm1759, %v3054, 0
        %3062 = vmatpush.msra.mxu0 0.0
        %3063 = vmatpush.msra.mxu0 0.0
        %3064 = vmatpush.msra.mxu0 0.0
        %3065 = vmatpush.msra.mxu0 0.0
        %3066 = vmatpush.msra.mxu0 0.0
        %3067 = vmatpush.msra.mxu0 0.0
        %3068 = vmatpush.msra.mxu0 0.0
        %3069 = vmatpush.msra.mxu0 0.0
        %3070 = vmatpush.msra.mxu0 0.0
        %3071 = vmatpush.msra.mxu0 0.0
        %3072 = vmatpush.msra.mxu0 0.0
        %3073 = vmatpush.msra.mxu0 0.0
        %3074 = vmatpush.msra.mxu0 0.0
        %3075 = vmatpush.msra.mxu0 0.0
        %3076 = vmatpush.msra.mxu0 0.0
        %3077 = vmatpush.msra.mxu0 %v3057
        %3078 = vmatmul.f32.gmra.mxu0 %v3060
        %v3079 = vpop.f32.mrf.mxu0
        %v3080 = vadd.f32 0.0, %v3079
        %3081 = vdwg.mxu0
        %3082 = vrot.lane.b32.xlu0 %v2473, 64
        %v3083 = vpop.permute.xlu0 %3082
        %3084 = vrot.lane.b32.xlu0 %v2573, 64
        %v3085 = vpop.permute.xlu0 %3084
        %v3086 = vsel %vm1732, %v3083, 0
        %v3088 = vsel %vm1732, %v3085, 0
        %3090 = vmatpush.xpose.msra.mxu0 0.0
        %3091 = vmatpush.xpose.msra.mxu0 0.0
        %3092 = vmatpush.xpose.msra.mxu0 0.0
        %3093 = vmatpush.xpose.msra.mxu0 0.0
        %3094 = vmatpush.xpose.msra.mxu0 0.0
        %3095 = vmatpush.xpose.msra.mxu0 0.0
        %3096 = vmatpush.xpose.msra.mxu0 0.0
        %3097 = vmatpush.xpose.msra.mxu0 0.0
        %3098 = vmatpush.xpose.msra.mxu0 0.0
        %3099 = vmatpush.xpose.msra.mxu0 0.0
        %3100 = vmatpush.xpose.msra.mxu0 0.0
        %3101 = vmatpush.xpose.msra.mxu0 0.0
        %3102 = vmatpush.xpose.msra.mxu0 0.0
        %3103 = vmatpush.xpose.msra.mxu0 0.0
        %3104 = vmatpush.xpose.msra.mxu0 0.0
        %3105 = vmatpush.xpose.msra.mxu0 %v3088
        %3106 = vmatmul.f32.gmra.mxu0 %v3086
        %v3107 = vpop.f32.mrf.mxu0
        %v3108 = vadd.f32 %v2929, %v3107
        %3109 = vdwg.mxu0
        %v3110 = vsel %vm1759, %v3108, -inf
        %3111 = vmax.xlane.f32.xlu0 %v3110
        %v3112 = vpop.xlane.xlu0 %3111
        %v3113 = vsub.f32 %v3108, %v3112
        %v3114 = vmul.f32 %v3113, 1.442695
        %v3115 = vpow.pop %v3114
        %v3116 = vsel %vm1759, %v3115, 0.0
        %3117 = vadd.xlane.f32.xlu0 %v3116
        %v3118 = vpop.xlane.xlu0 %3117
        %v3119 = vrcp.pop %v3118
        %v3120 = vmul.f32 %v3118, %v3119
        %v3121 = vsub.f32 1.0, %v3120
        %v3122 = vmul.f32 %v3119, %v3121
        %v3123 = vadd.f32 %v3119, %v3122
        %vm3124 = vweird.f32 %v3118
        %vm3125 = vweird.f32 %v3119
        %vm3126 = vmor %vm3124, %vm3125
        %v3127 = vsel %vm3126, %v3119, %v3123
        %v3128 = vand.u32 2147483647, %v3118
        %vm3129 = vcmp.eq.f32.partialorder %v3128, 8.507059e+37
        %v3130 = vand.u32 %v3118, 2147483648
        %v3131 = vor.u32 1.1754944e-38, %v3130
        %v3132 = vsel %vm3129, %v3131, %v3127
        %v3133 = vmul.f32 %v3115, %v3132
        %3134 = vrot.lane.b32.xlu0 %v2587, 64
        %v3135 = vpop.permute.xlu0 %3134
        %v3138 = vsel %vm1759, %v3133, 0
        %3140 = vmatpush.msra.mxu0 0.0
        %3141 = vmatpush.msra.mxu0 0.0
        %3142 = vmatpush.msra.mxu0 0.0
        %3143 = vmatpush.msra.mxu0 0.0
        %3144 = vmatpush.msra.mxu0 0.0
        %3145 = vmatpush.msra.mxu0 0.0
        %3146 = vmatpush.msra.mxu0 0.0
        %3147 = vmatpush.msra.mxu0 0.0
        %3148 = vmatpush.msra.mxu0 0.0
        %3149 = vmatpush.msra.mxu0 0.0
        %3150 = vmatpush.msra.mxu0 0.0
        %3151 = vmatpush.msra.mxu0 0.0
        %3152 = vmatpush.msra.mxu0 0.0
        %3153 = vmatpush.msra.mxu0 0.0
        %3154 = vmatpush.msra.mxu0 0.0
        %3155 = vmatpush.msra.mxu0 %v3135
        %3156 = vmatmul.f32.gmra.mxu0 %v3138
        %v3157 = vpop.f32.mrf.mxu0
        %v3158 = vadd.f32 0.0, %v3157
        %3159 = vdwg.mxu0
        %3160 = vrot.lane.b32.xlu0 %v2473, 32
        %v3161 = vpop.permute.xlu0 %3160
        %3162 = vrot.lane.b32.xlu0 %v2573, 32
        %v3163 = vpop.permute.xlu0 %3162
        %v3164 = vsel %vm1732, %v3161, 0
        %v3166 = vsel %vm1732, %v3163, 0
        %3168 = vmatpush.xpose.msra.mxu0 0.0
        %3169 = vmatpush.xpose.msra.mxu0 0.0
        %3170 = vmatpush.xpose.msra.mxu0 0.0
        %3171 = vmatpush.xpose.msra.mxu0 0.0
        %3172 = vmatpush.xpose.msra.mxu0 0.0
        %3173 = vmatpush.xpose.msra.mxu0 0.0
        %3174 = vmatpush.xpose.msra.mxu0 0.0
        %3175 = vmatpush.xpose.msra.mxu0 0.0
        %3176 = vmatpush.xpose.msra.mxu0 0.0
        %3177 = vmatpush.xpose.msra.mxu0 0.0
        %3178 = vmatpush.xpose.msra.mxu0 0.0
        %3179 = vmatpush.xpose.msra.mxu0 0.0
        %3180 = vmatpush.xpose.msra.mxu0 0.0
        %3181 = vmatpush.xpose.msra.mxu0 0.0
        %3182 = vmatpush.xpose.msra.mxu0 0.0
        %3183 = vmatpush.xpose.msra.mxu0 %v3166
        %3184 = vmatmul.f32.gmra.mxu0 %v3164
        %v3185 = vpop.f32.mrf.mxu0
        %v3186 = vadd.f32 %v2929, %v3185
        %3187 = vdwg.mxu0
        %v3188 = vsel %vm1759, %v3186, -inf
        %3189 = vmax.xlane.f32.xlu0 %v3188
        %v3190 = vpop.xlane.xlu0 %3189
        %v3191 = vsub.f32 %v3186, %v3190
        %v3192 = vmul.f32 %v3191, 1.442695
        %v3193 = vpow.pop %v3192
        %v3194 = vsel %vm1759, %v3193, 0.0
        %3195 = vadd.xlane.f32.xlu0 %v3194
        %v3196 = vpop.xlane.xlu0 %3195
        %v3197 = vrcp.pop %v3196
        %v3198 = vmul.f32 %v3196, %v3197
        %v3199 = vsub.f32 1.0, %v3198
        %v3200 = vmul.f32 %v3197, %v3199
        %v3201 = vadd.f32 %v3197, %v3200
        %vm3202 = vweird.f32 %v3196
        %vm3203 = vweird.f32 %v3197
        %vm3204 = vmor %vm3202, %vm3203
        %v3205 = vsel %vm3204, %v3197, %v3201
        %v3206 = vand.u32 2147483647, %v3196
        %vm3207 = vcmp.eq.f32.partialorder %v3206, 8.507059e+37
        %v3208 = vand.u32 %v3196, 2147483648
        %v3209 = vor.u32 1.1754944e-38, %v3208
        %v3210 = vsel %vm3207, %v3209, %v3205
        %v3211 = vmul.f32 %v3193, %v3210
        %3212 = vrot.lane.b32.xlu0 %v2587, 32
        %v3213 = vpop.permute.xlu0 %3212
        %v3216 = vsel %vm1759, %v3211, 0
        %3218 = vmatpush.msra.mxu0 0.0
        %3219 = vmatpush.msra.mxu0 0.0
        %3220 = vmatpush.msra.mxu0 0.0
        %3221 = vmatpush.msra.mxu0 0.0
        %3222 = vmatpush.msra.mxu0 0.0
        %3223 = vmatpush.msra.mxu0 0.0
        %3224 = vmatpush.msra.mxu0 0.0
        %3225 = vmatpush.msra.mxu0 0.0
        %3226 = vmatpush.msra.mxu0 0.0
        %3227 = vmatpush.msra.mxu0 0.0
        %3228 = vmatpush.msra.mxu0 0.0
        %3229 = vmatpush.msra.mxu0 0.0
        %3230 = vmatpush.msra.mxu0 0.0
        %3231 = vmatpush.msra.mxu0 0.0
        %3232 = vmatpush.msra.mxu0 0.0
        %3233 = vmatpush.msra.mxu0 %v3213
        %3234 = vmatmul.f32.gmra.mxu0 %v3216
        %v3235 = vpop.f32.mrf.mxu0
        %v3236 = vadd.f32 0.0, %v3235
        %3237 = vdwg.mxu0
        %3239 = vrot.lane.b32.xlu0 %v3080, 32
        %v3240 = vpop.permute.xlu0 %3239
        %3243 = vrot.lane.b32.xlu0 %v3158, 64
        %v3244 = vpop.permute.xlu0 %3243
        %3247 = vrot.lane.b32.xlu0 %v3236, 96
        %v3248 = vpop.permute.xlu0 %3247
        %v3250 = vsel %vm1732, %v3001, %v3240
        %v3251 = vsel %vm2003, %v3250, %v3244
        %v3252 = vsel %vm2005, %v3251, %v3248
        %3253 = vrot.lane.b32.xlu0 %v3054, 8
        %v3254 = vpop.permute.xlu0 %3253
        %3256 = vrot.lane.b32.xlu0 %v3133, 16
        %v3257 = vpop.permute.xlu0 %3256
        %3259 = vrot.lane.b32.xlu0 %v3211, 24
        %v3260 = vpop.permute.xlu0 %3259
        %v3262 = vsel %vm1759, %v2979, %v3254
        %v3263 = vsel %vm2925, %v3262, %v3257
        %v3264 = vsel %vm2927, %v3263, %v3260
        %v3265 = vpack.c.bf16 %v3252, %v2914
        %v3282 = vunpack.c.l.b16 %v1466
        %v3283 = vunpack.c.l.b16 %v1467
        %v3284 = vunpack.c.l.b16 %v1468
        %v3285 = vunpack.c.l.b16 %v1469
        %v3286 = vunpack.c.l.b16 %v1470
        %v3287 = vunpack.c.l.b16 %v1471
        %v3288 = vunpack.c.l.b16 %v1472
        %v3289 = vunpack.c.l.b16 %v1473
        %v3290 = vunpack.c.l.b16 %v1474
        %v3291 = vunpack.c.l.b16 %v1475
        %v3292 = vunpack.c.l.b16 %v1476
        %v3293 = vunpack.c.l.b16 %v1477
        %v3294 = vunpack.c.l.b16 %v1478
        %v3295 = vunpack.c.l.b16 %v1479
        %v3296 = vunpack.c.l.b16 %v1480
        %v3297 = vunpack.c.l.b16 %v1481
        %v3298 = vpack.c.b16 %v3283, %v3282
        %v3299 = vpack.c.b16 %v3285, %v3284
        %v3300 = vpack.c.b16 %v3287, %v3286
        %v3301 = vpack.c.b16 %v3289, %v3288
        %v3302 = vpack.c.b16 %v3291, %v3290
        %v3303 = vpack.c.b16 %v3293, %v3292
        %v3304 = vpack.c.b16 %v3295, %v3294
        %v3305 = vpack.c.b16 %v3297, %v3296
        %3314 = vmatpush.bf16.msra.mxu0 %v3305
        %3315 = vmatpush.bf16.msra.mxu0 %v3304
        %3316 = vmatpush.bf16.msra.mxu0 %v3303
        %3317 = vmatpush.bf16.msra.mxu0 %v3302
        %3318 = vmatpush.bf16.msra.mxu0 %v3301
        %3319 = vmatpush.bf16.msra.mxu0 %v3300
        %3320 = vmatpush.bf16.msra.mxu0 %v3299
        %3321 = vmatpush.bf16.msra.mxu0 %v3298
        %3322 = vmatmul.bf16.gmra.mxu0 %v3265
        %v3323 = vpop.f32.mrf.mxu0
        %v3324 = vadd.f32 0.0, %v3323
        %v3325 = vpop.f32.mrf.mxu0
        %v3326 = vadd.f32 0.0, %v3325
        %3327 = vdwg.mxu0
        %v3328 = vadd.f32 %v2407, %v3324
        %v3329 = vadd.f32 %v2408, %v3326
        %v3331 = vperm.slane %v1482, 0
        %v3333 = vadd.f32 %v3328, %v3331
        %v3334 = vadd.f32 %v3329, %v3331
        %3335 = vadd.xlane.f32.xlu0 %v3333
        %v3336 = vpop.xlane.xlu0 %3335
        %3337 = vadd.xlane.f32.xlu0 %v3334
        %v3338 = vpop.xlane.xlu0 %3337
        %v3339 = vmul.f32 %v3336, %v2362
        %v3340 = vmul.f32 %v3338, %v2362
        %v3341 = vsub.f32 %v3333, %v3339
        %v3342 = vsub.f32 %v3334, %v3340
        %v3343 = vmul.f32 %v3341, %v3341
        %v3344 = vmul.f32 %v3342, %v3342
        %3345 = vadd.xlane.f32.xlu0 %v3343
        %v3346 = vpop.xlane.xlu0 %3345
        %3347 = vadd.xlane.f32.xlu0 %v3344
        %v3348 = vpop.xlane.xlu0 %3347
        %v3349 = vmul.f32 %v3346, %v2362
        %v3350 = vmul.f32 %v3348, %v2362
        %v3351 = vadd.f32 %v3349, 1e-05
        %v3352 = vadd.f32 %v3350, 1e-05
        %v3353 = vrsqrt.pop %v3351
        %v3354 = vmul.f32 %v3353, %v3351
        %v3355 = vmul.f32 %v3354, %v3353
        %v3356 = vmul.f32 0.5, %v3355
        %v3357 = vsub.f32 1.5, %v3356
        %v3358 = vmul.f32 %v3353, %v3357
        %vm3359 = vweird.f32 %v3351
        %vm3360 = vweird.f32 %v3353
        %vm3361 = vmor %vm3359, %vm3360
        %v3362 = vsel %vm3361, %v3353, %v3358
        %v3363 = vrsqrt.pop %v3352
        %v3364 = vmul.f32 %v3363, %v3352
        %v3365 = vmul.f32 %v3364, %v3363
        %v3366 = vmul.f32 0.5, %v3365
        %v3367 = vsub.f32 1.5, %v3366
        %v3368 = vmul.f32 %v3363, %v3367
        %vm3369 = vweird.f32 %v3352
        %vm3370 = vweird.f32 %v3363
        %vm3371 = vmor %vm3369, %vm3370
        %v3372 = vsel %vm3371, %v3363, %v3368
        %v3373 = vmul.f32 %v3341, %v3362
        %v3374 = vmul.f32 %v3342, %v3372
        %v3376 = vperm.slane %v1483, 0
        %v3378 = vmul.f32 %v3373, %v3376
        %v3379 = vmul.f32 %v3374, %v3376
        %v3381 = vperm.slane %v1484, 0
        %v3383 = vadd.f32 %v3378, %v3381
        %v3384 = vadd.f32 %v3379, %v3381
        %v3385 = vpack.c.bf16 %v3384, %v3383
        %v3387 = vperm.slane %v1501, 0
        %v3388 = vperm.slane %v1501, 1
        %v3407 = vunpack.c.l.b16 %v1485
        %v3408 = vunpack.c.h.b16 %v1485
        %v3409 = vunpack.c.l.b16 %v1486
        %v3410 = vunpack.c.h.b16 %v1486
        %v3411 = vunpack.c.l.b16 %v1487
        %v3412 = vunpack.c.h.b16 %v1487
        %v3413 = vunpack.c.l.b16 %v1488
        %v3414 = vunpack.c.h.b16 %v1488
        %v3415 = vunpack.c.l.b16 %v1489
        %v3416 = vunpack.c.h.b16 %v1489
        %v3417 = vunpack.c.l.b16 %v1490
        %v3418 = vunpack.c.h.b16 %v1490
        %v3419 = vunpack.c.l.b16 %v1491
        %v3420 = vunpack.c.h.b16 %v1491
        %v3421 = vunpack.c.l.b16 %v1492
        %v3422 = vunpack.c.h.b16 %v1492
        %v3423 = vunpack.c.l.b16 %v1493
        %v3424 = vunpack.c.h.b16 %v1493
        %v3425 = vunpack.c.l.b16 %v1494
        %v3426 = vunpack.c.h.b16 %v1494
        %v3427 = vunpack.c.l.b16 %v1495
        %v3428 = vunpack.c.h.b16 %v1495
        %v3429 = vunpack.c.l.b16 %v1496
        %v3430 = vunpack.c.h.b16 %v1496
        %v3431 = vunpack.c.l.b16 %v1497
        %v3432 = vunpack.c.h.b16 %v1497
        %v3433 = vunpack.c.l.b16 %v1498
        %v3434 = vunpack.c.h.b16 %v1498
        %v3435 = vunpack.c.l.b16 %v1499
        %v3436 = vunpack.c.h.b16 %v1499
        %v3437 = vunpack.c.l.b16 %v1500
        %v3438 = vunpack.c.h.b16 %v1500
        %v3439 = vpack.c.b16 %v3409, %v3407
        %v3440 = vpack.c.b16 %v3410, %v3408
        %v3441 = vpack.c.b16 %v3413, %v3411
        %v3442 = vpack.c.b16 %v3414, %v3412
        %v3443 = vpack.c.b16 %v3417, %v3415
        %v3444 = vpack.c.b16 %v3418, %v3416
        %v3445 = vpack.c.b16 %v3421, %v3419
        %v3446 = vpack.c.b16 %v3422, %v3420
        %v3447 = vpack.c.b16 %v3425, %v3423
        %v3448 = vpack.c.b16 %v3426, %v3424
        %v3449 = vpack.c.b16 %v3429, %v3427
        %v3450 = vpack.c.b16 %v3430, %v3428
        %v3451 = vpack.c.b16 %v3433, %v3431
        %v3452 = vpack.c.b16 %v3434, %v3432
        %v3453 = vpack.c.b16 %v3437, %v3435
        %v3454 = vpack.c.b16 %v3438, %v3436
        %3471 = vmatpush.bf16.msra.mxu0 %v3453
        %3472 = vmatpush.bf16.msra.mxu0 %v3451
        %3473 = vmatpush.bf16.msra.mxu0 %v3449
        %3474 = vmatpush.bf16.msra.mxu0 %v3447
        %3475 = vmatpush.bf16.msra.mxu0 %v3445
        %3476 = vmatpush.bf16.msra.mxu0 %v3443
        %3477 = vmatpush.bf16.msra.mxu0 %v3441
        %3478 = vmatpush.bf16.msra.mxu0 %v3439
        %3479 = vmatmul.bf16.gmra.mxu0 %v3385
        %v3480 = vpop.f32.mrf.mxu0
        %v3481 = vadd.f32 %v3387, %v3480
        %v3482 = vpop.f32.mrf.mxu0
        %v3483 = vadd.f32 %v3387, %v3482
        %3484 = vdwg.mxu0
        %3485 = vmatpush.bf16.msra.mxu0 %v3454
        %3486 = vmatpush.bf16.msra.mxu0 %v3452
        %3487 = vmatpush.bf16.msra.mxu0 %v3450
        %3488 = vmatpush.bf16.msra.mxu0 %v3448
        %3489 = vmatpush.bf16.msra.mxu0 %v3446
        %3490 = vmatpush.bf16.msra.mxu0 %v3444
        %3491 = vmatpush.bf16.msra.mxu0 %v3442
        %3492 = vmatpush.bf16.msra.mxu0 %v3440
        %3493 = vmatmul.bf16.gmra.mxu0 %v3385
        %v3494 = vpop.f32.mrf.mxu0
        %v3495 = vadd.f32 %v3388, %v3494
        %v3496 = vpop.f32.mrf.mxu0
        %v3497 = vadd.f32 %v3388, %v3496
        %3498 = vdwg.mxu0
        %v3499 = vmax.f32 %v3481, 0.0
        %v3500 = vmax.f32 %v3495, 0.0
        %v3501 = vmax.f32 %v3483, 0.0
        %v3502 = vmax.f32 %v3497, 0.0
        %v3503 = vpack.c.bf16 %v3501, %v3499
        %v3504 = vpack.c.bf16 %v3502, %v3500
        %v3506 = vperm.slane %v1534, 0
        %v3540 = vunpack.c.l.b16 %v1502
        %v3541 = vunpack.c.l.b16 %v1503
        %v3542 = vunpack.c.l.b16 %v1504
        %v3543 = vunpack.c.l.b16 %v1505
        %v3544 = vunpack.c.l.b16 %v1506
        %v3545 = vunpack.c.l.b16 %v1507
        %v3546 = vunpack.c.l.b16 %v1508
        %v3547 = vunpack.c.l.b16 %v1509
        %v3548 = vunpack.c.l.b16 %v1510
        %v3549 = vunpack.c.l.b16 %v1511
        %v3550 = vunpack.c.l.b16 %v1512
        %v3551 = vunpack.c.l.b16 %v1513
        %v3552 = vunpack.c.l.b16 %v1514
        %v3553 = vunpack.c.l.b16 %v1515
        %v3554 = vunpack.c.l.b16 %v1516
        %v3555 = vunpack.c.l.b16 %v1517
        %v3556 = vunpack.c.l.b16 %v1518
        %v3557 = vunpack.c.l.b16 %v1519
        %v3558 = vunpack.c.l.b16 %v1520
        %v3559 = vunpack.c.l.b16 %v1521
        %v3560 = vunpack.c.l.b16 %v1522
        %v3561 = vunpack.c.l.b16 %v1523
        %v3562 = vunpack.c.l.b16 %v1524
        %v3563 = vunpack.c.l.b16 %v1525
        %v3564 = vunpack.c.l.b16 %v1526
        %v3565 = vunpack.c.l.b16 %v1527
        %v3566 = vunpack.c.l.b16 %v1528
        %v3567 = vunpack.c.l.b16 %v1529
        %v3568 = vunpack.c.l.b16 %v1530
        %v3569 = vunpack.c.l.b16 %v1531
        %v3570 = vunpack.c.l.b16 %v1532
        %v3571 = vunpack.c.l.b16 %v1533
        %v3572 = vpack.c.b16 %v3541, %v3540
        %v3573 = vpack.c.b16 %v3543, %v3542
        %v3574 = vpack.c.b16 %v3545, %v3544
        %v3575 = vpack.c.b16 %v3547, %v3546
        %v3576 = vpack.c.b16 %v3549, %v3548
        %v3577 = vpack.c.b16 %v3551, %v3550
        %v3578 = vpack.c.b16 %v3553, %v3552
        %v3579 = vpack.c.b16 %v3555, %v3554
        %v3580 = vpack.c.b16 %v3557, %v3556
        %v3581 = vpack.c.b16 %v3559, %v3558
        %v3582 = vpack.c.b16 %v3561, %v3560
        %v3583 = vpack.c.b16 %v3563, %v3562
        %v3584 = vpack.c.b16 %v3565, %v3564
        %v3585 = vpack.c.b16 %v3567, %v3566
        %v3586 = vpack.c.b16 %v3569, %v3568
        %v3587 = vpack.c.b16 %v3571, %v3570
        %3604 = vmatpush.bf16.msra.mxu0 %v3579
        %3605 = vmatpush.bf16.msra.mxu0 %v3578
        %3606 = vmatpush.bf16.msra.mxu0 %v3577
        %3607 = vmatpush.bf16.msra.mxu0 %v3576
        %3608 = vmatpush.bf16.msra.mxu0 %v3575
        %3609 = vmatpush.bf16.msra.mxu0 %v3574
        %3610 = vmatpush.bf16.msra.mxu0 %v3573
        %3611 = vmatpush.bf16.msra.mxu0 %v3572
        %3612 = vmatmul.bf16.gmra.mxu0 %v3503
        %v3613 = vpop.f32.mrf.mxu0
        %v3614 = vadd.f32 %v3506, %v3613
        %v3615 = vpop.f32.mrf.mxu0
        %v3616 = vadd.f32 %v3506, %v3615
        %3617 = vdwg.mxu0
        %3618 = vmatpush.bf16.msra.mxu0 %v3587
        %3619 = vmatpush.bf16.msra.mxu0 %v3586
        %3620 = vmatpush.bf16.msra.mxu0 %v3585
        %3621 = vmatpush.bf16.msra.mxu0 %v3584
        %3622 = vmatpush.bf16.msra.mxu0 %v3583
        %3623 = vmatpush.bf16.msra.mxu0 %v3582
        %3624 = vmatpush.bf16.msra.mxu0 %v3581
        %3625 = vmatpush.bf16.msra.mxu0 %v3580
        %3626 = vmatmul.bf16.gmra.mxu0 %v3504
        %v3627 = vpop.f32.mrf.mxu0
        %v3628 = vadd.f32 %v3614, %v3627
        %v3629 = vpop.f32.mrf.mxu0
        %v3630 = vadd.f32 %v3616, %v3629
        %3631 = vdwg.mxu0
        %v3632 = vadd.f32 %v3383, %v3628
        %v3633 = vadd.f32 %v3384, %v3630
        %3634 = vadd.xlane.f32.xlu0 %v3632
        %v3635 = vpop.xlane.xlu0 %3634
        %3636 = vadd.xlane.f32.xlu0 %v3633
        %v3637 = vpop.xlane.xlu0 %3636
        %v3638 = vmul.f32 %v3635, %v2362
        %v3639 = vmul.f32 %v3637, %v2362
        %v3640 = vsub.f32 %v3632, %v3638
        %v3641 = vsub.f32 %v3633, %v3639
        %v3642 = vmul.f32 %v3640, %v3640
        %v3643 = vmul.f32 %v3641, %v3641
        %3644 = vadd.xlane.f32.xlu0 %v3642
        %v3645 = vpop.xlane.xlu0 %3644
        %3646 = vadd.xlane.f32.xlu0 %v3643
        %v3647 = vpop.xlane.xlu0 %3646
        %v3648 = vmul.f32 %v3645, %v2362
        %v3649 = vmul.f32 %v3647, %v2362
        %v3650 = vadd.f32 %v3648, 1e-05
        %v3651 = vadd.f32 %v3649, 1e-05
        %v3652 = vrsqrt.pop %v3650
        %v3653 = vmul.f32 %v3652, %v3650
        %v3654 = vmul.f32 %v3653, %v3652
        %v3655 = vmul.f32 0.5, %v3654
        %v3656 = vsub.f32 1.5, %v3655
        %v3657 = vmul.f32 %v3652, %v3656
        %vm3658 = vweird.f32 %v3650
        %vm3659 = vweird.f32 %v3652
        %vm3660 = vmor %vm3658, %vm3659
        %v3661 = vsel %vm3660, %v3652, %v3657
        %v3662 = vrsqrt.pop %v3651
        %v3663 = vmul.f32 %v3662, %v3651
        %v3664 = vmul.f32 %v3663, %v3662
        %v3665 = vmul.f32 0.5, %v3664
        %v3666 = vsub.f32 1.5, %v3665
        %v3667 = vmul.f32 %v3662, %v3666
        %vm3668 = vweird.f32 %v3651
        %vm3669 = vweird.f32 %v3662
        %vm3670 = vmor %vm3668, %vm3669
        %v3671 = vsel %vm3670, %v3662, %v3667
        %v3672 = vmul.f32 %v3640, %v3661
        %v3673 = vmul.f32 %v3641, %v3671
        %v3675 = vperm.slane %v1535, 0
        %v3677 = vmul.f32 %v3672, %v3675
        %v3678 = vmul.f32 %v3673, %v3675
        %v3680 = vperm.slane %v1536, 0
        %v3682 = vadd.f32 %v3677, %v3680
        %v3683 = vadd.f32 %v3678, %v3680
        %3684 = vst [vmem:[%s1290] sm:$0xff] %v3682
        %3685 = vst [vmem:[%s1290 + $0x8] sm:$0xff] %v3683
        %v3686 = vpack.c.bf16 %v3683, %v3682
        %v3687 = vld [vmem:[%s1131] sm:$0xf]
        %v3688 = vld [vmem:[%s1131 + $0x4] sm:$0xf]
        %v3689 = vld [vmem:[%s1131 + $0x8] sm:$0xf]
        %v3690 = vld [vmem:[%s1131 + $0xc] sm:$0xf]
        %v3691 = vld [vmem:[%s1131 + $0x10] sm:$0xf]
        %v3692 = vld [vmem:[%s1131 + $0x14] sm:$0xf]
        %v3693 = vld [vmem:[%s1131 + $0x18] sm:$0xf]
        %v3694 = vld [vmem:[%s1131 + $0x1c] sm:$0xf]
        %v3695 = vld [vmem:[%s1131 + $0x20] sm:$0xf]
        %v3696 = vld [vmem:[%s1131 + $0x24] sm:$0xf]
        %v3697 = vld [vmem:[%s1131 + $0x28] sm:$0xf]
        %v3698 = vld [vmem:[%s1131 + $0x2c] sm:$0xf]
        %v3699 = vld [vmem:[%s1131 + $0x30] sm:$0xf]
        %v3700 = vld [vmem:[%s1131 + $0x34] sm:$0xf]
        %v3701 = vld [vmem:[%s1131 + $0x38] sm:$0xf]
        %v3702 = vld [vmem:[%s1131 + $0x3c] sm:$0xf]
        %v3703 = vld [vmem:[%s1369] sm:$0x1]
        %v3705 = vperm.slane %v3703, 0
        %v3723 = vunpack.c.l.b16 %v3687
        %v3724 = vunpack.c.l.b16 %v3688
        %v3725 = vunpack.c.l.b16 %v3689
        %v3726 = vunpack.c.l.b16 %v3690
        %v3727 = vunpack.c.l.b16 %v3691
        %v3728 = vunpack.c.l.b16 %v3692
        %v3729 = vunpack.c.l.b16 %v3693
        %v3730 = vunpack.c.l.b16 %v3694
        %v3731 = vunpack.c.l.b16 %v3695
        %v3732 = vunpack.c.l.b16 %v3696
        %v3733 = vunpack.c.l.b16 %v3697
        %v3734 = vunpack.c.l.b16 %v3698
        %v3735 = vunpack.c.l.b16 %v3699
        %v3736 = vunpack.c.l.b16 %v3700
        %v3737 = vunpack.c.l.b16 %v3701
        %v3738 = vunpack.c.l.b16 %v3702
        %v3739 = vpack.c.b16 %v3724, %v3723
        %v3740 = vpack.c.b16 %v3726, %v3725
        %v3741 = vpack.c.b16 %v3728, %v3727
        %v3742 = vpack.c.b16 %v3730, %v3729
        %v3743 = vpack.c.b16 %v3732, %v3731
        %v3744 = vpack.c.b16 %v3734, %v3733
        %v3745 = vpack.c.b16 %v3736, %v3735
        %v3746 = vpack.c.b16 %v3738, %v3737
        %3755 = vmatpush.bf16.msra.mxu0 %v3746
        %3756 = vmatpush.bf16.msra.mxu0 %v3745
        %3757 = vmatpush.bf16.msra.mxu0 %v3744
        %3758 = vmatpush.bf16.msra.mxu0 %v3743
        %3759 = vmatpush.bf16.msra.mxu0 %v3742
        %3760 = vmatpush.bf16.msra.mxu0 %v3741
        %3761 = vmatpush.bf16.msra.mxu0 %v3740
        %3762 = vmatpush.bf16.msra.mxu0 %v3739
        %3763 = vmatmul.bf16.gmra.mxu0 %v3686
        %v3764 = vpop.f32.mrf.mxu0
        %v3765 = vadd.f32 %v3705, %v3764
        %v3766 = vpop.f32.mrf.mxu0
        %v3767 = vadd.f32 %v3705, %v3766
        %3768 = vdwg.mxu0
        %3769 = vst [vmem:[%s1374] sm:$0xff] %v3765
        %3770 = vst [vmem:[%s1374 + $0x8] sm:$0xff] %v3767
        %3771 = vst.msk [vmem:[%s1379] sm:$0xff] %vm1732, %v2928
        %3772 = vst.msk [vmem:[%s1379 + $0x8] sm:$0xff] %vm1732, %v3264
        %s3773 = sand.u32 %s729, 1
        %s3774 = scalar_lea.sflag [#allocation4], %s3773
        %s3775 = sand.u32 %s729, 1
        %s3776 = smul.addr %s3775, 16
        %s3777 = scalar_lea.vmem [#allocation13], %s3776
        %p3778 = scmp.lt.s32.totalorder %s55, 1
        %s3779 = scalar_select %p3778, %s55, 1
        %s3780 = smul.addr %s3779, 2
        %s3781 = smul.addr %s3780, 8
        %s3782 = scalar_lea.vmem %s27, %s3781
        %p3783 = scmp.lt.s32.totalorder %s55, 1
        %s3784 = scalar_select %p3783, %s55, 1
        %s3785 = smul.addr %s3784, 2
        %s3786 = smul.addr %s3785, 8
        %s3787 = scalar_lea.vmem %s28, %s3786
        // Predicated region
        $region149: #{seq2seq_forward.3} parent=123 // pred_check
          %p3788 = pneg %p739
        $region150: #{seq2seq_forward.3} parent=123 // pred_check_branch
          %3790 = sbr.rel (%p3788) target = $region152
        $region151: #{seq2seq_forward.3} parent=123 // pred_region
          %3792 = vsyncadd %s3774, 0
          %s3793 = smul.addr %s55, 2
          %s3794 = smul.addr %s3793, 8
          %s3795 = scalar_lea.hbm %s26, %s3794
          %s3796 = sshll.u32 %s3777, 4
          %s3797 = int_to_ptr.vmem [resolvable:$true] %s3796
          %s3798 = sshll.u32 %s3795, 4
          %s3799 = int_to_ptr.hbm [resolvable:$true] %s3798
          %3804 = dma.vmem_to_hbm [thread:$0]  %s3797, 256, %s3799, %s3774, 128, 128, 8
        $region152: #{seq2seq_forward.3} parent=123 // pred_fallthru
          _
        // Predicated region
        $region153: #{seq2seq_forward.3} parent=123 // pred_check
          %p3805 = pneg %p765
        $region154: #{seq2seq_forward.3} parent=123 // pred_check_branch
          %3807 = sbr.rel (%p3805) target = $region156
        $region155: #{seq2seq_forward.3} parent=123 // pred_region
          _
        $region156: #{seq2seq_forward.3} parent=123 // pred_fallthru
          _
        // Predicated region
        $region157: #{seq2seq_forward.3} parent=123 // pred_check
          %p3808 = pneg %p791
        $region158: #{seq2seq_forward.3} parent=123 // pred_check_branch
          %3810 = sbr.rel (%p3808) target = $region160
        $region159: #{seq2seq_forward.3} parent=123 // pred_region
          _
        $region160: #{seq2seq_forward.3} parent=123 // pred_fallthru
          _
      $region124: #{seq2seq_forward.3} parent=5 // pred_fallthru
        _
      %p3811 = scmp.le.s32.totalorder 2, %s50
      // Predicated region
      $region161: #{seq2seq_forward.3} parent=5 // pred_check
        %p3812 = pneg %p3811
      $region162: #{seq2seq_forward.3} parent=5 // pred_check_branch
        %3814 = sbr.rel (%p3812) target = $region164
      $region163: #{seq2seq_forward.3} parent=5 // pred_region
        %s3815 = ssub.s32 %s50, 2
        // Predicated region
        $region165: #{seq2seq_forward.3} parent=163 // pred_check
          %p3816 = pneg %p745
        $region166: #{seq2seq_forward.3} parent=163 // pred_check_branch
          %3818 = sbr.rel (%p3816) target = $region168
        $region167: #{seq2seq_forward.3} parent=163 // pred_region
          %s3819 = sand.u32 %s730, 1
          %s3820 = scalar_lea.sflag [#allocation4], %s3819
          %s3821 = sand.u32 %s730, 1
          %s3822 = smul.addr %s3821, 16
          %s3823 = scalar_lea.vmem [#allocation13], %s3822
          %3825 = dma.done %s3820, 256
        $region168: #{seq2seq_forward.3} parent=163 // pred_fallthru
          _
        // Predicated region
        $region169: #{seq2seq_forward.3} parent=163 // pred_check
          %p3826 = pneg %p771
        $region170: #{seq2seq_forward.3} parent=163 // pred_check_branch
          %3828 = sbr.rel (%p3826) target = $region172
        $region171: #{seq2seq_forward.3} parent=163 // pred_region
          %p3829 = scmp.lt.s32.totalorder %s56, 1
          %s3830 = scalar_select %p3829, %s56, 1
          %s3831 = smul.addr %s3830, 2
          %s3832 = smul.addr %s3831, 8
          %s3833 = scalar_lea.vmem %s27, %s3832
        $region172: #{seq2seq_forward.3} parent=163 // pred_fallthru
          _
        // Predicated region
        $region173: #{seq2seq_forward.3} parent=163 // pred_check
          %p3834 = pneg %p797
        $region174: #{seq2seq_forward.3} parent=163 // pred_check_branch
          %3836 = sbr.rel (%p3834) target = $region176
        $region175: #{seq2seq_forward.3} parent=163 // pred_region
          %p3837 = scmp.lt.s32.totalorder %s56, 1
          %s3838 = scalar_select %p3837, %s56, 1
          %s3839 = smul.addr %s3838, 2
          %s3840 = smul.addr %s3839, 8
          %s3841 = scalar_lea.vmem %s28, %s3840
        $region176: #{seq2seq_forward.3} parent=163 // pred_fallthru
          _
      $region164: #{seq2seq_forward.3} parent=5 // pred_fallthru
        _
    $region6: #{seq2seq_forward.3} parent=1 // loop_footer
      %s54 = sadd.s32 1, %s50
    $region7: #{seq2seq_forward.3} parent=1 // loop_footer_branch
      %49 = sbr.rel target = $region3
    $region8: #{seq2seq_forward.3} parent=1 // loop_exit
      _
    %3842 = vsyncpa [#allocation3], 1
    %s3843 = scalar_lea.sflag [#allocation3], 1
    %3844 = vsyncpa %s3843, 1
    %3845 = vsyncpa [#allocation6], 1
    %s3846 = scalar_lea.sflag [#allocation6], 1
    %3847 = vsyncpa %s3846, 1
    %3848 = vsyncpa [#allocation9], 1
    %s3849 = scalar_lea.sflag [#allocation9], 1
    %3850 = vsyncpa %s3849, 1
    %3851 = vsyncpa [#allocation12], 1
    %s3852 = scalar_lea.sflag [#allocation12], 1
    %3853 = vsyncpa %s3852, 1
    %3854 = vsyncpa [#allocation4], 1
    %s3855 = scalar_lea.sflag [#allocation4], 1
    %3856 = vsyncpa %s3855, 1

</llo_original>
